<compile_context>
chip_gen: v5e
topology: v5e:2x2
jax: 0.10.0
libtpu: 0.0.40
codegen_flags: <defaults>
</compile_context>

<pallas_src>
import functools

import jax
import jax.numpy as jnp
from jax import lax
from jax.experimental import pallas as pl
from jax.experimental.pallas import tpu as pltpu

EPS = 1e-5
LANE = 128


def _round_up(x, m):
    return (x + m - 1) // m * m


def _bf16_round(x):
    # Inputs/weights are made bf16-representable so the in-kernel bf16 casts are lossless.
    return x.astype(jnp.bfloat16).astype(jnp.float32)


def _bn_train(h, gamma, beta):
    # PyTorch training-mode BatchNorm2d over rows (= N*H*W), biased variance, f32 math.
    # One-pass statistics: var = E[x^2] - E[x]^2, clamped at 0 for numerical safety.
    mean = jnp.mean(h, axis=0, keepdims=True)
    msq = jnp.mean(h * h, axis=0, keepdims=True)
    var = jnp.maximum(msq - mean * mean, 0.0)
    return (h - mean) * lax.rsqrt(var + EPS) * gamma + beta


def bottleneck_kernel(stride, N, Hp, Wp, Cinp, Cp, H2, W2,
                      xpad_ref, w1_ref, b1_ref, g1_ref, be1_ref,
                      w2_ref, b2_ref, g2_ref, be2_ref,
                      wd_ref, bd_ref,
                      out_ref, h1p_ref, im2col_ref):
    # xpad_ref  : (N, Hp, Wp, Cinp) bf16 — input, spatially zero-padded by 1 and
    #             channel-padded to a 128-lane multiple (shared by cn1 and downsample).
    # w1/wd     : (Cinp, Cp) bf16      w2_ref: (9*Cp, Cp) bf16 (HWIO, channel-padded)
    # b*/g*/be* : (1, Cp) f32
    # h1p_ref   : (N, Hp+2, Wp+2, Cp) f32 scratch — h1 zero-padded by 1 for the 3x3 conv.
    # im2col_ref: (N, H2, W2, 9*Cp) bf16 scratch — the 9 conv taps concatenated on lanes.
    x2d = xpad_ref[...].reshape(N * Hp * Wp, Cinp)           # bf16, lane-dense rows

    # ---- cn1: 1x1 conv == one bf16 matmul (f32 accumulate), then bn1 + relu in f32 ----
    h1 = jnp.dot(x2d, w1_ref[...], preferred_element_type=jnp.float32) + b1_ref[...]
    h1 = jnp.maximum(_bn_train(h1, g1_ref[...], be1_ref[...]), 0.0)

    # ---- zero-pad h1 by 1 for cn2: zero only the 1-px border, write interior once ----
    Hs, Ws = Hp + 2, Wp + 2
    h1p_ref[:, 0:1, :, :] = jnp.zeros((N, 1, Ws, Cp), jnp.float32)
    h1p_ref[:, Hs - 1:Hs, :, :] = jnp.zeros((N, 1, Ws, Cp), jnp.float32)
    h1p_ref[:, 1:Hp + 1, 0:1, :] = jnp.zeros((N, Hp, 1, Cp), jnp.float32)
    h1p_ref[:, 1:Hp + 1, Ws - 1:Ws, :] = jnp.zeros((N, Hp, 1, Cp), jnp.float32)
    h1p_ref[:, 1:Hp + 1, 1:Wp + 1, :] = h1.reshape(N, Hp, Wp, Cp)
    h1p = h1p_ref[...]

    # ---- cn2: 3x3 conv (stride=stride, padding=1) as ONE im2col matmul, K = 9*Cp ----
    for ky in range(3):
        for kx in range(3):
            if stride == 1:
                tap = h1p[:, ky:ky + H2, kx:kx + W2, :]
            else:
                # TODO(synk): stride>1 path uses a strided in-VMEM slice; it is not
                # exercised below — a strided-DMA / index_map form would be cheaper.
                tap = lax.slice(
                    h1p, (0, ky, kx, 0),
                    (N, ky + stride * (H2 - 1) + 1, kx + stride * (W2 - 1) + 1, Cp),
                    (1, stride, stride, 1))
            c0 = (ky * 3 + kx) * Cp                    # lane offset, multiple of 128
            im2col_ref[:, :, :, c0:c0 + Cp] = tap.astype(jnp.bfloat16)
    patches = im2col_ref[...].reshape(N * H2 * W2, 9 * Cp)
    h2 = jnp.dot(patches, w2_ref[...], preferred_element_type=jnp.float32) + b2_ref[...]
    h2 = _bn_train(h2, g2_ref[...], be2_ref[...])

    # ---- downsample(identity): 1x1 conv, stride=stride, padding=1 on the original x ----
    if stride == 1:
        idn_in = x2d
    else:
        xsel = lax.slice(xpad_ref[...], (0, 0, 0, 0),
                         (N, stride * (H2 - 1) + 1, stride * (W2 - 1) + 1, Cinp),
                         (1, stride, stride, 1))
        idn_in = xsel.reshape(N * H2 * W2, Cinp)
    identity = jnp.dot(idn_in, wd_ref[...],
                       preferred_element_type=jnp.float32) + bd_ref[...]

    # ---- residual add + relu, lane-dense (128-wide) store ----
    out = jnp.maximum(h2 + identity, 0.0)
    out_ref[...] = out.reshape(N, H2, W2, Cp).astype(out_ref.dtype)


def bottleneck_forward(x_nchw, params, stride=1):
    """BottleNeck forward pass. Input/output are NCHW f32 (PyTorch convention)."""
    N, Cin, H, W = x_nchw.shape
    C = params["w1"].shape[1]
    Cinp = _round_up(Cin, LANE)
    Cp = _round_up(C, LANE)

    # Glue (bf16): NCHW -> NHWC, zero-pad spatially by 1 (shared by cn1 & downsample)
    # and zero-pad channels up to the 128-lane boundary.
    x_nhwc = jnp.transpose(x_nchw, (0, 2, 3, 1)).astype(jnp.bfloat16)
    xpad = jnp.pad(x_nhwc, ((0, 0), (1, 1), (1, 1), (0, Cinp - Cin)))
    Hp, Wp = H + 2, W + 2
    H2 = (Hp + 2 - 3) // stride + 1
    W2 = (Wp + 2 - 3) // stride + 1

    def pad_mat(w, rows, cols):
        return jnp.pad(w, ((0, rows - w.shape[0]), (0, cols - w.shape[1])))

    def pad_vec(v):
        return jnp.pad(v, ((0, 0), (0, Cp - v.shape[1]))).astype(jnp.float32)

    w1 = pad_mat(params["w1"], Cinp, Cp).astype(jnp.bfloat16)
    wd = pad_mat(params["wd"], Cinp, Cp).astype(jnp.bfloat16)
    w2 = jnp.pad(params["w2"], ((0, 0), (0, 0), (0, Cp - C), (0, Cp - C)))
    w2 = w2.reshape(9 * Cp, Cp).astype(jnp.bfloat16)
    b1, g1, be1 = pad_vec(params["b1"]), pad_vec(params["g1"]), pad_vec(params["be1"])
    b2, g2, be2 = pad_vec(params["b2"]), pad_vec(params["g2"]), pad_vec(params["be2"])
    bd = pad_vec(params["bd"])

    kernel = functools.partial(bottleneck_kernel, stride, N, Hp, Wp, Cinp, Cp, H2, W2)
    vmem = pl.BlockSpec(memory_space=pltpu.MemorySpace.VMEM)

    flops = 2 * (N * Hp * Wp) * Cinp * Cp            # cn1
    flops += 2 * (N * H2 * W2) * (9 * Cp) * Cp       # cn2 as a single im2col matmul
    flops += 2 * (N * H2 * W2) * Cinp * Cp           # downsample
    operands = (xpad, w1, b1, g1, be1, w2, b2, g2, be2, wd, bd)
    bytes_accessed = sum(int(a.size) * a.dtype.itemsize for a in operands)
    bytes_accessed += N * H2 * W2 * Cp * 4           # output

    out_nhwc = pl.pallas_call(
        kernel,
        out_shape=jax.ShapeDtypeStruct((N, H2, W2, Cp), jnp.float32),
        in_specs=[vmem] * 11,
        out_specs=vmem,
        scratch_shapes=[
            pltpu.VMEM((N, Hp + 2, Wp + 2, Cp), jnp.float32),   # zero-padded h1
            pltpu.VMEM((N, H2, W2, 9 * Cp), jnp.bfloat16),      # im2col patches
        ],
        compiler_params=pltpu.CompilerParams(vmem_limit_bytes=48 * 1024 * 1024),
        cost_estimate=pl.CostEstimate(flops=flops, transcendentals=2 * Cp,
                                      bytes_accessed=bytes_accessed),
    )(*operands)

    # Strip channel padding and return to NCHW.
    return jnp.transpose(out_nhwc[:, :, :, :C], (0, 3, 1, 2)).astype(jnp.float32)


# ---------------------------- pure-JAX reference ----------------------------
def _bn_ref(y, g, b):
    mean = y.mean(axis=(0, 2, 3), keepdims=True)
    var = ((y - mean) ** 2).mean(axis=(0, 2, 3), keepdims=True)
    return (y - mean) * lax.rsqrt(var + EPS) * g[None, :, None, None] + b[None, :, None, None]


def bottleneck_reference(x, params, stride=1):
    Cin = x.shape[1]
    C = params["w1"].shape[1]
    dn = ("NCHW", "HWIO", "NCHW")
    hp = lax.Precision.HIGHEST

    y = lax.conv_general_dilated(x, params["w1"].reshape(1, 1, Cin, C), (1, 1),
                                 ((1, 1), (1, 1)), dimension_numbers=dn, precision=hp)
    y = y + params["b1"].reshape(1, C, 1, 1)
    y = _bn_ref(y, params["g1"].ravel(), params["be1"].ravel())
    y = jnp.maximum(y, 0.0)

    y = lax.conv_general_dilated(y, params["w2"], (stride, stride),
                                 ((1, 1), (1, 1)), dimension_numbers=dn, precision=hp)
    y = y + params["b2"].reshape(1, C, 1, 1)
    y = _bn_ref(y, params["g2"].ravel(), params["be2"].ravel())

    idn = lax.conv_general_dilated(x, params["wd"].reshape(1, 1, Cin, C), (stride, stride),
                                   ((1, 1), (1, 1)), dimension_numbers=dn, precision=hp)
    idn = idn + params["bd"].reshape(1, C, 1, 1)
    return jnp.maximum(y + idn, 0.0)


def init_params(key, in_channels, out_channels):
    ks = jax.random.split(key, 6)
    C, Cin = out_channels, in_channels
    rnd = lambda k, shape, s: _bf16_round(jax.random.normal(k, shape, jnp.float32) * s)
    return {
        "w1": rnd(ks[0], (Cin, C), 0.1),          # cn1 (1x1)
        "b1": rnd(ks[1], (1, C), 0.1),
        "g1": jnp.ones((1, C), jnp.float32),      # bn1 (PyTorch defaults)
        "be1": jnp.zeros((1, C), jnp.float32),
        "w2": rnd(ks[2], (3, 3, C, C), 0.1),      # cn2 (3x3, HWIO)
        "b2": rnd(ks[3], (1, C), 0.1),
        "g2": jnp.ones((1, C), jnp.float32),      # bn2 (PyTorch defaults)
        "be2": jnp.zeros((1, C), jnp.float32),
        "wd": rnd(ks[4], (Cin, C), 0.1),          # downsample (1x1)
        "bd": rnd(ks[5], (1, C), 0.1),
    }


if __name__ == "__main__":
    N, Cin, H, W = 2, 16, 14, 14   # padded spatial -> 16x16 (sublane friendly)
    Cout = 32
    stride = 1                     # TODO(synk): stride>1 path implemented but not exercised here.

    key = jax.random.PRNGKey(0)
    kx, kp = jax.random.split(key)
    x = _bf16_round(jax.random.normal(kx, (N, Cin, H, W), jnp.float32))
    params = init_params(kp, Cin, Cout)

    fwd = jax.jit(functools.partial(bottleneck_forward, stride=stride))
    out = jax.block_until_ready(fwd(x, params))

    ref = bottleneck_reference(x, params, stride)
    assert out.shape == ref.shape, (out.shape, ref.shape)
    # Tolerance reflects bf16 MXU operands (per perf guidance); BN statistics and all
    # accumulation remain f32, and inputs/weights are bf16-representable by construction.
    if not jnp.allclose(out, ref, atol=2e-2, rtol=2e-2):
        raise AssertionError(
            f"kernel/reference mismatch, max abs err={float(jnp.max(jnp.abs(out - ref)))}")

    print("KERNEL_OK")
</pallas_src>

<mosaic_0001>
module attributes {stable_mosaic.version = 11 : i64} {
  func.func @bottleneck_kernel(%arg0: memref<2x16x16x128xbf16, #tpu.memory_space<vmem>>, %arg1: memref<128x128xbf16, #tpu.memory_space<vmem>>, %arg2: memref<1x128xf32, #tpu.memory_space<vmem>>, %arg3: memref<1x128xf32, #tpu.memory_space<vmem>>, %arg4: memref<1x128xf32, #tpu.memory_space<vmem>>, %arg5: memref<1152x128xbf16, #tpu.memory_space<vmem>>, %arg6: memref<1x128xf32, #tpu.memory_space<vmem>>, %arg7: memref<1x128xf32, #tpu.memory_space<vmem>>, %arg8: memref<1x128xf32, #tpu.memory_space<vmem>>, %arg9: memref<128x128xbf16, #tpu.memory_space<vmem>>, %arg10: memref<1x128xf32, #tpu.memory_space<vmem>>, %arg11: memref<2x16x16x128xf32, #tpu.memory_space<vmem>>, %arg12: memref<2x18x18x128xf32, #tpu.memory_space<vmem>>, %arg13: memref<2x16x16x1152xbf16, #tpu.memory_space<vmem>>) attributes {dimension_semantics = [], scalar_prefetch = 0 : i64, scratch_operands = 2 : i64, tpu.core_type = #tpu.core_type<tc>} {
    %c0 = arith.constant 0 : index
    %c0_0 = arith.constant 0 : index
    %c0_1 = arith.constant 0 : index
    %c0_2 = arith.constant 0 : index
    %0 = vector.load %arg0[%c0, %c0_0, %c0_1, %c0_2] : memref<2x16x16x128xbf16, #tpu.memory_space<vmem>>, vector<2x16x16x128xbf16>
    %1 = vector.shape_cast %0 : vector<2x16x16x128xbf16> to vector<512x128xbf16>
    %c0_3 = arith.constant 0 : index
    %c0_4 = arith.constant 0 : index
    %2 = vector.load %arg1[%c0_3, %c0_4] : memref<128x128xbf16, #tpu.memory_space<vmem>>, vector<128x128xbf16>
    %cst = arith.constant dense<0.000000e+00> : vector<512x128xf32>
    %3 = tpu.matmul %1, %2, %cst {dimension_numbers = #tpu.dot_dimension_numbers<[1], [0], [0], [1], [0, 0, 1, 1], [], []>} : vector<512x128xbf16>, vector<128x128xbf16>, vector<512x128xf32> -> vector<512x128xf32>
    %c0_5 = arith.constant 0 : index
    %c0_6 = arith.constant 0 : index
    %4 = vector.load %arg2[%c0_5, %c0_6] : memref<1x128xf32, #tpu.memory_space<vmem>>, vector<1x128xf32>
    %5 = vector.broadcast %4 : vector<1x128xf32> to vector<512x128xf32>
    %6 = arith.addf %3, %5 : vector<512x128xf32>
    %c0_7 = arith.constant 0 : index
    %c0_8 = arith.constant 0 : index
    %7 = vector.load %arg3[%c0_7, %c0_8] : memref<1x128xf32, #tpu.memory_space<vmem>>, vector<1x128xf32>
    %c0_9 = arith.constant 0 : index
    %c0_10 = arith.constant 0 : index
    %8 = vector.load %arg4[%c0_9, %c0_10] : memref<1x128xf32, #tpu.memory_space<vmem>>, vector<1x128xf32>
    %cst_11 = arith.constant dense<0.000000e+00> : vector<128xf32>
    %9 = vector.multi_reduction <add>, %6, %cst_11 [0] : vector<512x128xf32> to vector<128xf32>
    %10 = vector.shape_cast %9 : vector<128xf32> to vector<1x128xf32>
    %cst_12 = arith.constant 5.120000e+02 : f32
    %11 = vector.broadcast %cst_12 : f32 to vector<1x128xf32>
    %12 = arith.divf %10, %11 : vector<1x128xf32>
    %13 = arith.mulf %6, %6 : vector<512x128xf32>
    %cst_13 = arith.constant dense<0.000000e+00> : vector<128xf32>
    %14 = vector.multi_reduction <add>, %13, %cst_13 [0] : vector<512x128xf32> to vector<128xf32>
    %15 = vector.shape_cast %14 : vector<128xf32> to vector<1x128xf32>
    %cst_14 = arith.constant 5.120000e+02 : f32
    %16 = vector.broadcast %cst_14 : f32 to vector<1x128xf32>
    %17 = arith.divf %15, %16 : vector<1x128xf32>
    %18 = arith.mulf %12, %12 : vector<1x128xf32>
    %19 = arith.subf %17, %18 : vector<1x128xf32>
    %cst_15 = arith.constant 0.000000e+00 : f32
    %20 = vector.broadcast %cst_15 : f32 to vector<1x128xf32>
    %21 = arith.maximumf %19, %20 : vector<1x128xf32>
    %22 = vector.broadcast %12 : vector<1x128xf32> to vector<512x128xf32>
    %23 = arith.subf %6, %22 : vector<512x128xf32>
    %cst_16 = arith.constant 9.99999974E-6 : f32
    %24 = vector.broadcast %cst_16 : f32 to vector<1x128xf32>
    %25 = arith.addf %21, %24 : vector<1x128xf32>
    %26 = math.rsqrt %25 : vector<1x128xf32>
    %27 = vector.broadcast %26 : vector<1x128xf32> to vector<512x128xf32>
    %28 = arith.mulf %23, %27 : vector<512x128xf32>
    %29 = vector.broadcast %7 : vector<1x128xf32> to vector<512x128xf32>
    %30 = arith.mulf %28, %29 : vector<512x128xf32>
    %31 = vector.broadcast %8 : vector<1x128xf32> to vector<512x128xf32>
    %32 = arith.addf %30, %31 : vector<512x128xf32>
    %cst_17 = arith.constant 0.000000e+00 : f32
    %33 = vector.broadcast %cst_17 : f32 to vector<512x128xf32>
    %34 = arith.maximumf %32, %33 : vector<512x128xf32>
    %cst_18 = arith.constant 0.000000e+00 : f32
    %35 = vector.broadcast %cst_18 : f32 to vector<2x1x18x128xf32>
    %c0_19 = arith.constant 0 : index
    %c0_20 = arith.constant 0 : index
    %c0_21 = arith.constant 0 : index
    %c0_22 = arith.constant 0 : index
    %36 = vector.load %arg12[%c0_19, %c0_20, %c0_21, %c0_22] : memref<2x18x18x128xf32, #tpu.memory_space<vmem>>, vector<2x1x18x128xf32>
    tpu.vector_store %arg12[%c0_19, %c0_20, %c0_21, %c0_22], %35 {strides = array<i32>} : memref<2x18x18x128xf32, #tpu.memory_space<vmem>>, vector<2x1x18x128xf32>,
    %cst_23 = arith.constant 0.000000e+00 : f32
    %37 = vector.broadcast %cst_23 : f32 to vector<2x1x18x128xf32>
    %c0_24 = arith.constant 0 : index
    %c17 = arith.constant 17 : index
    %c0_25 = arith.constant 0 : index
    %c0_26 = arith.constant 0 : index
    %38 = vector.load %arg12[%c0_24, %c17, %c0_25, %c0_26] : memref<2x18x18x128xf32, #tpu.memory_space<vmem>>, vector<2x1x18x128xf32>
    tpu.vector_store %arg12[%c0_24, %c17, %c0_25, %c0_26], %37 {strides = array<i32>} : memref<2x18x18x128xf32, #tpu.memory_space<vmem>>, vector<2x1x18x128xf32>,
    %cst_27 = arith.constant 0.000000e+00 : f32
    %39 = vector.broadcast %cst_27 : f32 to vector<2x16x1x128xf32>
    %c0_28 = arith.constant 0 : index
    %c1 = arith.constant 1 : index
    %c0_29 = arith.constant 0 : index
    %c0_30 = arith.constant 0 : index
    %40 = vector.load %arg12[%c0_28, %c1, %c0_29, %c0_30] : memref<2x18x18x128xf32, #tpu.memory_space<vmem>>, vector<2x16x1x128xf32>
    tpu.vector_store %arg12[%c0_28, %c1, %c0_29, %c0_30], %39 {strides = array<i32>} : memref<2x18x18x128xf32, #tpu.memory_space<vmem>>, vector<2x16x1x128xf32>,
    %cst_31 = arith.constant 0.000000e+00 : f32
    %41 = vector.broadcast %cst_31 : f32 to vector<2x16x1x128xf32>
    %c0_32 = arith.constant 0 : index
    %c1_33 = arith.constant 1 : index
    %c17_34 = arith.constant 17 : index
    %c0_35 = arith.constant 0 : index
    %42 = vector.load %arg12[%c0_32, %c1_33, %c17_34, %c0_35] : memref<2x18x18x128xf32, #tpu.memory_space<vmem>>, vector<2x16x1x128xf32>
    tpu.vector_store %arg12[%c0_32, %c1_33, %c17_34, %c0_35], %41 {strides = array<i32>} : memref<2x18x18x128xf32, #tpu.memory_space<vmem>>, vector<2x16x1x128xf32>,
    %43 = vector.shape_cast %34 : vector<512x128xf32> to vector<2x16x16x128xf32>
    %c0_36 = arith.constant 0 : index
    %c1_37 = arith.constant 1 : index
    %c1_38 = arith.constant 1 : index
    %c0_39 = arith.constant 0 : index
    %44 = vector.load %arg12[%c0_36, %c1_37, %c1_38, %c0_39] : memref<2x18x18x128xf32, #tpu.memory_space<vmem>>, vector<2x16x16x128xf32>
    tpu.vector_store %arg12[%c0_36, %c1_37, %c1_38, %c0_39], %43 {strides = array<i32>} : memref<2x18x18x128xf32, #tpu.memory_space<vmem>>, vector<2x16x16x128xf32>,
    %c0_40 = arith.constant 0 : index
    %c0_41 = arith.constant 0 : index
    %c0_42 = arith.constant 0 : index
    %c0_43 = arith.constant 0 : index
    %45 = vector.load %arg12[%c0_40, %c0_41, %c0_42, %c0_43] : memref<2x18x18x128xf32, #tpu.memory_space<vmem>>, vector<2x18x18x128xf32>
    %46 = vector.extract_strided_slice %45 {offsets = [0, 0, 0, 0], sizes = [2, 16, 16, 128], strides = [1, 1, 1, 1]} : vector<2x18x18x128xf32> to vector<2x16x16x128xf32>
    %47 = arith.truncf %46 : vector<2x16x16x128xf32> to vector<2x16x16x128xbf16>
    %c0_44 = arith.constant 0 : index
    %c0_45 = arith.constant 0 : index
    %c0_46 = arith.constant 0 : index
    %c0_47 = arith.constant 0 : index
    %48 = vector.load %arg13[%c0_44, %c0_45, %c0_46, %c0_47] : memref<2x16x16x1152xbf16, #tpu.memory_space<vmem>>, vector<2x16x16x128xbf16>
    tpu.vector_store %arg13[%c0_44, %c0_45, %c0_46, %c0_47], %47 {strides = array<i32>} : memref<2x16x16x1152xbf16, #tpu.memory_space<vmem>>, vector<2x16x16x128xbf16>,
    %49 = vector.extract_strided_slice %45 {offsets = [0, 0, 1, 0], sizes = [2, 16, 16, 128], strides = [1, 1, 1, 1]} : vector<2x18x18x128xf32> to vector<2x16x16x128xf32>
    %50 = arith.truncf %49 : vector<2x16x16x128xf32> to vector<2x16x16x128xbf16>
    %c0_48 = arith.constant 0 : index
    %c0_49 = arith.constant 0 : index
    %c0_50 = arith.constant 0 : index
    %c128 = arith.constant 128 : index
    %51 = vector.load %arg13[%c0_48, %c0_49, %c0_50, %c128] : memref<2x16x16x1152xbf16, #tpu.memory_space<vmem>>, vector<2x16x16x128xbf16>
    tpu.vector_store %arg13[%c0_48, %c0_49, %c0_50, %c128], %50 {strides = array<i32>} : memref<2x16x16x1152xbf16, #tpu.memory_space<vmem>>, vector<2x16x16x128xbf16>,
    %52 = vector.extract_strided_slice %45 {offsets = [0, 0, 2, 0], sizes = [2, 16, 16, 128], strides = [1, 1, 1, 1]} : vector<2x18x18x128xf32> to vector<2x16x16x128xf32>
    %53 = arith.truncf %52 : vector<2x16x16x128xf32> to vector<2x16x16x128xbf16>
    %c0_51 = arith.constant 0 : index
    %c0_52 = arith.constant 0 : index
    %c0_53 = arith.constant 0 : index
    %c256 = arith.constant 256 : index
    %54 = vector.load %arg13[%c0_51, %c0_52, %c0_53, %c256] : memref<2x16x16x1152xbf16, #tpu.memory_space<vmem>>, vector<2x16x16x128xbf16>
    tpu.vector_store %arg13[%c0_51, %c0_52, %c0_53, %c256], %53 {strides = array<i32>} : memref<2x16x16x1152xbf16, #tpu.memory_space<vmem>>, vector<2x16x16x128xbf16>,
    %55 = vector.extract_strided_slice %45 {offsets = [0, 1, 0, 0], sizes = [2, 16, 16, 128], strides = [1, 1, 1, 1]} : vector<2x18x18x128xf32> to vector<2x16x16x128xf32>
    %56 = arith.truncf %55 : vector<2x16x16x128xf32> to vector<2x16x16x128xbf16>
    %c0_54 = arith.constant 0 : index
    %c0_55 = arith.constant 0 : index
    %c0_56 = arith.constant 0 : index
    %c384 = arith.constant 384 : index
    %57 = vector.load %arg13[%c0_54, %c0_55, %c0_56, %c384] : memref<2x16x16x1152xbf16, #tpu.memory_space<vmem>>, vector<2x16x16x128xbf16>
    tpu.vector_store %arg13[%c0_54, %c0_55, %c0_56, %c384], %56 {strides = array<i32>} : memref<2x16x16x1152xbf16, #tpu.memory_space<vmem>>, vector<2x16x16x128xbf16>,
    %58 = vector.extract_strided_slice %45 {offsets = [0, 1, 1, 0], sizes = [2, 16, 16, 128], strides = [1, 1, 1, 1]} : vector<2x18x18x128xf32> to vector<2x16x16x128xf32>
    %59 = arith.truncf %58 : vector<2x16x16x128xf32> to vector<2x16x16x128xbf16>
    %c0_57 = arith.constant 0 : index
    %c0_58 = arith.constant 0 : index
    %c0_59 = arith.constant 0 : index
    %c512 = arith.constant 512 : index
    %60 = vector.load %arg13[%c0_57, %c0_58, %c0_59, %c512] : memref<2x16x16x1152xbf16, #tpu.memory_space<vmem>>, vector<2x16x16x128xbf16>
    tpu.vector_store %arg13[%c0_57, %c0_58, %c0_59, %c512], %59 {strides = array<i32>} : memref<2x16x16x1152xbf16, #tpu.memory_space<vmem>>, vector<2x16x16x128xbf16>,
    %61 = vector.extract_strided_slice %45 {offsets = [0, 1, 2, 0], sizes = [2, 16, 16, 128], strides = [1, 1, 1, 1]} : vector<2x18x18x128xf32> to vector<2x16x16x128xf32>
    %62 = arith.truncf %61 : vector<2x16x16x128xf32> to vector<2x16x16x128xbf16>
    %c0_60 = arith.constant 0 : index
    %c0_61 = arith.constant 0 : index
    %c0_62 = arith.constant 0 : index
    %c640 = arith.constant 640 : index
    %63 = vector.load %arg13[%c0_60, %c0_61, %c0_62, %c640] : memref<2x16x16x1152xbf16, #tpu.memory_space<vmem>>, vector<2x16x16x128xbf16>
    tpu.vector_store %arg13[%c0_60, %c0_61, %c0_62, %c640], %62 {strides = array<i32>} : memref<2x16x16x1152xbf16, #tpu.memory_space<vmem>>, vector<2x16x16x128xbf16>,
    %64 = vector.extract_strided_slice %45 {offsets = [0, 2, 0, 0], sizes = [2, 16, 16, 128], strides = [1, 1, 1, 1]} : vector<2x18x18x128xf32> to vector<2x16x16x128xf32>
    %65 = arith.truncf %64 : vector<2x16x16x128xf32> to vector<2x16x16x128xbf16>
    %c0_63 = arith.constant 0 : index
    %c0_64 = arith.constant 0 : index
    %c0_65 = arith.constant 0 : index
    %c768 = arith.constant 768 : index
    %66 = vector.load %arg13[%c0_63, %c0_64, %c0_65, %c768] : memref<2x16x16x1152xbf16, #tpu.memory_space<vmem>>, vector<2x16x16x128xbf16>
    tpu.vector_store %arg13[%c0_63, %c0_64, %c0_65, %c768], %65 {strides = array<i32>} : memref<2x16x16x1152xbf16, #tpu.memory_space<vmem>>, vector<2x16x16x128xbf16>,
    %67 = vector.extract_strided_slice %45 {offsets = [0, 2, 1, 0], sizes = [2, 16, 16, 128], strides = [1, 1, 1, 1]} : vector<2x18x18x128xf32> to vector<2x16x16x128xf32>
    %68 = arith.truncf %67 : vector<2x16x16x128xf32> to vector<2x16x16x128xbf16>
    %c0_66 = arith.constant 0 : index
    %c0_67 = arith.constant 0 : index
    %c0_68 = arith.constant 0 : index
    %c896 = arith.constant 896 : index
    %69 = vector.load %arg13[%c0_66, %c0_67, %c0_68, %c896] : memref<2x16x16x1152xbf16, #tpu.memory_space<vmem>>, vector<2x16x16x128xbf16>
    tpu.vector_store %arg13[%c0_66, %c0_67, %c0_68, %c896], %68 {strides = array<i32>} : memref<2x16x16x1152xbf16, #tpu.memory_space<vmem>>, vector<2x16x16x128xbf16>,
    %70 = vector.extract_strided_slice %45 {offsets = [0, 2, 2, 0], sizes = [2, 16, 16, 128], strides = [1, 1, 1, 1]} : vector<2x18x18x128xf32> to vector<2x16x16x128xf32>
    %71 = arith.truncf %70 : vector<2x16x16x128xf32> to vector<2x16x16x128xbf16>
    %c0_69 = arith.constant 0 : index
    %c0_70 = arith.constant 0 : index
    %c0_71 = arith.constant 0 : index
    %c1024 = arith.constant 1024 : index
    %72 = vector.load %arg13[%c0_69, %c0_70, %c0_71, %c1024] : memref<2x16x16x1152xbf16, #tpu.memory_space<vmem>>, vector<2x16x16x128xbf16>
    tpu.vector_store %arg13[%c0_69, %c0_70, %c0_71, %c1024], %71 {strides = array<i32>} : memref<2x16x16x1152xbf16, #tpu.memory_space<vmem>>, vector<2x16x16x128xbf16>,
    %c0_72 = arith.constant 0 : index
    %c0_73 = arith.constant 0 : index
    %c0_74 = arith.constant 0 : index
    %c0_75 = arith.constant 0 : index
    %73 = vector.load %arg13[%c0_72, %c0_73, %c0_74, %c0_75] : memref<2x16x16x1152xbf16, #tpu.memory_space<vmem>>, vector<2x16x16x1152xbf16>
    %74 = vector.shape_cast %73 : vector<2x16x16x1152xbf16> to vector<512x1152xbf16>
    %c0_76 = arith.constant 0 : index
    %c0_77 = arith.constant 0 : index
    %75 = vector.load %arg5[%c0_76, %c0_77] : memref<1152x128xbf16, #tpu.memory_space<vmem>>, vector<1152x128xbf16>
    %cst_78 = arith.constant dense<0.000000e+00> : vector<512x128xf32>
    %76 = tpu.matmul %74, %75, %cst_78 {dimension_numbers = #tpu.dot_dimension_numbers<[1], [0], [0], [1], [0, 0, 1, 1], [], []>} : vector<512x1152xbf16>, vector<1152x128xbf16>, vector<512x128xf32> -> vector<512x128xf32>
    %c0_79 = arith.constant 0 : index
    %c0_80 = arith.constant 0 : index
    %77 = vector.load %arg6[%c0_79, %c0_80] : memref<1x128xf32, #tpu.memory_space<vmem>>, vector<1x128xf32>
    %78 = vector.broadcast %77 : vector<1x128xf32> to vector<512x128xf32>
    %79 = arith.addf %76, %78 : vector<512x128xf32>
    %c0_81 = arith.constant 0 : index
    %c0_82 = arith.constant 0 : index
    %80 = vector.load %arg7[%c0_81, %c0_82] : memref<1x128xf32, #tpu.memory_space<vmem>>, vector<1x128xf32>
    %c0_83 = arith.constant 0 : index
    %c0_84 = arith.constant 0 : index
    %81 = vector.load %arg8[%c0_83, %c0_84] : memref<1x128xf32, #tpu.memory_space<vmem>>, vector<1x128xf32>
    %cst_85 = arith.constant dense<0.000000e+00> : vector<128xf32>
    %82 = vector.multi_reduction <add>, %79, %cst_85 [0] : vector<512x128xf32> to vector<128xf32>
    %83 = vector.shape_cast %82 : vector<128xf32> to vector<1x128xf32>
    %cst_86 = arith.constant 5.120000e+02 : f32
    %84 = vector.broadcast %cst_86 : f32 to vector<1x128xf32>
    %85 = arith.divf %83, %84 : vector<1x128xf32>
    %86 = arith.mulf %79, %79 : vector<512x128xf32>
    %cst_87 = arith.constant dense<0.000000e+00> : vector<128xf32>
    %87 = vector.multi_reduction <add>, %86, %cst_87 [0] : vector<512x128xf32> to vector<128xf32>
    %88 = vector.shape_cast %87 : vector<128xf32> to vector<1x128xf32>
    %cst_88 = arith.constant 5.120000e+02 : f32
    %89 = vector.broadcast %cst_88 : f32 to vector<1x128xf32>
    %90 = arith.divf %88, %89 : vector<1x128xf32>
    %91 = arith.mulf %85, %85 : vector<1x128xf32>
    %92 = arith.subf %90, %91 : vector<1x128xf32>
    %cst_89 = arith.constant 0.000000e+00 : f32
    %93 = vector.broadcast %cst_89 : f32 to vector<1x128xf32>
    %94 = arith.maximumf %92, %93 : vector<1x128xf32>
    %95 = vector.broadcast %85 : vector<1x128xf32> to vector<512x128xf32>
    %96 = arith.subf %79, %95 : vector<512x128xf32>
    %cst_90 = arith.constant 9.99999974E-6 : f32
    %97 = vector.broadcast %cst_90 : f32 to vector<1x128xf32>
    %98 = arith.addf %94, %97 : vector<1x128xf32>
    %99 = math.rsqrt %98 : vector<1x128xf32>
    %100 = vector.broadcast %99 : vector<1x128xf32> to vector<512x128xf32>
    %101 = arith.mulf %96, %100 : vector<512x128xf32>
    %102 = vector.broadcast %80 : vector<1x128xf32> to vector<512x128xf32>
    %103 = arith.mulf %101, %102 : vector<512x128xf32>
    %104 = vector.broadcast %81 : vector<1x128xf32> to vector<512x128xf32>
    %105 = arith.addf %103, %104 : vector<512x128xf32>
    %c0_91 = arith.constant 0 : index
    %c0_92 = arith.constant 0 : index
    %106 = vector.load %arg9[%c0_91, %c0_92] : memref<128x128xbf16, #tpu.memory_space<vmem>>, vector<128x128xbf16>
    %cst_93 = arith.constant dense<0.000000e+00> : vector<512x128xf32>
    %107 = tpu.matmul %1, %106, %cst_93 {dimension_numbers = #tpu.dot_dimension_numbers<[1], [0], [0], [1], [0, 0, 1, 1], [], []>} : vector<512x128xbf16>, vector<128x128xbf16>, vector<512x128xf32> -> vector<512x128xf32>
    %c0_94 = arith.constant 0 : index
    %c0_95 = arith.constant 0 : index
    %108 = vector.load %arg10[%c0_94, %c0_95] : memref<1x128xf32, #tpu.memory_space<vmem>>, vector<1x128xf32>
    %109 = vector.broadcast %108 : vector<1x128xf32> to vector<512x128xf32>
    %110 = arith.addf %107, %109 : vector<512x128xf32>
    %111 = arith.addf %105, %110 : vector<512x128xf32>
    %cst_96 = arith.constant 0.000000e+00 : f32
    %112 = vector.broadcast %cst_96 : f32 to vector<512x128xf32>
    %113 = arith.maximumf %111, %112 : vector<512x128xf32>
    %114 = vector.shape_cast %113 : vector<512x128xf32> to vector<2x16x16x128xf32>
    %c0_97 = arith.constant 0 : index
    %c0_98 = arith.constant 0 : index
    %c0_99 = arith.constant 0 : index
    %c0_100 = arith.constant 0 : index
    %115 = vector.load %arg11[%c0_97, %c0_98, %c0_99, %c0_100] : memref<2x16x16x128xf32, #tpu.memory_space<vmem>>, vector<2x16x16x128xf32>
    tpu.vector_store %arg11[%c0_97, %c0_98, %c0_99, %c0_100], %114 {strides = array<i32>} : memref<2x16x16x128xf32, #tpu.memory_space<vmem>>, vector<2x16x16x128xf32>,
    return
  }
}

</mosaic_0001>

<llo_original>
// kernel: bottleneck_forward.1
$region0: #{bottleneck_forward.1}
  #allocation0 [shape = 'u32[]', space=smem, size = 0x4, offset = 0x4, fixed_abs, tag = 'smem constant byte address 0x4 - core index']
  #allocation1 [shape = 'u32[72,128]{1,0:T(1,128)}', space=vmem, size = 0x9000, scoped, tag = 'internal scratch']
  #allocation2 [shape = 'f32[2,18,18,128]{3,2,1,0:T(8,128)}', space=vmem, size = 0x6c000, scoped, tag = 'scratch operand']
  #allocation3 [shape = 'bf16[2,16,16,1152]{3,2,1,0:T(8,128)(2,1)}', space=vmem, size = 0x120000, scoped, tag = 'scratch operand']
  %s0 = inlined_call_operand.vmem [shape: bf16[2,16,16,128], index: 0, kind: input, shape index: {}]
  %s1 = inlined_call_operand.vmem [shape: bf16[128,128], index: 1, kind: input, shape index: {}]
  %s2 = inlined_call_operand.vmem [shape: f32[1,128], index: 2, kind: input, shape index: {}]
  %s3 = inlined_call_operand.vmem [shape: f32[1,128], index: 3, kind: input, shape index: {}]
  %s4 = inlined_call_operand.vmem [shape: f32[1,128], index: 4, kind: input, shape index: {}]
  %s5 = inlined_call_operand.vmem [shape: bf16[1152,128], index: 5, kind: input, shape index: {}]
  %s6 = inlined_call_operand.vmem [shape: f32[1,128], index: 6, kind: input, shape index: {}]
  %s7 = inlined_call_operand.vmem [shape: f32[1,128], index: 7, kind: input, shape index: {}]
  %s8 = inlined_call_operand.vmem [shape: f32[1,128], index: 8, kind: input, shape index: {}]
  %s9 = inlined_call_operand.vmem [shape: bf16[128,128], index: 9, kind: input, shape index: {}]
  %s10 = inlined_call_operand.vmem [shape: f32[1,128], index: 10, kind: input, shape index: {}]
  %s11 = inlined_call_operand.vmem [shape: f32[2,16,16,128], index: 11, kind: output, shape index: {}]
  %s12 = sld [smem:[#allocation0]]
  $region54: #{bottleneck_forward.1} parent=0
    _
  %s14 = ssub.s32 1, %s12
  %s15 = scalar_select 0, %s14, %s12
  // Predicated region
  $region2: #{bottleneck_forward.1} parent=0 // pred_check
    _
  $region3: #{bottleneck_forward.1} parent=0 // pred_check_branch
    %17 = sbr.rel (0) target = $region5
  $region4: #{bottleneck_forward.1} parent=0 // pred_region
    _
  $region5: #{bottleneck_forward.1} parent=0 // pred_fallthru
    _
  // Predicated region
  $region6: #{bottleneck_forward.1} parent=0 // pred_check
    _
  $region7: #{bottleneck_forward.1} parent=0 // pred_check_branch
    %19 = sbr.rel (0) target = $region9
  $region8: #{bottleneck_forward.1} parent=0 // pred_region
    _
  $region9: #{bottleneck_forward.1} parent=0 // pred_fallthru
    _
  // Predicated region
  $region10: #{bottleneck_forward.1} parent=0 // pred_check
    _
  $region11: #{bottleneck_forward.1} parent=0 // pred_check_branch
    %21 = sbr.rel (0) target = $region13
  $region12: #{bottleneck_forward.1} parent=0 // pred_region
    _
  $region13: #{bottleneck_forward.1} parent=0 // pred_fallthru
    _
  // Predicated region
  $region14: #{bottleneck_forward.1} parent=0 // pred_check
    _
  $region15: #{bottleneck_forward.1} parent=0 // pred_check_branch
    %23 = sbr.rel (0) target = $region17
  $region16: #{bottleneck_forward.1} parent=0 // pred_region
    _
  $region17: #{bottleneck_forward.1} parent=0 // pred_fallthru
    _
  // Predicated region
  $region18: #{bottleneck_forward.1} parent=0 // pred_check
    _
  $region19: #{bottleneck_forward.1} parent=0 // pred_check_branch
    %25 = sbr.rel (0) target = $region21
  $region20: #{bottleneck_forward.1} parent=0 // pred_region
    _
  $region21: #{bottleneck_forward.1} parent=0 // pred_fallthru
    _
  // Predicated region
  $region22: #{bottleneck_forward.1} parent=0 // pred_check
    _
  $region23: #{bottleneck_forward.1} parent=0 // pred_check_branch
    %27 = sbr.rel (0) target = $region25
  $region24: #{bottleneck_forward.1} parent=0 // pred_region
    _
  $region25: #{bottleneck_forward.1} parent=0 // pred_fallthru
    _
  // Predicated region
  $region26: #{bottleneck_forward.1} parent=0 // pred_check
    _
  $region27: #{bottleneck_forward.1} parent=0 // pred_check_branch
    %29 = sbr.rel (0) target = $region29
  $region28: #{bottleneck_forward.1} parent=0 // pred_region
    _
  $region29: #{bottleneck_forward.1} parent=0 // pred_fallthru
    _
  // Predicated region
  $region30: #{bottleneck_forward.1} parent=0 // pred_check
    _
  $region31: #{bottleneck_forward.1} parent=0 // pred_check_branch
    %31 = sbr.rel (0) target = $region33
  $region32: #{bottleneck_forward.1} parent=0 // pred_region
    _
  $region33: #{bottleneck_forward.1} parent=0 // pred_fallthru
    _
  // Predicated region
  $region34: #{bottleneck_forward.1} parent=0 // pred_check
    _
  $region35: #{bottleneck_forward.1} parent=0 // pred_check_branch
    %33 = sbr.rel (0) target = $region37
  $region36: #{bottleneck_forward.1} parent=0 // pred_region
    _
  $region37: #{bottleneck_forward.1} parent=0 // pred_fallthru
    _
  // Predicated region
  $region38: #{bottleneck_forward.1} parent=0 // pred_check
    _
  $region39: #{bottleneck_forward.1} parent=0 // pred_check_branch
    %35 = sbr.rel (0) target = $region41
  $region40: #{bottleneck_forward.1} parent=0 // pred_region
    _
  $region41: #{bottleneck_forward.1} parent=0 // pred_fallthru
    _
  // Predicated region
  $region42: #{bottleneck_forward.1} parent=0 // pred_check
    _
  $region43: #{bottleneck_forward.1} parent=0 // pred_check_branch
    %37 = sbr.rel (0) target = $region45
  $region44: #{bottleneck_forward.1} parent=0 // pred_region
    _
  $region45: #{bottleneck_forward.1} parent=0 // pred_fallthru
    _
  %v38 = vld [vmem:[%s0] sm:$0xf]
  %v39 = vld [vmem:[%s0 + $0x4] sm:$0xf]
  %v40 = vld [vmem:[%s0 + $0x8] sm:$0xf]
  %v41 = vld [vmem:[%s0 + $0xc] sm:$0xf]
  %v42 = vld [vmem:[%s0 + $0x10] sm:$0xf]
  %v43 = vld [vmem:[%s0 + $0x14] sm:$0xf]
  %v44 = vld [vmem:[%s0 + $0x18] sm:$0xf]
  %v45 = vld [vmem:[%s0 + $0x1c] sm:$0xf]
  %v46 = vld [vmem:[%s0 + $0x20] sm:$0xf]
  %v47 = vld [vmem:[%s0 + $0x24] sm:$0xf]
  %v48 = vld [vmem:[%s0 + $0x28] sm:$0xf]
  %v49 = vld [vmem:[%s0 + $0x2c] sm:$0xf]
  %v50 = vld [vmem:[%s0 + $0x30] sm:$0xf]
  %v51 = vld [vmem:[%s0 + $0x34] sm:$0xf]
  %v52 = vld [vmem:[%s0 + $0x38] sm:$0xf]
  %v53 = vld [vmem:[%s0 + $0x3c] sm:$0xf]
  %v54 = vld [vmem:[%s0 + $0x40] sm:$0xf]
  %v55 = vld [vmem:[%s0 + $0x44] sm:$0xf]
  %v56 = vld [vmem:[%s0 + $0x48] sm:$0xf]
  %v57 = vld [vmem:[%s0 + $0x4c] sm:$0xf]
  %v58 = vld [vmem:[%s0 + $0x50] sm:$0xf]
  %v59 = vld [vmem:[%s0 + $0x54] sm:$0xf]
  %v60 = vld [vmem:[%s0 + $0x58] sm:$0xf]
  %v61 = vld [vmem:[%s0 + $0x5c] sm:$0xf]
  %v62 = vld [vmem:[%s0 + $0x60] sm:$0xf]
  %v63 = vld [vmem:[%s0 + $0x64] sm:$0xf]
  %v64 = vld [vmem:[%s0 + $0x68] sm:$0xf]
  %v65 = vld [vmem:[%s0 + $0x6c] sm:$0xf]
  %v66 = vld [vmem:[%s0 + $0x70] sm:$0xf]
  %v67 = vld [vmem:[%s0 + $0x74] sm:$0xf]
  %v68 = vld [vmem:[%s0 + $0x78] sm:$0xf]
  %v69 = vld [vmem:[%s0 + $0x7c] sm:$0xf]
  %v70 = vld [vmem:[%s0 + $0x80] sm:$0xf]
  %v71 = vld [vmem:[%s0 + $0x84] sm:$0xf]
  %v72 = vld [vmem:[%s0 + $0x88] sm:$0xf]
  %v73 = vld [vmem:[%s0 + $0x8c] sm:$0xf]
  %v74 = vld [vmem:[%s0 + $0x90] sm:$0xf]
  %v75 = vld [vmem:[%s0 + $0x94] sm:$0xf]
  %v76 = vld [vmem:[%s0 + $0x98] sm:$0xf]
  %v77 = vld [vmem:[%s0 + $0x9c] sm:$0xf]
  %v78 = vld [vmem:[%s0 + $0xa0] sm:$0xf]
  %v79 = vld [vmem:[%s0 + $0xa4] sm:$0xf]
  %v80 = vld [vmem:[%s0 + $0xa8] sm:$0xf]
  %v81 = vld [vmem:[%s0 + $0xac] sm:$0xf]
  %v82 = vld [vmem:[%s0 + $0xb0] sm:$0xf]
  %v83 = vld [vmem:[%s0 + $0xb4] sm:$0xf]
  %v84 = vld [vmem:[%s0 + $0xb8] sm:$0xf]
  %v85 = vld [vmem:[%s0 + $0xbc] sm:$0xf]
  %v86 = vld [vmem:[%s0 + $0xc0] sm:$0xf]
  %v87 = vld [vmem:[%s0 + $0xc4] sm:$0xf]
  %v88 = vld [vmem:[%s0 + $0xc8] sm:$0xf]
  %v89 = vld [vmem:[%s0 + $0xcc] sm:$0xf]
  %v90 = vld [vmem:[%s0 + $0xd0] sm:$0xf]
  %v91 = vld [vmem:[%s0 + $0xd4] sm:$0xf]
  %v92 = vld [vmem:[%s0 + $0xd8] sm:$0xf]
  %v93 = vld [vmem:[%s0 + $0xdc] sm:$0xf]
  %v94 = vld [vmem:[%s0 + $0xe0] sm:$0xf]
  %v95 = vld [vmem:[%s0 + $0xe4] sm:$0xf]
  %v96 = vld [vmem:[%s0 + $0xe8] sm:$0xf]
  %v97 = vld [vmem:[%s0 + $0xec] sm:$0xf]
  %v98 = vld [vmem:[%s0 + $0xf0] sm:$0xf]
  %v99 = vld [vmem:[%s0 + $0xf4] sm:$0xf]
  %v100 = vld [vmem:[%s0 + $0xf8] sm:$0xf]
  %v101 = vld [vmem:[%s0 + $0xfc] sm:$0xf]
  %v102 = vld [vmem:[%s1] sm:$0xf]
  %v103 = vld [vmem:[%s1 + $0x4] sm:$0xf]
  %v104 = vld [vmem:[%s1 + $0x8] sm:$0xf]
  %v105 = vld [vmem:[%s1 + $0xc] sm:$0xf]
  %v106 = vld [vmem:[%s1 + $0x10] sm:$0xf]
  %v107 = vld [vmem:[%s1 + $0x14] sm:$0xf]
  %v108 = vld [vmem:[%s1 + $0x18] sm:$0xf]
  %v109 = vld [vmem:[%s1 + $0x1c] sm:$0xf]
  %v110 = vld [vmem:[%s1 + $0x20] sm:$0xf]
  %v111 = vld [vmem:[%s1 + $0x24] sm:$0xf]
  %v112 = vld [vmem:[%s1 + $0x28] sm:$0xf]
  %v113 = vld [vmem:[%s1 + $0x2c] sm:$0xf]
  %v114 = vld [vmem:[%s1 + $0x30] sm:$0xf]
  %v115 = vld [vmem:[%s1 + $0x34] sm:$0xf]
  %v116 = vld [vmem:[%s1 + $0x38] sm:$0xf]
  %v117 = vld [vmem:[%s1 + $0x3c] sm:$0xf]
  %v118 = vld [vmem:[%s2] sm:$0x1]
  %v120 = vperm.slane %v118, 0
  %v186 = vunpack.c.l.b16 %v38
  %v187 = vunpack.c.l.b16 %v39
  %v188 = vunpack.c.l.b16 %v40
  %v189 = vunpack.c.l.b16 %v41
  %v190 = vunpack.c.l.b16 %v42
  %v191 = vunpack.c.l.b16 %v43
  %v192 = vunpack.c.l.b16 %v44
  %v193 = vunpack.c.l.b16 %v45
  %v194 = vunpack.c.l.b16 %v46
  %v195 = vunpack.c.l.b16 %v47
  %v196 = vunpack.c.l.b16 %v48
  %v197 = vunpack.c.l.b16 %v49
  %v198 = vunpack.c.l.b16 %v50
  %v199 = vunpack.c.l.b16 %v51
  %v200 = vunpack.c.l.b16 %v52
  %v201 = vunpack.c.l.b16 %v53
  %v202 = vunpack.c.l.b16 %v54
  %v203 = vunpack.c.l.b16 %v55
  %v204 = vunpack.c.l.b16 %v56
  %v205 = vunpack.c.l.b16 %v57
  %v206 = vunpack.c.l.b16 %v58
  %v207 = vunpack.c.l.b16 %v59
  %v208 = vunpack.c.l.b16 %v60
  %v209 = vunpack.c.l.b16 %v61
  %v210 = vunpack.c.l.b16 %v62
  %v211 = vunpack.c.l.b16 %v63
  %v212 = vunpack.c.l.b16 %v64
  %v213 = vunpack.c.l.b16 %v65
  %v214 = vunpack.c.l.b16 %v66
  %v215 = vunpack.c.l.b16 %v67
  %v216 = vunpack.c.l.b16 %v68
  %v217 = vunpack.c.l.b16 %v69
  %v218 = vunpack.c.l.b16 %v70
  %v219 = vunpack.c.l.b16 %v71
  %v220 = vunpack.c.l.b16 %v72
  %v221 = vunpack.c.l.b16 %v73
  %v222 = vunpack.c.l.b16 %v74
  %v223 = vunpack.c.l.b16 %v75
  %v224 = vunpack.c.l.b16 %v76
  %v225 = vunpack.c.l.b16 %v77
  %v226 = vunpack.c.l.b16 %v78
  %v227 = vunpack.c.l.b16 %v79
  %v228 = vunpack.c.l.b16 %v80
  %v229 = vunpack.c.l.b16 %v81
  %v230 = vunpack.c.l.b16 %v82
  %v231 = vunpack.c.l.b16 %v83
  %v232 = vunpack.c.l.b16 %v84
  %v233 = vunpack.c.l.b16 %v85
  %v234 = vunpack.c.l.b16 %v86
  %v235 = vunpack.c.l.b16 %v87
  %v236 = vunpack.c.l.b16 %v88
  %v237 = vunpack.c.l.b16 %v89
  %v238 = vunpack.c.l.b16 %v90
  %v239 = vunpack.c.l.b16 %v91
  %v240 = vunpack.c.l.b16 %v92
  %v241 = vunpack.c.l.b16 %v93
  %v242 = vunpack.c.l.b16 %v94
  %v243 = vunpack.c.l.b16 %v95
  %v244 = vunpack.c.l.b16 %v96
  %v245 = vunpack.c.l.b16 %v97
  %v246 = vunpack.c.l.b16 %v98
  %v247 = vunpack.c.l.b16 %v99
  %v248 = vunpack.c.l.b16 %v100
  %v249 = vunpack.c.l.b16 %v101
  %v250 = vpack.c.b16 %v187, %v186
  %v251 = vpack.c.b16 %v189, %v188
  %v252 = vpack.c.b16 %v191, %v190
  %v253 = vpack.c.b16 %v193, %v192
  %v254 = vpack.c.b16 %v195, %v194
  %v255 = vpack.c.b16 %v197, %v196
  %v256 = vpack.c.b16 %v199, %v198
  %v257 = vpack.c.b16 %v201, %v200
  %v258 = vpack.c.b16 %v203, %v202
  %v259 = vpack.c.b16 %v205, %v204
  %v260 = vpack.c.b16 %v207, %v206
  %v261 = vpack.c.b16 %v209, %v208
  %v262 = vpack.c.b16 %v211, %v210
  %v263 = vpack.c.b16 %v213, %v212
  %v264 = vpack.c.b16 %v215, %v214
  %v265 = vpack.c.b16 %v217, %v216
  %v266 = vpack.c.b16 %v219, %v218
  %v267 = vpack.c.b16 %v221, %v220
  %v268 = vpack.c.b16 %v223, %v222
  %v269 = vpack.c.b16 %v225, %v224
  %v270 = vpack.c.b16 %v227, %v226
  %v271 = vpack.c.b16 %v229, %v228
  %v272 = vpack.c.b16 %v231, %v230
  %v273 = vpack.c.b16 %v233, %v232
  %v274 = vpack.c.b16 %v235, %v234
  %v275 = vpack.c.b16 %v237, %v236
  %v276 = vpack.c.b16 %v239, %v238
  %v277 = vpack.c.b16 %v241, %v240
  %v278 = vpack.c.b16 %v243, %v242
  %v279 = vpack.c.b16 %v245, %v244
  %v280 = vpack.c.b16 %v247, %v246
  %v281 = vpack.c.b16 %v249, %v248
  %v330 = vunpack.c.l.b16 %v102
  %v331 = vunpack.c.l.b16 %v103
  %v332 = vunpack.c.l.b16 %v104
  %v333 = vunpack.c.l.b16 %v105
  %v334 = vunpack.c.l.b16 %v106
  %v335 = vunpack.c.l.b16 %v107
  %v336 = vunpack.c.l.b16 %v108
  %v337 = vunpack.c.l.b16 %v109
  %v338 = vunpack.c.l.b16 %v110
  %v339 = vunpack.c.l.b16 %v111
  %v340 = vunpack.c.l.b16 %v112
  %v341 = vunpack.c.l.b16 %v113
  %v342 = vunpack.c.l.b16 %v114
  %v343 = vunpack.c.l.b16 %v115
  %v344 = vunpack.c.l.b16 %v116
  %v345 = vunpack.c.l.b16 %v117
  %v346 = vpack.c.b16 %v331, %v330
  %v347 = vpack.c.b16 %v333, %v332
  %v348 = vpack.c.b16 %v335, %v334
  %v349 = vpack.c.b16 %v337, %v336
  %v350 = vpack.c.b16 %v339, %v338
  %v351 = vpack.c.b16 %v341, %v340
  %v352 = vpack.c.b16 %v343, %v342
  %v353 = vpack.c.b16 %v345, %v344
  %362 = vmatpush.bf16.msra.mxu0 %v353
  %363 = vmatpush.bf16.msra.mxu0 %v352
  %364 = vmatpush.bf16.msra.mxu0 %v351
  %365 = vmatpush.bf16.msra.mxu0 %v350
  %366 = vmatpush.bf16.msra.mxu0 %v349
  %367 = vmatpush.bf16.msra.mxu0 %v348
  %368 = vmatpush.bf16.msra.mxu0 %v347
  %369 = vmatpush.bf16.msra.mxu0 %v346
  %370 = vmatmul.bf16.gmra.mxu0 %v250
  %v371 = vpop.f32.mrf.mxu0
  %v372 = vadd.f32 %v120, %v371
  %v373 = vpop.f32.mrf.mxu0
  %v374 = vadd.f32 %v120, %v373
  %375 = vmatmul.bf16.gmra.mxu0 %v251
  %v376 = vpop.f32.mrf.mxu0
  %v377 = vadd.f32 %v120, %v376
  %v378 = vpop.f32.mrf.mxu0
  %v379 = vadd.f32 %v120, %v378
  %380 = vmatmul.bf16.gmra.mxu0 %v252
  %v381 = vpop.f32.mrf.mxu0
  %v382 = vadd.f32 %v120, %v381
  %v383 = vpop.f32.mrf.mxu0
  %v384 = vadd.f32 %v120, %v383
  %385 = vmatmul.bf16.gmra.mxu0 %v253
  %v386 = vpop.f32.mrf.mxu0
  %v387 = vadd.f32 %v120, %v386
  %v388 = vpop.f32.mrf.mxu0
  %v389 = vadd.f32 %v120, %v388
  %390 = vmatmul.bf16.gmra.mxu0 %v254
  %v391 = vpop.f32.mrf.mxu0
  %v392 = vadd.f32 %v120, %v391
  %v393 = vpop.f32.mrf.mxu0
  %v394 = vadd.f32 %v120, %v393
  %395 = vmatmul.bf16.gmra.mxu0 %v255
  %v396 = vpop.f32.mrf.mxu0
  %v397 = vadd.f32 %v120, %v396
  %v398 = vpop.f32.mrf.mxu0
  %v399 = vadd.f32 %v120, %v398
  %400 = vmatmul.bf16.gmra.mxu0 %v256
  %v401 = vpop.f32.mrf.mxu0
  %v402 = vadd.f32 %v120, %v401
  %v403 = vpop.f32.mrf.mxu0
  %v404 = vadd.f32 %v120, %v403
  %405 = vmatmul.bf16.gmra.mxu0 %v257
  %v406 = vpop.f32.mrf.mxu0
  %v407 = vadd.f32 %v120, %v406
  %v408 = vpop.f32.mrf.mxu0
  %v409 = vadd.f32 %v120, %v408
  %410 = vmatmul.bf16.gmra.mxu0 %v258
  %v411 = vpop.f32.mrf.mxu0
  %v412 = vadd.f32 %v120, %v411
  %v413 = vpop.f32.mrf.mxu0
  %v414 = vadd.f32 %v120, %v413
  %415 = vmatmul.bf16.gmra.mxu0 %v259
  %v416 = vpop.f32.mrf.mxu0
  %v417 = vadd.f32 %v120, %v416
  %v418 = vpop.f32.mrf.mxu0
  %v419 = vadd.f32 %v120, %v418
  %420 = vmatmul.bf16.gmra.mxu0 %v260
  %v421 = vpop.f32.mrf.mxu0
  %v422 = vadd.f32 %v120, %v421
  %v423 = vpop.f32.mrf.mxu0
  %v424 = vadd.f32 %v120, %v423
  %425 = vmatmul.bf16.gmra.mxu0 %v261
  %v426 = vpop.f32.mrf.mxu0
  %v427 = vadd.f32 %v120, %v426
  %v428 = vpop.f32.mrf.mxu0
  %v429 = vadd.f32 %v120, %v428
  %430 = vmatmul.bf16.gmra.mxu0 %v262
  %v431 = vpop.f32.mrf.mxu0
  %v432 = vadd.f32 %v120, %v431
  %v433 = vpop.f32.mrf.mxu0
  %v434 = vadd.f32 %v120, %v433
  %435 = vmatmul.bf16.gmra.mxu0 %v263
  %v436 = vpop.f32.mrf.mxu0
  %v437 = vadd.f32 %v120, %v436
  %v438 = vpop.f32.mrf.mxu0
  %v439 = vadd.f32 %v120, %v438
  %440 = vmatmul.bf16.gmra.mxu0 %v264
  %v441 = vpop.f32.mrf.mxu0
  %v442 = vadd.f32 %v120, %v441
  %v443 = vpop.f32.mrf.mxu0
  %v444 = vadd.f32 %v120, %v443
  %445 = vmatmul.bf16.gmra.mxu0 %v265
  %v446 = vpop.f32.mrf.mxu0
  %v447 = vadd.f32 %v120, %v446
  %v448 = vpop.f32.mrf.mxu0
  %v449 = vadd.f32 %v120, %v448
  %450 = vmatmul.bf16.gmra.mxu0 %v266
  %v451 = vpop.f32.mrf.mxu0
  %v452 = vadd.f32 %v120, %v451
  %v453 = vpop.f32.mrf.mxu0
  %v454 = vadd.f32 %v120, %v453
  %455 = vmatmul.bf16.gmra.mxu0 %v267
  %v456 = vpop.f32.mrf.mxu0
  %v457 = vadd.f32 %v120, %v456
  %v458 = vpop.f32.mrf.mxu0
  %v459 = vadd.f32 %v120, %v458
  %460 = vmatmul.bf16.gmra.mxu0 %v268
  %v461 = vpop.f32.mrf.mxu0
  %v462 = vadd.f32 %v120, %v461
  %v463 = vpop.f32.mrf.mxu0
  %v464 = vadd.f32 %v120, %v463
  %465 = vmatmul.bf16.gmra.mxu0 %v269
  %v466 = vpop.f32.mrf.mxu0
  %v467 = vadd.f32 %v120, %v466
  %v468 = vpop.f32.mrf.mxu0
  %v469 = vadd.f32 %v120, %v468
  %470 = vmatmul.bf16.gmra.mxu0 %v270
  %v471 = vpop.f32.mrf.mxu0
  %v472 = vadd.f32 %v120, %v471
  %v473 = vpop.f32.mrf.mxu0
  %v474 = vadd.f32 %v120, %v473
  %475 = vmatmul.bf16.gmra.mxu0 %v271
  %v476 = vpop.f32.mrf.mxu0
  %v477 = vadd.f32 %v120, %v476
  %v478 = vpop.f32.mrf.mxu0
  %v479 = vadd.f32 %v120, %v478
  %480 = vmatmul.bf16.gmra.mxu0 %v272
  %v481 = vpop.f32.mrf.mxu0
  %v482 = vadd.f32 %v120, %v481
  %v483 = vpop.f32.mrf.mxu0
  %v484 = vadd.f32 %v120, %v483
  %485 = vmatmul.bf16.gmra.mxu0 %v273
  %v486 = vpop.f32.mrf.mxu0
  %v487 = vadd.f32 %v120, %v486
  %v488 = vpop.f32.mrf.mxu0
  %v489 = vadd.f32 %v120, %v488
  %490 = vmatmul.bf16.gmra.mxu0 %v274
  %v491 = vpop.f32.mrf.mxu0
  %v492 = vadd.f32 %v120, %v491
  %v493 = vpop.f32.mrf.mxu0
  %v494 = vadd.f32 %v120, %v493
  %495 = vmatmul.bf16.gmra.mxu0 %v275
  %v496 = vpop.f32.mrf.mxu0
  %v497 = vadd.f32 %v120, %v496
  %v498 = vpop.f32.mrf.mxu0
  %v499 = vadd.f32 %v120, %v498
  %500 = vmatmul.bf16.gmra.mxu0 %v276
  %v501 = vpop.f32.mrf.mxu0
  %v502 = vadd.f32 %v120, %v501
  %v503 = vpop.f32.mrf.mxu0
  %v504 = vadd.f32 %v120, %v503
  %505 = vmatmul.bf16.gmra.mxu0 %v277
  %v506 = vpop.f32.mrf.mxu0
  %v507 = vadd.f32 %v120, %v506
  %v508 = vpop.f32.mrf.mxu0
  %v509 = vadd.f32 %v120, %v508
  %510 = vmatmul.bf16.gmra.mxu0 %v278
  %v511 = vpop.f32.mrf.mxu0
  %v512 = vadd.f32 %v120, %v511
  %v513 = vpop.f32.mrf.mxu0
  %v514 = vadd.f32 %v120, %v513
  %515 = vmatmul.bf16.gmra.mxu0 %v279
  %v516 = vpop.f32.mrf.mxu0
  %v517 = vadd.f32 %v120, %v516
  %v518 = vpop.f32.mrf.mxu0
  %v519 = vadd.f32 %v120, %v518
  %520 = vmatmul.bf16.gmra.mxu0 %v280
  %v521 = vpop.f32.mrf.mxu0
  %v522 = vadd.f32 %v120, %v521
  %v523 = vpop.f32.mrf.mxu0
  %v524 = vadd.f32 %v120, %v523
  %525 = vmatmul.bf16.gmra.mxu0 %v281
  %v526 = vpop.f32.mrf.mxu0
  %v527 = vadd.f32 %v120, %v526
  %v528 = vpop.f32.mrf.mxu0
  %v529 = vadd.f32 %v120, %v528
  %530 = vdwg.mxu0
  %v531 = vld [vmem:[%s3] sm:$0x1]
  %v532 = vld [vmem:[%s4] sm:$0x1]
  %v533 = vadd.f32 %v372, %v374
  %v534 = vadd.f32 %v533, %v377
  %v535 = vadd.f32 %v534, %v379
  %v536 = vadd.f32 %v535, %v382
  %v537 = vadd.f32 %v536, %v384
  %v538 = vadd.f32 %v537, %v387
  %v539 = vadd.f32 %v538, %v389
  %v540 = vadd.f32 %v539, %v392
  %v541 = vadd.f32 %v540, %v394
  %v542 = vadd.f32 %v541, %v397
  %v543 = vadd.f32 %v542, %v399
  %v544 = vadd.f32 %v543, %v402
  %v545 = vadd.f32 %v544, %v404
  %v546 = vadd.f32 %v545, %v407
  %v547 = vadd.f32 %v546, %v409
  %v548 = vadd.f32 %v547, %v412
  %v549 = vadd.f32 %v548, %v414
  %v550 = vadd.f32 %v549, %v417
  %v551 = vadd.f32 %v550, %v419
  %v552 = vadd.f32 %v551, %v422
  %v553 = vadd.f32 %v552, %v424
  %v554 = vadd.f32 %v553, %v427
  %v555 = vadd.f32 %v554, %v429
  %v556 = vadd.f32 %v555, %v432
  %v557 = vadd.f32 %v556, %v434
  %v558 = vadd.f32 %v557, %v437
  %v559 = vadd.f32 %v558, %v439
  %v560 = vadd.f32 %v559, %v442
  %v561 = vadd.f32 %v560, %v444
  %v562 = vadd.f32 %v561, %v447
  %v563 = vadd.f32 %v562, %v449
  %v564 = vadd.f32 %v563, %v452
  %v565 = vadd.f32 %v564, %v454
  %v566 = vadd.f32 %v565, %v457
  %v567 = vadd.f32 %v566, %v459
  %v568 = vadd.f32 %v567, %v462
  %v569 = vadd.f32 %v568, %v464
  %v570 = vadd.f32 %v569, %v467
  %v571 = vadd.f32 %v570, %v469
  %v572 = vadd.f32 %v571, %v472
  %v573 = vadd.f32 %v572, %v474
  %v574 = vadd.f32 %v573, %v477
  %v575 = vadd.f32 %v574, %v479
  %v576 = vadd.f32 %v575, %v482
  %v577 = vadd.f32 %v576, %v484
  %v578 = vadd.f32 %v577, %v487
  %v579 = vadd.f32 %v578, %v489
  %v580 = vadd.f32 %v579, %v492
  %v581 = vadd.f32 %v580, %v494
  %v582 = vadd.f32 %v581, %v497
  %v583 = vadd.f32 %v582, %v499
  %v584 = vadd.f32 %v583, %v502
  %v585 = vadd.f32 %v584, %v504
  %v586 = vadd.f32 %v585, %v507
  %v587 = vadd.f32 %v586, %v509
  %v588 = vadd.f32 %v587, %v512
  %v589 = vadd.f32 %v588, %v514
  %v590 = vadd.f32 %v589, %v517
  %v591 = vadd.f32 %v590, %v519
  %v592 = vadd.f32 %v591, %v522
  %v593 = vadd.f32 %v592, %v524
  %v594 = vadd.f32 %v593, %v527
  %v595 = vadd.f32 %v594, %v529
  %v596 = vrot.slane %v595, 4
  %v597 = vadd.f32 %v595, %v596
  %v598 = vrot.slane %v597, 2
  %v599 = vadd.f32 %v597, %v598
  %v600 = vrot.slane %v599, 1
  %v601 = vadd.f32 %v599, %v600
  %v602 = vrcp.pop 512.0
  %v603 = vmul.f32 512.0, %v602
  %v604 = vsub.f32 1.0, %v603
  %v605 = vmul.f32 %v602, %v604
  %v606 = vadd.f32 %v602, %v605
  %vm607 = vweird.f32 %v602
  %v608 = vsel %vm607, %v602, %v606
  %v609 = vmul.f32 %v601, %v608
  %v610 = vmul.f32 %v372, %v372
  %v611 = vmul.f32 %v374, %v374
  %v612 = vmul.f32 %v377, %v377
  %v613 = vmul.f32 %v379, %v379
  %v614 = vmul.f32 %v382, %v382
  %v615 = vmul.f32 %v384, %v384
  %v616 = vmul.f32 %v387, %v387
  %v617 = vmul.f32 %v389, %v389
  %v618 = vmul.f32 %v392, %v392
  %v619 = vmul.f32 %v394, %v394
  %v620 = vmul.f32 %v397, %v397
  %v621 = vmul.f32 %v399, %v399
  %v622 = vmul.f32 %v402, %v402
  %v623 = vmul.f32 %v404, %v404
  %v624 = vmul.f32 %v407, %v407
  %v625 = vmul.f32 %v409, %v409
  %v626 = vmul.f32 %v412, %v412
  %v627 = vmul.f32 %v414, %v414
  %v628 = vmul.f32 %v417, %v417
  %v629 = vmul.f32 %v419, %v419
  %v630 = vmul.f32 %v422, %v422
  %v631 = vmul.f32 %v424, %v424
  %v632 = vmul.f32 %v427, %v427
  %v633 = vmul.f32 %v429, %v429
  %v634 = vmul.f32 %v432, %v432
  %v635 = vmul.f32 %v434, %v434
  %v636 = vmul.f32 %v437, %v437
  %v637 = vmul.f32 %v439, %v439
  %v638 = vmul.f32 %v442, %v442
  %v639 = vmul.f32 %v444, %v444
  %v640 = vmul.f32 %v447, %v447
  %v641 = vmul.f32 %v449, %v449
  %v642 = vmul.f32 %v452, %v452
  %v643 = vmul.f32 %v454, %v454
  %v644 = vmul.f32 %v457, %v457
  %v645 = vmul.f32 %v459, %v459
  %v646 = vmul.f32 %v462, %v462
  %v647 = vmul.f32 %v464, %v464
  %v648 = vmul.f32 %v467, %v467
  %v649 = vmul.f32 %v469, %v469
  %v650 = vmul.f32 %v472, %v472
  %v651 = vmul.f32 %v474, %v474
  %v652 = vmul.f32 %v477, %v477
  %v653 = vmul.f32 %v479, %v479
  %v654 = vmul.f32 %v482, %v482
  %v655 = vmul.f32 %v484, %v484
  %v656 = vmul.f32 %v487, %v487
  %v657 = vmul.f32 %v489, %v489
  %v658 = vmul.f32 %v492, %v492
  %v659 = vmul.f32 %v494, %v494
  %v660 = vmul.f32 %v497, %v497
  %v661 = vmul.f32 %v499, %v499
  %v662 = vmul.f32 %v502, %v502
  %v663 = vmul.f32 %v504, %v504
  %v664 = vmul.f32 %v507, %v507
  %v665 = vmul.f32 %v509, %v509
  %v666 = vmul.f32 %v512, %v512
  %v667 = vmul.f32 %v514, %v514
  %v668 = vmul.f32 %v517, %v517
  %v669 = vmul.f32 %v519, %v519
  %v670 = vmul.f32 %v522, %v522
  %v671 = vmul.f32 %v524, %v524
  %v672 = vmul.f32 %v527, %v527
  %v673 = vmul.f32 %v529, %v529
  %v674 = vadd.f32 %v610, %v611
  %v675 = vadd.f32 %v674, %v612
  %v676 = vadd.f32 %v675, %v613
  %v677 = vadd.f32 %v676, %v614
  %v678 = vadd.f32 %v677, %v615
  %v679 = vadd.f32 %v678, %v616
  %v680 = vadd.f32 %v679, %v617
  %v681 = vadd.f32 %v680, %v618
  %v682 = vadd.f32 %v681, %v619
  %v683 = vadd.f32 %v682, %v620
  %v684 = vadd.f32 %v683, %v621
  %v685 = vadd.f32 %v684, %v622
  %v686 = vadd.f32 %v685, %v623
  %v687 = vadd.f32 %v686, %v624
  %v688 = vadd.f32 %v687, %v625
  %v689 = vadd.f32 %v688, %v626
  %v690 = vadd.f32 %v689, %v627
  %v691 = vadd.f32 %v690, %v628
  %v692 = vadd.f32 %v691, %v629
  %v693 = vadd.f32 %v692, %v630
  %v694 = vadd.f32 %v693, %v631
  %v695 = vadd.f32 %v694, %v632
  %v696 = vadd.f32 %v695, %v633
  %v697 = vadd.f32 %v696, %v634
  %v698 = vadd.f32 %v697, %v635
  %v699 = vadd.f32 %v698, %v636
  %v700 = vadd.f32 %v699, %v637
  %v701 = vadd.f32 %v700, %v638
  %v702 = vadd.f32 %v701, %v639
  %v703 = vadd.f32 %v702, %v640
  %v704 = vadd.f32 %v703, %v641
  %v705 = vadd.f32 %v704, %v642
  %v706 = vadd.f32 %v705, %v643
  %v707 = vadd.f32 %v706, %v644
  %v708 = vadd.f32 %v707, %v645
  %v709 = vadd.f32 %v708, %v646
  %v710 = vadd.f32 %v709, %v647
  %v711 = vadd.f32 %v710, %v648
  %v712 = vadd.f32 %v711, %v649
  %v713 = vadd.f32 %v712, %v650
  %v714 = vadd.f32 %v713, %v651
  %v715 = vadd.f32 %v714, %v652
  %v716 = vadd.f32 %v715, %v653
  %v717 = vadd.f32 %v716, %v654
  %v718 = vadd.f32 %v717, %v655
  %v719 = vadd.f32 %v718, %v656
  %v720 = vadd.f32 %v719, %v657
  %v721 = vadd.f32 %v720, %v658
  %v722 = vadd.f32 %v721, %v659
  %v723 = vadd.f32 %v722, %v660
  %v724 = vadd.f32 %v723, %v661
  %v725 = vadd.f32 %v724, %v662
  %v726 = vadd.f32 %v725, %v663
  %v727 = vadd.f32 %v726, %v664
  %v728 = vadd.f32 %v727, %v665
  %v729 = vadd.f32 %v728, %v666
  %v730 = vadd.f32 %v729, %v667
  %v731 = vadd.f32 %v730, %v668
  %v732 = vadd.f32 %v731, %v669
  %v733 = vadd.f32 %v732, %v670
  %v734 = vadd.f32 %v733, %v671
  %v735 = vadd.f32 %v734, %v672
  %v736 = vadd.f32 %v735, %v673
  %v737 = vrot.slane %v736, 4
  %v738 = vadd.f32 %v736, %v737
  %v739 = vrot.slane %v738, 2
  %v740 = vadd.f32 %v738, %v739
  %v741 = vrot.slane %v740, 1
  %v742 = vadd.f32 %v740, %v741
  %v743 = vmul.f32 %v742, %v608
  %v744 = vmul.f32 %v609, %v609
  %v745 = vsub.f32 %v743, %v744
  %v746 = vmax.f32 %v745, 0.0
  %v747 = vsub.f32 %v372, %v609
  %v748 = vsub.f32 %v374, %v609
  %v749 = vsub.f32 %v377, %v609
  %v750 = vsub.f32 %v379, %v609
  %v751 = vsub.f32 %v382, %v609
  %v752 = vsub.f32 %v384, %v609
  %v753 = vsub.f32 %v387, %v609
  %v754 = vsub.f32 %v389, %v609
  %v755 = vsub.f32 %v392, %v609
  %v756 = vsub.f32 %v394, %v609
  %v757 = vsub.f32 %v397, %v609
  %v758 = vsub.f32 %v399, %v609
  %v759 = vsub.f32 %v402, %v609
  %v760 = vsub.f32 %v404, %v609
  %v761 = vsub.f32 %v407, %v609
  %v762 = vsub.f32 %v409, %v609
  %v763 = vsub.f32 %v412, %v609
  %v764 = vsub.f32 %v414, %v609
  %v765 = vsub.f32 %v417, %v609
  %v766 = vsub.f32 %v419, %v609
  %v767 = vsub.f32 %v422, %v609
  %v768 = vsub.f32 %v424, %v609
  %v769 = vsub.f32 %v427, %v609
  %v770 = vsub.f32 %v429, %v609
  %v771 = vsub.f32 %v432, %v609
  %v772 = vsub.f32 %v434, %v609
  %v773 = vsub.f32 %v437, %v609
  %v774 = vsub.f32 %v439, %v609
  %v775 = vsub.f32 %v442, %v609
  %v776 = vsub.f32 %v444, %v609
  %v777 = vsub.f32 %v447, %v609
  %v778 = vsub.f32 %v449, %v609
  %v779 = vsub.f32 %v452, %v609
  %v780 = vsub.f32 %v454, %v609
  %v781 = vsub.f32 %v457, %v609
  %v782 = vsub.f32 %v459, %v609
  %v783 = vsub.f32 %v462, %v609
  %v784 = vsub.f32 %v464, %v609
  %v785 = vsub.f32 %v467, %v609
  %v786 = vsub.f32 %v469, %v609
  %v787 = vsub.f32 %v472, %v609
  %v788 = vsub.f32 %v474, %v609
  %v789 = vsub.f32 %v477, %v609
  %v790 = vsub.f32 %v479, %v609
  %v791 = vsub.f32 %v482, %v609
  %v792 = vsub.f32 %v484, %v609
  %v793 = vsub.f32 %v487, %v609
  %v794 = vsub.f32 %v489, %v609
  %v795 = vsub.f32 %v492, %v609
  %v796 = vsub.f32 %v494, %v609
  %v797 = vsub.f32 %v497, %v609
  %v798 = vsub.f32 %v499, %v609
  %v799 = vsub.f32 %v502, %v609
  %v800 = vsub.f32 %v504, %v609
  %v801 = vsub.f32 %v507, %v609
  %v802 = vsub.f32 %v509, %v609
  %v803 = vsub.f32 %v512, %v609
  %v804 = vsub.f32 %v514, %v609
  %v805 = vsub.f32 %v517, %v609
  %v806 = vsub.f32 %v519, %v609
  %v807 = vsub.f32 %v522, %v609
  %v808 = vsub.f32 %v524, %v609
  %v809 = vsub.f32 %v527, %v609
  %v810 = vsub.f32 %v529, %v609
  %v811 = vadd.f32 %v746, 1e-05
  %v812 = vrsqrt.pop %v811
  %v813 = vmul.f32 %v812, %v811
  %v814 = vmul.f32 %v813, %v812
  %v815 = vmul.f32 0.5, %v814
  %v816 = vsub.f32 1.5, %v815
  %v817 = vmul.f32 %v812, %v816
  %vm818 = vweird.f32 %v811
  %vm819 = vweird.f32 %v812
  %vm820 = vmor %vm818, %vm819
  %v821 = vsel %vm820, %v812, %v817
  %v822 = vmul.f32 %v747, %v821
  %v823 = vmul.f32 %v748, %v821
  %v824 = vmul.f32 %v749, %v821
  %v825 = vmul.f32 %v750, %v821
  %v826 = vmul.f32 %v751, %v821
  %v827 = vmul.f32 %v752, %v821
  %v828 = vmul.f32 %v753, %v821
  %v829 = vmul.f32 %v754, %v821
  %v830 = vmul.f32 %v755, %v821
  %v831 = vmul.f32 %v756, %v821
  %v832 = vmul.f32 %v757, %v821
  %v833 = vmul.f32 %v758, %v821
  %v834 = vmul.f32 %v759, %v821
  %v835 = vmul.f32 %v760, %v821
  %v836 = vmul.f32 %v761, %v821
  %v837 = vmul.f32 %v762, %v821
  %v838 = vmul.f32 %v763, %v821
  %v839 = vmul.f32 %v764, %v821
  %v840 = vmul.f32 %v765, %v821
  %v841 = vmul.f32 %v766, %v821
  %v842 = vmul.f32 %v767, %v821
  %v843 = vmul.f32 %v768, %v821
  %v844 = vmul.f32 %v769, %v821
  %v845 = vmul.f32 %v770, %v821
  %v846 = vmul.f32 %v771, %v821
  %v847 = vmul.f32 %v772, %v821
  %v848 = vmul.f32 %v773, %v821
  %v849 = vmul.f32 %v774, %v821
  %v850 = vmul.f32 %v775, %v821
  %v851 = vmul.f32 %v776, %v821
  %v852 = vmul.f32 %v777, %v821
  %v853 = vmul.f32 %v778, %v821
  %v854 = vmul.f32 %v779, %v821
  %v855 = vmul.f32 %v780, %v821
  %v856 = vmul.f32 %v781, %v821
  %v857 = vmul.f32 %v782, %v821
  %v858 = vmul.f32 %v783, %v821
  %v859 = vmul.f32 %v784, %v821
  %v860 = vmul.f32 %v785, %v821
  %v861 = vmul.f32 %v786, %v821
  %v862 = vmul.f32 %v787, %v821
  %v863 = vmul.f32 %v788, %v821
  %v864 = vmul.f32 %v789, %v821
  %v865 = vmul.f32 %v790, %v821
  %v866 = vmul.f32 %v791, %v821
  %v867 = vmul.f32 %v792, %v821
  %v868 = vmul.f32 %v793, %v821
  %v869 = vmul.f32 %v794, %v821
  %v870 = vmul.f32 %v795, %v821
  %v871 = vmul.f32 %v796, %v821
  %v872 = vmul.f32 %v797, %v821
  %v873 = vmul.f32 %v798, %v821
  %v874 = vmul.f32 %v799, %v821
  %v875 = vmul.f32 %v800, %v821
  %v876 = vmul.f32 %v801, %v821
  %v877 = vmul.f32 %v802, %v821
  %v878 = vmul.f32 %v803, %v821
  %v879 = vmul.f32 %v804, %v821
  %v880 = vmul.f32 %v805, %v821
  %v881 = vmul.f32 %v806, %v821
  %v882 = vmul.f32 %v807, %v821
  %v883 = vmul.f32 %v808, %v821
  %v884 = vmul.f32 %v809, %v821
  %v885 = vmul.f32 %v810, %v821
  %v887 = vperm.slane %v531, 0
  %v889 = vmul.f32 %v822, %v887
  %v890 = vmul.f32 %v823, %v887
  %v891 = vmul.f32 %v824, %v887
  %v892 = vmul.f32 %v825, %v887
  %v893 = vmul.f32 %v826, %v887
  %v894 = vmul.f32 %v827, %v887
  %v895 = vmul.f32 %v828, %v887
  %v896 = vmul.f32 %v829, %v887
  %v897 = vmul.f32 %v830, %v887
  %v898 = vmul.f32 %v831, %v887
  %v899 = vmul.f32 %v832, %v887
  %v900 = vmul.f32 %v833, %v887
  %v901 = vmul.f32 %v834, %v887
  %v902 = vmul.f32 %v835, %v887
  %v903 = vmul.f32 %v836, %v887
  %v904 = vmul.f32 %v837, %v887
  %v905 = vmul.f32 %v838, %v887
  %v906 = vmul.f32 %v839, %v887
  %v907 = vmul.f32 %v840, %v887
  %v908 = vmul.f32 %v841, %v887
  %v909 = vmul.f32 %v842, %v887
  %v910 = vmul.f32 %v843, %v887
  %v911 = vmul.f32 %v844, %v887
  %v912 = vmul.f32 %v845, %v887
  %v913 = vmul.f32 %v846, %v887
  %v914 = vmul.f32 %v847, %v887
  %v915 = vmul.f32 %v848, %v887
  %v916 = vmul.f32 %v849, %v887
  %v917 = vmul.f32 %v850, %v887
  %v918 = vmul.f32 %v851, %v887
  %v919 = vmul.f32 %v852, %v887
  %v920 = vmul.f32 %v853, %v887
  %v921 = vmul.f32 %v854, %v887
  %v922 = vmul.f32 %v855, %v887
  %v923 = vmul.f32 %v856, %v887
  %v924 = vmul.f32 %v857, %v887
  %v925 = vmul.f32 %v858, %v887
  %v926 = vmul.f32 %v859, %v887
  %v927 = vmul.f32 %v860, %v887
  %v928 = vmul.f32 %v861, %v887
  %v929 = vmul.f32 %v862, %v887
  %v930 = vmul.f32 %v863, %v887
  %v931 = vmul.f32 %v864, %v887
  %v932 = vmul.f32 %v865, %v887
  %v933 = vmul.f32 %v866, %v887
  %v934 = vmul.f32 %v867, %v887
  %v935 = vmul.f32 %v868, %v887
  %v936 = vmul.f32 %v869, %v887
  %v937 = vmul.f32 %v870, %v887
  %v938 = vmul.f32 %v871, %v887
  %v939 = vmul.f32 %v872, %v887
  %v940 = vmul.f32 %v873, %v887
  %v941 = vmul.f32 %v874, %v887
  %v942 = vmul.f32 %v875, %v887
  %v943 = vmul.f32 %v876, %v887
  %v944 = vmul.f32 %v877, %v887
  %v945 = vmul.f32 %v878, %v887
  %v946 = vmul.f32 %v879, %v887
  %v947 = vmul.f32 %v880, %v887
  %v948 = vmul.f32 %v881, %v887
  %v949 = vmul.f32 %v882, %v887
  %v950 = vmul.f32 %v883, %v887
  %v951 = vmul.f32 %v884, %v887
  %v952 = vmul.f32 %v885, %v887
  %v954 = vperm.slane %v532, 0
  %v956 = vadd.f32 %v889, %v954
  %v957 = vadd.f32 %v890, %v954
  %v958 = vadd.f32 %v891, %v954
  %v959 = vadd.f32 %v892, %v954
  %v960 = vadd.f32 %v893, %v954
  %v961 = vadd.f32 %v894, %v954
  %v962 = vadd.f32 %v895, %v954
  %v963 = vadd.f32 %v896, %v954
  %v964 = vadd.f32 %v897, %v954
  %v965 = vadd.f32 %v898, %v954
  %v966 = vadd.f32 %v899, %v954
  %v967 = vadd.f32 %v900, %v954
  %v968 = vadd.f32 %v901, %v954
  %v969 = vadd.f32 %v902, %v954
  %v970 = vadd.f32 %v903, %v954
  %v971 = vadd.f32 %v904, %v954
  %v972 = vadd.f32 %v905, %v954
  %v973 = vadd.f32 %v906, %v954
  %v974 = vadd.f32 %v907, %v954
  %v975 = vadd.f32 %v908, %v954
  %v976 = vadd.f32 %v909, %v954
  %v977 = vadd.f32 %v910, %v954
  %v978 = vadd.f32 %v911, %v954
  %v979 = vadd.f32 %v912, %v954
  %v980 = vadd.f32 %v913, %v954
  %v981 = vadd.f32 %v914, %v954
  %v982 = vadd.f32 %v915, %v954
  %v983 = vadd.f32 %v916, %v954
  %v984 = vadd.f32 %v917, %v954
  %v985 = vadd.f32 %v918, %v954
  %v986 = vadd.f32 %v919, %v954
  %v987 = vadd.f32 %v920, %v954
  %v988 = vadd.f32 %v921, %v954
  %v989 = vadd.f32 %v922, %v954
  %v990 = vadd.f32 %v923, %v954
  %v991 = vadd.f32 %v924, %v954
  %v992 = vadd.f32 %v925, %v954
  %v993 = vadd.f32 %v926, %v954
  %v994 = vadd.f32 %v927, %v954
  %v995 = vadd.f32 %v928, %v954
  %v996 = vadd.f32 %v929, %v954
  %v997 = vadd.f32 %v930, %v954
  %v998 = vadd.f32 %v931, %v954
  %v999 = vadd.f32 %v932, %v954
  %v1000 = vadd.f32 %v933, %v954
  %v1001 = vadd.f32 %v934, %v954
  %v1002 = vadd.f32 %v935, %v954
  %v1003 = vadd.f32 %v936, %v954
  %v1004 = vadd.f32 %v937, %v954
  %v1005 = vadd.f32 %v938, %v954
  %v1006 = vadd.f32 %v939, %v954
  %v1007 = vadd.f32 %v940, %v954
  %v1008 = vadd.f32 %v941, %v954
  %v1009 = vadd.f32 %v942, %v954
  %v1010 = vadd.f32 %v943, %v954
  %v1011 = vadd.f32 %v944, %v954
  %v1012 = vadd.f32 %v945, %v954
  %v1013 = vadd.f32 %v946, %v954
  %v1014 = vadd.f32 %v947, %v954
  %v1015 = vadd.f32 %v948, %v954
  %v1016 = vadd.f32 %v949, %v954
  %v1017 = vadd.f32 %v950, %v954
  %v1018 = vadd.f32 %v951, %v954
  %v1019 = vadd.f32 %v952, %v954
  %v1020 = vmax.f32 %v956, 0.0
  %v1021 = vmax.f32 %v957, 0.0
  %v1022 = vmax.f32 %v958, 0.0
  %v1023 = vmax.f32 %v959, 0.0
  %v1024 = vmax.f32 %v960, 0.0
  %v1025 = vmax.f32 %v961, 0.0
  %v1026 = vmax.f32 %v962, 0.0
  %v1027 = vmax.f32 %v963, 0.0
  %v1028 = vmax.f32 %v964, 0.0
  %v1029 = vmax.f32 %v965, 0.0
  %v1030 = vmax.f32 %v966, 0.0
  %v1031 = vmax.f32 %v967, 0.0
  %v1032 = vmax.f32 %v968, 0.0
  %v1033 = vmax.f32 %v969, 0.0
  %v1034 = vmax.f32 %v970, 0.0
  %v1035 = vmax.f32 %v971, 0.0
  %v1036 = vmax.f32 %v972, 0.0
  %v1037 = vmax.f32 %v973, 0.0
  %v1038 = vmax.f32 %v974, 0.0
  %v1039 = vmax.f32 %v975, 0.0
  %v1040 = vmax.f32 %v976, 0.0
  %v1041 = vmax.f32 %v977, 0.0
  %v1042 = vmax.f32 %v978, 0.0
  %v1043 = vmax.f32 %v979, 0.0
  %v1044 = vmax.f32 %v980, 0.0
  %v1045 = vmax.f32 %v981, 0.0
  %v1046 = vmax.f32 %v982, 0.0
  %v1047 = vmax.f32 %v983, 0.0
  %v1048 = vmax.f32 %v984, 0.0
  %v1049 = vmax.f32 %v985, 0.0
  %v1050 = vmax.f32 %v986, 0.0
  %v1051 = vmax.f32 %v987, 0.0
  %v1052 = vmax.f32 %v988, 0.0
  %v1053 = vmax.f32 %v989, 0.0
  %v1054 = vmax.f32 %v990, 0.0
  %v1055 = vmax.f32 %v991, 0.0
  %v1056 = vmax.f32 %v992, 0.0
  %v1057 = vmax.f32 %v993, 0.0
  %v1058 = vmax.f32 %v994, 0.0
  %v1059 = vmax.f32 %v995, 0.0
  %v1060 = vmax.f32 %v996, 0.0
  %v1061 = vmax.f32 %v997, 0.0
  %v1062 = vmax.f32 %v998, 0.0
  %v1063 = vmax.f32 %v999, 0.0
  %v1064 = vmax.f32 %v1000, 0.0
  %v1065 = vmax.f32 %v1001, 0.0
  %v1066 = vmax.f32 %v1002, 0.0
  %v1067 = vmax.f32 %v1003, 0.0
  %v1068 = vmax.f32 %v1004, 0.0
  %v1069 = vmax.f32 %v1005, 0.0
  %v1070 = vmax.f32 %v1006, 0.0
  %v1071 = vmax.f32 %v1007, 0.0
  %v1072 = vmax.f32 %v1008, 0.0
  %v1073 = vmax.f32 %v1009, 0.0
  %v1074 = vmax.f32 %v1010, 0.0
  %v1075 = vmax.f32 %v1011, 0.0
  %v1076 = vmax.f32 %v1012, 0.0
  %v1077 = vmax.f32 %v1013, 0.0
  %v1078 = vmax.f32 %v1014, 0.0
  %v1079 = vmax.f32 %v1015, 0.0
  %v1080 = vmax.f32 %v1016, 0.0
  %v1081 = vmax.f32 %v1017, 0.0
  %v1082 = vmax.f32 %v1018, 0.0
  %v1083 = vmax.f32 %v1019, 0.0
  %1084 = vst [vmem:[#allocation2] sm:$0xff] 0.0
  %1085 = vst [vmem:[#allocation2 + $0x8] sm:$0xff] 0.0
  %1086 = vst [vmem:[#allocation2 + $0x10] sm:$0x3] 0.0
  %1087 = vst [vmem:[#allocation2 + $0x1b0] sm:$0xff] 0.0
  %1088 = vst [vmem:[#allocation2 + $0x1b8] sm:$0xff] 0.0
  %1089 = vst [vmem:[#allocation2 + $0x1c0] sm:$0x3] 0.0
  %s1090 = scalar_lea.vmem [#allocation2], 408
  %1091 = vst [vmem:[%s1090] sm:$0xff] 0.0
  %1092 = vst [vmem:[%s1090 + $0x8] sm:$0xff] 0.0
  %1093 = vst [vmem:[%s1090 + $0x10] sm:$0x3] 0.0
  %1094 = vst [vmem:[%s1090 + $0x1b0] sm:$0xff] 0.0
  %1095 = vst [vmem:[%s1090 + $0x1b8] sm:$0xff] 0.0
  %1096 = vst [vmem:[%s1090 + $0x1c0] sm:$0x3] 0.0
  %s1097 = scalar_lea.vmem [#allocation2], 24
  %1098 = vst [vmem:[%s1097] sm:$0x1] 0.0
  %1099 = vst [vmem:[%s1097 + $0x18] sm:$0x1] 0.0
  %1100 = vst [vmem:[%s1097 + $0x30] sm:$0x1] 0.0
  %1101 = vst [vmem:[%s1097 + $0x48] sm:$0x1] 0.0
  %1102 = vst [vmem:[%s1097 + $0x60] sm:$0x1] 0.0
  %1103 = vst [vmem:[%s1097 + $0x78] sm:$0x1] 0.0
  %1104 = vst [vmem:[%s1097 + $0x90] sm:$0x1] 0.0
  %1105 = vst [vmem:[%s1097 + $0xa8] sm:$0x1] 0.0
  %1106 = vst [vmem:[%s1097 + $0xc0] sm:$0x1] 0.0
  %1107 = vst [vmem:[%s1097 + $0xd8] sm:$0x1] 0.0
  %1108 = vst [vmem:[%s1097 + $0xf0] sm:$0x1] 0.0
  %1109 = vst [vmem:[%s1097 + $0x108] sm:$0x1] 0.0
  %1110 = vst [vmem:[%s1097 + $0x120] sm:$0x1] 0.0
  %1111 = vst [vmem:[%s1097 + $0x138] sm:$0x1] 0.0
  %1112 = vst [vmem:[%s1097 + $0x150] sm:$0x1] 0.0
  %1113 = vst [vmem:[%s1097 + $0x168] sm:$0x1] 0.0
  %1114 = vst [vmem:[%s1097 + $0x1b0] sm:$0x1] 0.0
  %1115 = vst [vmem:[%s1097 + $0x1c8] sm:$0x1] 0.0
  %1116 = vst [vmem:[%s1097 + $0x1e0] sm:$0x1] 0.0
  %1117 = vst [vmem:[%s1097 + $0x1f8] sm:$0x1] 0.0
  %1118 = vst [vmem:[%s1097 + $0x210] sm:$0x1] 0.0
  %1119 = vst [vmem:[%s1097 + $0x228] sm:$0x1] 0.0
  %1120 = vst [vmem:[%s1097 + $0x240] sm:$0x1] 0.0
  %1121 = vst [vmem:[%s1097 + $0x258] sm:$0x1] 0.0
  %1122 = vst [vmem:[%s1097 + $0x270] sm:$0x1] 0.0
  %1123 = vst [vmem:[%s1097 + $0x288] sm:$0x1] 0.0
  %1124 = vst [vmem:[%s1097 + $0x2a0] sm:$0x1] 0.0
  %1125 = vst [vmem:[%s1097 + $0x2b8] sm:$0x1] 0.0
  %1126 = vst [vmem:[%s1097 + $0x2d0] sm:$0x1] 0.0
  %1127 = vst [vmem:[%s1097 + $0x2e8] sm:$0x1] 0.0
  %1128 = vst [vmem:[%s1097 + $0x300] sm:$0x1] 0.0
  %1129 = vst [vmem:[%s1097 + $0x318] sm:$0x1] 0.0
  %1130 = vst [vmem:[%s1097 + $0x11] sm:$0x1] 0.0
  %1131 = vst [vmem:[%s1097 + $0x29] sm:$0x1] 0.0
  %1132 = vst [vmem:[%s1097 + $0x41] sm:$0x1] 0.0
  %1133 = vst [vmem:[%s1097 + $0x59] sm:$0x1] 0.0
  %1134 = vst [vmem:[%s1097 + $0x71] sm:$0x1] 0.0
  %1135 = vst [vmem:[%s1097 + $0x89] sm:$0x1] 0.0
  %1136 = vst [vmem:[%s1097 + $0xa1] sm:$0x1] 0.0
  %1137 = vst [vmem:[%s1097 + $0xb9] sm:$0x1] 0.0
  %1138 = vst [vmem:[%s1097 + $0xd1] sm:$0x1] 0.0
  %1139 = vst [vmem:[%s1097 + $0xe9] sm:$0x1] 0.0
  %1140 = vst [vmem:[%s1097 + $0x101] sm:$0x1] 0.0
  %1141 = vst [vmem:[%s1097 + $0x119] sm:$0x1] 0.0
  %1142 = vst [vmem:[%s1097 + $0x131] sm:$0x1] 0.0
  %1143 = vst [vmem:[%s1097 + $0x149] sm:$0x1] 0.0
  %1144 = vst [vmem:[%s1097 + $0x161] sm:$0x1] 0.0
  %1145 = vst [vmem:[%s1097 + $0x179] sm:$0x1] 0.0
  %1146 = vst [vmem:[%s1097 + $0x1c1] sm:$0x1] 0.0
  %1147 = vst [vmem:[%s1097 + $0x1d9] sm:$0x1] 0.0
  %1148 = vst [vmem:[%s1097 + $0x1f1] sm:$0x1] 0.0
  %1149 = vst [vmem:[%s1097 + $0x209] sm:$0x1] 0.0
  %1150 = vst [vmem:[%s1097 + $0x221] sm:$0x1] 0.0
  %1151 = vst [vmem:[%s1097 + $0x239] sm:$0x1] 0.0
  %1152 = vst [vmem:[%s1097 + $0x251] sm:$0x1] 0.0
  %1153 = vst [vmem:[%s1097 + $0x269] sm:$0x1] 0.0
  %1154 = vst [vmem:[%s1097 + $0x281] sm:$0x1] 0.0
  %1155 = vst [vmem:[%s1097 + $0x299] sm:$0x1] 0.0
  %1156 = vst [vmem:[%s1097 + $0x2b1] sm:$0x1] 0.0
  %1157 = vst [vmem:[%s1097 + $0x2c9] sm:$0x1] 0.0
  %1158 = vst [vmem:[%s1097 + $0x2e1] sm:$0x1] 0.0
  %1159 = vst [vmem:[%s1097 + $0x2f9] sm:$0x1] 0.0
  %1160 = vst [vmem:[%s1097 + $0x311] sm:$0x1] 0.0
  %1161 = vst [vmem:[%s1097 + $0x329] sm:$0x1] 0.0
  %1162 = vst [vmem:[%s1097 + $0x1] sm:$0xff] %v1020
  %1163 = vst [vmem:[%s1097 + $0x9] sm:$0xff] %v1021
  %1164 = vst [vmem:[%s1097 + $0x19] sm:$0xff] %v1022
  %1165 = vst [vmem:[%s1097 + $0x21] sm:$0xff] %v1023
  %1166 = vst [vmem:[%s1097 + $0x31] sm:$0xff] %v1024
  %1167 = vst [vmem:[%s1097 + $0x39] sm:$0xff] %v1025
  %1168 = vst [vmem:[%s1097 + $0x49] sm:$0xff] %v1026
  %1169 = vst [vmem:[%s1097 + $0x51] sm:$0xff] %v1027
  %1170 = vst [vmem:[%s1097 + $0x61] sm:$0xff] %v1028
  %1171 = vst [vmem:[%s1097 + $0x69] sm:$0xff] %v1029
  %1172 = vst [vmem:[%s1097 + $0x79] sm:$0xff] %v1030
  %1173 = vst [vmem:[%s1097 + $0x81] sm:$0xff] %v1031
  %1174 = vst [vmem:[%s1097 + $0x91] sm:$0xff] %v1032
  %1175 = vst [vmem:[%s1097 + $0x99] sm:$0xff] %v1033
  %1176 = vst [vmem:[%s1097 + $0xa9] sm:$0xff] %v1034
  %1177 = vst [vmem:[%s1097 + $0xb1] sm:$0xff] %v1035
  %1178 = vst [vmem:[%s1097 + $0xc1] sm:$0xff] %v1036
  %1179 = vst [vmem:[%s1097 + $0xc9] sm:$0xff] %v1037
  %1180 = vst [vmem:[%s1097 + $0xd9] sm:$0xff] %v1038
  %1181 = vst [vmem:[%s1097 + $0xe1] sm:$0xff] %v1039
  %1182 = vst [vmem:[%s1097 + $0xf1] sm:$0xff] %v1040
  %1183 = vst [vmem:[%s1097 + $0xf9] sm:$0xff] %v1041
  %1184 = vst [vmem:[%s1097 + $0x109] sm:$0xff] %v1042
  %1185 = vst [vmem:[%s1097 + $0x111] sm:$0xff] %v1043
  %1186 = vst [vmem:[%s1097 + $0x121] sm:$0xff] %v1044
  %1187 = vst [vmem:[%s1097 + $0x129] sm:$0xff] %v1045
  %1188 = vst [vmem:[%s1097 + $0x139] sm:$0xff] %v1046
  %1189 = vst [vmem:[%s1097 + $0x141] sm:$0xff] %v1047
  %1190 = vst [vmem:[%s1097 + $0x151] sm:$0xff] %v1048
  %1191 = vst [vmem:[%s1097 + $0x159] sm:$0xff] %v1049
  %1192 = vst [vmem:[%s1097 + $0x169] sm:$0xff] %v1050
  %1193 = vst [vmem:[%s1097 + $0x171] sm:$0xff] %v1051
  %1194 = vst [vmem:[%s1097 + $0x1b1] sm:$0xff] %v1052
  %1195 = vst [vmem:[%s1097 + $0x1b9] sm:$0xff] %v1053
  %1196 = vst [vmem:[%s1097 + $0x1c9] sm:$0xff] %v1054
  %1197 = vst [vmem:[%s1097 + $0x1d1] sm:$0xff] %v1055
  %1198 = vst [vmem:[%s1097 + $0x1e1] sm:$0xff] %v1056
  %1199 = vst [vmem:[%s1097 + $0x1e9] sm:$0xff] %v1057
  %1200 = vst [vmem:[%s1097 + $0x1f9] sm:$0xff] %v1058
  %1201 = vst [vmem:[%s1097 + $0x201] sm:$0xff] %v1059
  %1202 = vst [vmem:[%s1097 + $0x211] sm:$0xff] %v1060
  %1203 = vst [vmem:[%s1097 + $0x219] sm:$0xff] %v1061
  %1204 = vst [vmem:[%s1097 + $0x229] sm:$0xff] %v1062
  %1205 = vst [vmem:[%s1097 + $0x231] sm:$0xff] %v1063
  %1206 = vst [vmem:[%s1097 + $0x241] sm:$0xff] %v1064
  %1207 = vst [vmem:[%s1097 + $0x249] sm:$0xff] %v1065
  %1208 = vst [vmem:[%s1097 + $0x259] sm:$0xff] %v1066
  %1209 = vst [vmem:[%s1097 + $0x261] sm:$0xff] %v1067
  %1210 = vst [vmem:[%s1097 + $0x271] sm:$0xff] %v1068
  %1211 = vst [vmem:[%s1097 + $0x279] sm:$0xff] %v1069
  %1212 = vst [vmem:[%s1097 + $0x289] sm:$0xff] %v1070
  %1213 = vst [vmem:[%s1097 + $0x291] sm:$0xff] %v1071
  %1214 = vst [vmem:[%s1097 + $0x2a1] sm:$0xff] %v1072
  %1215 = vst [vmem:[%s1097 + $0x2a9] sm:$0xff] %v1073
  %1216 = vst [vmem:[%s1097 + $0x2b9] sm:$0xff] %v1074
  %1217 = vst [vmem:[%s1097 + $0x2c1] sm:$0xff] %v1075
  %1218 = vst [vmem:[%s1097 + $0x2d1] sm:$0xff] %v1076
  %1219 = vst [vmem:[%s1097 + $0x2d9] sm:$0xff] %v1077
  %1220 = vst [vmem:[%s1097 + $0x2e9] sm:$0xff] %v1078
  %1221 = vst [vmem:[%s1097 + $0x2f1] sm:$0xff] %v1079
  %1222 = vst [vmem:[%s1097 + $0x301] sm:$0xff] %v1080
  %1223 = vst [vmem:[%s1097 + $0x309] sm:$0xff] %v1081
  %1224 = vst [vmem:[%s1097 + $0x319] sm:$0xff] %v1082
  %1225 = vst [vmem:[%s1097 + $0x321] sm:$0xff] %v1083
  %v1226 = vld [vmem:[#allocation2] sm:$0xff]
  %v1227 = vld [vmem:[#allocation2 + $0x8] sm:$0xff]
  %v1228 = vld [vmem:[#allocation2 + $0x10] sm:$0x3]
  %v1229 = vld [vmem:[#allocation2 + $0x18] sm:$0xff]
  %v1230 = vld [vmem:[#allocation2 + $0x20] sm:$0xff]
  %v1231 = vld [vmem:[#allocation2 + $0x28] sm:$0x3]
  %v1232 = vld [vmem:[#allocation2 + $0x30] sm:$0xff]
  %v1233 = vld [vmem:[#allocation2 + $0x38] sm:$0xff]
  %v1234 = vld [vmem:[#allocation2 + $0x40] sm:$0x3]
  %v1235 = vld [vmem:[#allocation2 + $0x48] sm:$0xff]
  %v1236 = vld [vmem:[#allocation2 + $0x50] sm:$0xff]
  %v1237 = vld [vmem:[#allocation2 + $0x58] sm:$0x3]
  %v1238 = vld [vmem:[#allocation2 + $0x60] sm:$0xff]
  %v1239 = vld [vmem:[#allocation2 + $0x68] sm:$0xff]
  %v1240 = vld [vmem:[#allocation2 + $0x70] sm:$0x3]
  %v1241 = vld [vmem:[#allocation2 + $0x78] sm:$0xff]
  %v1242 = vld [vmem:[#allocation2 + $0x80] sm:$0xff]
  %v1243 = vld [vmem:[#allocation2 + $0x88] sm:$0x3]
  %v1244 = vld [vmem:[#allocation2 + $0x90] sm:$0xff]
  %v1245 = vld [vmem:[#allocation2 + $0x98] sm:$0xff]
  %v1246 = vld [vmem:[#allocation2 + $0xa0] sm:$0x3]
  %v1247 = vld [vmem:[#allocation2 + $0xa8] sm:$0xff]
  %v1248 = vld [vmem:[#allocation2 + $0xb0] sm:$0xff]
  %v1249 = vld [vmem:[#allocation2 + $0xb8] sm:$0x3]
  %v1250 = vld [vmem:[#allocation2 + $0xc0] sm:$0xff]
  %v1251 = vld [vmem:[#allocation2 + $0xc8] sm:$0xff]
  %v1252 = vld [vmem:[#allocation2 + $0xd0] sm:$0x3]
  %v1253 = vld [vmem:[#allocation2 + $0xd8] sm:$0xff]
  %v1254 = vld [vmem:[#allocation2 + $0xe0] sm:$0xff]
  %v1255 = vld [vmem:[#allocation2 + $0xe8] sm:$0x3]
  %v1256 = vld [vmem:[#allocation2 + $0xf0] sm:$0xff]
  %v1257 = vld [vmem:[#allocation2 + $0xf8] sm:$0xff]
  %v1258 = vld [vmem:[#allocation2 + $0x100] sm:$0x3]
  %v1259 = vld [vmem:[#allocation2 + $0x108] sm:$0xff]
  %v1260 = vld [vmem:[#allocation2 + $0x110] sm:$0xff]
  %v1261 = vld [vmem:[#allocation2 + $0x118] sm:$0x3]
  %v1262 = vld [vmem:[#allocation2 + $0x120] sm:$0xff]
  %v1263 = vld [vmem:[#allocation2 + $0x128] sm:$0xff]
  %v1264 = vld [vmem:[#allocation2 + $0x130] sm:$0x3]
  %v1265 = vld [vmem:[#allocation2 + $0x138] sm:$0xff]
  %v1266 = vld [vmem:[#allocation2 + $0x140] sm:$0xff]
  %v1267 = vld [vmem:[#allocation2 + $0x148] sm:$0x3]
  %v1268 = vld [vmem:[#allocation2 + $0x150] sm:$0xff]
  %v1269 = vld [vmem:[#allocation2 + $0x158] sm:$0xff]
  %v1270 = vld [vmem:[#allocation2 + $0x160] sm:$0x3]
  %v1271 = vld [vmem:[#allocation2 + $0x168] sm:$0xff]
  %v1272 = vld [vmem:[#allocation2 + $0x170] sm:$0xff]
  %v1273 = vld [vmem:[#allocation2 + $0x178] sm:$0x3]
  %v1274 = vld [vmem:[#allocation2 + $0x180] sm:$0xff]
  %v1275 = vld [vmem:[#allocation2 + $0x188] sm:$0xff]
  %v1276 = vld [vmem:[#allocation2 + $0x190] sm:$0x3]
  %v1277 = vld [vmem:[#allocation2 + $0x198] sm:$0xff]
  %v1278 = vld [vmem:[#allocation2 + $0x1a0] sm:$0xff]
  %v1279 = vld [vmem:[#allocation2 + $0x1a8] sm:$0x3]
  %v1280 = vld [vmem:[#allocation2 + $0x1b0] sm:$0xff]
  %v1281 = vld [vmem:[#allocation2 + $0x1b8] sm:$0xff]
  %v1282 = vld [vmem:[#allocation2 + $0x1c0] sm:$0x3]
  %v1283 = vld [vmem:[#allocation2 + $0x1c8] sm:$0xff]
  %v1284 = vld [vmem:[#allocation2 + $0x1d0] sm:$0xff]
  %v1285 = vld [vmem:[#allocation2 + $0x1d8] sm:$0x3]
  %v1286 = vld [vmem:[#allocation2 + $0x1e0] sm:$0xff]
  %v1287 = vld [vmem:[#allocation2 + $0x1e8] sm:$0xff]
  %v1288 = vld [vmem:[#allocation2 + $0x1f0] sm:$0x3]
  %v1289 = vld [vmem:[#allocation2 + $0x1f8] sm:$0xff]
  %v1290 = vld [vmem:[#allocation2 + $0x200] sm:$0xff]
  %v1291 = vld [vmem:[#allocation2 + $0x208] sm:$0x3]
  %v1292 = vld [vmem:[#allocation2 + $0x210] sm:$0xff]
  %v1293 = vld [vmem:[#allocation2 + $0x218] sm:$0xff]
  %v1294 = vld [vmem:[#allocation2 + $0x220] sm:$0x3]
  %v1295 = vld [vmem:[#allocation2 + $0x228] sm:$0xff]
  %v1296 = vld [vmem:[#allocation2 + $0x230] sm:$0xff]
  %v1297 = vld [vmem:[#allocation2 + $0x238] sm:$0x3]
  %v1298 = vld [vmem:[#allocation2 + $0x240] sm:$0xff]
  %v1299 = vld [vmem:[#allocation2 + $0x248] sm:$0xff]
  %v1300 = vld [vmem:[#allocation2 + $0x250] sm:$0x3]
  %v1301 = vld [vmem:[#allocation2 + $0x258] sm:$0xff]
  %v1302 = vld [vmem:[#allocation2 + $0x260] sm:$0xff]
  %v1303 = vld [vmem:[#allocation2 + $0x268] sm:$0x3]
  %v1304 = vld [vmem:[#allocation2 + $0x270] sm:$0xff]
  %v1305 = vld [vmem:[#allocation2 + $0x278] sm:$0xff]
  %v1306 = vld [vmem:[#allocation2 + $0x280] sm:$0x3]
  %v1307 = vld [vmem:[#allocation2 + $0x288] sm:$0xff]
  %v1308 = vld [vmem:[#allocation2 + $0x290] sm:$0xff]
  %v1309 = vld [vmem:[#allocation2 + $0x298] sm:$0x3]
  %v1310 = vld [vmem:[#allocation2 + $0x2a0] sm:$0xff]
  %v1311 = vld [vmem:[#allocation2 + $0x2a8] sm:$0xff]
  %v1312 = vld [vmem:[#allocation2 + $0x2b0] sm:$0x3]
  %v1313 = vld [vmem:[#allocation2 + $0x2b8] sm:$0xff]
  %v1314 = vld [vmem:[#allocation2 + $0x2c0] sm:$0xff]
  %v1315 = vld [vmem:[#allocation2 + $0x2c8] sm:$0x3]
  %v1316 = vld [vmem:[#allocation2 + $0x2d0] sm:$0xff]
  %v1317 = vld [vmem:[#allocation2 + $0x2d8] sm:$0xff]
  %v1318 = vld [vmem:[#allocation2 + $0x2e0] sm:$0x3]
  %v1319 = vld [vmem:[#allocation2 + $0x2e8] sm:$0xff]
  %v1320 = vld [vmem:[#allocation2 + $0x2f0] sm:$0xff]
  %v1321 = vld [vmem:[#allocation2 + $0x2f8] sm:$0x3]
  %v1322 = vld [vmem:[#allocation2 + $0x300] sm:$0xff]
  %v1323 = vld [vmem:[#allocation2 + $0x308] sm:$0xff]
  %v1324 = vld [vmem:[#allocation2 + $0x310] sm:$0x3]
  %v1325 = vld [vmem:[#allocation2 + $0x318] sm:$0xff]
  %v1326 = vld [vmem:[#allocation2 + $0x320] sm:$0xff]
  %v1327 = vld [vmem:[#allocation2 + $0x328] sm:$0x3]
  %v1328 = vld [vmem:[#allocation2 + $0x330] sm:$0xff]
  %v1329 = vld [vmem:[#allocation2 + $0x338] sm:$0xff]
  %v1330 = vld [vmem:[#allocation2 + $0x340] sm:$0x3]
  %v1331 = vld [vmem:[#allocation2 + $0x348] sm:$0xff]
  %v1332 = vld [vmem:[#allocation2 + $0x350] sm:$0xff]
  %v1333 = vld [vmem:[#allocation2 + $0x358] sm:$0x3]
  %v1334 = vpack.c.bf16 %v1226, %v1226
  %v1335 = vpack.c.bf16 %v1227, %v1227
  %v1336 = vpack.c.bf16 %v1229, %v1229
  %v1337 = vpack.c.bf16 %v1230, %v1230
  %v1338 = vpack.c.bf16 %v1232, %v1232
  %v1339 = vpack.c.bf16 %v1233, %v1233
  %v1340 = vpack.c.bf16 %v1235, %v1235
  %v1341 = vpack.c.bf16 %v1236, %v1236
  %v1342 = vpack.c.bf16 %v1238, %v1238
  %v1343 = vpack.c.bf16 %v1239, %v1239
  %v1344 = vpack.c.bf16 %v1241, %v1241
  %v1345 = vpack.c.bf16 %v1242, %v1242
  %v1346 = vpack.c.bf16 %v1244, %v1244
  %v1347 = vpack.c.bf16 %v1245, %v1245
  %v1348 = vpack.c.bf16 %v1247, %v1247
  %v1349 = vpack.c.bf16 %v1248, %v1248
  %v1350 = vpack.c.bf16 %v1250, %v1250
  %v1351 = vpack.c.bf16 %v1251, %v1251
  %v1352 = vpack.c.bf16 %v1253, %v1253
  %v1353 = vpack.c.bf16 %v1254, %v1254
  %v1354 = vpack.c.bf16 %v1256, %v1256
  %v1355 = vpack.c.bf16 %v1257, %v1257
  %v1356 = vpack.c.bf16 %v1259, %v1259
  %v1357 = vpack.c.bf16 %v1260, %v1260
  %v1358 = vpack.c.bf16 %v1262, %v1262
  %v1359 = vpack.c.bf16 %v1263, %v1263
  %v1360 = vpack.c.bf16 %v1265, %v1265
  %v1361 = vpack.c.bf16 %v1266, %v1266
  %v1362 = vpack.c.bf16 %v1268, %v1268
  %v1363 = vpack.c.bf16 %v1269, %v1269
  %v1364 = vpack.c.bf16 %v1271, %v1271
  %v1365 = vpack.c.bf16 %v1272, %v1272
  %v1366 = vpack.c.bf16 %v1280, %v1280
  %v1367 = vpack.c.bf16 %v1281, %v1281
  %v1368 = vpack.c.bf16 %v1283, %v1283
  %v1369 = vpack.c.bf16 %v1284, %v1284
  %v1370 = vpack.c.bf16 %v1286, %v1286
  %v1371 = vpack.c.bf16 %v1287, %v1287
  %v1372 = vpack.c.bf16 %v1289, %v1289
  %v1373 = vpack.c.bf16 %v1290, %v1290
  %v1374 = vpack.c.bf16 %v1292, %v1292
  %v1375 = vpack.c.bf16 %v1293, %v1293
  %v1376 = vpack.c.bf16 %v1295, %v1295
  %v1377 = vpack.c.bf16 %v1296, %v1296
  %v1378 = vpack.c.bf16 %v1298, %v1298
  %v1379 = vpack.c.bf16 %v1299, %v1299
  %v1380 = vpack.c.bf16 %v1301, %v1301
  %v1381 = vpack.c.bf16 %v1302, %v1302
  %v1382 = vpack.c.bf16 %v1304, %v1304
  %v1383 = vpack.c.bf16 %v1305, %v1305
  %v1384 = vpack.c.bf16 %v1307, %v1307
  %v1385 = vpack.c.bf16 %v1308, %v1308
  %v1386 = vpack.c.bf16 %v1310, %v1310
  %v1387 = vpack.c.bf16 %v1311, %v1311
  %v1388 = vpack.c.bf16 %v1313, %v1313
  %v1389 = vpack.c.bf16 %v1314, %v1314
  %v1390 = vpack.c.bf16 %v1316, %v1316
  %v1391 = vpack.c.bf16 %v1317, %v1317
  %v1392 = vpack.c.bf16 %v1319, %v1319
  %v1393 = vpack.c.bf16 %v1320, %v1320
  %v1394 = vpack.c.bf16 %v1322, %v1322
  %v1395 = vpack.c.bf16 %v1323, %v1323
  %v1396 = vpack.c.bf16 %v1325, %v1325
  %v1397 = vpack.c.bf16 %v1326, %v1326
  %1398 = vst [vmem:[#allocation3] sm:$0xf] %v1334
  %1399 = vst [vmem:[#allocation3 + $0x24] sm:$0xf] %v1335
  %1400 = vst [vmem:[#allocation3 + $0x48] sm:$0xf] %v1336
  %1401 = vst [vmem:[#allocation3 + $0x6c] sm:$0xf] %v1337
  %1402 = vst [vmem:[#allocation3 + $0x90] sm:$0xf] %v1338
  %1403 = vst [vmem:[#allocation3 + $0xb4] sm:$0xf] %v1339
  %1404 = vst [vmem:[#allocation3 + $0xd8] sm:$0xf] %v1340
  %1405 = vst [vmem:[#allocation3 + $0xfc] sm:$0xf] %v1341
  %1406 = vst [vmem:[#allocation3 + $0x120] sm:$0xf] %v1342
  %1407 = vst [vmem:[#allocation3 + $0x144] sm:$0xf] %v1343
  %1408 = vst [vmem:[#allocation3 + $0x168] sm:$0xf] %v1344
  %1409 = vst [vmem:[#allocation3 + $0x18c] sm:$0xf] %v1345
  %1410 = vst [vmem:[#allocation3 + $0x1b0] sm:$0xf] %v1346
  %1411 = vst [vmem:[#allocation3 + $0x1d4] sm:$0xf] %v1347
  %1412 = vst [vmem:[#allocation3 + $0x1f8] sm:$0xf] %v1348
  %1413 = vst [vmem:[#allocation3 + $0x21c] sm:$0xf] %v1349
  %1414 = vst [vmem:[#allocation3 + $0x240] sm:$0xf] %v1350
  %1415 = vst [vmem:[#allocation3 + $0x264] sm:$0xf] %v1351
  %1416 = vst [vmem:[#allocation3 + $0x288] sm:$0xf] %v1352
  %1417 = vst [vmem:[#allocation3 + $0x2ac] sm:$0xf] %v1353
  %1418 = vst [vmem:[#allocation3 + $0x2d0] sm:$0xf] %v1354
  %1419 = vst [vmem:[#allocation3 + $0x2f4] sm:$0xf] %v1355
  %1420 = vst [vmem:[#allocation3 + $0x318] sm:$0xf] %v1356
  %1421 = vst [vmem:[#allocation3 + $0x33c] sm:$0xf] %v1357
  %1422 = vst [vmem:[#allocation3 + $0x360] sm:$0xf] %v1358
  %1423 = vst [vmem:[#allocation3 + $0x384] sm:$0xf] %v1359
  %1424 = vst [vmem:[#allocation3 + $0x3a8] sm:$0xf] %v1360
  %1425 = vst [vmem:[#allocation3 + $0x3cc] sm:$0xf] %v1361
  %1426 = vst [vmem:[#allocation3 + $0x3f0] sm:$0xf] %v1362
  %1427 = vst [vmem:[#allocation3 + $0x414] sm:$0xf] %v1363
  %1428 = vst [vmem:[#allocation3 + $0x438] sm:$0xf] %v1364
  %1429 = vst [vmem:[#allocation3 + $0x45c] sm:$0xf] %v1365
  %1430 = vst [vmem:[#allocation3 + $0x480] sm:$0xf] %v1366
  %1431 = vst [vmem:[#allocation3 + $0x4a4] sm:$0xf] %v1367
  %1432 = vst [vmem:[#allocation3 + $0x4c8] sm:$0xf] %v1368
  %1433 = vst [vmem:[#allocation3 + $0x4ec] sm:$0xf] %v1369
  %1434 = vst [vmem:[#allocation3 + $0x510] sm:$0xf] %v1370
  %1435 = vst [vmem:[#allocation3 + $0x534] sm:$0xf] %v1371
  %1436 = vst [vmem:[#allocation3 + $0x558] sm:$0xf] %v1372
  %1437 = vst [vmem:[#allocation3 + $0x57c] sm:$0xf] %v1373
  %1438 = vst [vmem:[#allocation3 + $0x5a0] sm:$0xf] %v1374
  %1439 = vst [vmem:[#allocation3 + $0x5c4] sm:$0xf] %v1375
  %1440 = vst [vmem:[#allocation3 + $0x5e8] sm:$0xf] %v1376
  %1441 = vst [vmem:[#allocation3 + $0x60c] sm:$0xf] %v1377
  %1442 = vst [vmem:[#allocation3 + $0x630] sm:$0xf] %v1378
  %1443 = vst [vmem:[#allocation3 + $0x654] sm:$0xf] %v1379
  %1444 = vst [vmem:[#allocation3 + $0x678] sm:$0xf] %v1380
  %1445 = vst [vmem:[#allocation3 + $0x69c] sm:$0xf] %v1381
  %1446 = vst [vmem:[#allocation3 + $0x6c0] sm:$0xf] %v1382
  %1447 = vst [vmem:[#allocation3 + $0x6e4] sm:$0xf] %v1383
  %1448 = vst [vmem:[#allocation3 + $0x708] sm:$0xf] %v1384
  %1449 = vst [vmem:[#allocation3 + $0x72c] sm:$0xf] %v1385
  %1450 = vst [vmem:[#allocation3 + $0x750] sm:$0xf] %v1386
  %1451 = vst [vmem:[#allocation3 + $0x774] sm:$0xf] %v1387
  %1452 = vst [vmem:[#allocation3 + $0x798] sm:$0xf] %v1388
  %1453 = vst [vmem:[#allocation3 + $0x7bc] sm:$0xf] %v1389
  %1454 = vst [vmem:[#allocation3 + $0x7e0] sm:$0xf] %v1390
  %1455 = vst [vmem:[#allocation3 + $0x804] sm:$0xf] %v1391
  %1456 = vst [vmem:[#allocation3 + $0x828] sm:$0xf] %v1392
  %1457 = vst [vmem:[#allocation3 + $0x84c] sm:$0xf] %v1393
  %1458 = vst [vmem:[#allocation3 + $0x870] sm:$0xf] %v1394
  %1459 = vst [vmem:[#allocation3 + $0x894] sm:$0xf] %v1395
  %1460 = vst [vmem:[#allocation3 + $0x8b8] sm:$0xf] %v1396
  %1461 = vst [vmem:[#allocation3 + $0x8dc] sm:$0xf] %v1397
  %v1462 = vpack.c.bf16 %v1228, %v1228
  %v1463 = vpack.c.bf16 %v1231, %v1231
  %v1464 = vpack.c.bf16 %v1234, %v1234
  %v1465 = vpack.c.bf16 %v1237, %v1237
  %v1466 = vpack.c.bf16 %v1240, %v1240
  %v1467 = vpack.c.bf16 %v1243, %v1243
  %v1468 = vpack.c.bf16 %v1246, %v1246
  %v1469 = vpack.c.bf16 %v1249, %v1249
  %v1470 = vpack.c.bf16 %v1252, %v1252
  %v1471 = vpack.c.bf16 %v1255, %v1255
  %v1472 = vpack.c.bf16 %v1258, %v1258
  %v1473 = vpack.c.bf16 %v1261, %v1261
  %v1474 = vpack.c.bf16 %v1264, %v1264
  %v1475 = vpack.c.bf16 %v1267, %v1267
  %v1476 = vpack.c.bf16 %v1270, %v1270
  %v1477 = vpack.c.bf16 %v1273, %v1273
  %v1478 = vpack.c.bf16 %v1282, %v1282
  %v1479 = vpack.c.bf16 %v1285, %v1285
  %v1480 = vpack.c.bf16 %v1288, %v1288
  %v1481 = vpack.c.bf16 %v1291, %v1291
  %v1482 = vpack.c.bf16 %v1294, %v1294
  %v1483 = vpack.c.bf16 %v1297, %v1297
  %v1484 = vpack.c.bf16 %v1300, %v1300
  %v1485 = vpack.c.bf16 %v1303, %v1303
  %v1486 = vpack.c.bf16 %v1306, %v1306
  %v1487 = vpack.c.bf16 %v1309, %v1309
  %v1488 = vpack.c.bf16 %v1312, %v1312
  %v1489 = vpack.c.bf16 %v1315, %v1315
  %v1490 = vpack.c.bf16 %v1318, %v1318
  %v1491 = vpack.c.bf16 %v1321, %v1321
  %v1492 = vpack.c.bf16 %v1324, %v1324
  %v1493 = vpack.c.bf16 %v1327, %v1327
  %vm1494 = vsmask.f32 3328
  %vm1495 = vsmask.f32 7440
  %vm1496 = vmor %vm1494, %vm1495
  %v1498 = vshrl.u32 %v1334, 16
  %v1500 = vrot.slane %v1498, 4
  %v1501 = vshll.u32 %v1334, 16
  %v1503 = vrot.slane %v1501, 5
  %v1504 = vor.u32 %v1500, %v1503
  %v1505 = vrot.slane %v1504, 4
  %v1507 = vshll.u32 %v1335, 16
  %v1509 = vrot.slane %v1507, 5
  %v1510 = vsel %vm1496, %v1505, %v1509
  %v1511 = vshrl.u32 %v1335, 16
  %v1513 = vrot.slane %v1511, 4
  %v1514 = vor.u32 %v1513, %v1509
  %v1515 = vrot.slane %v1514, 4
  %v1517 = vshll.u32 %v1462, 16
  %v1519 = vrot.slane %v1517, 5
  %v1520 = vsel %vm1496, %v1515, %v1519
  %v1522 = vshrl.u32 %v1336, 16
  %v1524 = vrot.slane %v1522, 4
  %v1525 = vshll.u32 %v1336, 16
  %v1527 = vrot.slane %v1525, 5
  %v1528 = vor.u32 %v1524, %v1527
  %v1529 = vrot.slane %v1528, 4
  %v1531 = vshll.u32 %v1337, 16
  %v1533 = vrot.slane %v1531, 5
  %v1534 = vsel %vm1496, %v1529, %v1533
  %v1535 = vshrl.u32 %v1337, 16
  %v1537 = vrot.slane %v1535, 4
  %v1538 = vor.u32 %v1537, %v1533
  %v1539 = vrot.slane %v1538, 4
  %v1541 = vshll.u32 %v1463, 16
  %v1543 = vrot.slane %v1541, 5
  %v1544 = vsel %vm1496, %v1539, %v1543
  %v1546 = vshrl.u32 %v1338, 16
  %v1548 = vrot.slane %v1546, 4
  %v1549 = vshll.u32 %v1338, 16
  %v1551 = vrot.slane %v1549, 5
  %v1552 = vor.u32 %v1548, %v1551
  %v1553 = vrot.slane %v1552, 4
  %v1555 = vshll.u32 %v1339, 16
  %v1557 = vrot.slane %v1555, 5
  %v1558 = vsel %vm1496, %v1553, %v1557
  %v1559 = vshrl.u32 %v1339, 16
  %v1561 = vrot.slane %v1559, 4
  %v1562 = vor.u32 %v1561, %v1557
  %v1563 = vrot.slane %v1562, 4
  %v1565 = vshll.u32 %v1464, 16
  %v1567 = vrot.slane %v1565, 5
  %v1568 = vsel %vm1496, %v1563, %v1567
  %v1570 = vshrl.u32 %v1340, 16
  %v1572 = vrot.slane %v1570, 4
  %v1573 = vshll.u32 %v1340, 16
  %v1575 = vrot.slane %v1573, 5
  %v1576 = vor.u32 %v1572, %v1575
  %v1577 = vrot.slane %v1576, 4
  %v1579 = vshll.u32 %v1341, 16
  %v1581 = vrot.slane %v1579, 5
  %v1582 = vsel %vm1496, %v1577, %v1581
  %v1583 = vshrl.u32 %v1341, 16
  %v1585 = vrot.slane %v1583, 4
  %v1586 = vor.u32 %v1585, %v1581
  %v1587 = vrot.slane %v1586, 4
  %v1589 = vshll.u32 %v1465, 16
  %v1591 = vrot.slane %v1589, 5
  %v1592 = vsel %vm1496, %v1587, %v1591
  %v1594 = vshrl.u32 %v1342, 16
  %v1596 = vrot.slane %v1594, 4
  %v1597 = vshll.u32 %v1342, 16
  %v1599 = vrot.slane %v1597, 5
  %v1600 = vor.u32 %v1596, %v1599
  %v1601 = vrot.slane %v1600, 4
  %v1603 = vshll.u32 %v1343, 16
  %v1605 = vrot.slane %v1603, 5
  %v1606 = vsel %vm1496, %v1601, %v1605
  %v1607 = vshrl.u32 %v1343, 16
  %v1609 = vrot.slane %v1607, 4
  %v1610 = vor.u32 %v1609, %v1605
  %v1611 = vrot.slane %v1610, 4
  %v1613 = vshll.u32 %v1466, 16
  %v1615 = vrot.slane %v1613, 5
  %v1616 = vsel %vm1496, %v1611, %v1615
  %v1618 = vshrl.u32 %v1344, 16
  %v1620 = vrot.slane %v1618, 4
  %v1621 = vshll.u32 %v1344, 16
  %v1623 = vrot.slane %v1621, 5
  %v1624 = vor.u32 %v1620, %v1623
  %v1625 = vrot.slane %v1624, 4
  %v1627 = vshll.u32 %v1345, 16
  %v1629 = vrot.slane %v1627, 5
  %v1630 = vsel %vm1496, %v1625, %v1629
  %v1631 = vshrl.u32 %v1345, 16
  %v1633 = vrot.slane %v1631, 4
  %v1634 = vor.u32 %v1633, %v1629
  %v1635 = vrot.slane %v1634, 4
  %v1637 = vshll.u32 %v1467, 16
  %v1639 = vrot.slane %v1637, 5
  %v1640 = vsel %vm1496, %v1635, %v1639
  %v1642 = vshrl.u32 %v1346, 16
  %v1644 = vrot.slane %v1642, 4
  %v1645 = vshll.u32 %v1346, 16
  %v1647 = vrot.slane %v1645, 5
  %v1648 = vor.u32 %v1644, %v1647
  %v1649 = vrot.slane %v1648, 4
  %v1651 = vshll.u32 %v1347, 16
  %v1653 = vrot.slane %v1651, 5
  %v1654 = vsel %vm1496, %v1649, %v1653
  %v1655 = vshrl.u32 %v1347, 16
  %v1657 = vrot.slane %v1655, 4
  %v1658 = vor.u32 %v1657, %v1653
  %v1659 = vrot.slane %v1658, 4
  %v1661 = vshll.u32 %v1468, 16
  %v1663 = vrot.slane %v1661, 5
  %v1664 = vsel %vm1496, %v1659, %v1663
  %v1666 = vshrl.u32 %v1348, 16
  %v1668 = vrot.slane %v1666, 4
  %v1669 = vshll.u32 %v1348, 16
  %v1671 = vrot.slane %v1669, 5
  %v1672 = vor.u32 %v1668, %v1671
  %v1673 = vrot.slane %v1672, 4
  %v1675 = vshll.u32 %v1349, 16
  %v1677 = vrot.slane %v1675, 5
  %v1678 = vsel %vm1496, %v1673, %v1677
  %v1679 = vshrl.u32 %v1349, 16
  %v1681 = vrot.slane %v1679, 4
  %v1682 = vor.u32 %v1681, %v1677
  %v1683 = vrot.slane %v1682, 4
  %v1685 = vshll.u32 %v1469, 16
  %v1687 = vrot.slane %v1685, 5
  %v1688 = vsel %vm1496, %v1683, %v1687
  %v1690 = vshrl.u32 %v1350, 16
  %v1692 = vrot.slane %v1690, 4
  %v1693 = vshll.u32 %v1350, 16
  %v1695 = vrot.slane %v1693, 5
  %v1696 = vor.u32 %v1692, %v1695
  %v1697 = vrot.slane %v1696, 4
  %v1699 = vshll.u32 %v1351, 16
  %v1701 = vrot.slane %v1699, 5
  %v1702 = vsel %vm1496, %v1697, %v1701
  %v1703 = vshrl.u32 %v1351, 16
  %v1705 = vrot.slane %v1703, 4
  %v1706 = vor.u32 %v1705, %v1701
  %v1707 = vrot.slane %v1706, 4
  %v1709 = vshll.u32 %v1470, 16
  %v1711 = vrot.slane %v1709, 5
  %v1712 = vsel %vm1496, %v1707, %v1711
  %v1714 = vshrl.u32 %v1352, 16
  %v1716 = vrot.slane %v1714, 4
  %v1717 = vshll.u32 %v1352, 16
  %v1719 = vrot.slane %v1717, 5
  %v1720 = vor.u32 %v1716, %v1719
  %v1721 = vrot.slane %v1720, 4
  %v1723 = vshll.u32 %v1353, 16
  %v1725 = vrot.slane %v1723, 5
  %v1726 = vsel %vm1496, %v1721, %v1725
  %v1727 = vshrl.u32 %v1353, 16
  %v1729 = vrot.slane %v1727, 4
  %v1730 = vor.u32 %v1729, %v1725
  %v1731 = vrot.slane %v1730, 4
  %v1733 = vshll.u32 %v1471, 16
  %v1735 = vrot.slane %v1733, 5
  %v1736 = vsel %vm1496, %v1731, %v1735
  %v1738 = vshrl.u32 %v1354, 16
  %v1740 = vrot.slane %v1738, 4
  %v1741 = vshll.u32 %v1354, 16
  %v1743 = vrot.slane %v1741, 5
  %v1744 = vor.u32 %v1740, %v1743
  %v1745 = vrot.slane %v1744, 4
  %v1747 = vshll.u32 %v1355, 16
  %v1749 = vrot.slane %v1747, 5
  %v1750 = vsel %vm1496, %v1745, %v1749
  %v1751 = vshrl.u32 %v1355, 16
  %v1753 = vrot.slane %v1751, 4
  %v1754 = vor.u32 %v1753, %v1749
  %v1755 = vrot.slane %v1754, 4
  %v1757 = vshll.u32 %v1472, 16
  %v1759 = vrot.slane %v1757, 5
  %v1760 = vsel %vm1496, %v1755, %v1759
  %v1762 = vshrl.u32 %v1356, 16
  %v1764 = vrot.slane %v1762, 4
  %v1765 = vshll.u32 %v1356, 16
  %v1767 = vrot.slane %v1765, 5
  %v1768 = vor.u32 %v1764, %v1767
  %v1769 = vrot.slane %v1768, 4
  %v1771 = vshll.u32 %v1357, 16
  %v1773 = vrot.slane %v1771, 5
  %v1774 = vsel %vm1496, %v1769, %v1773
  %v1775 = vshrl.u32 %v1357, 16
  %v1777 = vrot.slane %v1775, 4
  %v1778 = vor.u32 %v1777, %v1773
  %v1779 = vrot.slane %v1778, 4
  %v1781 = vshll.u32 %v1473, 16
  %v1783 = vrot.slane %v1781, 5
  %v1784 = vsel %vm1496, %v1779, %v1783
  %v1786 = vshrl.u32 %v1358, 16
  %v1788 = vrot.slane %v1786, 4
  %v1789 = vshll.u32 %v1358, 16
  %v1791 = vrot.slane %v1789, 5
  %v1792 = vor.u32 %v1788, %v1791
  %v1793 = vrot.slane %v1792, 4
  %v1795 = vshll.u32 %v1359, 16
  %v1797 = vrot.slane %v1795, 5
  %v1798 = vsel %vm1496, %v1793, %v1797
  %v1799 = vshrl.u32 %v1359, 16
  %v1801 = vrot.slane %v1799, 4
  %v1802 = vor.u32 %v1801, %v1797
  %v1803 = vrot.slane %v1802, 4
  %v1805 = vshll.u32 %v1474, 16
  %v1807 = vrot.slane %v1805, 5
  %v1808 = vsel %vm1496, %v1803, %v1807
  %v1810 = vshrl.u32 %v1360, 16
  %v1812 = vrot.slane %v1810, 4
  %v1813 = vshll.u32 %v1360, 16
  %v1815 = vrot.slane %v1813, 5
  %v1816 = vor.u32 %v1812, %v1815
  %v1817 = vrot.slane %v1816, 4
  %v1819 = vshll.u32 %v1361, 16
  %v1821 = vrot.slane %v1819, 5
  %v1822 = vsel %vm1496, %v1817, %v1821
  %v1823 = vshrl.u32 %v1361, 16
  %v1825 = vrot.slane %v1823, 4
  %v1826 = vor.u32 %v1825, %v1821
  %v1827 = vrot.slane %v1826, 4
  %v1829 = vshll.u32 %v1475, 16
  %v1831 = vrot.slane %v1829, 5
  %v1832 = vsel %vm1496, %v1827, %v1831
  %v1834 = vshrl.u32 %v1362, 16
  %v1836 = vrot.slane %v1834, 4
  %v1837 = vshll.u32 %v1362, 16
  %v1839 = vrot.slane %v1837, 5
  %v1840 = vor.u32 %v1836, %v1839
  %v1841 = vrot.slane %v1840, 4
  %v1843 = vshll.u32 %v1363, 16
  %v1845 = vrot.slane %v1843, 5
  %v1846 = vsel %vm1496, %v1841, %v1845
  %v1847 = vshrl.u32 %v1363, 16
  %v1849 = vrot.slane %v1847, 4
  %v1850 = vor.u32 %v1849, %v1845
  %v1851 = vrot.slane %v1850, 4
  %v1853 = vshll.u32 %v1476, 16
  %v1855 = vrot.slane %v1853, 5
  %v1856 = vsel %vm1496, %v1851, %v1855
  %v1858 = vshrl.u32 %v1364, 16
  %v1860 = vrot.slane %v1858, 4
  %v1861 = vshll.u32 %v1364, 16
  %v1863 = vrot.slane %v1861, 5
  %v1864 = vor.u32 %v1860, %v1863
  %v1865 = vrot.slane %v1864, 4
  %v1867 = vshll.u32 %v1365, 16
  %v1869 = vrot.slane %v1867, 5
  %v1870 = vsel %vm1496, %v1865, %v1869
  %v1871 = vshrl.u32 %v1365, 16
  %v1873 = vrot.slane %v1871, 4
  %v1874 = vor.u32 %v1873, %v1869
  %v1875 = vrot.slane %v1874, 4
  %v1877 = vshll.u32 %v1477, 16
  %v1879 = vrot.slane %v1877, 5
  %v1880 = vsel %vm1496, %v1875, %v1879
  %v1882 = vshrl.u32 %v1366, 16
  %v1884 = vrot.slane %v1882, 4
  %v1885 = vshll.u32 %v1366, 16
  %v1887 = vrot.slane %v1885, 5
  %v1888 = vor.u32 %v1884, %v1887
  %v1889 = vrot.slane %v1888, 4
  %v1891 = vshll.u32 %v1367, 16
  %v1893 = vrot.slane %v1891, 5
  %v1894 = vsel %vm1496, %v1889, %v1893
  %v1895 = vshrl.u32 %v1367, 16
  %v1897 = vrot.slane %v1895, 4
  %v1898 = vor.u32 %v1897, %v1893
  %v1899 = vrot.slane %v1898, 4
  %v1901 = vshll.u32 %v1478, 16
  %v1903 = vrot.slane %v1901, 5
  %v1904 = vsel %vm1496, %v1899, %v1903
  %v1906 = vshrl.u32 %v1368, 16
  %v1908 = vrot.slane %v1906, 4
  %v1909 = vshll.u32 %v1368, 16
  %v1911 = vrot.slane %v1909, 5
  %v1912 = vor.u32 %v1908, %v1911
  %v1913 = vrot.slane %v1912, 4
  %v1915 = vshll.u32 %v1369, 16
  %v1917 = vrot.slane %v1915, 5
  %v1918 = vsel %vm1496, %v1913, %v1917
  %v1919 = vshrl.u32 %v1369, 16
  %v1921 = vrot.slane %v1919, 4
  %v1922 = vor.u32 %v1921, %v1917
  %v1923 = vrot.slane %v1922, 4
  %v1925 = vshll.u32 %v1479, 16
  %v1927 = vrot.slane %v1925, 5
  %v1928 = vsel %vm1496, %v1923, %v1927
  %v1930 = vshrl.u32 %v1370, 16
  %v1932 = vrot.slane %v1930, 4
  %v1933 = vshll.u32 %v1370, 16
  %v1935 = vrot.slane %v1933, 5
  %v1936 = vor.u32 %v1932, %v1935
  %v1937 = vrot.slane %v1936, 4
  %v1939 = vshll.u32 %v1371, 16
  %v1941 = vrot.slane %v1939, 5
  %v1942 = vsel %vm1496, %v1937, %v1941
  %v1943 = vshrl.u32 %v1371, 16
  %v1945 = vrot.slane %v1943, 4
  %v1946 = vor.u32 %v1945, %v1941
  %v1947 = vrot.slane %v1946, 4
  %v1949 = vshll.u32 %v1480, 16
  %v1951 = vrot.slane %v1949, 5
  %v1952 = vsel %vm1496, %v1947, %v1951
  %v1954 = vshrl.u32 %v1372, 16
  %v1956 = vrot.slane %v1954, 4
  %v1957 = vshll.u32 %v1372, 16
  %v1959 = vrot.slane %v1957, 5
  %v1960 = vor.u32 %v1956, %v1959
  %v1961 = vrot.slane %v1960, 4
  %v1963 = vshll.u32 %v1373, 16
  %v1965 = vrot.slane %v1963, 5
  %v1966 = vsel %vm1496, %v1961, %v1965
  %v1967 = vshrl.u32 %v1373, 16
  %v1969 = vrot.slane %v1967, 4
  %v1970 = vor.u32 %v1969, %v1965
  %v1971 = vrot.slane %v1970, 4
  %v1973 = vshll.u32 %v1481, 16
  %v1975 = vrot.slane %v1973, 5
  %v1976 = vsel %vm1496, %v1971, %v1975
  %v1978 = vshrl.u32 %v1374, 16
  %v1980 = vrot.slane %v1978, 4
  %v1981 = vshll.u32 %v1374, 16
  %v1983 = vrot.slane %v1981, 5
  %v1984 = vor.u32 %v1980, %v1983
  %v1985 = vrot.slane %v1984, 4
  %v1987 = vshll.u32 %v1375, 16
  %v1989 = vrot.slane %v1987, 5
  %v1990 = vsel %vm1496, %v1985, %v1989
  %v1991 = vshrl.u32 %v1375, 16
  %v1993 = vrot.slane %v1991, 4
  %v1994 = vor.u32 %v1993, %v1989
  %v1995 = vrot.slane %v1994, 4
  %v1997 = vshll.u32 %v1482, 16
  %v1999 = vrot.slane %v1997, 5
  %v2000 = vsel %vm1496, %v1995, %v1999
  %v2002 = vshrl.u32 %v1376, 16
  %v2004 = vrot.slane %v2002, 4
  %v2005 = vshll.u32 %v1376, 16
  %v2007 = vrot.slane %v2005, 5
  %v2008 = vor.u32 %v2004, %v2007
  %v2009 = vrot.slane %v2008, 4
  %v2011 = vshll.u32 %v1377, 16
  %v2013 = vrot.slane %v2011, 5
  %v2014 = vsel %vm1496, %v2009, %v2013
  %v2015 = vshrl.u32 %v1377, 16
  %v2017 = vrot.slane %v2015, 4
  %v2018 = vor.u32 %v2017, %v2013
  %v2019 = vrot.slane %v2018, 4
  %v2021 = vshll.u32 %v1483, 16
  %v2023 = vrot.slane %v2021, 5
  %v2024 = vsel %vm1496, %v2019, %v2023
  %v2026 = vshrl.u32 %v1378, 16
  %v2028 = vrot.slane %v2026, 4
  %v2029 = vshll.u32 %v1378, 16
  %v2031 = vrot.slane %v2029, 5
  %v2032 = vor.u32 %v2028, %v2031
  %v2033 = vrot.slane %v2032, 4
  %v2035 = vshll.u32 %v1379, 16
  %v2037 = vrot.slane %v2035, 5
  %v2038 = vsel %vm1496, %v2033, %v2037
  %v2039 = vshrl.u32 %v1379, 16
  %v2041 = vrot.slane %v2039, 4
  %v2042 = vor.u32 %v2041, %v2037
  %v2043 = vrot.slane %v2042, 4
  %v2045 = vshll.u32 %v1484, 16
  %v2047 = vrot.slane %v2045, 5
  %v2048 = vsel %vm1496, %v2043, %v2047
  %v2050 = vshrl.u32 %v1380, 16
  %v2052 = vrot.slane %v2050, 4
  %v2053 = vshll.u32 %v1380, 16
  %v2055 = vrot.slane %v2053, 5
  %v2056 = vor.u32 %v2052, %v2055
  %v2057 = vrot.slane %v2056, 4
  %v2059 = vshll.u32 %v1381, 16
  %v2061 = vrot.slane %v2059, 5
  %v2062 = vsel %vm1496, %v2057, %v2061
  %v2063 = vshrl.u32 %v1381, 16
  %v2065 = vrot.slane %v2063, 4
  %v2066 = vor.u32 %v2065, %v2061
  %v2067 = vrot.slane %v2066, 4
  %v2069 = vshll.u32 %v1485, 16
  %v2071 = vrot.slane %v2069, 5
  %v2072 = vsel %vm1496, %v2067, %v2071
  %v2074 = vshrl.u32 %v1382, 16
  %v2076 = vrot.slane %v2074, 4
  %v2077 = vshll.u32 %v1382, 16
  %v2079 = vrot.slane %v2077, 5
  %v2080 = vor.u32 %v2076, %v2079
  %v2081 = vrot.slane %v2080, 4
  %v2083 = vshll.u32 %v1383, 16
  %v2085 = vrot.slane %v2083, 5
  %v2086 = vsel %vm1496, %v2081, %v2085
  %v2087 = vshrl.u32 %v1383, 16
  %v2089 = vrot.slane %v2087, 4
  %v2090 = vor.u32 %v2089, %v2085
  %v2091 = vrot.slane %v2090, 4
  %v2093 = vshll.u32 %v1486, 16
  %v2095 = vrot.slane %v2093, 5
  %v2096 = vsel %vm1496, %v2091, %v2095
  %v2098 = vshrl.u32 %v1384, 16
  %v2100 = vrot.slane %v2098, 4
  %v2101 = vshll.u32 %v1384, 16
  %v2103 = vrot.slane %v2101, 5
  %v2104 = vor.u32 %v2100, %v2103
  %v2105 = vrot.slane %v2104, 4
  %v2107 = vshll.u32 %v1385, 16
  %v2109 = vrot.slane %v2107, 5
  %v2110 = vsel %vm1496, %v2105, %v2109
  %v2111 = vshrl.u32 %v1385, 16
  %v2113 = vrot.slane %v2111, 4
  %v2114 = vor.u32 %v2113, %v2109
  %v2115 = vrot.slane %v2114, 4
  %v2117 = vshll.u32 %v1487, 16
  %v2119 = vrot.slane %v2117, 5
  %v2120 = vsel %vm1496, %v2115, %v2119
  %v2122 = vshrl.u32 %v1386, 16
  %v2124 = vrot.slane %v2122, 4
  %v2125 = vshll.u32 %v1386, 16
  %v2127 = vrot.slane %v2125, 5
  %v2128 = vor.u32 %v2124, %v2127
  %v2129 = vrot.slane %v2128, 4
  %v2131 = vshll.u32 %v1387, 16
  %v2133 = vrot.slane %v2131, 5
  %v2134 = vsel %vm1496, %v2129, %v2133
  %v2135 = vshrl.u32 %v1387, 16
  %v2137 = vrot.slane %v2135, 4
  %v2138 = vor.u32 %v2137, %v2133
  %v2139 = vrot.slane %v2138, 4
  %v2141 = vshll.u32 %v1488, 16
  %v2143 = vrot.slane %v2141, 5
  %v2144 = vsel %vm1496, %v2139, %v2143
  %v2146 = vshrl.u32 %v1388, 16
  %v2148 = vrot.slane %v2146, 4
  %v2149 = vshll.u32 %v1388, 16
  %v2151 = vrot.slane %v2149, 5
  %v2152 = vor.u32 %v2148, %v2151
  %v2153 = vrot.slane %v2152, 4
  %v2155 = vshll.u32 %v1389, 16
  %v2157 = vrot.slane %v2155, 5
  %v2158 = vsel %vm1496, %v2153, %v2157
  %v2159 = vshrl.u32 %v1389, 16
  %v2161 = vrot.slane %v2159, 4
  %v2162 = vor.u32 %v2161, %v2157
  %v2163 = vrot.slane %v2162, 4
  %v2165 = vshll.u32 %v1489, 16
  %v2167 = vrot.slane %v2165, 5
  %v2168 = vsel %vm1496, %v2163, %v2167
  %v2170 = vshrl.u32 %v1390, 16
  %v2172 = vrot.slane %v2170, 4
  %v2173 = vshll.u32 %v1390, 16
  %v2175 = vrot.slane %v2173, 5
  %v2176 = vor.u32 %v2172, %v2175
  %v2177 = vrot.slane %v2176, 4
  %v2179 = vshll.u32 %v1391, 16
  %v2181 = vrot.slane %v2179, 5
  %v2182 = vsel %vm1496, %v2177, %v2181
  %v2183 = vshrl.u32 %v1391, 16
  %v2185 = vrot.slane %v2183, 4
  %v2186 = vor.u32 %v2185, %v2181
  %v2187 = vrot.slane %v2186, 4
  %v2189 = vshll.u32 %v1490, 16
  %v2191 = vrot.slane %v2189, 5
  %v2192 = vsel %vm1496, %v2187, %v2191
  %v2194 = vshrl.u32 %v1392, 16
  %v2196 = vrot.slane %v2194, 4
  %v2197 = vshll.u32 %v1392, 16
  %v2199 = vrot.slane %v2197, 5
  %v2200 = vor.u32 %v2196, %v2199
  %v2201 = vrot.slane %v2200, 4
  %v2203 = vshll.u32 %v1393, 16
  %v2205 = vrot.slane %v2203, 5
  %v2206 = vsel %vm1496, %v2201, %v2205
  %v2207 = vshrl.u32 %v1393, 16
  %v2209 = vrot.slane %v2207, 4
  %v2210 = vor.u32 %v2209, %v2205
  %v2211 = vrot.slane %v2210, 4
  %v2213 = vshll.u32 %v1491, 16
  %v2215 = vrot.slane %v2213, 5
  %v2216 = vsel %vm1496, %v2211, %v2215
  %v2218 = vshrl.u32 %v1394, 16
  %v2220 = vrot.slane %v2218, 4
  %v2221 = vshll.u32 %v1394, 16
  %v2223 = vrot.slane %v2221, 5
  %v2224 = vor.u32 %v2220, %v2223
  %v2225 = vrot.slane %v2224, 4
  %v2227 = vshll.u32 %v1395, 16
  %v2229 = vrot.slane %v2227, 5
  %v2230 = vsel %vm1496, %v2225, %v2229
  %v2231 = vshrl.u32 %v1395, 16
  %v2233 = vrot.slane %v2231, 4
  %v2234 = vor.u32 %v2233, %v2229
  %v2235 = vrot.slane %v2234, 4
  %v2237 = vshll.u32 %v1492, 16
  %v2239 = vrot.slane %v2237, 5
  %v2240 = vsel %vm1496, %v2235, %v2239
  %v2242 = vshrl.u32 %v1396, 16
  %v2244 = vrot.slane %v2242, 4
  %v2245 = vshll.u32 %v1396, 16
  %v2247 = vrot.slane %v2245, 5
  %v2248 = vor.u32 %v2244, %v2247
  %v2249 = vrot.slane %v2248, 4
  %v2251 = vshll.u32 %v1397, 16
  %v2253 = vrot.slane %v2251, 5
  %v2254 = vsel %vm1496, %v2249, %v2253
  %v2255 = vshrl.u32 %v1397, 16
  %v2257 = vrot.slane %v2255, 4
  %v2258 = vor.u32 %v2257, %v2253
  %v2259 = vrot.slane %v2258, 4
  %v2261 = vshll.u32 %v1493, 16
  %v2263 = vrot.slane %v2261, 5
  %v2264 = vsel %vm1496, %v2259, %v2263
  %2329 = vst [vmem:[#allocation3 + $0x4] sm:$0xf] %v1510
  %2330 = vst [vmem:[#allocation3 + $0x28] sm:$0xf] %v1520
  %2331 = vst [vmem:[#allocation3 + $0x4c] sm:$0xf] %v1534
  %2332 = vst [vmem:[#allocation3 + $0x70] sm:$0xf] %v1544
  %2333 = vst [vmem:[#allocation3 + $0x94] sm:$0xf] %v1558
  %2334 = vst [vmem:[#allocation3 + $0xb8] sm:$0xf] %v1568
  %2335 = vst [vmem:[#allocation3 + $0xdc] sm:$0xf] %v1582
  %2336 = vst [vmem:[#allocation3 + $0x100] sm:$0xf] %v1592
  %2337 = vst [vmem:[#allocation3 + $0x124] sm:$0xf] %v1606
  %2338 = vst [vmem:[#allocation3 + $0x148] sm:$0xf] %v1616
  %2339 = vst [vmem:[#allocation3 + $0x16c] sm:$0xf] %v1630
  %2340 = vst [vmem:[#allocation3 + $0x190] sm:$0xf] %v1640
  %2341 = vst [vmem:[#allocation3 + $0x1b4] sm:$0xf] %v1654
  %2342 = vst [vmem:[#allocation3 + $0x1d8] sm:$0xf] %v1664
  %2343 = vst [vmem:[#allocation3 + $0x1fc] sm:$0xf] %v1678
  %2344 = vst [vmem:[#allocation3 + $0x220] sm:$0xf] %v1688
  %2345 = vst [vmem:[#allocation3 + $0x244] sm:$0xf] %v1702
  %2346 = vst [vmem:[#allocation3 + $0x268] sm:$0xf] %v1712
  %2347 = vst [vmem:[#allocation3 + $0x28c] sm:$0xf] %v1726
  %2348 = vst [vmem:[#allocation3 + $0x2b0] sm:$0xf] %v1736
  %2349 = vst [vmem:[#allocation3 + $0x2d4] sm:$0xf] %v1750
  %2350 = vst [vmem:[#allocation3 + $0x2f8] sm:$0xf] %v1760
  %2351 = vst [vmem:[#allocation3 + $0x31c] sm:$0xf] %v1774
  %2352 = vst [vmem:[#allocation3 + $0x340] sm:$0xf] %v1784
  %2353 = vst [vmem:[#allocation3 + $0x364] sm:$0xf] %v1798
  %2354 = vst [vmem:[#allocation3 + $0x388] sm:$0xf] %v1808
  %2355 = vst [vmem:[#allocation3 + $0x3ac] sm:$0xf] %v1822
  %2356 = vst [vmem:[#allocation3 + $0x3d0] sm:$0xf] %v1832
  %2357 = vst [vmem:[#allocation3 + $0x3f4] sm:$0xf] %v1846
  %2358 = vst [vmem:[#allocation3 + $0x418] sm:$0xf] %v1856
  %2359 = vst [vmem:[#allocation3 + $0x43c] sm:$0xf] %v1870
  %2360 = vst [vmem:[#allocation3 + $0x460] sm:$0xf] %v1880
  %2361 = vst [vmem:[#allocation3 + $0x484] sm:$0xf] %v1894
  %2362 = vst [vmem:[#allocation3 + $0x4a8] sm:$0xf] %v1904
  %2363 = vst [vmem:[#allocation3 + $0x4cc] sm:$0xf] %v1918
  %2364 = vst [vmem:[#allocation3 + $0x4f0] sm:$0xf] %v1928
  %2365 = vst [vmem:[#allocation3 + $0x514] sm:$0xf] %v1942
  %2366 = vst [vmem:[#allocation3 + $0x538] sm:$0xf] %v1952
  %2367 = vst [vmem:[#allocation3 + $0x55c] sm:$0xf] %v1966
  %2368 = vst [vmem:[#allocation3 + $0x580] sm:$0xf] %v1976
  %2369 = vst [vmem:[#allocation3 + $0x5a4] sm:$0xf] %v1990
  %2370 = vst [vmem:[#allocation3 + $0x5c8] sm:$0xf] %v2000
  %2371 = vst [vmem:[#allocation3 + $0x5ec] sm:$0xf] %v2014
  %2372 = vst [vmem:[#allocation3 + $0x610] sm:$0xf] %v2024
  %2373 = vst [vmem:[#allocation3 + $0x634] sm:$0xf] %v2038
  %2374 = vst [vmem:[#allocation3 + $0x658] sm:$0xf] %v2048
  %2375 = vst [vmem:[#allocation3 + $0x67c] sm:$0xf] %v2062
  %2376 = vst [vmem:[#allocation3 + $0x6a0] sm:$0xf] %v2072
  %2377 = vst [vmem:[#allocation3 + $0x6c4] sm:$0xf] %v2086
  %2378 = vst [vmem:[#allocation3 + $0x6e8] sm:$0xf] %v2096
  %2379 = vst [vmem:[#allocation3 + $0x70c] sm:$0xf] %v2110
  %2380 = vst [vmem:[#allocation3 + $0x730] sm:$0xf] %v2120
  %2381 = vst [vmem:[#allocation3 + $0x754] sm:$0xf] %v2134
  %2382 = vst [vmem:[#allocation3 + $0x778] sm:$0xf] %v2144
  %2383 = vst [vmem:[#allocation3 + $0x79c] sm:$0xf] %v2158
  %2384 = vst [vmem:[#allocation3 + $0x7c0] sm:$0xf] %v2168
  %2385 = vst [vmem:[#allocation3 + $0x7e4] sm:$0xf] %v2182
  %2386 = vst [vmem:[#allocation3 + $0x808] sm:$0xf] %v2192
  %2387 = vst [vmem:[#allocation3 + $0x82c] sm:$0xf] %v2206
  %2388 = vst [vmem:[#allocation3 + $0x850] sm:$0xf] %v2216
  %2389 = vst [vmem:[#allocation3 + $0x874] sm:$0xf] %v2230
  %2390 = vst [vmem:[#allocation3 + $0x898] sm:$0xf] %v2240
  %2391 = vst [vmem:[#allocation3 + $0x8bc] sm:$0xf] %v2254
  %2392 = vst [vmem:[#allocation3 + $0x8e0] sm:$0xf] %v2264
  %vm2489 = vcmask 1042432
  %vm2490 = vcmask 1046532
  %vm2491 = vmor %vm2489, %vm2490
  %v2492 = vrot.slane %v1334, 5
  %v2493 = vrot.slane %v2492, 4
  %v2494 = vrot.slane %v1335, 5
  %v2495 = vsel %vm2491, %v2493, %v2494
  %v2496 = vrot.slane %v2494, 4
  %v2497 = vrot.slane %v1462, 5
  %v2498 = vsel %vm2491, %v2496, %v2497
  %v2499 = vrot.slane %v1336, 5
  %v2500 = vrot.slane %v2499, 4
  %v2501 = vrot.slane %v1337, 5
  %v2502 = vsel %vm2491, %v2500, %v2501
  %v2503 = vrot.slane %v2501, 4
  %v2504 = vrot.slane %v1463, 5
  %v2505 = vsel %vm2491, %v2503, %v2504
  %v2506 = vrot.slane %v1338, 5
  %v2507 = vrot.slane %v2506, 4
  %v2508 = vrot.slane %v1339, 5
  %v2509 = vsel %vm2491, %v2507, %v2508
  %v2510 = vrot.slane %v2508, 4
  %v2511 = vrot.slane %v1464, 5
  %v2512 = vsel %vm2491, %v2510, %v2511
  %v2513 = vrot.slane %v1340, 5
  %v2514 = vrot.slane %v2513, 4
  %v2515 = vrot.slane %v1341, 5
  %v2516 = vsel %vm2491, %v2514, %v2515
  %v2517 = vrot.slane %v2515, 4
  %v2518 = vrot.slane %v1465, 5
  %v2519 = vsel %vm2491, %v2517, %v2518
  %v2520 = vrot.slane %v1342, 5
  %v2521 = vrot.slane %v2520, 4
  %v2522 = vrot.slane %v1343, 5
  %v2523 = vsel %vm2491, %v2521, %v2522
  %v2524 = vrot.slane %v2522, 4
  %v2525 = vrot.slane %v1466, 5
  %v2526 = vsel %vm2491, %v2524, %v2525
  %v2527 = vrot.slane %v1344, 5
  %v2528 = vrot.slane %v2527, 4
  %v2529 = vrot.slane %v1345, 5
  %v2530 = vsel %vm2491, %v2528, %v2529
  %v2531 = vrot.slane %v2529, 4
  %v2532 = vrot.slane %v1467, 5
  %v2533 = vsel %vm2491, %v2531, %v2532
  %v2534 = vrot.slane %v1346, 5
  %v2535 = vrot.slane %v2534, 4
  %v2536 = vrot.slane %v1347, 5
  %v2537 = vsel %vm2491, %v2535, %v2536
  %v2538 = vrot.slane %v2536, 4
  %v2539 = vrot.slane %v1468, 5
  %v2540 = vsel %vm2491, %v2538, %v2539
  %v2541 = vrot.slane %v1348, 5
  %v2542 = vrot.slane %v2541, 4
  %v2543 = vrot.slane %v1349, 5
  %v2544 = vsel %vm2491, %v2542, %v2543
  %v2545 = vrot.slane %v2543, 4
  %v2546 = vrot.slane %v1469, 5
  %v2547 = vsel %vm2491, %v2545, %v2546
  %v2548 = vrot.slane %v1350, 5
  %v2549 = vrot.slane %v2548, 4
  %v2550 = vrot.slane %v1351, 5
  %v2551 = vsel %vm2491, %v2549, %v2550
  %v2552 = vrot.slane %v2550, 4
  %v2553 = vrot.slane %v1470, 5
  %v2554 = vsel %vm2491, %v2552, %v2553
  %v2555 = vrot.slane %v1352, 5
  %v2556 = vrot.slane %v2555, 4
  %v2557 = vrot.slane %v1353, 5
  %v2558 = vsel %vm2491, %v2556, %v2557
  %v2559 = vrot.slane %v2557, 4
  %v2560 = vrot.slane %v1471, 5
  %v2561 = vsel %vm2491, %v2559, %v2560
  %v2562 = vrot.slane %v1354, 5
  %v2563 = vrot.slane %v2562, 4
  %v2564 = vrot.slane %v1355, 5
  %v2565 = vsel %vm2491, %v2563, %v2564
  %v2566 = vrot.slane %v2564, 4
  %v2567 = vrot.slane %v1472, 5
  %v2568 = vsel %vm2491, %v2566, %v2567
  %v2569 = vrot.slane %v1356, 5
  %v2570 = vrot.slane %v2569, 4
  %v2571 = vrot.slane %v1357, 5
  %v2572 = vsel %vm2491, %v2570, %v2571
  %v2573 = vrot.slane %v2571, 4
  %v2574 = vrot.slane %v1473, 5
  %v2575 = vsel %vm2491, %v2573, %v2574
  %v2576 = vrot.slane %v1358, 5
  %v2577 = vrot.slane %v2576, 4
  %v2578 = vrot.slane %v1359, 5
  %v2579 = vsel %vm2491, %v2577, %v2578
  %v2580 = vrot.slane %v2578, 4
  %v2581 = vrot.slane %v1474, 5
  %v2582 = vsel %vm2491, %v2580, %v2581
  %v2583 = vrot.slane %v1360, 5
  %v2584 = vrot.slane %v2583, 4
  %v2585 = vrot.slane %v1361, 5
  %v2586 = vsel %vm2491, %v2584, %v2585
  %v2587 = vrot.slane %v2585, 4
  %v2588 = vrot.slane %v1475, 5
  %v2589 = vsel %vm2491, %v2587, %v2588
  %v2590 = vrot.slane %v1362, 5
  %v2591 = vrot.slane %v2590, 4
  %v2592 = vrot.slane %v1363, 5
  %v2593 = vsel %vm2491, %v2591, %v2592
  %v2594 = vrot.slane %v2592, 4
  %v2595 = vrot.slane %v1476, 5
  %v2596 = vsel %vm2491, %v2594, %v2595
  %v2597 = vrot.slane %v1364, 5
  %v2598 = vrot.slane %v2597, 4
  %v2599 = vrot.slane %v1365, 5
  %v2600 = vsel %vm2491, %v2598, %v2599
  %v2601 = vrot.slane %v2599, 4
  %v2602 = vrot.slane %v1477, 5
  %v2603 = vsel %vm2491, %v2601, %v2602
  %v2604 = vrot.slane %v1366, 5
  %v2605 = vrot.slane %v2604, 4
  %v2606 = vrot.slane %v1367, 5
  %v2607 = vsel %vm2491, %v2605, %v2606
  %v2608 = vrot.slane %v2606, 4
  %v2609 = vrot.slane %v1478, 5
  %v2610 = vsel %vm2491, %v2608, %v2609
  %v2611 = vrot.slane %v1368, 5
  %v2612 = vrot.slane %v2611, 4
  %v2613 = vrot.slane %v1369, 5
  %v2614 = vsel %vm2491, %v2612, %v2613
  %v2615 = vrot.slane %v2613, 4
  %v2616 = vrot.slane %v1479, 5
  %v2617 = vsel %vm2491, %v2615, %v2616
  %v2618 = vrot.slane %v1370, 5
  %v2619 = vrot.slane %v2618, 4
  %v2620 = vrot.slane %v1371, 5
  %v2621 = vsel %vm2491, %v2619, %v2620
  %v2622 = vrot.slane %v2620, 4
  %v2623 = vrot.slane %v1480, 5
  %v2624 = vsel %vm2491, %v2622, %v2623
  %v2625 = vrot.slane %v1372, 5
  %v2626 = vrot.slane %v2625, 4
  %v2627 = vrot.slane %v1373, 5
  %v2628 = vsel %vm2491, %v2626, %v2627
  %v2629 = vrot.slane %v2627, 4
  %v2630 = vrot.slane %v1481, 5
  %v2631 = vsel %vm2491, %v2629, %v2630
  %v2632 = vrot.slane %v1374, 5
  %v2633 = vrot.slane %v2632, 4
  %v2634 = vrot.slane %v1375, 5
  %v2635 = vsel %vm2491, %v2633, %v2634
  %v2636 = vrot.slane %v2634, 4
  %v2637 = vrot.slane %v1482, 5
  %v2638 = vsel %vm2491, %v2636, %v2637
  %v2639 = vrot.slane %v1376, 5
  %v2640 = vrot.slane %v2639, 4
  %v2641 = vrot.slane %v1377, 5
  %v2642 = vsel %vm2491, %v2640, %v2641
  %v2643 = vrot.slane %v2641, 4
  %v2644 = vrot.slane %v1483, 5
  %v2645 = vsel %vm2491, %v2643, %v2644
  %v2646 = vrot.slane %v1378, 5
  %v2647 = vrot.slane %v2646, 4
  %v2648 = vrot.slane %v1379, 5
  %v2649 = vsel %vm2491, %v2647, %v2648
  %v2650 = vrot.slane %v2648, 4
  %v2651 = vrot.slane %v1484, 5
  %v2652 = vsel %vm2491, %v2650, %v2651
  %v2653 = vrot.slane %v1380, 5
  %v2654 = vrot.slane %v2653, 4
  %v2655 = vrot.slane %v1381, 5
  %v2656 = vsel %vm2491, %v2654, %v2655
  %v2657 = vrot.slane %v2655, 4
  %v2658 = vrot.slane %v1485, 5
  %v2659 = vsel %vm2491, %v2657, %v2658
  %v2660 = vrot.slane %v1382, 5
  %v2661 = vrot.slane %v2660, 4
  %v2662 = vrot.slane %v1383, 5
  %v2663 = vsel %vm2491, %v2661, %v2662
  %v2664 = vrot.slane %v2662, 4
  %v2665 = vrot.slane %v1486, 5
  %v2666 = vsel %vm2491, %v2664, %v2665
  %v2667 = vrot.slane %v1384, 5
  %v2668 = vrot.slane %v2667, 4
  %v2669 = vrot.slane %v1385, 5
  %v2670 = vsel %vm2491, %v2668, %v2669
  %v2671 = vrot.slane %v2669, 4
  %v2672 = vrot.slane %v1487, 5
  %v2673 = vsel %vm2491, %v2671, %v2672
  %v2674 = vrot.slane %v1386, 5
  %v2675 = vrot.slane %v2674, 4
  %v2676 = vrot.slane %v1387, 5
  %v2677 = vsel %vm2491, %v2675, %v2676
  %v2678 = vrot.slane %v2676, 4
  %v2679 = vrot.slane %v1488, 5
  %v2680 = vsel %vm2491, %v2678, %v2679
  %v2681 = vrot.slane %v1388, 5
  %v2682 = vrot.slane %v2681, 4
  %v2683 = vrot.slane %v1389, 5
  %v2684 = vsel %vm2491, %v2682, %v2683
  %v2685 = vrot.slane %v2683, 4
  %v2686 = vrot.slane %v1489, 5
  %v2687 = vsel %vm2491, %v2685, %v2686
  %v2688 = vrot.slane %v1390, 5
  %v2689 = vrot.slane %v2688, 4
  %v2690 = vrot.slane %v1391, 5
  %v2691 = vsel %vm2491, %v2689, %v2690
  %v2692 = vrot.slane %v2690, 4
  %v2693 = vrot.slane %v1490, 5
  %v2694 = vsel %vm2491, %v2692, %v2693
  %v2695 = vrot.slane %v1392, 5
  %v2696 = vrot.slane %v2695, 4
  %v2697 = vrot.slane %v1393, 5
  %v2698 = vsel %vm2491, %v2696, %v2697
  %v2699 = vrot.slane %v2697, 4
  %v2700 = vrot.slane %v1491, 5
  %v2701 = vsel %vm2491, %v2699, %v2700
  %v2702 = vrot.slane %v1394, 5
  %v2703 = vrot.slane %v2702, 4
  %v2704 = vrot.slane %v1395, 5
  %v2705 = vsel %vm2491, %v2703, %v2704
  %v2706 = vrot.slane %v2704, 4
  %v2707 = vrot.slane %v1492, 5
  %v2708 = vsel %vm2491, %v2706, %v2707
  %v2709 = vrot.slane %v1396, 5
  %v2710 = vrot.slane %v2709, 4
  %v2711 = vrot.slane %v1397, 5
  %v2712 = vsel %vm2491, %v2710, %v2711
  %v2713 = vrot.slane %v2711, 4
  %v2714 = vrot.slane %v1493, 5
  %v2715 = vsel %vm2491, %v2713, %v2714
  %2780 = vst [vmem:[#allocation3 + $0x8] sm:$0xf] %v2495
  %2781 = vst [vmem:[#allocation3 + $0x2c] sm:$0xf] %v2498
  %2782 = vst [vmem:[#allocation3 + $0x50] sm:$0xf] %v2502
  %2783 = vst [vmem:[#allocation3 + $0x74] sm:$0xf] %v2505
  %2784 = vst [vmem:[#allocation3 + $0x98] sm:$0xf] %v2509
  %2785 = vst [vmem:[#allocation3 + $0xbc] sm:$0xf] %v2512
  %2786 = vst [vmem:[#allocation3 + $0xe0] sm:$0xf] %v2516
  %2787 = vst [vmem:[#allocation3 + $0x104] sm:$0xf] %v2519
  %2788 = vst [vmem:[#allocation3 + $0x128] sm:$0xf] %v2523
  %2789 = vst [vmem:[#allocation3 + $0x14c] sm:$0xf] %v2526
  %2790 = vst [vmem:[#allocation3 + $0x170] sm:$0xf] %v2530
  %2791 = vst [vmem:[#allocation3 + $0x194] sm:$0xf] %v2533
  %2792 = vst [vmem:[#allocation3 + $0x1b8] sm:$0xf] %v2537
  %2793 = vst [vmem:[#allocation3 + $0x1dc] sm:$0xf] %v2540
  %2794 = vst [vmem:[#allocation3 + $0x200] sm:$0xf] %v2544
  %2795 = vst [vmem:[#allocation3 + $0x224] sm:$0xf] %v2547
  %2796 = vst [vmem:[#allocation3 + $0x248] sm:$0xf] %v2551
  %2797 = vst [vmem:[#allocation3 + $0x26c] sm:$0xf] %v2554
  %2798 = vst [vmem:[#allocation3 + $0x290] sm:$0xf] %v2558
  %2799 = vst [vmem:[#allocation3 + $0x2b4] sm:$0xf] %v2561
  %2800 = vst [vmem:[#allocation3 + $0x2d8] sm:$0xf] %v2565
  %2801 = vst [vmem:[#allocation3 + $0x2fc] sm:$0xf] %v2568
  %2802 = vst [vmem:[#allocation3 + $0x320] sm:$0xf] %v2572
  %2803 = vst [vmem:[#allocation3 + $0x344] sm:$0xf] %v2575
  %2804 = vst [vmem:[#allocation3 + $0x368] sm:$0xf] %v2579
  %2805 = vst [vmem:[#allocation3 + $0x38c] sm:$0xf] %v2582
  %2806 = vst [vmem:[#allocation3 + $0x3b0] sm:$0xf] %v2586
  %2807 = vst [vmem:[#allocation3 + $0x3d4] sm:$0xf] %v2589
  %2808 = vst [vmem:[#allocation3 + $0x3f8] sm:$0xf] %v2593
  %2809 = vst [vmem:[#allocation3 + $0x41c] sm:$0xf] %v2596
  %2810 = vst [vmem:[#allocation3 + $0x440] sm:$0xf] %v2600
  %2811 = vst [vmem:[#allocation3 + $0x464] sm:$0xf] %v2603
  %2812 = vst [vmem:[#allocation3 + $0x488] sm:$0xf] %v2607
  %2813 = vst [vmem:[#allocation3 + $0x4ac] sm:$0xf] %v2610
  %2814 = vst [vmem:[#allocation3 + $0x4d0] sm:$0xf] %v2614
  %2815 = vst [vmem:[#allocation3 + $0x4f4] sm:$0xf] %v2617
  %2816 = vst [vmem:[#allocation3 + $0x518] sm:$0xf] %v2621
  %2817 = vst [vmem:[#allocation3 + $0x53c] sm:$0xf] %v2624
  %2818 = vst [vmem:[#allocation3 + $0x560] sm:$0xf] %v2628
  %2819 = vst [vmem:[#allocation3 + $0x584] sm:$0xf] %v2631
  %2820 = vst [vmem:[#allocation3 + $0x5a8] sm:$0xf] %v2635
  %2821 = vst [vmem:[#allocation3 + $0x5cc] sm:$0xf] %v2638
  %2822 = vst [vmem:[#allocation3 + $0x5f0] sm:$0xf] %v2642
  %2823 = vst [vmem:[#allocation3 + $0x614] sm:$0xf] %v2645
  %2824 = vst [vmem:[#allocation3 + $0x638] sm:$0xf] %v2649
  %2825 = vst [vmem:[#allocation3 + $0x65c] sm:$0xf] %v2652
  %2826 = vst [vmem:[#allocation3 + $0x680] sm:$0xf] %v2656
  %2827 = vst [vmem:[#allocation3 + $0x6a4] sm:$0xf] %v2659
  %2828 = vst [vmem:[#allocation3 + $0x6c8] sm:$0xf] %v2663
  %2829 = vst [vmem:[#allocation3 + $0x6ec] sm:$0xf] %v2666
  %2830 = vst [vmem:[#allocation3 + $0x710] sm:$0xf] %v2670
  %2831 = vst [vmem:[#allocation3 + $0x734] sm:$0xf] %v2673
  %2832 = vst [vmem:[#allocation3 + $0x758] sm:$0xf] %v2677
  %2833 = vst [vmem:[#allocation3 + $0x77c] sm:$0xf] %v2680
  %2834 = vst [vmem:[#allocation3 + $0x7a0] sm:$0xf] %v2684
  %2835 = vst [vmem:[#allocation3 + $0x7c4] sm:$0xf] %v2687
  %2836 = vst [vmem:[#allocation3 + $0x7e8] sm:$0xf] %v2691
  %2837 = vst [vmem:[#allocation3 + $0x80c] sm:$0xf] %v2694
  %2838 = vst [vmem:[#allocation3 + $0x830] sm:$0xf] %v2698
  %2839 = vst [vmem:[#allocation3 + $0x854] sm:$0xf] %v2701
  %2840 = vst [vmem:[#allocation3 + $0x878] sm:$0xf] %v2705
  %2841 = vst [vmem:[#allocation3 + $0x89c] sm:$0xf] %v2708
  %2842 = vst [vmem:[#allocation3 + $0x8c0] sm:$0xf] %v2712
  %2843 = vst [vmem:[#allocation3 + $0x8e4] sm:$0xf] %v2715
  %v2844 = vpack.c.bf16 %v1274, %v1274
  %v2845 = vpack.c.bf16 %v1275, %v1275
  %v2846 = vpack.c.bf16 %v1328, %v1328
  %v2847 = vpack.c.bf16 %v1329, %v1329
  %2848 = vst [vmem:[#allocation3 + $0xc] sm:$0xf] %v1336
  %2849 = vst [vmem:[#allocation3 + $0x30] sm:$0xf] %v1337
  %2850 = vst [vmem:[#allocation3 + $0x54] sm:$0xf] %v1338
  %2851 = vst [vmem:[#allocation3 + $0x78] sm:$0xf] %v1339
  %2852 = vst [vmem:[#allocation3 + $0x9c] sm:$0xf] %v1340
  %2853 = vst [vmem:[#allocation3 + $0xc0] sm:$0xf] %v1341
  %2854 = vst [vmem:[#allocation3 + $0xe4] sm:$0xf] %v1342
  %2855 = vst [vmem:[#allocation3 + $0x108] sm:$0xf] %v1343
  %2856 = vst [vmem:[#allocation3 + $0x12c] sm:$0xf] %v1344
  %2857 = vst [vmem:[#allocation3 + $0x150] sm:$0xf] %v1345
  %2858 = vst [vmem:[#allocation3 + $0x174] sm:$0xf] %v1346
  %2859 = vst [vmem:[#allocation3 + $0x198] sm:$0xf] %v1347
  %2860 = vst [vmem:[#allocation3 + $0x1bc] sm:$0xf] %v1348
  %2861 = vst [vmem:[#allocation3 + $0x1e0] sm:$0xf] %v1349
  %2862 = vst [vmem:[#allocation3 + $0x204] sm:$0xf] %v1350
  %2863 = vst [vmem:[#allocation3 + $0x228] sm:$0xf] %v1351
  %2864 = vst [vmem:[#allocation3 + $0x24c] sm:$0xf] %v1352
  %2865 = vst [vmem:[#allocation3 + $0x270] sm:$0xf] %v1353
  %2866 = vst [vmem:[#allocation3 + $0x294] sm:$0xf] %v1354
  %2867 = vst [vmem:[#allocation3 + $0x2b8] sm:$0xf] %v1355
  %2868 = vst [vmem:[#allocation3 + $0x2dc] sm:$0xf] %v1356
  %2869 = vst [vmem:[#allocation3 + $0x300] sm:$0xf] %v1357
  %2870 = vst [vmem:[#allocation3 + $0x324] sm:$0xf] %v1358
  %2871 = vst [vmem:[#allocation3 + $0x348] sm:$0xf] %v1359
  %2872 = vst [vmem:[#allocation3 + $0x36c] sm:$0xf] %v1360
  %2873 = vst [vmem:[#allocation3 + $0x390] sm:$0xf] %v1361
  %2874 = vst [vmem:[#allocation3 + $0x3b4] sm:$0xf] %v1362
  %2875 = vst [vmem:[#allocation3 + $0x3d8] sm:$0xf] %v1363
  %2876 = vst [vmem:[#allocation3 + $0x3fc] sm:$0xf] %v1364
  %2877 = vst [vmem:[#allocation3 + $0x420] sm:$0xf] %v1365
  %2878 = vst [vmem:[#allocation3 + $0x444] sm:$0xf] %v2844
  %2879 = vst [vmem:[#allocation3 + $0x468] sm:$0xf] %v2845
  %2880 = vst [vmem:[#allocation3 + $0x48c] sm:$0xf] %v1368
  %2881 = vst [vmem:[#allocation3 + $0x4b0] sm:$0xf] %v1369
  %2882 = vst [vmem:[#allocation3 + $0x4d4] sm:$0xf] %v1370
  %2883 = vst [vmem:[#allocation3 + $0x4f8] sm:$0xf] %v1371
  %2884 = vst [vmem:[#allocation3 + $0x51c] sm:$0xf] %v1372
  %2885 = vst [vmem:[#allocation3 + $0x540] sm:$0xf] %v1373
  %2886 = vst [vmem:[#allocation3 + $0x564] sm:$0xf] %v1374
  %2887 = vst [vmem:[#allocation3 + $0x588] sm:$0xf] %v1375
  %2888 = vst [vmem:[#allocation3 + $0x5ac] sm:$0xf] %v1376
  %2889 = vst [vmem:[#allocation3 + $0x5d0] sm:$0xf] %v1377
  %2890 = vst [vmem:[#allocation3 + $0x5f4] sm:$0xf] %v1378
  %2891 = vst [vmem:[#allocation3 + $0x618] sm:$0xf] %v1379
  %2892 = vst [vmem:[#allocation3 + $0x63c] sm:$0xf] %v1380
  %2893 = vst [vmem:[#allocation3 + $0x660] sm:$0xf] %v1381
  %2894 = vst [vmem:[#allocation3 + $0x684] sm:$0xf] %v1382
  %2895 = vst [vmem:[#allocation3 + $0x6a8] sm:$0xf] %v1383
  %2896 = vst [vmem:[#allocation3 + $0x6cc] sm:$0xf] %v1384
  %2897 = vst [vmem:[#allocation3 + $0x6f0] sm:$0xf] %v1385
  %2898 = vst [vmem:[#allocation3 + $0x714] sm:$0xf] %v1386
  %2899 = vst [vmem:[#allocation3 + $0x738] sm:$0xf] %v1387
  %2900 = vst [vmem:[#allocation3 + $0x75c] sm:$0xf] %v1388
  %2901 = vst [vmem:[#allocation3 + $0x780] sm:$0xf] %v1389
  %2902 = vst [vmem:[#allocation3 + $0x7a4] sm:$0xf] %v1390
  %2903 = vst [vmem:[#allocation3 + $0x7c8] sm:$0xf] %v1391
  %2904 = vst [vmem:[#allocation3 + $0x7ec] sm:$0xf] %v1392
  %2905 = vst [vmem:[#allocation3 + $0x810] sm:$0xf] %v1393
  %2906 = vst [vmem:[#allocation3 + $0x834] sm:$0xf] %v1394
  %2907 = vst [vmem:[#allocation3 + $0x858] sm:$0xf] %v1395
  %2908 = vst [vmem:[#allocation3 + $0x87c] sm:$0xf] %v1396
  %2909 = vst [vmem:[#allocation3 + $0x8a0] sm:$0xf] %v1397
  %2910 = vst [vmem:[#allocation3 + $0x8c4] sm:$0xf] %v2846
  %2911 = vst [vmem:[#allocation3 + $0x8e8] sm:$0xf] %v2847
  %v2912 = vpack.c.bf16 %v1276, %v1276
  %v2913 = vpack.c.bf16 %v1330, %v1330
  %v2915 = vshrl.u32 %v2844, 16
  %v2917 = vrot.slane %v2915, 4
  %v2918 = vshll.u32 %v2844, 16
  %v2920 = vrot.slane %v2918, 5
  %v2921 = vor.u32 %v2917, %v2920
  %v2922 = vrot.slane %v2921, 4
  %v2924 = vshll.u32 %v2845, 16
  %v2926 = vrot.slane %v2924, 5
  %v2927 = vsel %vm1496, %v2922, %v2926
  %v2928 = vshrl.u32 %v2845, 16
  %v2930 = vrot.slane %v2928, 4
  %v2931 = vor.u32 %v2930, %v2926
  %v2932 = vrot.slane %v2931, 4
  %v2934 = vshll.u32 %v2912, 16
  %v2936 = vrot.slane %v2934, 5
  %v2937 = vsel %vm1496, %v2932, %v2936
  %v2939 = vshrl.u32 %v2846, 16
  %v2941 = vrot.slane %v2939, 4
  %v2942 = vshll.u32 %v2846, 16
  %v2944 = vrot.slane %v2942, 5
  %v2945 = vor.u32 %v2941, %v2944
  %v2946 = vrot.slane %v2945, 4
  %v2948 = vshll.u32 %v2847, 16
  %v2950 = vrot.slane %v2948, 5
  %v2951 = vsel %vm1496, %v2946, %v2950
  %v2952 = vshrl.u32 %v2847, 16
  %v2954 = vrot.slane %v2952, 4
  %v2955 = vor.u32 %v2954, %v2950
  %v2956 = vrot.slane %v2955, 4
  %v2958 = vshll.u32 %v2913, 16
  %v2960 = vrot.slane %v2958, 5
  %v2961 = vsel %vm1496, %v2956, %v2960
  %2966 = vst [vmem:[#allocation3 + $0x10] sm:$0xf] %v1534
  %2967 = vst [vmem:[#allocation3 + $0x34] sm:$0xf] %v1544
  %2968 = vst [vmem:[#allocation3 + $0x58] sm:$0xf] %v1558
  %2969 = vst [vmem:[#allocation3 + $0x7c] sm:$0xf] %v1568
  %2970 = vst [vmem:[#allocation3 + $0xa0] sm:$0xf] %v1582
  %2971 = vst [vmem:[#allocation3 + $0xc4] sm:$0xf] %v1592
  %2972 = vst [vmem:[#allocation3 + $0xe8] sm:$0xf] %v1606
  %2973 = vst [vmem:[#allocation3 + $0x10c] sm:$0xf] %v1616
  %2974 = vst [vmem:[#allocation3 + $0x130] sm:$0xf] %v1630
  %2975 = vst [vmem:[#allocation3 + $0x154] sm:$0xf] %v1640
  %2976 = vst [vmem:[#allocation3 + $0x178] sm:$0xf] %v1654
  %2977 = vst [vmem:[#allocation3 + $0x19c] sm:$0xf] %v1664
  %2978 = vst [vmem:[#allocation3 + $0x1c0] sm:$0xf] %v1678
  %2979 = vst [vmem:[#allocation3 + $0x1e4] sm:$0xf] %v1688
  %2980 = vst [vmem:[#allocation3 + $0x208] sm:$0xf] %v1702
  %2981 = vst [vmem:[#allocation3 + $0x22c] sm:$0xf] %v1712
  %2982 = vst [vmem:[#allocation3 + $0x250] sm:$0xf] %v1726
  %2983 = vst [vmem:[#allocation3 + $0x274] sm:$0xf] %v1736
  %2984 = vst [vmem:[#allocation3 + $0x298] sm:$0xf] %v1750
  %2985 = vst [vmem:[#allocation3 + $0x2bc] sm:$0xf] %v1760
  %2986 = vst [vmem:[#allocation3 + $0x2e0] sm:$0xf] %v1774
  %2987 = vst [vmem:[#allocation3 + $0x304] sm:$0xf] %v1784
  %2988 = vst [vmem:[#allocation3 + $0x328] sm:$0xf] %v1798
  %2989 = vst [vmem:[#allocation3 + $0x34c] sm:$0xf] %v1808
  %2990 = vst [vmem:[#allocation3 + $0x370] sm:$0xf] %v1822
  %2991 = vst [vmem:[#allocation3 + $0x394] sm:$0xf] %v1832
  %2992 = vst [vmem:[#allocation3 + $0x3b8] sm:$0xf] %v1846
  %2993 = vst [vmem:[#allocation3 + $0x3dc] sm:$0xf] %v1856
  %2994 = vst [vmem:[#allocation3 + $0x400] sm:$0xf] %v1870
  %2995 = vst [vmem:[#allocation3 + $0x424] sm:$0xf] %v1880
  %2996 = vst [vmem:[#allocation3 + $0x448] sm:$0xf] %v2927
  %2997 = vst [vmem:[#allocation3 + $0x46c] sm:$0xf] %v2937
  %2998 = vst [vmem:[#allocation3 + $0x490] sm:$0xf] %v1918
  %2999 = vst [vmem:[#allocation3 + $0x4b4] sm:$0xf] %v1928
  %3000 = vst [vmem:[#allocation3 + $0x4d8] sm:$0xf] %v1942
  %3001 = vst [vmem:[#allocation3 + $0x4fc] sm:$0xf] %v1952
  %3002 = vst [vmem:[#allocation3 + $0x520] sm:$0xf] %v1966
  %3003 = vst [vmem:[#allocation3 + $0x544] sm:$0xf] %v1976
  %3004 = vst [vmem:[#allocation3 + $0x568] sm:$0xf] %v1990
  %3005 = vst [vmem:[#allocation3 + $0x58c] sm:$0xf] %v2000
  %3006 = vst [vmem:[#allocation3 + $0x5b0] sm:$0xf] %v2014
  %3007 = vst [vmem:[#allocation3 + $0x5d4] sm:$0xf] %v2024
  %3008 = vst [vmem:[#allocation3 + $0x5f8] sm:$0xf] %v2038
  %3009 = vst [vmem:[#allocation3 + $0x61c] sm:$0xf] %v2048
  %3010 = vst [vmem:[#allocation3 + $0x640] sm:$0xf] %v2062
  %3011 = vst [vmem:[#allocation3 + $0x664] sm:$0xf] %v2072
  %3012 = vst [vmem:[#allocation3 + $0x688] sm:$0xf] %v2086
  %3013 = vst [vmem:[#allocation3 + $0x6ac] sm:$0xf] %v2096
  %3014 = vst [vmem:[#allocation3 + $0x6d0] sm:$0xf] %v2110
  %3015 = vst [vmem:[#allocation3 + $0x6f4] sm:$0xf] %v2120
  %3016 = vst [vmem:[#allocation3 + $0x718] sm:$0xf] %v2134
  %3017 = vst [vmem:[#allocation3 + $0x73c] sm:$0xf] %v2144
  %3018 = vst [vmem:[#allocation3 + $0x760] sm:$0xf] %v2158
  %3019 = vst [vmem:[#allocation3 + $0x784] sm:$0xf] %v2168
  %3020 = vst [vmem:[#allocation3 + $0x7a8] sm:$0xf] %v2182
  %3021 = vst [vmem:[#allocation3 + $0x7cc] sm:$0xf] %v2192
  %3022 = vst [vmem:[#allocation3 + $0x7f0] sm:$0xf] %v2206
  %3023 = vst [vmem:[#allocation3 + $0x814] sm:$0xf] %v2216
  %3024 = vst [vmem:[#allocation3 + $0x838] sm:$0xf] %v2230
  %3025 = vst [vmem:[#allocation3 + $0x85c] sm:$0xf] %v2240
  %3026 = vst [vmem:[#allocation3 + $0x880] sm:$0xf] %v2254
  %3027 = vst [vmem:[#allocation3 + $0x8a4] sm:$0xf] %v2264
  %3028 = vst [vmem:[#allocation3 + $0x8c8] sm:$0xf] %v2951
  %3029 = vst [vmem:[#allocation3 + $0x8ec] sm:$0xf] %v2961
  %v3036 = vrot.slane %v2844, 5
  %v3037 = vrot.slane %v3036, 4
  %v3038 = vrot.slane %v2845, 5
  %v3039 = vsel %vm2491, %v3037, %v3038
  %v3040 = vrot.slane %v3038, 4
  %v3041 = vrot.slane %v2912, 5
  %v3042 = vsel %vm2491, %v3040, %v3041
  %v3043 = vrot.slane %v2846, 5
  %v3044 = vrot.slane %v3043, 4
  %v3045 = vrot.slane %v2847, 5
  %v3046 = vsel %vm2491, %v3044, %v3045
  %v3047 = vrot.slane %v3045, 4
  %v3048 = vrot.slane %v2913, 5
  %v3049 = vsel %vm2491, %v3047, %v3048
  %3054 = vst [vmem:[#allocation3 + $0x14] sm:$0xf] %v2502
  %3055 = vst [vmem:[#allocation3 + $0x38] sm:$0xf] %v2505
  %3056 = vst [vmem:[#allocation3 + $0x5c] sm:$0xf] %v2509
  %3057 = vst [vmem:[#allocation3 + $0x80] sm:$0xf] %v2512
  %3058 = vst [vmem:[#allocation3 + $0xa4] sm:$0xf] %v2516
  %3059 = vst [vmem:[#allocation3 + $0xc8] sm:$0xf] %v2519
  %3060 = vst [vmem:[#allocation3 + $0xec] sm:$0xf] %v2523
  %3061 = vst [vmem:[#allocation3 + $0x110] sm:$0xf] %v2526
  %3062 = vst [vmem:[#allocation3 + $0x134] sm:$0xf] %v2530
  %3063 = vst [vmem:[#allocation3 + $0x158] sm:$0xf] %v2533
  %3064 = vst [vmem:[#allocation3 + $0x17c] sm:$0xf] %v2537
  %3065 = vst [vmem:[#allocation3 + $0x1a0] sm:$0xf] %v2540
  %3066 = vst [vmem:[#allocation3 + $0x1c4] sm:$0xf] %v2544
  %3067 = vst [vmem:[#allocation3 + $0x1e8] sm:$0xf] %v2547
  %3068 = vst [vmem:[#allocation3 + $0x20c] sm:$0xf] %v2551
  %3069 = vst [vmem:[#allocation3 + $0x230] sm:$0xf] %v2554
  %3070 = vst [vmem:[#allocation3 + $0x254] sm:$0xf] %v2558
  %3071 = vst [vmem:[#allocation3 + $0x278] sm:$0xf] %v2561
  %3072 = vst [vmem:[#allocation3 + $0x29c] sm:$0xf] %v2565
  %3073 = vst [vmem:[#allocation3 + $0x2c0] sm:$0xf] %v2568
  %3074 = vst [vmem:[#allocation3 + $0x2e4] sm:$0xf] %v2572
  %3075 = vst [vmem:[#allocation3 + $0x308] sm:$0xf] %v2575
  %3076 = vst [vmem:[#allocation3 + $0x32c] sm:$0xf] %v2579
  %3077 = vst [vmem:[#allocation3 + $0x350] sm:$0xf] %v2582
  %3078 = vst [vmem:[#allocation3 + $0x374] sm:$0xf] %v2586
  %3079 = vst [vmem:[#allocation3 + $0x398] sm:$0xf] %v2589
  %3080 = vst [vmem:[#allocation3 + $0x3bc] sm:$0xf] %v2593
  %3081 = vst [vmem:[#allocation3 + $0x3e0] sm:$0xf] %v2596
  %3082 = vst [vmem:[#allocation3 + $0x404] sm:$0xf] %v2600
  %3083 = vst [vmem:[#allocation3 + $0x428] sm:$0xf] %v2603
  %3084 = vst [vmem:[#allocation3 + $0x44c] sm:$0xf] %v3039
  %3085 = vst [vmem:[#allocation3 + $0x470] sm:$0xf] %v3042
  %3086 = vst [vmem:[#allocation3 + $0x494] sm:$0xf] %v2614
  %3087 = vst [vmem:[#allocation3 + $0x4b8] sm:$0xf] %v2617
  %3088 = vst [vmem:[#allocation3 + $0x4dc] sm:$0xf] %v2621
  %3089 = vst [vmem:[#allocation3 + $0x500] sm:$0xf] %v2624
  %3090 = vst [vmem:[#allocation3 + $0x524] sm:$0xf] %v2628
  %3091 = vst [vmem:[#allocation3 + $0x548] sm:$0xf] %v2631
  %3092 = vst [vmem:[#allocation3 + $0x56c] sm:$0xf] %v2635
  %3093 = vst [vmem:[#allocation3 + $0x590] sm:$0xf] %v2638
  %3094 = vst [vmem:[#allocation3 + $0x5b4] sm:$0xf] %v2642
  %3095 = vst [vmem:[#allocation3 + $0x5d8] sm:$0xf] %v2645
  %3096 = vst [vmem:[#allocation3 + $0x5fc] sm:$0xf] %v2649
  %3097 = vst [vmem:[#allocation3 + $0x620] sm:$0xf] %v2652
  %3098 = vst [vmem:[#allocation3 + $0x644] sm:$0xf] %v2656
  %3099 = vst [vmem:[#allocation3 + $0x668] sm:$0xf] %v2659
  %3100 = vst [vmem:[#allocation3 + $0x68c] sm:$0xf] %v2663
  %3101 = vst [vmem:[#allocation3 + $0x6b0] sm:$0xf] %v2666
  %3102 = vst [vmem:[#allocation3 + $0x6d4] sm:$0xf] %v2670
  %3103 = vst [vmem:[#allocation3 + $0x6f8] sm:$0xf] %v2673
  %3104 = vst [vmem:[#allocation3 + $0x71c] sm:$0xf] %v2677
  %3105 = vst [vmem:[#allocation3 + $0x740] sm:$0xf] %v2680
  %3106 = vst [vmem:[#allocation3 + $0x764] sm:$0xf] %v2684
  %3107 = vst [vmem:[#allocation3 + $0x788] sm:$0xf] %v2687
  %3108 = vst [vmem:[#allocation3 + $0x7ac] sm:$0xf] %v2691
  %3109 = vst [vmem:[#allocation3 + $0x7d0] sm:$0xf] %v2694
  %3110 = vst [vmem:[#allocation3 + $0x7f4] sm:$0xf] %v2698
  %3111 = vst [vmem:[#allocation3 + $0x818] sm:$0xf] %v2701
  %3112 = vst [vmem:[#allocation3 + $0x83c] sm:$0xf] %v2705
  %3113 = vst [vmem:[#allocation3 + $0x860] sm:$0xf] %v2708
  %3114 = vst [vmem:[#allocation3 + $0x884] sm:$0xf] %v2712
  %3115 = vst [vmem:[#allocation3 + $0x8a8] sm:$0xf] %v2715
  %3116 = vst [vmem:[#allocation3 + $0x8cc] sm:$0xf] %v3046
  %3117 = vst [vmem:[#allocation3 + $0x8f0] sm:$0xf] %v3049
  %v3118 = vpack.c.bf16 %v1277, %v1277
  %v3119 = vpack.c.bf16 %v1278, %v1278
  %v3120 = vpack.c.bf16 %v1331, %v1331
  %v3121 = vpack.c.bf16 %v1332, %v1332
  %3122 = vst [vmem:[#allocation3 + $0x18] sm:$0xf] %v1338
  %3123 = vst [vmem:[#allocation3 + $0x3c] sm:$0xf] %v1339
  %3124 = vst [vmem:[#allocation3 + $0x60] sm:$0xf] %v1340
  %3125 = vst [vmem:[#allocation3 + $0x84] sm:$0xf] %v1341
  %3126 = vst [vmem:[#allocation3 + $0xa8] sm:$0xf] %v1342
  %3127 = vst [vmem:[#allocation3 + $0xcc] sm:$0xf] %v1343
  %3128 = vst [vmem:[#allocation3 + $0xf0] sm:$0xf] %v1344
  %3129 = vst [vmem:[#allocation3 + $0x114] sm:$0xf] %v1345
  %3130 = vst [vmem:[#allocation3 + $0x138] sm:$0xf] %v1346
  %3131 = vst [vmem:[#allocation3 + $0x15c] sm:$0xf] %v1347
  %3132 = vst [vmem:[#allocation3 + $0x180] sm:$0xf] %v1348
  %3133 = vst [vmem:[#allocation3 + $0x1a4] sm:$0xf] %v1349
  %3134 = vst [vmem:[#allocation3 + $0x1c8] sm:$0xf] %v1350
  %3135 = vst [vmem:[#allocation3 + $0x1ec] sm:$0xf] %v1351
  %3136 = vst [vmem:[#allocation3 + $0x210] sm:$0xf] %v1352
  %3137 = vst [vmem:[#allocation3 + $0x234] sm:$0xf] %v1353
  %3138 = vst [vmem:[#allocation3 + $0x258] sm:$0xf] %v1354
  %3139 = vst [vmem:[#allocation3 + $0x27c] sm:$0xf] %v1355
  %3140 = vst [vmem:[#allocation3 + $0x2a0] sm:$0xf] %v1356
  %3141 = vst [vmem:[#allocation3 + $0x2c4] sm:$0xf] %v1357
  %3142 = vst [vmem:[#allocation3 + $0x2e8] sm:$0xf] %v1358
  %3143 = vst [vmem:[#allocation3 + $0x30c] sm:$0xf] %v1359
  %3144 = vst [vmem:[#allocation3 + $0x330] sm:$0xf] %v1360
  %3145 = vst [vmem:[#allocation3 + $0x354] sm:$0xf] %v1361
  %3146 = vst [vmem:[#allocation3 + $0x378] sm:$0xf] %v1362
  %3147 = vst [vmem:[#allocation3 + $0x39c] sm:$0xf] %v1363
  %3148 = vst [vmem:[#allocation3 + $0x3c0] sm:$0xf] %v1364
  %3149 = vst [vmem:[#allocation3 + $0x3e4] sm:$0xf] %v1365
  %3150 = vst [vmem:[#allocation3 + $0x408] sm:$0xf] %v2844
  %3151 = vst [vmem:[#allocation3 + $0x42c] sm:$0xf] %v2845
  %3152 = vst [vmem:[#allocation3 + $0x450] sm:$0xf] %v3118
  %3153 = vst [vmem:[#allocation3 + $0x474] sm:$0xf] %v3119
  %3154 = vst [vmem:[#allocation3 + $0x498] sm:$0xf] %v1370
  %3155 = vst [vmem:[#allocation3 + $0x4bc] sm:$0xf] %v1371
  %3156 = vst [vmem:[#allocation3 + $0x4e0] sm:$0xf] %v1372
  %3157 = vst [vmem:[#allocation3 + $0x504] sm:$0xf] %v1373
  %3158 = vst [vmem:[#allocation3 + $0x528] sm:$0xf] %v1374
  %3159 = vst [vmem:[#allocation3 + $0x54c] sm:$0xf] %v1375
  %3160 = vst [vmem:[#allocation3 + $0x570] sm:$0xf] %v1376
  %3161 = vst [vmem:[#allocation3 + $0x594] sm:$0xf] %v1377
  %3162 = vst [vmem:[#allocation3 + $0x5b8] sm:$0xf] %v1378
  %3163 = vst [vmem:[#allocation3 + $0x5dc] sm:$0xf] %v1379
  %3164 = vst [vmem:[#allocation3 + $0x600] sm:$0xf] %v1380
  %3165 = vst [vmem:[#allocation3 + $0x624] sm:$0xf] %v1381
  %3166 = vst [vmem:[#allocation3 + $0x648] sm:$0xf] %v1382
  %3167 = vst [vmem:[#allocation3 + $0x66c] sm:$0xf] %v1383
  %3168 = vst [vmem:[#allocation3 + $0x690] sm:$0xf] %v1384
  %3169 = vst [vmem:[#allocation3 + $0x6b4] sm:$0xf] %v1385
  %3170 = vst [vmem:[#allocation3 + $0x6d8] sm:$0xf] %v1386
  %3171 = vst [vmem:[#allocation3 + $0x6fc] sm:$0xf] %v1387
  %3172 = vst [vmem:[#allocation3 + $0x720] sm:$0xf] %v1388
  %3173 = vst [vmem:[#allocation3 + $0x744] sm:$0xf] %v1389
  %3174 = vst [vmem:[#allocation3 + $0x768] sm:$0xf] %v1390
  %3175 = vst [vmem:[#allocation3 + $0x78c] sm:$0xf] %v1391
  %3176 = vst [vmem:[#allocation3 + $0x7b0] sm:$0xf] %v1392
  %3177 = vst [vmem:[#allocation3 + $0x7d4] sm:$0xf] %v1393
  %3178 = vst [vmem:[#allocation3 + $0x7f8] sm:$0xf] %v1394
  %3179 = vst [vmem:[#allocation3 + $0x81c] sm:$0xf] %v1395
  %3180 = vst [vmem:[#allocation3 + $0x840] sm:$0xf] %v1396
  %3181 = vst [vmem:[#allocation3 + $0x864] sm:$0xf] %v1397
  %3182 = vst [vmem:[#allocation3 + $0x888] sm:$0xf] %v2846
  %3183 = vst [vmem:[#allocation3 + $0x8ac] sm:$0xf] %v2847
  %3184 = vst [vmem:[#allocation3 + $0x8d0] sm:$0xf] %v3120
  %3185 = vst [vmem:[#allocation3 + $0x8f4] sm:$0xf] %v3121
  %v3186 = vpack.c.bf16 %v1279, %v1279
  %v3187 = vpack.c.bf16 %v1333, %v1333
  %v3189 = vshrl.u32 %v3118, 16
  %v3191 = vrot.slane %v3189, 4
  %v3192 = vshll.u32 %v3118, 16
  %v3194 = vrot.slane %v3192, 5
  %v3195 = vor.u32 %v3191, %v3194
  %v3196 = vrot.slane %v3195, 4
  %v3198 = vshll.u32 %v3119, 16
  %v3200 = vrot.slane %v3198, 5
  %v3201 = vsel %vm1496, %v3196, %v3200
  %v3202 = vshrl.u32 %v3119, 16
  %v3204 = vrot.slane %v3202, 4
  %v3205 = vor.u32 %v3204, %v3200
  %v3206 = vrot.slane %v3205, 4
  %v3208 = vshll.u32 %v3186, 16
  %v3210 = vrot.slane %v3208, 5
  %v3211 = vsel %vm1496, %v3206, %v3210
  %v3213 = vshrl.u32 %v3120, 16
  %v3215 = vrot.slane %v3213, 4
  %v3216 = vshll.u32 %v3120, 16
  %v3218 = vrot.slane %v3216, 5
  %v3219 = vor.u32 %v3215, %v3218
  %v3220 = vrot.slane %v3219, 4
  %v3222 = vshll.u32 %v3121, 16
  %v3224 = vrot.slane %v3222, 5
  %v3225 = vsel %vm1496, %v3220, %v3224
  %v3226 = vshrl.u32 %v3121, 16
  %v3228 = vrot.slane %v3226, 4
  %v3229 = vor.u32 %v3228, %v3224
  %v3230 = vrot.slane %v3229, 4
  %v3232 = vshll.u32 %v3187, 16
  %v3234 = vrot.slane %v3232, 5
  %v3235 = vsel %vm1496, %v3230, %v3234
  %3240 = vst [vmem:[#allocation3 + $0x1c] sm:$0xf] %v1558
  %3241 = vst [vmem:[#allocation3 + $0x40] sm:$0xf] %v1568
  %3242 = vst [vmem:[#allocation3 + $0x64] sm:$0xf] %v1582
  %3243 = vst [vmem:[#allocation3 + $0x88] sm:$0xf] %v1592
  %3244 = vst [vmem:[#allocation3 + $0xac] sm:$0xf] %v1606
  %3245 = vst [vmem:[#allocation3 + $0xd0] sm:$0xf] %v1616
  %3246 = vst [vmem:[#allocation3 + $0xf4] sm:$0xf] %v1630
  %3247 = vst [vmem:[#allocation3 + $0x118] sm:$0xf] %v1640
  %3248 = vst [vmem:[#allocation3 + $0x13c] sm:$0xf] %v1654
  %3249 = vst [vmem:[#allocation3 + $0x160] sm:$0xf] %v1664
  %3250 = vst [vmem:[#allocation3 + $0x184] sm:$0xf] %v1678
  %3251 = vst [vmem:[#allocation3 + $0x1a8] sm:$0xf] %v1688
  %3252 = vst [vmem:[#allocation3 + $0x1cc] sm:$0xf] %v1702
  %3253 = vst [vmem:[#allocation3 + $0x1f0] sm:$0xf] %v1712
  %3254 = vst [vmem:[#allocation3 + $0x214] sm:$0xf] %v1726
  %3255 = vst [vmem:[#allocation3 + $0x238] sm:$0xf] %v1736
  %3256 = vst [vmem:[#allocation3 + $0x25c] sm:$0xf] %v1750
  %3257 = vst [vmem:[#allocation3 + $0x280] sm:$0xf] %v1760
  %3258 = vst [vmem:[#allocation3 + $0x2a4] sm:$0xf] %v1774
  %3259 = vst [vmem:[#allocation3 + $0x2c8] sm:$0xf] %v1784
  %3260 = vst [vmem:[#allocation3 + $0x2ec] sm:$0xf] %v1798
  %3261 = vst [vmem:[#allocation3 + $0x310] sm:$0xf] %v1808
  %3262 = vst [vmem:[#allocation3 + $0x334] sm:$0xf] %v1822
  %3263 = vst [vmem:[#allocation3 + $0x358] sm:$0xf] %v1832
  %3264 = vst [vmem:[#allocation3 + $0x37c] sm:$0xf] %v1846
  %3265 = vst [vmem:[#allocation3 + $0x3a0] sm:$0xf] %v1856
  %3266 = vst [vmem:[#allocation3 + $0x3c4] sm:$0xf] %v1870
  %3267 = vst [vmem:[#allocation3 + $0x3e8] sm:$0xf] %v1880
  %3268 = vst [vmem:[#allocation3 + $0x40c] sm:$0xf] %v2927
  %3269 = vst [vmem:[#allocation3 + $0x430] sm:$0xf] %v2937
  %3270 = vst [vmem:[#allocation3 + $0x454] sm:$0xf] %v3201
  %3271 = vst [vmem:[#allocation3 + $0x478] sm:$0xf] %v3211
  %3272 = vst [vmem:[#allocation3 + $0x49c] sm:$0xf] %v1942
  %3273 = vst [vmem:[#allocation3 + $0x4c0] sm:$0xf] %v1952
  %3274 = vst [vmem:[#allocation3 + $0x4e4] sm:$0xf] %v1966
  %3275 = vst [vmem:[#allocation3 + $0x508] sm:$0xf] %v1976
  %3276 = vst [vmem:[#allocation3 + $0x52c] sm:$0xf] %v1990
  %3277 = vst [vmem:[#allocation3 + $0x550] sm:$0xf] %v2000
  %3278 = vst [vmem:[#allocation3 + $0x574] sm:$0xf] %v2014
  %3279 = vst [vmem:[#allocation3 + $0x598] sm:$0xf] %v2024
  %3280 = vst [vmem:[#allocation3 + $0x5bc] sm:$0xf] %v2038
  %3281 = vst [vmem:[#allocation3 + $0x5e0] sm:$0xf] %v2048
  %3282 = vst [vmem:[#allocation3 + $0x604] sm:$0xf] %v2062
  %3283 = vst [vmem:[#allocation3 + $0x628] sm:$0xf] %v2072
  %3284 = vst [vmem:[#allocation3 + $0x64c] sm:$0xf] %v2086
  %3285 = vst [vmem:[#allocation3 + $0x670] sm:$0xf] %v2096
  %3286 = vst [vmem:[#allocation3 + $0x694] sm:$0xf] %v2110
  %3287 = vst [vmem:[#allocation3 + $0x6b8] sm:$0xf] %v2120
  %3288 = vst [vmem:[#allocation3 + $0x6dc] sm:$0xf] %v2134
  %3289 = vst [vmem:[#allocation3 + $0x700] sm:$0xf] %v2144
  %3290 = vst [vmem:[#allocation3 + $0x724] sm:$0xf] %v2158
  %3291 = vst [vmem:[#allocation3 + $0x748] sm:$0xf] %v2168
  %3292 = vst [vmem:[#allocation3 + $0x76c] sm:$0xf] %v2182
  %3293 = vst [vmem:[#allocation3 + $0x790] sm:$0xf] %v2192
  %3294 = vst [vmem:[#allocation3 + $0x7b4] sm:$0xf] %v2206
  %3295 = vst [vmem:[#allocation3 + $0x7d8] sm:$0xf] %v2216
  %3296 = vst [vmem:[#allocation3 + $0x7fc] sm:$0xf] %v2230
  %3297 = vst [vmem:[#allocation3 + $0x820] sm:$0xf] %v2240
  %3298 = vst [vmem:[#allocation3 + $0x844] sm:$0xf] %v2254
  %3299 = vst [vmem:[#allocation3 + $0x868] sm:$0xf] %v2264
  %3300 = vst [vmem:[#allocation3 + $0x88c] sm:$0xf] %v2951
  %3301 = vst [vmem:[#allocation3 + $0x8b0] sm:$0xf] %v2961
  %3302 = vst [vmem:[#allocation3 + $0x8d4] sm:$0xf] %v3225
  %3303 = vst [vmem:[#allocation3 + $0x8f8] sm:$0xf] %v3235
  %v3310 = vrot.slane %v3118, 5
  %v3311 = vrot.slane %v3310, 4
  %v3312 = vrot.slane %v3119, 5
  %v3313 = vsel %vm2491, %v3311, %v3312
  %v3314 = vrot.slane %v3312, 4
  %v3315 = vrot.slane %v3186, 5
  %v3316 = vsel %vm2491, %v3314, %v3315
  %v3317 = vrot.slane %v3120, 5
  %v3318 = vrot.slane %v3317, 4
  %v3319 = vrot.slane %v3121, 5
  %v3320 = vsel %vm2491, %v3318, %v3319
  %v3321 = vrot.slane %v3319, 4
  %v3322 = vrot.slane %v3187, 5
  %v3323 = vsel %vm2491, %v3321, %v3322
  %3328 = vst [vmem:[#allocation3 + $0x20] sm:$0xf] %v2509
  %3329 = vst [vmem:[#allocation3 + $0x44] sm:$0xf] %v2512
  %3330 = vst [vmem:[#allocation3 + $0x68] sm:$0xf] %v2516
  %3331 = vst [vmem:[#allocation3 + $0x8c] sm:$0xf] %v2519
  %3332 = vst [vmem:[#allocation3 + $0xb0] sm:$0xf] %v2523
  %3333 = vst [vmem:[#allocation3 + $0xd4] sm:$0xf] %v2526
  %3334 = vst [vmem:[#allocation3 + $0xf8] sm:$0xf] %v2530
  %3335 = vst [vmem:[#allocation3 + $0x11c] sm:$0xf] %v2533
  %3336 = vst [vmem:[#allocation3 + $0x140] sm:$0xf] %v2537
  %3337 = vst [vmem:[#allocation3 + $0x164] sm:$0xf] %v2540
  %3338 = vst [vmem:[#allocation3 + $0x188] sm:$0xf] %v2544
  %3339 = vst [vmem:[#allocation3 + $0x1ac] sm:$0xf] %v2547
  %3340 = vst [vmem:[#allocation3 + $0x1d0] sm:$0xf] %v2551
  %3341 = vst [vmem:[#allocation3 + $0x1f4] sm:$0xf] %v2554
  %3342 = vst [vmem:[#allocation3 + $0x218] sm:$0xf] %v2558
  %3343 = vst [vmem:[#allocation3 + $0x23c] sm:$0xf] %v2561
  %3344 = vst [vmem:[#allocation3 + $0x260] sm:$0xf] %v2565
  %3345 = vst [vmem:[#allocation3 + $0x284] sm:$0xf] %v2568
  %3346 = vst [vmem:[#allocation3 + $0x2a8] sm:$0xf] %v2572
  %3347 = vst [vmem:[#allocation3 + $0x2cc] sm:$0xf] %v2575
  %3348 = vst [vmem:[#allocation3 + $0x2f0] sm:$0xf] %v2579
  %3349 = vst [vmem:[#allocation3 + $0x314] sm:$0xf] %v2582
  %3350 = vst [vmem:[#allocation3 + $0x338] sm:$0xf] %v2586
  %3351 = vst [vmem:[#allocation3 + $0x35c] sm:$0xf] %v2589
  %3352 = vst [vmem:[#allocation3 + $0x380] sm:$0xf] %v2593
  %3353 = vst [vmem:[#allocation3 + $0x3a4] sm:$0xf] %v2596
  %3354 = vst [vmem:[#allocation3 + $0x3c8] sm:$0xf] %v2600
  %3355 = vst [vmem:[#allocation3 + $0x3ec] sm:$0xf] %v2603
  %3356 = vst [vmem:[#allocation3 + $0x410] sm:$0xf] %v3039
  %3357 = vst [vmem:[#allocation3 + $0x434] sm:$0xf] %v3042
  %3358 = vst [vmem:[#allocation3 + $0x458] sm:$0xf] %v3313
  %3359 = vst [vmem:[#allocation3 + $0x47c] sm:$0xf] %v3316
  %3360 = vst [vmem:[#allocation3 + $0x4a0] sm:$0xf] %v2621
  %3361 = vst [vmem:[#allocation3 + $0x4c4] sm:$0xf] %v2624
  %3362 = vst [vmem:[#allocation3 + $0x4e8] sm:$0xf] %v2628
  %3363 = vst [vmem:[#allocation3 + $0x50c] sm:$0xf] %v2631
  %3364 = vst [vmem:[#allocation3 + $0x530] sm:$0xf] %v2635
  %3365 = vst [vmem:[#allocation3 + $0x554] sm:$0xf] %v2638
  %3366 = vst [vmem:[#allocation3 + $0x578] sm:$0xf] %v2642
  %3367 = vst [vmem:[#allocation3 + $0x59c] sm:$0xf] %v2645
  %3368 = vst [vmem:[#allocation3 + $0x5c0] sm:$0xf] %v2649
  %3369 = vst [vmem:[#allocation3 + $0x5e4] sm:$0xf] %v2652
  %3370 = vst [vmem:[#allocation3 + $0x608] sm:$0xf] %v2656
  %3371 = vst [vmem:[#allocation3 + $0x62c] sm:$0xf] %v2659
  %3372 = vst [vmem:[#allocation3 + $0x650] sm:$0xf] %v2663
  %3373 = vst [vmem:[#allocation3 + $0x674] sm:$0xf] %v2666
  %3374 = vst [vmem:[#allocation3 + $0x698] sm:$0xf] %v2670
  %3375 = vst [vmem:[#allocation3 + $0x6bc] sm:$0xf] %v2673
  %3376 = vst [vmem:[#allocation3 + $0x6e0] sm:$0xf] %v2677
  %3377 = vst [vmem:[#allocation3 + $0x704] sm:$0xf] %v2680
  %3378 = vst [vmem:[#allocation3 + $0x728] sm:$0xf] %v2684
  %3379 = vst [vmem:[#allocation3 + $0x74c] sm:$0xf] %v2687
  %3380 = vst [vmem:[#allocation3 + $0x770] sm:$0xf] %v2691
  %3381 = vst [vmem:[#allocation3 + $0x794] sm:$0xf] %v2694
  %3382 = vst [vmem:[#allocation3 + $0x7b8] sm:$0xf] %v2698
  %3383 = vst [vmem:[#allocation3 + $0x7dc] sm:$0xf] %v2701
  %3384 = vst [vmem:[#allocation3 + $0x800] sm:$0xf] %v2705
  %3385 = vst [vmem:[#allocation3 + $0x824] sm:$0xf] %v2708
  %3386 = vst [vmem:[#allocation3 + $0x848] sm:$0xf] %v2712
  %3387 = vst [vmem:[#allocation3 + $0x86c] sm:$0xf] %v2715
  %3388 = vst [vmem:[#allocation3 + $0x890] sm:$0xf] %v3046
  %3389 = vst [vmem:[#allocation3 + $0x8b4] sm:$0xf] %v3049
  %3390 = vst [vmem:[#allocation3 + $0x8d8] sm:$0xf] %v3320
  %3391 = vst [vmem:[#allocation3 + $0x8fc] sm:$0xf] %v3323
  %v3392 = vld [vmem:[#allocation3] sm:$0xff]
  %v3393 = vld [vmem:[#allocation3 + $0x8] sm:$0xff]
  %v3394 = vld [vmem:[#allocation3 + $0x10] sm:$0xff]
  %v3395 = vld [vmem:[#allocation3 + $0x18] sm:$0xff]
  %v3396 = vld [vmem:[#allocation3 + $0x20] sm:$0xf]
  %v3397 = vld [vmem:[#allocation3 + $0x24] sm:$0xff]
  %v3398 = vld [vmem:[#allocation3 + $0x2c] sm:$0xff]
  %v3399 = vld [vmem:[#allocation3 + $0x34] sm:$0xff]
  %v3400 = vld [vmem:[#allocation3 + $0x3c] sm:$0xff]
  %v3401 = vld [vmem:[#allocation3 + $0x44] sm:$0xf]
  %v3402 = vld [vmem:[#allocation3 + $0x48] sm:$0xff]
  %v3403 = vld [vmem:[#allocation3 + $0x50] sm:$0xff]
  %v3404 = vld [vmem:[#allocation3 + $0x58] sm:$0xff]
  %v3405 = vld [vmem:[#allocation3 + $0x60] sm:$0xff]
  %v3406 = vld [vmem:[#allocation3 + $0x68] sm:$0xf]
  %v3407 = vld [vmem:[#allocation3 + $0x6c] sm:$0xff]
  %v3408 = vld [vmem:[#allocation3 + $0x74] sm:$0xff]
  %v3409 = vld [vmem:[#allocation3 + $0x7c] sm:$0xff]
  %v3410 = vld [vmem:[#allocation3 + $0x84] sm:$0xff]
  %v3411 = vld [vmem:[#allocation3 + $0x8c] sm:$0xf]
  %v3412 = vld [vmem:[#allocation3 + $0x90] sm:$0xff]
  %v3413 = vld [vmem:[#allocation3 + $0x98] sm:$0xff]
  %v3414 = vld [vmem:[#allocation3 + $0xa0] sm:$0xff]
  %v3415 = vld [vmem:[#allocation3 + $0xa8] sm:$0xff]
  %v3416 = vld [vmem:[#allocation3 + $0xb0] sm:$0xf]
  %v3417 = vld [vmem:[#allocation3 + $0xb4] sm:$0xff]
  %v3418 = vld [vmem:[#allocation3 + $0xbc] sm:$0xff]
  %v3419 = vld [vmem:[#allocation3 + $0xc4] sm:$0xff]
  %v3420 = vld [vmem:[#allocation3 + $0xcc] sm:$0xff]
  %v3421 = vld [vmem:[#allocation3 + $0xd4] sm:$0xf]
  %v3422 = vld [vmem:[#allocation3 + $0xd8] sm:$0xff]
  %v3423 = vld [vmem:[#allocation3 + $0xe0] sm:$0xff]
  %v3424 = vld [vmem:[#allocation3 + $0xe8] sm:$0xff]
  %v3425 = vld [vmem:[#allocation3 + $0xf0] sm:$0xff]
  %v3426 = vld [vmem:[#allocation3 + $0xf8] sm:$0xf]
  %v3427 = vld [vmem:[#allocation3 + $0xfc] sm:$0xff]
  %v3428 = vld [vmem:[#allocation3 + $0x104] sm:$0xff]
  %v3429 = vld [vmem:[#allocation3 + $0x10c] sm:$0xff]
  %v3430 = vld [vmem:[#allocation3 + $0x114] sm:$0xff]
  %v3431 = vld [vmem:[#allocation3 + $0x11c] sm:$0xf]
  %v3432 = vld [vmem:[#allocation3 + $0x120] sm:$0xff]
  %v3433 = vld [vmem:[#allocation3 + $0x128] sm:$0xff]
  %v3434 = vld [vmem:[#allocation3 + $0x130] sm:$0xff]
  %v3435 = vld [vmem:[#allocation3 + $0x138] sm:$0xff]
  %v3436 = vld [vmem:[#allocation3 + $0x140] sm:$0xf]
  %v3437 = vld [vmem:[#allocation3 + $0x144] sm:$0xff]
  %v3438 = vld [vmem:[#allocation3 + $0x14c] sm:$0xff]
  %v3439 = vld [vmem:[#allocation3 + $0x154] sm:$0xff]
  %v3440 = vld [vmem:[#allocation3 + $0x15c] sm:$0xff]
  %v3441 = vld [vmem:[#allocation3 + $0x164] sm:$0xf]
  %v3442 = vld [vmem:[#allocation3 + $0x168] sm:$0xff]
  %v3443 = vld [vmem:[#allocation3 + $0x170] sm:$0xff]
  %v3444 = vld [vmem:[#allocation3 + $0x178] sm:$0xff]
  %v3445 = vld [vmem:[#allocation3 + $0x180] sm:$0xff]
  %v3446 = vld [vmem:[#allocation3 + $0x188] sm:$0xf]
  %v3447 = vld [vmem:[#allocation3 + $0x18c] sm:$0xff]
  %v3448 = vld [vmem:[#allocation3 + $0x194] sm:$0xff]
  %v3449 = vld [vmem:[#allocation3 + $0x19c] sm:$0xff]
  %v3450 = vld [vmem:[#allocation3 + $0x1a4] sm:$0xff]
  %v3451 = vld [vmem:[#allocation3 + $0x1ac] sm:$0xf]
  %v3452 = vld [vmem:[#allocation3 + $0x1b0] sm:$0xff]
  %v3453 = vld [vmem:[#allocation3 + $0x1b8] sm:$0xff]
  %v3454 = vld [vmem:[#allocation3 + $0x1c0] sm:$0xff]
  %v3455 = vld [vmem:[#allocation3 + $0x1c8] sm:$0xff]
  %v3456 = vld [vmem:[#allocation3 + $0x1d0] sm:$0xf]
  %v3457 = vld [vmem:[#allocation3 + $0x1d4] sm:$0xff]
  %v3458 = vld [vmem:[#allocation3 + $0x1dc] sm:$0xff]
  %v3459 = vld [vmem:[#allocation3 + $0x1e4] sm:$0xff]
  %v3460 = vld [vmem:[#allocation3 + $0x1ec] sm:$0xff]
  %v3461 = vld [vmem:[#allocation3 + $0x1f4] sm:$0xf]
  %v3462 = vld [vmem:[#allocation3 + $0x1f8] sm:$0xff]
  %v3463 = vld [vmem:[#allocation3 + $0x200] sm:$0xff]
  %v3464 = vld [vmem:[#allocation3 + $0x208] sm:$0xff]
  %v3465 = vld [vmem:[#allocation3 + $0x210] sm:$0xff]
  %v3466 = vld [vmem:[#allocation3 + $0x218] sm:$0xf]
  %v3467 = vld [vmem:[#allocation3 + $0x21c] sm:$0xff]
  %v3468 = vld [vmem:[#allocation3 + $0x224] sm:$0xff]
  %v3469 = vld [vmem:[#allocation3 + $0x22c] sm:$0xff]
  %v3470 = vld [vmem:[#allocation3 + $0x234] sm:$0xff]
  %v3471 = vld [vmem:[#allocation3 + $0x23c] sm:$0xf]
  %v3472 = vld [vmem:[#allocation3 + $0x240] sm:$0xff]
  %v3473 = vld [vmem:[#allocation3 + $0x248] sm:$0xff]
  %v3474 = vld [vmem:[#allocation3 + $0x250] sm:$0xff]
  %v3475 = vld [vmem:[#allocation3 + $0x258] sm:$0xff]
  %v3476 = vld [vmem:[#allocation3 + $0x260] sm:$0xf]
  %v3477 = vld [vmem:[#allocation3 + $0x264] sm:$0xff]
  %v3478 = vld [vmem:[#allocation3 + $0x26c] sm:$0xff]
  %v3479 = vld [vmem:[#allocation3 + $0x274] sm:$0xff]
  %v3480 = vld [vmem:[#allocation3 + $0x27c] sm:$0xff]
  %v3481 = vld [vmem:[#allocation3 + $0x284] sm:$0xf]
  %v3482 = vld [vmem:[#allocation3 + $0x288] sm:$0xff]
  %v3483 = vld [vmem:[#allocation3 + $0x290] sm:$0xff]
  %v3484 = vld [vmem:[#allocation3 + $0x298] sm:$0xff]
  %v3485 = vld [vmem:[#allocation3 + $0x2a0] sm:$0xff]
  %v3486 = vld [vmem:[#allocation3 + $0x2a8] sm:$0xf]
  %v3487 = vld [vmem:[#allocation3 + $0x2ac] sm:$0xff]
  %v3488 = vld [vmem:[#allocation3 + $0x2b4] sm:$0xff]
  %v3489 = vld [vmem:[#allocation3 + $0x2bc] sm:$0xff]
  %v3490 = vld [vmem:[#allocation3 + $0x2c4] sm:$0xff]
  %v3491 = vld [vmem:[#allocation3 + $0x2cc] sm:$0xf]
  %v3492 = vld [vmem:[#allocation3 + $0x2d0] sm:$0xff]
  %v3493 = vld [vmem:[#allocation3 + $0x2d8] sm:$0xff]
  %v3494 = vld [vmem:[#allocation3 + $0x2e0] sm:$0xff]
  %v3495 = vld [vmem:[#allocation3 + $0x2e8] sm:$0xff]
  %v3496 = vld [vmem:[#allocation3 + $0x2f0] sm:$0xf]
  %v3497 = vld [vmem:[#allocation3 + $0x2f4] sm:$0xff]
  %v3498 = vld [vmem:[#allocation3 + $0x2fc] sm:$0xff]
  %v3499 = vld [vmem:[#allocation3 + $0x304] sm:$0xff]
  %v3500 = vld [vmem:[#allocation3 + $0x30c] sm:$0xff]
  %v3501 = vld [vmem:[#allocation3 + $0x314] sm:$0xf]
  %v3502 = vld [vmem:[#allocation3 + $0x318] sm:$0xff]
  %v3503 = vld [vmem:[#allocation3 + $0x320] sm:$0xff]
  %v3504 = vld [vmem:[#allocation3 + $0x328] sm:$0xff]
  %v3505 = vld [vmem:[#allocation3 + $0x330] sm:$0xff]
  %v3506 = vld [vmem:[#allocation3 + $0x338] sm:$0xf]
  %v3507 = vld [vmem:[#allocation3 + $0x33c] sm:$0xff]
  %v3508 = vld [vmem:[#allocation3 + $0x344] sm:$0xff]
  %v3509 = vld [vmem:[#allocation3 + $0x34c] sm:$0xff]
  %v3510 = vld [vmem:[#allocation3 + $0x354] sm:$0xff]
  %v3511 = vld [vmem:[#allocation3 + $0x35c] sm:$0xf]
  %v3512 = vld [vmem:[#allocation3 + $0x360] sm:$0xff]
  %v3513 = vld [vmem:[#allocation3 + $0x368] sm:$0xff]
  %v3514 = vld [vmem:[#allocation3 + $0x370] sm:$0xff]
  %v3515 = vld [vmem:[#allocation3 + $0x378] sm:$0xff]
  %v3516 = vld [vmem:[#allocation3 + $0x380] sm:$0xf]
  %v3517 = vld [vmem:[#allocation3 + $0x384] sm:$0xff]
  %v3518 = vld [vmem:[#allocation3 + $0x38c] sm:$0xff]
  %v3519 = vld [vmem:[#allocation3 + $0x394] sm:$0xff]
  %v3520 = vld [vmem:[#allocation3 + $0x39c] sm:$0xff]
  %v3521 = vld [vmem:[#allocation3 + $0x3a4] sm:$0xf]
  %v3522 = vld [vmem:[#allocation3 + $0x3a8] sm:$0xff]
  %v3523 = vld [vmem:[#allocation3 + $0x3b0] sm:$0xff]
  %v3524 = vld [vmem:[#allocation3 + $0x3b8] sm:$0xff]
  %v3525 = vld [vmem:[#allocation3 + $0x3c0] sm:$0xff]
  %v3526 = vld [vmem:[#allocation3 + $0x3c8] sm:$0xf]
  %v3527 = vld [vmem:[#allocation3 + $0x3cc] sm:$0xff]
  %v3528 = vld [vmem:[#allocation3 + $0x3d4] sm:$0xff]
  %v3529 = vld [vmem:[#allocation3 + $0x3dc] sm:$0xff]
  %v3530 = vld [vmem:[#allocation3 + $0x3e4] sm:$0xff]
  %v3531 = vld [vmem:[#allocation3 + $0x3ec] sm:$0xf]
  %v3532 = vld [vmem:[#allocation3 + $0x3f0] sm:$0xff]
  %v3533 = vld [vmem:[#allocation3 + $0x3f8] sm:$0xff]
  %v3534 = vld [vmem:[#allocation3 + $0x400] sm:$0xff]
  %v3535 = vld [vmem:[#allocation3 + $0x408] sm:$0xff]
  %v3536 = vld [vmem:[#allocation3 + $0x410] sm:$0xf]
  %v3537 = vld [vmem:[#allocation3 + $0x414] sm:$0xff]
  %v3538 = vld [vmem:[#allocation3 + $0x41c] sm:$0xff]
  %v3539 = vld [vmem:[#allocation3 + $0x424] sm:$0xff]
  %v3540 = vld [vmem:[#allocation3 + $0x42c] sm:$0xff]
  %v3541 = vld [vmem:[#allocation3 + $0x434] sm:$0xf]
  %v3542 = vld [vmem:[#allocation3 + $0x438] sm:$0xff]
  %v3543 = vld [vmem:[#allocation3 + $0x440] sm:$0xff]
  %v3544 = vld [vmem:[#allocation3 + $0x448] sm:$0xff]
  %v3545 = vld [vmem:[#allocation3 + $0x450] sm:$0xff]
  %v3546 = vld [vmem:[#allocation3 + $0x458] sm:$0xf]
  %v3547 = vld [vmem:[#allocation3 + $0x45c] sm:$0xff]
  %v3548 = vld [vmem:[#allocation3 + $0x464] sm:$0xff]
  %v3549 = vld [vmem:[#allocation3 + $0x46c] sm:$0xff]
  %v3550 = vld [vmem:[#allocation3 + $0x474] sm:$0xff]
  %v3551 = vld [vmem:[#allocation3 + $0x47c] sm:$0xf]
  %v3552 = vld [vmem:[#allocation3 + $0x480] sm:$0xff]
  %v3553 = vld [vmem:[#allocation3 + $0x488] sm:$0xff]
  %v3554 = vld [vmem:[#allocation3 + $0x490] sm:$0xff]
  %v3555 = vld [vmem:[#allocation3 + $0x498] sm:$0xff]
  %v3556 = vld [vmem:[#allocation3 + $0x4a0] sm:$0xf]
  %v3557 = vld [vmem:[#allocation3 + $0x4a4] sm:$0xff]
  %v3558 = vld [vmem:[#allocation3 + $0x4ac] sm:$0xff]
  %v3559 = vld [vmem:[#allocation3 + $0x4b4] sm:$0xff]
  %v3560 = vld [vmem:[#allocation3 + $0x4bc] sm:$0xff]
  %v3561 = vld [vmem:[#allocation3 + $0x4c4] sm:$0xf]
  %v3562 = vld [vmem:[#allocation3 + $0x4c8] sm:$0xff]
  %v3563 = vld [vmem:[#allocation3 + $0x4d0] sm:$0xff]
  %v3564 = vld [vmem:[#allocation3 + $0x4d8] sm:$0xff]
  %v3565 = vld [vmem:[#allocation3 + $0x4e0] sm:$0xff]
  %v3566 = vld [vmem:[#allocation3 + $0x4e8] sm:$0xf]
  %v3567 = vld [vmem:[#allocation3 + $0x4ec] sm:$0xff]
  %v3568 = vld [vmem:[#allocation3 + $0x4f4] sm:$0xff]
  %v3569 = vld [vmem:[#allocation3 + $0x4fc] sm:$0xff]
  %v3570 = vld [vmem:[#allocation3 + $0x504] sm:$0xff]
  %v3571 = vld [vmem:[#allocation3 + $0x50c] sm:$0xf]
  %v3572 = vld [vmem:[#allocation3 + $0x510] sm:$0xff]
  %v3573 = vld [vmem:[#allocation3 + $0x518] sm:$0xff]
  %v3574 = vld [vmem:[#allocation3 + $0x520] sm:$0xff]
  %v3575 = vld [vmem:[#allocation3 + $0x528] sm:$0xff]
  %v3576 = vld [vmem:[#allocation3 + $0x530] sm:$0xf]
  %v3577 = vld [vmem:[#allocation3 + $0x534] sm:$0xff]
  %v3578 = vld [vmem:[#allocation3 + $0x53c] sm:$0xff]
  %v3579 = vld [vmem:[#allocation3 + $0x544] sm:$0xff]
  %v3580 = vld [vmem:[#allocation3 + $0x54c] sm:$0xff]
  %v3581 = vld [vmem:[#allocation3 + $0x554] sm:$0xf]
  %v3582 = vld [vmem:[#allocation3 + $0x558] sm:$0xff]
  %v3583 = vld [vmem:[#allocation3 + $0x560] sm:$0xff]
  %v3584 = vld [vmem:[#allocation3 + $0x568] sm:$0xff]
  %v3585 = vld [vmem:[#allocation3 + $0x570] sm:$0xff]
  %v3586 = vld [vmem:[#allocation3 + $0x578] sm:$0xf]
  %v3587 = vld [vmem:[#allocation3 + $0x57c] sm:$0xff]
  %v3588 = vld [vmem:[#allocation3 + $0x584] sm:$0xff]
  %v3589 = vld [vmem:[#allocation3 + $0x58c] sm:$0xff]
  %v3590 = vld [vmem:[#allocation3 + $0x594] sm:$0xff]
  %v3591 = vld [vmem:[#allocation3 + $0x59c] sm:$0xf]
  %v3592 = vld [vmem:[#allocation3 + $0x5a0] sm:$0xff]
  %v3593 = vld [vmem:[#allocation3 + $0x5a8] sm:$0xff]
  %v3594 = vld [vmem:[#allocation3 + $0x5b0] sm:$0xff]
  %v3595 = vld [vmem:[#allocation3 + $0x5b8] sm:$0xff]
  %v3596 = vld [vmem:[#allocation3 + $0x5c0] sm:$0xf]
  %v3597 = vld [vmem:[#allocation3 + $0x5c4] sm:$0xff]
  %v3598 = vld [vmem:[#allocation3 + $0x5cc] sm:$0xff]
  %v3599 = vld [vmem:[#allocation3 + $0x5d4] sm:$0xff]
  %v3600 = vld [vmem:[#allocation3 + $0x5dc] sm:$0xff]
  %v3601 = vld [vmem:[#allocation3 + $0x5e4] sm:$0xf]
  %v3602 = vld [vmem:[#allocation3 + $0x5e8] sm:$0xff]
  %v3603 = vld [vmem:[#allocation3 + $0x5f0] sm:$0xff]
  %v3604 = vld [vmem:[#allocation3 + $0x5f8] sm:$0xff]
  %v3605 = vld [vmem:[#allocation3 + $0x600] sm:$0xff]
  %v3606 = vld [vmem:[#allocation3 + $0x608] sm:$0xf]
  %v3607 = vld [vmem:[#allocation3 + $0x60c] sm:$0xff]
  %v3608 = vld [vmem:[#allocation3 + $0x614] sm:$0xff]
  %v3609 = vld [vmem:[#allocation3 + $0x61c] sm:$0xff]
  %v3610 = vld [vmem:[#allocation3 + $0x624] sm:$0xff]
  %v3611 = vld [vmem:[#allocation3 + $0x62c] sm:$0xf]
  %v3612 = vld [vmem:[#allocation3 + $0x630] sm:$0xff]
  %v3613 = vld [vmem:[#allocation3 + $0x638] sm:$0xff]
  %v3614 = vld [vmem:[#allocation3 + $0x640] sm:$0xff]
  %v3615 = vld [vmem:[#allocation3 + $0x648] sm:$0xff]
  %v3616 = vld [vmem:[#allocation3 + $0x650] sm:$0xf]
  %v3617 = vld [vmem:[#allocation3 + $0x654] sm:$0xff]
  %v3618 = vld [vmem:[#allocation3 + $0x65c] sm:$0xff]
  %v3619 = vld [vmem:[#allocation3 + $0x664] sm:$0xff]
  %v3620 = vld [vmem:[#allocation3 + $0x66c] sm:$0xff]
  %v3621 = vld [vmem:[#allocation3 + $0x674] sm:$0xf]
  %v3622 = vld [vmem:[#allocation3 + $0x678] sm:$0xff]
  %v3623 = vld [vmem:[#allocation3 + $0x680] sm:$0xff]
  %v3624 = vld [vmem:[#allocation3 + $0x688] sm:$0xff]
  %v3625 = vld [vmem:[#allocation3 + $0x690] sm:$0xff]
  %v3626 = vld [vmem:[#allocation3 + $0x698] sm:$0xf]
  %v3627 = vld [vmem:[#allocation3 + $0x69c] sm:$0xff]
  %v3628 = vld [vmem:[#allocation3 + $0x6a4] sm:$0xff]
  %v3629 = vld [vmem:[#allocation3 + $0x6ac] sm:$0xff]
  %v3630 = vld [vmem:[#allocation3 + $0x6b4] sm:$0xff]
  %v3631 = vld [vmem:[#allocation3 + $0x6bc] sm:$0xf]
  %v3632 = vld [vmem:[#allocation3 + $0x6c0] sm:$0xff]
  %v3633 = vld [vmem:[#allocation3 + $0x6c8] sm:$0xff]
  %v3634 = vld [vmem:[#allocation3 + $0x6d0] sm:$0xff]
  %v3635 = vld [vmem:[#allocation3 + $0x6d8] sm:$0xff]
  %v3636 = vld [vmem:[#allocation3 + $0x6e0] sm:$0xf]
  %v3637 = vld [vmem:[#allocation3 + $0x6e4] sm:$0xff]
  %v3638 = vld [vmem:[#allocation3 + $0x6ec] sm:$0xff]
  %v3639 = vld [vmem:[#allocation3 + $0x6f4] sm:$0xff]
  %v3640 = vld [vmem:[#allocation3 + $0x6fc] sm:$0xff]
  %v3641 = vld [vmem:[#allocation3 + $0x704] sm:$0xf]
  %v3642 = vld [vmem:[#allocation3 + $0x708] sm:$0xff]
  %v3643 = vld [vmem:[#allocation3 + $0x710] sm:$0xff]
  %v3644 = vld [vmem:[#allocation3 + $0x718] sm:$0xff]
  %v3645 = vld [vmem:[#allocation3 + $0x720] sm:$0xff]
  %v3646 = vld [vmem:[#allocation3 + $0x728] sm:$0xf]
  %v3647 = vld [vmem:[#allocation3 + $0x72c] sm:$0xff]
  %v3648 = vld [vmem:[#allocation3 + $0x734] sm:$0xff]
  %v3649 = vld [vmem:[#allocation3 + $0x73c] sm:$0xff]
  %v3650 = vld [vmem:[#allocation3 + $0x744] sm:$0xff]
  %v3651 = vld [vmem:[#allocation3 + $0x74c] sm:$0xf]
  %v3652 = vld [vmem:[#allocation3 + $0x750] sm:$0xff]
  %v3653 = vld [vmem:[#allocation3 + $0x758] sm:$0xff]
  %v3654 = vld [vmem:[#allocation3 + $0x760] sm:$0xff]
  %v3655 = vld [vmem:[#allocation3 + $0x768] sm:$0xff]
  %v3656 = vld [vmem:[#allocation3 + $0x770] sm:$0xf]
  %v3657 = vld [vmem:[#allocation3 + $0x774] sm:$0xff]
  %v3658 = vld [vmem:[#allocation3 + $0x77c] sm:$0xff]
  %v3659 = vld [vmem:[#allocation3 + $0x784] sm:$0xff]
  %v3660 = vld [vmem:[#allocation3 + $0x78c] sm:$0xff]
  %v3661 = vld [vmem:[#allocation3 + $0x794] sm:$0xf]
  %v3662 = vld [vmem:[#allocation3 + $0x798] sm:$0xff]
  %v3663 = vld [vmem:[#allocation3 + $0x7a0] sm:$0xff]
  %v3664 = vld [vmem:[#allocation3 + $0x7a8] sm:$0xff]
  %v3665 = vld [vmem:[#allocation3 + $0x7b0] sm:$0xff]
  %v3666 = vld [vmem:[#allocation3 + $0x7b8] sm:$0xf]
  %v3667 = vld [vmem:[#allocation3 + $0x7bc] sm:$0xff]
  %v3668 = vld [vmem:[#allocation3 + $0x7c4] sm:$0xff]
  %v3669 = vld [vmem:[#allocation3 + $0x7cc] sm:$0xff]
  %v3670 = vld [vmem:[#allocation3 + $0x7d4] sm:$0xff]
  %v3671 = vld [vmem:[#allocation3 + $0x7dc] sm:$0xf]
  %v3672 = vld [vmem:[#allocation3 + $0x7e0] sm:$0xff]
  %v3673 = vld [vmem:[#allocation3 + $0x7e8] sm:$0xff]
  %v3674 = vld [vmem:[#allocation3 + $0x7f0] sm:$0xff]
  %v3675 = vld [vmem:[#allocation3 + $0x7f8] sm:$0xff]
  %v3676 = vld [vmem:[#allocation3 + $0x800] sm:$0xf]
  %v3677 = vld [vmem:[#allocation3 + $0x804] sm:$0xff]
  %v3678 = vld [vmem:[#allocation3 + $0x80c] sm:$0xff]
  %v3679 = vld [vmem:[#allocation3 + $0x814] sm:$0xff]
  %v3680 = vld [vmem:[#allocation3 + $0x81c] sm:$0xff]
  %v3681 = vld [vmem:[#allocation3 + $0x824] sm:$0xf]
  %v3682 = vld [vmem:[#allocation3 + $0x828] sm:$0xff]
  %v3683 = vld [vmem:[#allocation3 + $0x830] sm:$0xff]
  %v3684 = vld [vmem:[#allocation3 + $0x838] sm:$0xff]
  %v3685 = vld [vmem:[#allocation3 + $0x840] sm:$0xff]
  %v3686 = vld [vmem:[#allocation3 + $0x848] sm:$0xf]
  %v3687 = vld [vmem:[#allocation3 + $0x84c] sm:$0xff]
  %v3688 = vld [vmem:[#allocation3 + $0x854] sm:$0xff]
  %v3689 = vld [vmem:[#allocation3 + $0x85c] sm:$0xff]
  %v3690 = vld [vmem:[#allocation3 + $0x864] sm:$0xff]
  %v3691 = vld [vmem:[#allocation3 + $0x86c] sm:$0xf]
  %v3692 = vld [vmem:[#allocation3 + $0x870] sm:$0xff]
  %v3693 = vld [vmem:[#allocation3 + $0x878] sm:$0xff]
  %v3694 = vld [vmem:[#allocation3 + $0x880] sm:$0xff]
  %v3695 = vld [vmem:[#allocation3 + $0x888] sm:$0xff]
  %v3696 = vld [vmem:[#allocation3 + $0x890] sm:$0xf]
  %v3697 = vld [vmem:[#allocation3 + $0x894] sm:$0xff]
  %v3698 = vld [vmem:[#allocation3 + $0x89c] sm:$0xff]
  %v3699 = vld [vmem:[#allocation3 + $0x8a4] sm:$0xff]
  %v3700 = vld [vmem:[#allocation3 + $0x8ac] sm:$0xff]
  %v3701 = vld [vmem:[#allocation3 + $0x8b4] sm:$0xf]
  %v3702 = vld [vmem:[#allocation3 + $0x8b8] sm:$0xff]
  %v3703 = vld [vmem:[#allocation3 + $0x8c0] sm:$0xff]
  %v3704 = vld [vmem:[#allocation3 + $0x8c8] sm:$0xff]
  %v3705 = vld [vmem:[#allocation3 + $0x8d0] sm:$0xff]
  %v3706 = vld [vmem:[#allocation3 + $0x8d8] sm:$0xf]
  %v3707 = vld [vmem:[#allocation3 + $0x8dc] sm:$0xff]
  %v3708 = vld [vmem:[#allocation3 + $0x8e4] sm:$0xff]
  %v3709 = vld [vmem:[#allocation3 + $0x8ec] sm:$0xff]
  %v3710 = vld [vmem:[#allocation3 + $0x8f4] sm:$0xff]
  %v3711 = vld [vmem:[#allocation3 + $0x8fc] sm:$0xf]
  %v3712 = vld [vmem:[%s5] sm:$0xf]
  %v3713 = vld [vmem:[%s5 + $0x4] sm:$0xf]
  %v3714 = vld [vmem:[%s5 + $0x8] sm:$0xf]
  %v3715 = vld [vmem:[%s5 + $0xc] sm:$0xf]
  %v3716 = vld [vmem:[%s5 + $0x10] sm:$0xf]
  %v3717 = vld [vmem:[%s5 + $0x14] sm:$0xf]
  %v3718 = vld [vmem:[%s5 + $0x18] sm:$0xf]
  %v3719 = vld [vmem:[%s5 + $0x1c] sm:$0xf]
  %v3720 = vld [vmem:[%s5 + $0x20] sm:$0xf]
  %v3721 = vld [vmem:[%s5 + $0x24] sm:$0xf]
  %v3722 = vld [vmem:[%s5 + $0x28] sm:$0xf]
  %v3723 = vld [vmem:[%s5 + $0x2c] sm:$0xf]
  %v3724 = vld [vmem:[%s5 + $0x30] sm:$0xf]
  %v3725 = vld [vmem:[%s5 + $0x34] sm:$0xf]
  %v3726 = vld [vmem:[%s5 + $0x38] sm:$0xf]
  %v3727 = vld [vmem:[%s5 + $0x3c] sm:$0xf]
  %v3728 = vld [vmem:[%s5 + $0x40] sm:$0xf]
  %v3729 = vld [vmem:[%s5 + $0x44] sm:$0xf]
  %v3730 = vld [vmem:[%s5 + $0x48] sm:$0xf]
  %v3731 = vld [vmem:[%s5 + $0x4c] sm:$0xf]
  %v3732 = vld [vmem:[%s5 + $0x50] sm:$0xf]
  %v3733 = vld [vmem:[%s5 + $0x54] sm:$0xf]
  %v3734 = vld [vmem:[%s5 + $0x58] sm:$0xf]
  %v3735 = vld [vmem:[%s5 + $0x5c] sm:$0xf]
  %v3736 = vld [vmem:[%s5 + $0x60] sm:$0xf]
  %v3737 = vld [vmem:[%s5 + $0x64] sm:$0xf]
  %v3738 = vld [vmem:[%s5 + $0x68] sm:$0xf]
  %v3739 = vld [vmem:[%s5 + $0x6c] sm:$0xf]
  %v3740 = vld [vmem:[%s5 + $0x70] sm:$0xf]
  %v3741 = vld [vmem:[%s5 + $0x74] sm:$0xf]
  %v3742 = vld [vmem:[%s5 + $0x78] sm:$0xf]
  %v3743 = vld [vmem:[%s5 + $0x7c] sm:$0xf]
  %v3744 = vld [vmem:[%s5 + $0x80] sm:$0xf]
  %v3745 = vld [vmem:[%s5 + $0x84] sm:$0xf]
  %v3746 = vld [vmem:[%s5 + $0x88] sm:$0xf]
  %v3747 = vld [vmem:[%s5 + $0x8c] sm:$0xf]
  %v3748 = vld [vmem:[%s5 + $0x90] sm:$0xf]
  %v3749 = vld [vmem:[%s5 + $0x94] sm:$0xf]
  %v3750 = vld [vmem:[%s5 + $0x98] sm:$0xf]
  %v3751 = vld [vmem:[%s5 + $0x9c] sm:$0xf]
  %v3752 = vld [vmem:[%s5 + $0xa0] sm:$0xf]
  %v3753 = vld [vmem:[%s5 + $0xa4] sm:$0xf]
  %v3754 = vld [vmem:[%s5 + $0xa8] sm:$0xf]
  %v3755 = vld [vmem:[%s5 + $0xac] sm:$0xf]
  %v3756 = vld [vmem:[%s5 + $0xb0] sm:$0xf]
  %v3757 = vld [vmem:[%s5 + $0xb4] sm:$0xf]
  %v3758 = vld [vmem:[%s5 + $0xb8] sm:$0xf]
  %v3759 = vld [vmem:[%s5 + $0xbc] sm:$0xf]
  %v3760 = vld [vmem:[%s5 + $0xc0] sm:$0xf]
  %v3761 = vld [vmem:[%s5 + $0xc4] sm:$0xf]
  %v3762 = vld [vmem:[%s5 + $0xc8] sm:$0xf]
  %v3763 = vld [vmem:[%s5 + $0xcc] sm:$0xf]
  %v3764 = vld [vmem:[%s5 + $0xd0] sm:$0xf]
  %v3765 = vld [vmem:[%s5 + $0xd4] sm:$0xf]
  %v3766 = vld [vmem:[%s5 + $0xd8] sm:$0xf]
  %v3767 = vld [vmem:[%s5 + $0xdc] sm:$0xf]
  %v3768 = vld [vmem:[%s5 + $0xe0] sm:$0xf]
  %v3769 = vld [vmem:[%s5 + $0xe4] sm:$0xf]
  %v3770 = vld [vmem:[%s5 + $0xe8] sm:$0xf]
  %v3771 = vld [vmem:[%s5 + $0xec] sm:$0xf]
  %v3772 = vld [vmem:[%s5 + $0xf0] sm:$0xf]
  %v3773 = vld [vmem:[%s5 + $0xf4] sm:$0xf]
  %v3774 = vld [vmem:[%s5 + $0xf8] sm:$0xf]
  %v3775 = vld [vmem:[%s5 + $0xfc] sm:$0xf]
  %v3776 = vld [vmem:[%s5 + $0x100] sm:$0xf]
  %v3777 = vld [vmem:[%s5 + $0x104] sm:$0xf]
  %v3778 = vld [vmem:[%s5 + $0x108] sm:$0xf]
  %v3779 = vld [vmem:[%s5 + $0x10c] sm:$0xf]
  %v3780 = vld [vmem:[%s5 + $0x110] sm:$0xf]
  %v3781 = vld [vmem:[%s5 + $0x114] sm:$0xf]
  %v3782 = vld [vmem:[%s5 + $0x118] sm:$0xf]
  %v3783 = vld [vmem:[%s5 + $0x11c] sm:$0xf]
  %v3784 = vld [vmem:[%s5 + $0x120] sm:$0xf]
  %v3785 = vld [vmem:[%s5 + $0x124] sm:$0xf]
  %v3786 = vld [vmem:[%s5 + $0x128] sm:$0xf]
  %v3787 = vld [vmem:[%s5 + $0x12c] sm:$0xf]
  %v3788 = vld [vmem:[%s5 + $0x130] sm:$0xf]
  %v3789 = vld [vmem:[%s5 + $0x134] sm:$0xf]
  %v3790 = vld [vmem:[%s5 + $0x138] sm:$0xf]
  %v3791 = vld [vmem:[%s5 + $0x13c] sm:$0xf]
  %v3792 = vld [vmem:[%s5 + $0x140] sm:$0xf]
  %v3793 = vld [vmem:[%s5 + $0x144] sm:$0xf]
  %v3794 = vld [vmem:[%s5 + $0x148] sm:$0xf]
  %v3795 = vld [vmem:[%s5 + $0x14c] sm:$0xf]
  %v3796 = vld [vmem:[%s5 + $0x150] sm:$0xf]
  %v3797 = vld [vmem:[%s5 + $0x154] sm:$0xf]
  %v3798 = vld [vmem:[%s5 + $0x158] sm:$0xf]
  %v3799 = vld [vmem:[%s5 + $0x15c] sm:$0xf]
  %v3800 = vld [vmem:[%s5 + $0x160] sm:$0xf]
  %v3801 = vld [vmem:[%s5 + $0x164] sm:$0xf]
  %v3802 = vld [vmem:[%s5 + $0x168] sm:$0xf]
  %v3803 = vld [vmem:[%s5 + $0x16c] sm:$0xf]
  %v3804 = vld [vmem:[%s5 + $0x170] sm:$0xf]
  %v3805 = vld [vmem:[%s5 + $0x174] sm:$0xf]
  %v3806 = vld [vmem:[%s5 + $0x178] sm:$0xf]
  %v3807 = vld [vmem:[%s5 + $0x17c] sm:$0xf]
  %v3808 = vld [vmem:[%s5 + $0x180] sm:$0xf]
  %v3809 = vld [vmem:[%s5 + $0x184] sm:$0xf]
  %v3810 = vld [vmem:[%s5 + $0x188] sm:$0xf]
  %v3811 = vld [vmem:[%s5 + $0x18c] sm:$0xf]
  %v3812 = vld [vmem:[%s5 + $0x190] sm:$0xf]
  %v3813 = vld [vmem:[%s5 + $0x194] sm:$0xf]
  %v3814 = vld [vmem:[%s5 + $0x198] sm:$0xf]
  %v3815 = vld [vmem:[%s5 + $0x19c] sm:$0xf]
  %v3816 = vld [vmem:[%s5 + $0x1a0] sm:$0xf]
  %v3817 = vld [vmem:[%s5 + $0x1a4] sm:$0xf]
  %v3818 = vld [vmem:[%s5 + $0x1a8] sm:$0xf]
  %v3819 = vld [vmem:[%s5 + $0x1ac] sm:$0xf]
  %v3820 = vld [vmem:[%s5 + $0x1b0] sm:$0xf]
  %v3821 = vld [vmem:[%s5 + $0x1b4] sm:$0xf]
  %v3822 = vld [vmem:[%s5 + $0x1b8] sm:$0xf]
  %v3823 = vld [vmem:[%s5 + $0x1bc] sm:$0xf]
  %v3824 = vld [vmem:[%s5 + $0x1c0] sm:$0xf]
  %v3825 = vld [vmem:[%s5 + $0x1c4] sm:$0xf]
  %v3826 = vld [vmem:[%s5 + $0x1c8] sm:$0xf]
  %v3827 = vld [vmem:[%s5 + $0x1cc] sm:$0xf]
  %v3828 = vld [vmem:[%s5 + $0x1d0] sm:$0xf]
  %v3829 = vld [vmem:[%s5 + $0x1d4] sm:$0xf]
  %v3830 = vld [vmem:[%s5 + $0x1d8] sm:$0xf]
  %v3831 = vld [vmem:[%s5 + $0x1dc] sm:$0xf]
  %v3832 = vld [vmem:[%s5 + $0x1e0] sm:$0xf]
  %v3833 = vld [vmem:[%s5 + $0x1e4] sm:$0xf]
  %v3834 = vld [vmem:[%s5 + $0x1e8] sm:$0xf]
  %v3835 = vld [vmem:[%s5 + $0x1ec] sm:$0xf]
  %v3836 = vld [vmem:[%s5 + $0x1f0] sm:$0xf]
  %v3837 = vld [vmem:[%s5 + $0x1f4] sm:$0xf]
  %v3838 = vld [vmem:[%s5 + $0x1f8] sm:$0xf]
  %v3839 = vld [vmem:[%s5 + $0x1fc] sm:$0xf]
  %v3840 = vld [vmem:[%s5 + $0x200] sm:$0xf]
  %v3841 = vld [vmem:[%s5 + $0x204] sm:$0xf]
  %v3842 = vld [vmem:[%s5 + $0x208] sm:$0xf]
  %v3843 = vld [vmem:[%s5 + $0x20c] sm:$0xf]
  %v3844 = vld [vmem:[%s5 + $0x210] sm:$0xf]
  %v3845 = vld [vmem:[%s5 + $0x214] sm:$0xf]
  %v3846 = vld [vmem:[%s5 + $0x218] sm:$0xf]
  %v3847 = vld [vmem:[%s5 + $0x21c] sm:$0xf]
  %v3848 = vld [vmem:[%s5 + $0x220] sm:$0xf]
  %v3849 = vld [vmem:[%s5 + $0x224] sm:$0xf]
  %v3850 = vld [vmem:[%s5 + $0x228] sm:$0xf]
  %v3851 = vld [vmem:[%s5 + $0x22c] sm:$0xf]
  %v3852 = vld [vmem:[%s5 + $0x230] sm:$0xf]
  %v3853 = vld [vmem:[%s5 + $0x234] sm:$0xf]
  %v3854 = vld [vmem:[%s5 + $0x238] sm:$0xf]
  %v3855 = vld [vmem:[%s5 + $0x23c] sm:$0xf]
  %v3856 = vld [vmem:[%s6] sm:$0x1]
  %v3858 = vperm.slane %v3856, 0
  %v4180 = vunpack.c.l.b16 %v3392
  %v4181 = vunpack.c.h.b16 %v3392
  %v4182 = vunpack.c.l.b16 %v3393
  %v4183 = vunpack.c.h.b16 %v3393
  %v4184 = vunpack.c.l.b16 %v3394
  %v4185 = vunpack.c.h.b16 %v3394
  %v4186 = vunpack.c.l.b16 %v3395
  %v4187 = vunpack.c.h.b16 %v3395
  %v4188 = vunpack.c.l.b16 %v3396
  %v4189 = vunpack.c.l.b16 %v3397
  %v4190 = vunpack.c.h.b16 %v3397
  %v4191 = vunpack.c.l.b16 %v3398
  %v4192 = vunpack.c.h.b16 %v3398
  %v4193 = vunpack.c.l.b16 %v3399
  %v4194 = vunpack.c.h.b16 %v3399
  %v4195 = vunpack.c.l.b16 %v3400
  %v4196 = vunpack.c.h.b16 %v3400
  %v4197 = vunpack.c.l.b16 %v3401
  %v4198 = vunpack.c.l.b16 %v3402
  %v4199 = vunpack.c.h.b16 %v3402
  %v4200 = vunpack.c.l.b16 %v3403
  %v4201 = vunpack.c.h.b16 %v3403
  %v4202 = vunpack.c.l.b16 %v3404
  %v4203 = vunpack.c.h.b16 %v3404
  %v4204 = vunpack.c.l.b16 %v3405
  %v4205 = vunpack.c.h.b16 %v3405
  %v4206 = vunpack.c.l.b16 %v3406
  %v4207 = vunpack.c.l.b16 %v3407
  %v4208 = vunpack.c.h.b16 %v3407
  %v4209 = vunpack.c.l.b16 %v3408
  %v4210 = vunpack.c.h.b16 %v3408
  %v4211 = vunpack.c.l.b16 %v3409
  %v4212 = vunpack.c.h.b16 %v3409
  %v4213 = vunpack.c.l.b16 %v3410
  %v4214 = vunpack.c.h.b16 %v3410
  %v4215 = vunpack.c.l.b16 %v3411
  %v4216 = vunpack.c.l.b16 %v3412
  %v4217 = vunpack.c.h.b16 %v3412
  %v4218 = vunpack.c.l.b16 %v3413
  %v4219 = vunpack.c.h.b16 %v3413
  %v4220 = vunpack.c.l.b16 %v3414
  %v4221 = vunpack.c.h.b16 %v3414
  %v4222 = vunpack.c.l.b16 %v3415
  %v4223 = vunpack.c.h.b16 %v3415
  %v4224 = vunpack.c.l.b16 %v3416
  %v4225 = vunpack.c.l.b16 %v3417
  %v4226 = vunpack.c.h.b16 %v3417
  %v4227 = vunpack.c.l.b16 %v3418
  %v4228 = vunpack.c.h.b16 %v3418
  %v4229 = vunpack.c.l.b16 %v3419
  %v4230 = vunpack.c.h.b16 %v3419
  %v4231 = vunpack.c.l.b16 %v3420
  %v4232 = vunpack.c.h.b16 %v3420
  %v4233 = vunpack.c.l.b16 %v3421
  %v4234 = vunpack.c.l.b16 %v3422
  %v4235 = vunpack.c.h.b16 %v3422
  %v4236 = vunpack.c.l.b16 %v3423
  %v4237 = vunpack.c.h.b16 %v3423
  %v4238 = vunpack.c.l.b16 %v3424
  %v4239 = vunpack.c.h.b16 %v3424
  %v4240 = vunpack.c.l.b16 %v3425
  %v4241 = vunpack.c.h.b16 %v3425
  %v4242 = vunpack.c.l.b16 %v3426
  %v4243 = vunpack.c.l.b16 %v3427
  %v4244 = vunpack.c.h.b16 %v3427
  %v4245 = vunpack.c.l.b16 %v3428
  %v4246 = vunpack.c.h.b16 %v3428
  %v4247 = vunpack.c.l.b16 %v3429
  %v4248 = vunpack.c.h.b16 %v3429
  %v4249 = vunpack.c.l.b16 %v3430
  %v4250 = vunpack.c.h.b16 %v3430
  %v4251 = vunpack.c.l.b16 %v3431
  %v4252 = vunpack.c.l.b16 %v3432
  %v4253 = vunpack.c.h.b16 %v3432
  %v4254 = vunpack.c.l.b16 %v3433
  %v4255 = vunpack.c.h.b16 %v3433
  %v4256 = vunpack.c.l.b16 %v3434
  %v4257 = vunpack.c.h.b16 %v3434
  %v4258 = vunpack.c.l.b16 %v3435
  %v4259 = vunpack.c.h.b16 %v3435
  %v4260 = vunpack.c.l.b16 %v3436
  %v4261 = vunpack.c.l.b16 %v3437
  %v4262 = vunpack.c.h.b16 %v3437
  %v4263 = vunpack.c.l.b16 %v3438
  %v4264 = vunpack.c.h.b16 %v3438
  %v4265 = vunpack.c.l.b16 %v3439
  %v4266 = vunpack.c.h.b16 %v3439
  %v4267 = vunpack.c.l.b16 %v3440
  %v4268 = vunpack.c.h.b16 %v3440
  %v4269 = vunpack.c.l.b16 %v3441
  %v4270 = vunpack.c.l.b16 %v3442
  %v4271 = vunpack.c.h.b16 %v3442
  %v4272 = vunpack.c.l.b16 %v3443
  %v4273 = vunpack.c.h.b16 %v3443
  %v4274 = vunpack.c.l.b16 %v3444
  %v4275 = vunpack.c.h.b16 %v3444
  %v4276 = vunpack.c.l.b16 %v3445
  %v4277 = vunpack.c.h.b16 %v3445
  %v4278 = vunpack.c.l.b16 %v3446
  %v4279 = vunpack.c.l.b16 %v3447
  %v4280 = vunpack.c.h.b16 %v3447
  %v4281 = vunpack.c.l.b16 %v3448
  %v4282 = vunpack.c.h.b16 %v3448
  %v4283 = vunpack.c.l.b16 %v3449
  %v4284 = vunpack.c.h.b16 %v3449
  %v4285 = vunpack.c.l.b16 %v3450
  %v4286 = vunpack.c.h.b16 %v3450
  %v4287 = vunpack.c.l.b16 %v3451
  %v4288 = vunpack.c.l.b16 %v3452
  %v4289 = vunpack.c.h.b16 %v3452
  %v4290 = vunpack.c.l.b16 %v3453
  %v4291 = vunpack.c.h.b16 %v3453
  %v4292 = vunpack.c.l.b16 %v3454
  %v4293 = vunpack.c.h.b16 %v3454
  %v4294 = vunpack.c.l.b16 %v3455
  %v4295 = vunpack.c.h.b16 %v3455
  %v4296 = vunpack.c.l.b16 %v3456
  %v4297 = vunpack.c.l.b16 %v3457
  %v4298 = vunpack.c.h.b16 %v3457
  %v4299 = vunpack.c.l.b16 %v3458
  %v4300 = vunpack.c.h.b16 %v3458
  %v4301 = vunpack.c.l.b16 %v3459
  %v4302 = vunpack.c.h.b16 %v3459
  %v4303 = vunpack.c.l.b16 %v3460
  %v4304 = vunpack.c.h.b16 %v3460
  %v4305 = vunpack.c.l.b16 %v3461
  %v4306 = vunpack.c.l.b16 %v3462
  %v4307 = vunpack.c.h.b16 %v3462
  %v4308 = vunpack.c.l.b16 %v3463
  %v4309 = vunpack.c.h.b16 %v3463
  %v4310 = vunpack.c.l.b16 %v3464
  %v4311 = vunpack.c.h.b16 %v3464
  %v4312 = vunpack.c.l.b16 %v3465
  %v4313 = vunpack.c.h.b16 %v3465
  %v4314 = vunpack.c.l.b16 %v3466
  %v4315 = vunpack.c.l.b16 %v3467
  %v4316 = vunpack.c.h.b16 %v3467
  %v4317 = vunpack.c.l.b16 %v3468
  %v4318 = vunpack.c.h.b16 %v3468
  %v4319 = vunpack.c.l.b16 %v3469
  %v4320 = vunpack.c.h.b16 %v3469
  %v4321 = vunpack.c.l.b16 %v3470
  %v4322 = vunpack.c.h.b16 %v3470
  %v4323 = vunpack.c.l.b16 %v3471
  %v4324 = vunpack.c.l.b16 %v3472
  %v4325 = vunpack.c.h.b16 %v3472
  %v4326 = vunpack.c.l.b16 %v3473
  %v4327 = vunpack.c.h.b16 %v3473
  %v4328 = vunpack.c.l.b16 %v3474
  %v4329 = vunpack.c.h.b16 %v3474
  %v4330 = vunpack.c.l.b16 %v3475
  %v4331 = vunpack.c.h.b16 %v3475
  %v4332 = vunpack.c.l.b16 %v3476
  %v4333 = vunpack.c.l.b16 %v3477
  %v4334 = vunpack.c.h.b16 %v3477
  %v4335 = vunpack.c.l.b16 %v3478
  %v4336 = vunpack.c.h.b16 %v3478
  %v4337 = vunpack.c.l.b16 %v3479
  %v4338 = vunpack.c.h.b16 %v3479
  %v4339 = vunpack.c.l.b16 %v3480
  %v4340 = vunpack.c.h.b16 %v3480
  %v4341 = vunpack.c.l.b16 %v3481
  %v4342 = vunpack.c.l.b16 %v3482
  %v4343 = vunpack.c.h.b16 %v3482
  %v4344 = vunpack.c.l.b16 %v3483
  %v4345 = vunpack.c.h.b16 %v3483
  %v4346 = vunpack.c.l.b16 %v3484
  %v4347 = vunpack.c.h.b16 %v3484
  %v4348 = vunpack.c.l.b16 %v3485
  %v4349 = vunpack.c.h.b16 %v3485
  %v4350 = vunpack.c.l.b16 %v3486
  %v4351 = vunpack.c.l.b16 %v3487
  %v4352 = vunpack.c.h.b16 %v3487
  %v4353 = vunpack.c.l.b16 %v3488
  %v4354 = vunpack.c.h.b16 %v3488
  %v4355 = vunpack.c.l.b16 %v3489
  %v4356 = vunpack.c.h.b16 %v3489
  %v4357 = vunpack.c.l.b16 %v3490
  %v4358 = vunpack.c.h.b16 %v3490
  %v4359 = vunpack.c.l.b16 %v3491
  %v4360 = vunpack.c.l.b16 %v3492
  %v4361 = vunpack.c.h.b16 %v3492
  %v4362 = vunpack.c.l.b16 %v3493
  %v4363 = vunpack.c.h.b16 %v3493
  %v4364 = vunpack.c.l.b16 %v3494
  %v4365 = vunpack.c.h.b16 %v3494
  %v4366 = vunpack.c.l.b16 %v3495
  %v4367 = vunpack.c.h.b16 %v3495
  %v4368 = vunpack.c.l.b16 %v3496
  %v4369 = vunpack.c.l.b16 %v3497
  %v4370 = vunpack.c.h.b16 %v3497
  %v4371 = vunpack.c.l.b16 %v3498
  %v4372 = vunpack.c.h.b16 %v3498
  %v4373 = vunpack.c.l.b16 %v3499
  %v4374 = vunpack.c.h.b16 %v3499
  %v4375 = vunpack.c.l.b16 %v3500
  %v4376 = vunpack.c.h.b16 %v3500
  %v4377 = vunpack.c.l.b16 %v3501
  %v4378 = vunpack.c.l.b16 %v3502
  %v4379 = vunpack.c.h.b16 %v3502
  %v4380 = vunpack.c.l.b16 %v3503
  %v4381 = vunpack.c.h.b16 %v3503
  %v4382 = vunpack.c.l.b16 %v3504
  %v4383 = vunpack.c.h.b16 %v3504
  %v4384 = vunpack.c.l.b16 %v3505
  %v4385 = vunpack.c.h.b16 %v3505
  %v4386 = vunpack.c.l.b16 %v3506
  %v4387 = vunpack.c.l.b16 %v3507
  %v4388 = vunpack.c.h.b16 %v3507
  %v4389 = vunpack.c.l.b16 %v3508
  %v4390 = vunpack.c.h.b16 %v3508
  %v4391 = vunpack.c.l.b16 %v3509
  %v4392 = vunpack.c.h.b16 %v3509
  %v4393 = vunpack.c.l.b16 %v3510
  %v4394 = vunpack.c.h.b16 %v3510
  %v4395 = vunpack.c.l.b16 %v3511
  %v4396 = vunpack.c.l.b16 %v3512
  %v4397 = vunpack.c.h.b16 %v3512
  %v4398 = vunpack.c.l.b16 %v3513
  %v4399 = vunpack.c.h.b16 %v3513
  %v4400 = vunpack.c.l.b16 %v3514
  %v4401 = vunpack.c.h.b16 %v3514
  %v4402 = vunpack.c.l.b16 %v3515
  %v4403 = vunpack.c.h.b16 %v3515
  %v4404 = vunpack.c.l.b16 %v3516
  %v4405 = vunpack.c.l.b16 %v3517
  %v4406 = vunpack.c.h.b16 %v3517
  %v4407 = vunpack.c.l.b16 %v3518
  %v4408 = vunpack.c.h.b16 %v3518
  %v4409 = vunpack.c.l.b16 %v3519
  %v4410 = vunpack.c.h.b16 %v3519
  %v4411 = vunpack.c.l.b16 %v3520
  %v4412 = vunpack.c.h.b16 %v3520
  %v4413 = vunpack.c.l.b16 %v3521
  %v4414 = vunpack.c.l.b16 %v3522
  %v4415 = vunpack.c.h.b16 %v3522
  %v4416 = vunpack.c.l.b16 %v3523
  %v4417 = vunpack.c.h.b16 %v3523
  %v4418 = vunpack.c.l.b16 %v3524
  %v4419 = vunpack.c.h.b16 %v3524
  %v4420 = vunpack.c.l.b16 %v3525
  %v4421 = vunpack.c.h.b16 %v3525
  %v4422 = vunpack.c.l.b16 %v3526
  %v4423 = vunpack.c.l.b16 %v3527
  %v4424 = vunpack.c.h.b16 %v3527
  %v4425 = vunpack.c.l.b16 %v3528
  %v4426 = vunpack.c.h.b16 %v3528
  %v4427 = vunpack.c.l.b16 %v3529
  %v4428 = vunpack.c.h.b16 %v3529
  %v4429 = vunpack.c.l.b16 %v3530
  %v4430 = vunpack.c.h.b16 %v3530
  %v4431 = vunpack.c.l.b16 %v3531
  %v4432 = vunpack.c.l.b16 %v3532
  %v4433 = vunpack.c.h.b16 %v3532
  %v4434 = vunpack.c.l.b16 %v3533
  %v4435 = vunpack.c.h.b16 %v3533
  %v4436 = vunpack.c.l.b16 %v3534
  %v4437 = vunpack.c.h.b16 %v3534
  %v4438 = vunpack.c.l.b16 %v3535
  %v4439 = vunpack.c.h.b16 %v3535
  %v4440 = vunpack.c.l.b16 %v3536
  %v4441 = vunpack.c.l.b16 %v3537
  %v4442 = vunpack.c.h.b16 %v3537
  %v4443 = vunpack.c.l.b16 %v3538
  %v4444 = vunpack.c.h.b16 %v3538
  %v4445 = vunpack.c.l.b16 %v3539
  %v4446 = vunpack.c.h.b16 %v3539
  %v4447 = vunpack.c.l.b16 %v3540
  %v4448 = vunpack.c.h.b16 %v3540
  %v4449 = vunpack.c.l.b16 %v3541
  %v4450 = vunpack.c.l.b16 %v3542
  %v4451 = vunpack.c.h.b16 %v3542
  %v4452 = vunpack.c.l.b16 %v3543
  %v4453 = vunpack.c.h.b16 %v3543
  %v4454 = vunpack.c.l.b16 %v3544
  %v4455 = vunpack.c.h.b16 %v3544
  %v4456 = vunpack.c.l.b16 %v3545
  %v4457 = vunpack.c.h.b16 %v3545
  %v4458 = vunpack.c.l.b16 %v3546
  %v4459 = vunpack.c.l.b16 %v3547
  %v4460 = vunpack.c.h.b16 %v3547
  %v4461 = vunpack.c.l.b16 %v3548
  %v4462 = vunpack.c.h.b16 %v3548
  %v4463 = vunpack.c.l.b16 %v3549
  %v4464 = vunpack.c.h.b16 %v3549
  %v4465 = vunpack.c.l.b16 %v3550
  %v4466 = vunpack.c.h.b16 %v3550
  %v4467 = vunpack.c.l.b16 %v3551
  %v4468 = vunpack.c.l.b16 %v3552
  %v4469 = vunpack.c.h.b16 %v3552
  %v4470 = vunpack.c.l.b16 %v3553
  %v4471 = vunpack.c.h.b16 %v3553
  %v4472 = vunpack.c.l.b16 %v3554
  %v4473 = vunpack.c.h.b16 %v3554
  %v4474 = vunpack.c.l.b16 %v3555
  %v4475 = vunpack.c.h.b16 %v3555
  %v4476 = vunpack.c.l.b16 %v3556
  %v4477 = vunpack.c.l.b16 %v3557
  %v4478 = vunpack.c.h.b16 %v3557
  %v4479 = vunpack.c.l.b16 %v3558
  %v4480 = vunpack.c.h.b16 %v3558
  %v4481 = vunpack.c.l.b16 %v3559
  %v4482 = vunpack.c.h.b16 %v3559
  %v4483 = vunpack.c.l.b16 %v3560
  %v4484 = vunpack.c.h.b16 %v3560
  %v4485 = vunpack.c.l.b16 %v3561
  %v4486 = vunpack.c.l.b16 %v3562
  %v4487 = vunpack.c.h.b16 %v3562
  %v4488 = vunpack.c.l.b16 %v3563
  %v4489 = vunpack.c.h.b16 %v3563
  %v4490 = vunpack.c.l.b16 %v3564
  %v4491 = vunpack.c.h.b16 %v3564
  %v4492 = vunpack.c.l.b16 %v3565
  %v4493 = vunpack.c.h.b16 %v3565
  %v4494 = vunpack.c.l.b16 %v3566
  %v4495 = vunpack.c.l.b16 %v3567
  %v4496 = vunpack.c.h.b16 %v3567
  %v4497 = vunpack.c.l.b16 %v3568
  %v4498 = vunpack.c.h.b16 %v3568
  %v4499 = vunpack.c.l.b16 %v3569
  %v4500 = vunpack.c.h.b16 %v3569
  %v4501 = vunpack.c.l.b16 %v3570
  %v4502 = vunpack.c.h.b16 %v3570
  %v4503 = vunpack.c.l.b16 %v3571
  %v4504 = vunpack.c.l.b16 %v3572
  %v4505 = vunpack.c.h.b16 %v3572
  %v4506 = vunpack.c.l.b16 %v3573
  %v4507 = vunpack.c.h.b16 %v3573
  %v4508 = vunpack.c.l.b16 %v3574
  %v4509 = vunpack.c.h.b16 %v3574
  %v4510 = vunpack.c.l.b16 %v3575
  %v4511 = vunpack.c.h.b16 %v3575
  %v4512 = vunpack.c.l.b16 %v3576
  %v4513 = vunpack.c.l.b16 %v3577
  %v4514 = vunpack.c.h.b16 %v3577
  %v4515 = vunpack.c.l.b16 %v3578
  %v4516 = vunpack.c.h.b16 %v3578
  %v4517 = vunpack.c.l.b16 %v3579
  %v4518 = vunpack.c.h.b16 %v3579
  %v4519 = vunpack.c.l.b16 %v3580
  %v4520 = vunpack.c.h.b16 %v3580
  %v4521 = vunpack.c.l.b16 %v3581
  %v4522 = vunpack.c.l.b16 %v3582
  %v4523 = vunpack.c.h.b16 %v3582
  %v4524 = vunpack.c.l.b16 %v3583
  %v4525 = vunpack.c.h.b16 %v3583
  %v4526 = vunpack.c.l.b16 %v3584
  %v4527 = vunpack.c.h.b16 %v3584
  %v4528 = vunpack.c.l.b16 %v3585
  %v4529 = vunpack.c.h.b16 %v3585
  %v4530 = vunpack.c.l.b16 %v3586
  %v4531 = vunpack.c.l.b16 %v3587
  %v4532 = vunpack.c.h.b16 %v3587
  %v4533 = vunpack.c.l.b16 %v3588
  %v4534 = vunpack.c.h.b16 %v3588
  %v4535 = vunpack.c.l.b16 %v3589
  %v4536 = vunpack.c.h.b16 %v3589
  %v4537 = vunpack.c.l.b16 %v3590
  %v4538 = vunpack.c.h.b16 %v3590
  %v4539 = vunpack.c.l.b16 %v3591
  %v4540 = vunpack.c.l.b16 %v3592
  %v4541 = vunpack.c.h.b16 %v3592
  %v4542 = vunpack.c.l.b16 %v3593
  %v4543 = vunpack.c.h.b16 %v3593
  %v4544 = vunpack.c.l.b16 %v3594
  %v4545 = vunpack.c.h.b16 %v3594
  %v4546 = vunpack.c.l.b16 %v3595
  %v4547 = vunpack.c.h.b16 %v3595
  %v4548 = vunpack.c.l.b16 %v3596
  %v4549 = vunpack.c.l.b16 %v3597
  %v4550 = vunpack.c.h.b16 %v3597
  %v4551 = vunpack.c.l.b16 %v3598
  %v4552 = vunpack.c.h.b16 %v3598
  %v4553 = vunpack.c.l.b16 %v3599
  %v4554 = vunpack.c.h.b16 %v3599
  %v4555 = vunpack.c.l.b16 %v3600
  %v4556 = vunpack.c.h.b16 %v3600
  %v4557 = vunpack.c.l.b16 %v3601
  %v4558 = vunpack.c.l.b16 %v3602
  %v4559 = vunpack.c.h.b16 %v3602
  %v4560 = vunpack.c.l.b16 %v3603
  %v4561 = vunpack.c.h.b16 %v3603
  %v4562 = vunpack.c.l.b16 %v3604
  %v4563 = vunpack.c.h.b16 %v3604
  %v4564 = vunpack.c.l.b16 %v3605
  %v4565 = vunpack.c.h.b16 %v3605
  %v4566 = vunpack.c.l.b16 %v3606
  %v4567 = vunpack.c.l.b16 %v3607
  %v4568 = vunpack.c.h.b16 %v3607
  %v4569 = vunpack.c.l.b16 %v3608
  %v4570 = vunpack.c.h.b16 %v3608
  %v4571 = vunpack.c.l.b16 %v3609
  %v4572 = vunpack.c.h.b16 %v3609
  %v4573 = vunpack.c.l.b16 %v3610
  %v4574 = vunpack.c.h.b16 %v3610
  %v4575 = vunpack.c.l.b16 %v3611
  %v4576 = vunpack.c.l.b16 %v3612
  %v4577 = vunpack.c.h.b16 %v3612
  %v4578 = vunpack.c.l.b16 %v3613
  %v4579 = vunpack.c.h.b16 %v3613
  %v4580 = vunpack.c.l.b16 %v3614
  %v4581 = vunpack.c.h.b16 %v3614
  %v4582 = vunpack.c.l.b16 %v3615
  %v4583 = vunpack.c.h.b16 %v3615
  %v4584 = vunpack.c.l.b16 %v3616
  %v4585 = vunpack.c.l.b16 %v3617
  %v4586 = vunpack.c.h.b16 %v3617
  %v4587 = vunpack.c.l.b16 %v3618
  %v4588 = vunpack.c.h.b16 %v3618
  %v4589 = vunpack.c.l.b16 %v3619
  %v4590 = vunpack.c.h.b16 %v3619
  %v4591 = vunpack.c.l.b16 %v3620
  %v4592 = vunpack.c.h.b16 %v3620
  %v4593 = vunpack.c.l.b16 %v3621
  %v4594 = vunpack.c.l.b16 %v3622
  %v4595 = vunpack.c.h.b16 %v3622
  %v4596 = vunpack.c.l.b16 %v3623
  %v4597 = vunpack.c.h.b16 %v3623
  %v4598 = vunpack.c.l.b16 %v3624
  %v4599 = vunpack.c.h.b16 %v3624
  %v4600 = vunpack.c.l.b16 %v3625
  %v4601 = vunpack.c.h.b16 %v3625
  %v4602 = vunpack.c.l.b16 %v3626
  %v4603 = vunpack.c.l.b16 %v3627
  %v4604 = vunpack.c.h.b16 %v3627
  %v4605 = vunpack.c.l.b16 %v3628
  %v4606 = vunpack.c.h.b16 %v3628
  %v4607 = vunpack.c.l.b16 %v3629
  %v4608 = vunpack.c.h.b16 %v3629
  %v4609 = vunpack.c.l.b16 %v3630
  %v4610 = vunpack.c.h.b16 %v3630
  %v4611 = vunpack.c.l.b16 %v3631
  %v4612 = vunpack.c.l.b16 %v3632
  %v4613 = vunpack.c.h.b16 %v3632
  %v4614 = vunpack.c.l.b16 %v3633
  %v4615 = vunpack.c.h.b16 %v3633
  %v4616 = vunpack.c.l.b16 %v3634
  %v4617 = vunpack.c.h.b16 %v3634
  %v4618 = vunpack.c.l.b16 %v3635
  %v4619 = vunpack.c.h.b16 %v3635
  %v4620 = vunpack.c.l.b16 %v3636
  %v4621 = vunpack.c.l.b16 %v3637
  %v4622 = vunpack.c.h.b16 %v3637
  %v4623 = vunpack.c.l.b16 %v3638
  %v4624 = vunpack.c.h.b16 %v3638
  %v4625 = vunpack.c.l.b16 %v3639
  %v4626 = vunpack.c.h.b16 %v3639
  %v4627 = vunpack.c.l.b16 %v3640
  %v4628 = vunpack.c.h.b16 %v3640
  %v4629 = vunpack.c.l.b16 %v3641
  %v4630 = vunpack.c.l.b16 %v3642
  %v4631 = vunpack.c.h.b16 %v3642
  %v4632 = vunpack.c.l.b16 %v3643
  %v4633 = vunpack.c.h.b16 %v3643
  %v4634 = vunpack.c.l.b16 %v3644
  %v4635 = vunpack.c.h.b16 %v3644
  %v4636 = vunpack.c.l.b16 %v3645
  %v4637 = vunpack.c.h.b16 %v3645
  %v4638 = vunpack.c.l.b16 %v3646
  %v4639 = vunpack.c.l.b16 %v3647
  %v4640 = vunpack.c.h.b16 %v3647
  %v4641 = vunpack.c.l.b16 %v3648
  %v4642 = vunpack.c.h.b16 %v3648
  %v4643 = vunpack.c.l.b16 %v3649
  %v4644 = vunpack.c.h.b16 %v3649
  %v4645 = vunpack.c.l.b16 %v3650
  %v4646 = vunpack.c.h.b16 %v3650
  %v4647 = vunpack.c.l.b16 %v3651
  %v4648 = vunpack.c.l.b16 %v3652
  %v4649 = vunpack.c.h.b16 %v3652
  %v4650 = vunpack.c.l.b16 %v3653
  %v4651 = vunpack.c.h.b16 %v3653
  %v4652 = vunpack.c.l.b16 %v3654
  %v4653 = vunpack.c.h.b16 %v3654
  %v4654 = vunpack.c.l.b16 %v3655
  %v4655 = vunpack.c.h.b16 %v3655
  %v4656 = vunpack.c.l.b16 %v3656
  %v4657 = vunpack.c.l.b16 %v3657
  %v4658 = vunpack.c.h.b16 %v3657
  %v4659 = vunpack.c.l.b16 %v3658
  %v4660 = vunpack.c.h.b16 %v3658
  %v4661 = vunpack.c.l.b16 %v3659
  %v4662 = vunpack.c.h.b16 %v3659
  %v4663 = vunpack.c.l.b16 %v3660
  %v4664 = vunpack.c.h.b16 %v3660
  %v4665 = vunpack.c.l.b16 %v3661
  %v4666 = vunpack.c.l.b16 %v3662
  %v4667 = vunpack.c.h.b16 %v3662
  %v4668 = vunpack.c.l.b16 %v3663
  %v4669 = vunpack.c.h.b16 %v3663
  %v4670 = vunpack.c.l.b16 %v3664
  %v4671 = vunpack.c.h.b16 %v3664
  %v4672 = vunpack.c.l.b16 %v3665
  %v4673 = vunpack.c.h.b16 %v3665
  %v4674 = vunpack.c.l.b16 %v3666
  %v4675 = vunpack.c.l.b16 %v3667
  %v4676 = vunpack.c.h.b16 %v3667
  %v4677 = vunpack.c.l.b16 %v3668
  %v4678 = vunpack.c.h.b16 %v3668
  %v4679 = vunpack.c.l.b16 %v3669
  %v4680 = vunpack.c.h.b16 %v3669
  %v4681 = vunpack.c.l.b16 %v3670
  %v4682 = vunpack.c.h.b16 %v3670
  %v4683 = vunpack.c.l.b16 %v3671
  %v4684 = vunpack.c.l.b16 %v3672
  %v4685 = vunpack.c.h.b16 %v3672
  %v4686 = vunpack.c.l.b16 %v3673
  %v4687 = vunpack.c.h.b16 %v3673
  %v4688 = vunpack.c.l.b16 %v3674
  %v4689 = vunpack.c.h.b16 %v3674
  %v4690 = vunpack.c.l.b16 %v3675
  %v4691 = vunpack.c.h.b16 %v3675
  %v4692 = vunpack.c.l.b16 %v3676
  %v4693 = vunpack.c.l.b16 %v3677
  %v4694 = vunpack.c.h.b16 %v3677
  %v4695 = vunpack.c.l.b16 %v3678
  %v4696 = vunpack.c.h.b16 %v3678
  %v4697 = vunpack.c.l.b16 %v3679
  %v4698 = vunpack.c.h.b16 %v3679
  %v4699 = vunpack.c.l.b16 %v3680
  %v4700 = vunpack.c.h.b16 %v3680
  %v4701 = vunpack.c.l.b16 %v3681
  %v4702 = vunpack.c.l.b16 %v3682
  %v4703 = vunpack.c.h.b16 %v3682
  %v4704 = vunpack.c.l.b16 %v3683
  %v4705 = vunpack.c.h.b16 %v3683
  %v4706 = vunpack.c.l.b16 %v3684
  %v4707 = vunpack.c.h.b16 %v3684
  %v4708 = vunpack.c.l.b16 %v3685
  %v4709 = vunpack.c.h.b16 %v3685
  %v4710 = vunpack.c.l.b16 %v3686
  %v4711 = vunpack.c.l.b16 %v3687
  %v4712 = vunpack.c.h.b16 %v3687
  %v4713 = vunpack.c.l.b16 %v3688
  %v4714 = vunpack.c.h.b16 %v3688
  %v4715 = vunpack.c.l.b16 %v3689
  %v4716 = vunpack.c.h.b16 %v3689
  %v4717 = vunpack.c.l.b16 %v3690
  %v4718 = vunpack.c.h.b16 %v3690
  %v4719 = vunpack.c.l.b16 %v3691
  %v4720 = vunpack.c.l.b16 %v3692
  %v4721 = vunpack.c.h.b16 %v3692
  %v4722 = vunpack.c.l.b16 %v3693
  %v4723 = vunpack.c.h.b16 %v3693
  %v4724 = vunpack.c.l.b16 %v3694
  %v4725 = vunpack.c.h.b16 %v3694
  %v4726 = vunpack.c.l.b16 %v3695
  %v4727 = vunpack.c.h.b16 %v3695
  %v4728 = vunpack.c.l.b16 %v3696
  %v4729 = vunpack.c.l.b16 %v3697
  %v4730 = vunpack.c.h.b16 %v3697
  %v4731 = vunpack.c.l.b16 %v3698
  %v4732 = vunpack.c.h.b16 %v3698
  %v4733 = vunpack.c.l.b16 %v3699
  %v4734 = vunpack.c.h.b16 %v3699
  %v4735 = vunpack.c.l.b16 %v3700
  %v4736 = vunpack.c.h.b16 %v3700
  %v4737 = vunpack.c.l.b16 %v3701
  %v4738 = vunpack.c.l.b16 %v3702
  %v4739 = vunpack.c.h.b16 %v3702
  %v4740 = vunpack.c.l.b16 %v3703
  %v4741 = vunpack.c.h.b16 %v3703
  %v4742 = vunpack.c.l.b16 %v3704
  %v4743 = vunpack.c.h.b16 %v3704
  %v4744 = vunpack.c.l.b16 %v3705
  %v4745 = vunpack.c.h.b16 %v3705
  %v4746 = vunpack.c.l.b16 %v3706
  %v4747 = vunpack.c.l.b16 %v3707
  %v4748 = vunpack.c.h.b16 %v3707
  %v4749 = vunpack.c.l.b16 %v3708
  %v4750 = vunpack.c.h.b16 %v3708
  %v4751 = vunpack.c.l.b16 %v3709
  %v4752 = vunpack.c.h.b16 %v3709
  %v4753 = vunpack.c.l.b16 %v3710
  %v4754 = vunpack.c.h.b16 %v3710
  %v4755 = vunpack.c.l.b16 %v3711
  %v4756 = vpack.c.b16 %v4189, %v4180
  %v4757 = vpack.c.b16 %v4190, %v4181
  %v4758 = vpack.c.b16 %v4191, %v4182
  %v4759 = vpack.c.b16 %v4192, %v4183
  %v4760 = vpack.c.b16 %v4193, %v4184
  %v4761 = vpack.c.b16 %v4194, %v4185
  %v4762 = vpack.c.b16 %v4195, %v4186
  %v4763 = vpack.c.b16 %v4196, %v4187
  %v4764 = vpack.c.b16 %v4197, %v4188
  %v4765 = vpack.c.b16 %v4207, %v4198
  %v4766 = vpack.c.b16 %v4208, %v4199
  %v4767 = vpack.c.b16 %v4209, %v4200
  %v4768 = vpack.c.b16 %v4210, %v4201
  %v4769 = vpack.c.b16 %v4211, %v4202
  %v4770 = vpack.c.b16 %v4212, %v4203
  %v4771 = vpack.c.b16 %v4213, %v4204
  %v4772 = vpack.c.b16 %v4214, %v4205
  %v4773 = vpack.c.b16 %v4215, %v4206
  %v4774 = vpack.c.b16 %v4225, %v4216
  %v4775 = vpack.c.b16 %v4226, %v4217
  %v4776 = vpack.c.b16 %v4227, %v4218
  %v4777 = vpack.c.b16 %v4228, %v4219
  %v4778 = vpack.c.b16 %v4229, %v4220
  %v4779 = vpack.c.b16 %v4230, %v4221
  %v4780 = vpack.c.b16 %v4231, %v4222
  %v4781 = vpack.c.b16 %v4232, %v4223
  %v4782 = vpack.c.b16 %v4233, %v4224
  %v4783 = vpack.c.b16 %v4243, %v4234
  %v4784 = vpack.c.b16 %v4244, %v4235
  %v4785 = vpack.c.b16 %v4245, %v4236
  %v4786 = vpack.c.b16 %v4246, %v4237
  %v4787 = vpack.c.b16 %v4247, %v4238
  %v4788 = vpack.c.b16 %v4248, %v4239
  %v4789 = vpack.c.b16 %v4249, %v4240
  %v4790 = vpack.c.b16 %v4250, %v4241
  %v4791 = vpack.c.b16 %v4251, %v4242
  %v4792 = vpack.c.b16 %v4261, %v4252
  %v4793 = vpack.c.b16 %v4262, %v4253
  %v4794 = vpack.c.b16 %v4263, %v4254
  %v4795 = vpack.c.b16 %v4264, %v4255
  %v4796 = vpack.c.b16 %v4265, %v4256
  %v4797 = vpack.c.b16 %v4266, %v4257
  %v4798 = vpack.c.b16 %v4267, %v4258
  %v4799 = vpack.c.b16 %v4268, %v4259
  %v4800 = vpack.c.b16 %v4269, %v4260
  %v4801 = vpack.c.b16 %v4279, %v4270
  %v4802 = vpack.c.b16 %v4280, %v4271
  %v4803 = vpack.c.b16 %v4281, %v4272
  %v4804 = vpack.c.b16 %v4282, %v4273
  %v4805 = vpack.c.b16 %v4283, %v4274
  %v4806 = vpack.c.b16 %v4284, %v4275
  %v4807 = vpack.c.b16 %v4285, %v4276
  %v4808 = vpack.c.b16 %v4286, %v4277
  %v4809 = vpack.c.b16 %v4287, %v4278
  %v4810 = vpack.c.b16 %v4297, %v4288
  %v4811 = vpack.c.b16 %v4298, %v4289
  %v4812 = vpack.c.b16 %v4299, %v4290
  %v4813 = vpack.c.b16 %v4300, %v4291
  %v4814 = vpack.c.b16 %v4301, %v4292
  %v4815 = vpack.c.b16 %v4302, %v4293
  %v4816 = vpack.c.b16 %v4303, %v4294
  %v4817 = vpack.c.b16 %v4304, %v4295
  %v4818 = vpack.c.b16 %v4305, %v4296
  %v4819 = vpack.c.b16 %v4315, %v4306
  %v4820 = vpack.c.b16 %v4316, %v4307
  %v4821 = vpack.c.b16 %v4317, %v4308
  %v4822 = vpack.c.b16 %v4318, %v4309
  %v4823 = vpack.c.b16 %v4319, %v4310
  %v4824 = vpack.c.b16 %v4320, %v4311
  %v4825 = vpack.c.b16 %v4321, %v4312
  %v4826 = vpack.c.b16 %v4322, %v4313
  %v4827 = vpack.c.b16 %v4323, %v4314
  %v4828 = vpack.c.b16 %v4333, %v4324
  %v4829 = vpack.c.b16 %v4334, %v4325
  %v4830 = vpack.c.b16 %v4335, %v4326
  %v4831 = vpack.c.b16 %v4336, %v4327
  %v4832 = vpack.c.b16 %v4337, %v4328
  %v4833 = vpack.c.b16 %v4338, %v4329
  %v4834 = vpack.c.b16 %v4339, %v4330
  %v4835 = vpack.c.b16 %v4340, %v4331
  %v4836 = vpack.c.b16 %v4341, %v4332
  %v4837 = vpack.c.b16 %v4351, %v4342
  %v4838 = vpack.c.b16 %v4352, %v4343
  %v4839 = vpack.c.b16 %v4353, %v4344
  %v4840 = vpack.c.b16 %v4354, %v4345
  %v4841 = vpack.c.b16 %v4355, %v4346
  %v4842 = vpack.c.b16 %v4356, %v4347
  %v4843 = vpack.c.b16 %v4357, %v4348
  %v4844 = vpack.c.b16 %v4358, %v4349
  %v4845 = vpack.c.b16 %v4359, %v4350
  %v4846 = vpack.c.b16 %v4369, %v4360
  %v4847 = vpack.c.b16 %v4370, %v4361
  %v4848 = vpack.c.b16 %v4371, %v4362
  %v4849 = vpack.c.b16 %v4372, %v4363
  %v4850 = vpack.c.b16 %v4373, %v4364
  %v4851 = vpack.c.b16 %v4374, %v4365
  %v4852 = vpack.c.b16 %v4375, %v4366
  %v4853 = vpack.c.b16 %v4376, %v4367
  %v4854 = vpack.c.b16 %v4377, %v4368
  %v4855 = vpack.c.b16 %v4387, %v4378
  %v4856 = vpack.c.b16 %v4388, %v4379
  %v4857 = vpack.c.b16 %v4389, %v4380
  %v4858 = vpack.c.b16 %v4390, %v4381
  %v4859 = vpack.c.b16 %v4391, %v4382
  %v4860 = vpack.c.b16 %v4392, %v4383
  %v4861 = vpack.c.b16 %v4393, %v4384
  %v4862 = vpack.c.b16 %v4394, %v4385
  %v4863 = vpack.c.b16 %v4395, %v4386
  %v4864 = vpack.c.b16 %v4405, %v4396
  %v4865 = vpack.c.b16 %v4406, %v4397
  %v4866 = vpack.c.b16 %v4407, %v4398
  %v4867 = vpack.c.b16 %v4408, %v4399
  %v4868 = vpack.c.b16 %v4409, %v4400
  %v4869 = vpack.c.b16 %v4410, %v4401
  %v4870 = vpack.c.b16 %v4411, %v4402
  %v4871 = vpack.c.b16 %v4412, %v4403
  %v4872 = vpack.c.b16 %v4413, %v4404
  %v4873 = vpack.c.b16 %v4423, %v4414
  %v4874 = vpack.c.b16 %v4424, %v4415
  %v4875 = vpack.c.b16 %v4425, %v4416
  %v4876 = vpack.c.b16 %v4426, %v4417
  %v4877 = vpack.c.b16 %v4427, %v4418
  %v4878 = vpack.c.b16 %v4428, %v4419
  %v4879 = vpack.c.b16 %v4429, %v4420
  %v4880 = vpack.c.b16 %v4430, %v4421
  %v4881 = vpack.c.b16 %v4431, %v4422
  %v4882 = vpack.c.b16 %v4441, %v4432
  %v4883 = vpack.c.b16 %v4442, %v4433
  %v4884 = vpack.c.b16 %v4443, %v4434
  %v4885 = vpack.c.b16 %v4444, %v4435
  %v4886 = vpack.c.b16 %v4445, %v4436
  %v4887 = vpack.c.b16 %v4446, %v4437
  %v4888 = vpack.c.b16 %v4447, %v4438
  %v4889 = vpack.c.b16 %v4448, %v4439
  %v4890 = vpack.c.b16 %v4449, %v4440
  %v4891 = vpack.c.b16 %v4459, %v4450
  %v4892 = vpack.c.b16 %v4460, %v4451
  %v4893 = vpack.c.b16 %v4461, %v4452
  %v4894 = vpack.c.b16 %v4462, %v4453
  %v4895 = vpack.c.b16 %v4463, %v4454
  %v4896 = vpack.c.b16 %v4464, %v4455
  %v4897 = vpack.c.b16 %v4465, %v4456
  %v4898 = vpack.c.b16 %v4466, %v4457
  %v4899 = vpack.c.b16 %v4467, %v4458
  %v4900 = vpack.c.b16 %v4477, %v4468
  %v4901 = vpack.c.b16 %v4478, %v4469
  %v4902 = vpack.c.b16 %v4479, %v4470
  %v4903 = vpack.c.b16 %v4480, %v4471
  %v4904 = vpack.c.b16 %v4481, %v4472
  %v4905 = vpack.c.b16 %v4482, %v4473
  %v4906 = vpack.c.b16 %v4483, %v4474
  %v4907 = vpack.c.b16 %v4484, %v4475
  %v4908 = vpack.c.b16 %v4485, %v4476
  %v4909 = vpack.c.b16 %v4495, %v4486
  %v4910 = vpack.c.b16 %v4496, %v4487
  %v4911 = vpack.c.b16 %v4497, %v4488
  %v4912 = vpack.c.b16 %v4498, %v4489
  %v4913 = vpack.c.b16 %v4499, %v4490
  %v4914 = vpack.c.b16 %v4500, %v4491
  %v4915 = vpack.c.b16 %v4501, %v4492
  %v4916 = vpack.c.b16 %v4502, %v4493
  %v4917 = vpack.c.b16 %v4503, %v4494
  %v4918 = vpack.c.b16 %v4513, %v4504
  %v4919 = vpack.c.b16 %v4514, %v4505
  %v4920 = vpack.c.b16 %v4515, %v4506
  %v4921 = vpack.c.b16 %v4516, %v4507
  %v4922 = vpack.c.b16 %v4517, %v4508
  %v4923 = vpack.c.b16 %v4518, %v4509
  %v4924 = vpack.c.b16 %v4519, %v4510
  %v4925 = vpack.c.b16 %v4520, %v4511
  %v4926 = vpack.c.b16 %v4521, %v4512
  %v4927 = vpack.c.b16 %v4531, %v4522
  %v4928 = vpack.c.b16 %v4532, %v4523
  %v4929 = vpack.c.b16 %v4533, %v4524
  %v4930 = vpack.c.b16 %v4534, %v4525
  %v4931 = vpack.c.b16 %v4535, %v4526
  %v4932 = vpack.c.b16 %v4536, %v4527
  %v4933 = vpack.c.b16 %v4537, %v4528
  %v4934 = vpack.c.b16 %v4538, %v4529
  %v4935 = vpack.c.b16 %v4539, %v4530
  %v4936 = vpack.c.b16 %v4549, %v4540
  %v4937 = vpack.c.b16 %v4550, %v4541
  %v4938 = vpack.c.b16 %v4551, %v4542
  %v4939 = vpack.c.b16 %v4552, %v4543
  %v4940 = vpack.c.b16 %v4553, %v4544
  %v4941 = vpack.c.b16 %v4554, %v4545
  %v4942 = vpack.c.b16 %v4555, %v4546
  %v4943 = vpack.c.b16 %v4556, %v4547
  %v4944 = vpack.c.b16 %v4557, %v4548
  %v4945 = vpack.c.b16 %v4567, %v4558
  %v4946 = vpack.c.b16 %v4568, %v4559
  %v4947 = vpack.c.b16 %v4569, %v4560
  %v4948 = vpack.c.b16 %v4570, %v4561
  %v4949 = vpack.c.b16 %v4571, %v4562
  %v4950 = vpack.c.b16 %v4572, %v4563
  %v4951 = vpack.c.b16 %v4573, %v4564
  %v4952 = vpack.c.b16 %v4574, %v4565
  %v4953 = vpack.c.b16 %v4575, %v4566
  %v4954 = vpack.c.b16 %v4585, %v4576
  %v4955 = vpack.c.b16 %v4586, %v4577
  %v4956 = vpack.c.b16 %v4587, %v4578
  %v4957 = vpack.c.b16 %v4588, %v4579
  %v4958 = vpack.c.b16 %v4589, %v4580
  %v4959 = vpack.c.b16 %v4590, %v4581
  %v4960 = vpack.c.b16 %v4591, %v4582
  %v4961 = vpack.c.b16 %v4592, %v4583
  %v4962 = vpack.c.b16 %v4593, %v4584
  %v4963 = vpack.c.b16 %v4603, %v4594
  %v4964 = vpack.c.b16 %v4604, %v4595
  %v4965 = vpack.c.b16 %v4605, %v4596
  %v4966 = vpack.c.b16 %v4606, %v4597
  %v4967 = vpack.c.b16 %v4607, %v4598
  %v4968 = vpack.c.b16 %v4608, %v4599
  %v4969 = vpack.c.b16 %v4609, %v4600
  %v4970 = vpack.c.b16 %v4610, %v4601
  %v4971 = vpack.c.b16 %v4611, %v4602
  %v4972 = vpack.c.b16 %v4621, %v4612
  %v4973 = vpack.c.b16 %v4622, %v4613
  %v4974 = vpack.c.b16 %v4623, %v4614
  %v4975 = vpack.c.b16 %v4624, %v4615
  %v4976 = vpack.c.b16 %v4625, %v4616
  %v4977 = vpack.c.b16 %v4626, %v4617
  %v4978 = vpack.c.b16 %v4627, %v4618
  %v4979 = vpack.c.b16 %v4628, %v4619
  %v4980 = vpack.c.b16 %v4629, %v4620
  %v4981 = vpack.c.b16 %v4639, %v4630
  %v4982 = vpack.c.b16 %v4640, %v4631
  %v4983 = vpack.c.b16 %v4641, %v4632
  %v4984 = vpack.c.b16 %v4642, %v4633
  %v4985 = vpack.c.b16 %v4643, %v4634
  %v4986 = vpack.c.b16 %v4644, %v4635
  %v4987 = vpack.c.b16 %v4645, %v4636
  %v4988 = vpack.c.b16 %v4646, %v4637
  %v4989 = vpack.c.b16 %v4647, %v4638
  %v4990 = vpack.c.b16 %v4657, %v4648
  %v4991 = vpack.c.b16 %v4658, %v4649
  %v4992 = vpack.c.b16 %v4659, %v4650
  %v4993 = vpack.c.b16 %v4660, %v4651
  %v4994 = vpack.c.b16 %v4661, %v4652
  %v4995 = vpack.c.b16 %v4662, %v4653
  %v4996 = vpack.c.b16 %v4663, %v4654
  %v4997 = vpack.c.b16 %v4664, %v4655
  %v4998 = vpack.c.b16 %v4665, %v4656
  %v4999 = vpack.c.b16 %v4675, %v4666
  %v5000 = vpack.c.b16 %v4676, %v4667
  %v5001 = vpack.c.b16 %v4677, %v4668
  %v5002 = vpack.c.b16 %v4678, %v4669
  %v5003 = vpack.c.b16 %v4679, %v4670
  %v5004 = vpack.c.b16 %v4680, %v4671
  %v5005 = vpack.c.b16 %v4681, %v4672
  %v5006 = vpack.c.b16 %v4682, %v4673
  %v5007 = vpack.c.b16 %v4683, %v4674
  %v5008 = vpack.c.b16 %v4693, %v4684
  %v5009 = vpack.c.b16 %v4694, %v4685
  %v5010 = vpack.c.b16 %v4695, %v4686
  %v5011 = vpack.c.b16 %v4696, %v4687
  %v5012 = vpack.c.b16 %v4697, %v4688
  %v5013 = vpack.c.b16 %v4698, %v4689
  %v5014 = vpack.c.b16 %v4699, %v4690
  %v5015 = vpack.c.b16 %v4700, %v4691
  %v5016 = vpack.c.b16 %v4701, %v4692
  %v5017 = vpack.c.b16 %v4711, %v4702
  %v5018 = vpack.c.b16 %v4712, %v4703
  %v5019 = vpack.c.b16 %v4713, %v4704
  %v5020 = vpack.c.b16 %v4714, %v4705
  %v5021 = vpack.c.b16 %v4715, %v4706
  %v5022 = vpack.c.b16 %v4716, %v4707
  %v5023 = vpack.c.b16 %v4717, %v4708
  %v5024 = vpack.c.b16 %v4718, %v4709
  %v5025 = vpack.c.b16 %v4719, %v4710
  %v5026 = vpack.c.b16 %v4729, %v4720
  %v5027 = vpack.c.b16 %v4730, %v4721
  %v5028 = vpack.c.b16 %v4731, %v4722
  %v5029 = vpack.c.b16 %v4732, %v4723
  %v5030 = vpack.c.b16 %v4733, %v4724
  %v5031 = vpack.c.b16 %v4734, %v4725
  %v5032 = vpack.c.b16 %v4735, %v4726
  %v5033 = vpack.c.b16 %v4736, %v4727
  %v5034 = vpack.c.b16 %v4737, %v4728
  %v5035 = vpack.c.b16 %v4747, %v4738
  %v5036 = vpack.c.b16 %v4748, %v4739
  %v5037 = vpack.c.b16 %v4749, %v4740
  %v5038 = vpack.c.b16 %v4750, %v4741
  %v5039 = vpack.c.b16 %v4751, %v4742
  %v5040 = vpack.c.b16 %v4752, %v4743
  %v5041 = vpack.c.b16 %v4753, %v4744
  %v5042 = vpack.c.b16 %v4754, %v4745
  %v5043 = vpack.c.b16 %v4755, %v4746
  %v5476 = vunpack.c.l.b16 %v3712
  %v5477 = vunpack.c.l.b16 %v3713
  %v5478 = vunpack.c.l.b16 %v3714
  %v5479 = vunpack.c.l.b16 %v3715
  %v5480 = vunpack.c.l.b16 %v3716
  %v5481 = vunpack.c.l.b16 %v3717
  %v5482 = vunpack.c.l.b16 %v3718
  %v5483 = vunpack.c.l.b16 %v3719
  %v5484 = vunpack.c.l.b16 %v3720
  %v5485 = vunpack.c.l.b16 %v3721
  %v5486 = vunpack.c.l.b16 %v3722
  %v5487 = vunpack.c.l.b16 %v3723
  %v5488 = vunpack.c.l.b16 %v3724
  %v5489 = vunpack.c.l.b16 %v3725
  %v5490 = vunpack.c.l.b16 %v3726
  %v5491 = vunpack.c.l.b16 %v3727
  %v5492 = vunpack.c.l.b16 %v3728
  %v5493 = vunpack.c.l.b16 %v3729
  %v5494 = vunpack.c.l.b16 %v3730
  %v5495 = vunpack.c.l.b16 %v3731
  %v5496 = vunpack.c.l.b16 %v3732
  %v5497 = vunpack.c.l.b16 %v3733
  %v5498 = vunpack.c.l.b16 %v3734
  %v5499 = vunpack.c.l.b16 %v3735
  %v5500 = vunpack.c.l.b16 %v3736
  %v5501 = vunpack.c.l.b16 %v3737
  %v5502 = vunpack.c.l.b16 %v3738
  %v5503 = vunpack.c.l.b16 %v3739
  %v5504 = vunpack.c.l.b16 %v3740
  %v5505 = vunpack.c.l.b16 %v3741
  %v5506 = vunpack.c.l.b16 %v3742
  %v5507 = vunpack.c.l.b16 %v3743
  %v5508 = vunpack.c.l.b16 %v3744
  %v5509 = vunpack.c.l.b16 %v3745
  %v5510 = vunpack.c.l.b16 %v3746
  %v5511 = vunpack.c.l.b16 %v3747
  %v5512 = vunpack.c.l.b16 %v3748
  %v5513 = vunpack.c.l.b16 %v3749
  %v5514 = vunpack.c.l.b16 %v3750
  %v5515 = vunpack.c.l.b16 %v3751
  %v5516 = vunpack.c.l.b16 %v3752
  %v5517 = vunpack.c.l.b16 %v3753
  %v5518 = vunpack.c.l.b16 %v3754
  %v5519 = vunpack.c.l.b16 %v3755
  %v5520 = vunpack.c.l.b16 %v3756
  %v5521 = vunpack.c.l.b16 %v3757
  %v5522 = vunpack.c.l.b16 %v3758
  %v5523 = vunpack.c.l.b16 %v3759
  %v5524 = vunpack.c.l.b16 %v3760
  %v5525 = vunpack.c.l.b16 %v3761
  %v5526 = vunpack.c.l.b16 %v3762
  %v5527 = vunpack.c.l.b16 %v3763
  %v5528 = vunpack.c.l.b16 %v3764
  %v5529 = vunpack.c.l.b16 %v3765
  %v5530 = vunpack.c.l.b16 %v3766
  %v5531 = vunpack.c.l.b16 %v3767
  %v5532 = vunpack.c.l.b16 %v3768
  %v5533 = vunpack.c.l.b16 %v3769
  %v5534 = vunpack.c.l.b16 %v3770
  %v5535 = vunpack.c.l.b16 %v3771
  %v5536 = vunpack.c.l.b16 %v3772
  %v5537 = vunpack.c.l.b16 %v3773
  %v5538 = vunpack.c.l.b16 %v3774
  %v5539 = vunpack.c.l.b16 %v3775
  %v5540 = vunpack.c.l.b16 %v3776
  %v5541 = vunpack.c.l.b16 %v3777
  %v5542 = vunpack.c.l.b16 %v3778
  %v5543 = vunpack.c.l.b16 %v3779
  %v5544 = vunpack.c.l.b16 %v3780
  %v5545 = vunpack.c.l.b16 %v3781
  %v5546 = vunpack.c.l.b16 %v3782
  %v5547 = vunpack.c.l.b16 %v3783
  %v5548 = vunpack.c.l.b16 %v3784
  %v5549 = vunpack.c.l.b16 %v3785
  %v5550 = vunpack.c.l.b16 %v3786
  %v5551 = vunpack.c.l.b16 %v3787
  %v5552 = vunpack.c.l.b16 %v3788
  %v5553 = vunpack.c.l.b16 %v3789
  %v5554 = vunpack.c.l.b16 %v3790
  %v5555 = vunpack.c.l.b16 %v3791
  %v5556 = vunpack.c.l.b16 %v3792
  %v5557 = vunpack.c.l.b16 %v3793
  %v5558 = vunpack.c.l.b16 %v3794
  %v5559 = vunpack.c.l.b16 %v3795
  %v5560 = vunpack.c.l.b16 %v3796
  %v5561 = vunpack.c.l.b16 %v3797
  %v5562 = vunpack.c.l.b16 %v3798
  %v5563 = vunpack.c.l.b16 %v3799
  %v5564 = vunpack.c.l.b16 %v3800
  %v5565 = vunpack.c.l.b16 %v3801
  %v5566 = vunpack.c.l.b16 %v3802
  %v5567 = vunpack.c.l.b16 %v3803
  %v5568 = vunpack.c.l.b16 %v3804
  %v5569 = vunpack.c.l.b16 %v3805
  %v5570 = vunpack.c.l.b16 %v3806
  %v5571 = vunpack.c.l.b16 %v3807
  %v5572 = vunpack.c.l.b16 %v3808
  %v5573 = vunpack.c.l.b16 %v3809
  %v5574 = vunpack.c.l.b16 %v3810
  %v5575 = vunpack.c.l.b16 %v3811
  %v5576 = vunpack.c.l.b16 %v3812
  %v5577 = vunpack.c.l.b16 %v3813
  %v5578 = vunpack.c.l.b16 %v3814
  %v5579 = vunpack.c.l.b16 %v3815
  %v5580 = vunpack.c.l.b16 %v3816
  %v5581 = vunpack.c.l.b16 %v3817
  %v5582 = vunpack.c.l.b16 %v3818
  %v5583 = vunpack.c.l.b16 %v3819
  %v5584 = vunpack.c.l.b16 %v3820
  %v5585 = vunpack.c.l.b16 %v3821
  %v5586 = vunpack.c.l.b16 %v3822
  %v5587 = vunpack.c.l.b16 %v3823
  %v5588 = vunpack.c.l.b16 %v3824
  %v5589 = vunpack.c.l.b16 %v3825
  %v5590 = vunpack.c.l.b16 %v3826
  %v5591 = vunpack.c.l.b16 %v3827
  %v5592 = vunpack.c.l.b16 %v3828
  %v5593 = vunpack.c.l.b16 %v3829
  %v5594 = vunpack.c.l.b16 %v3830
  %v5595 = vunpack.c.l.b16 %v3831
  %v5596 = vunpack.c.l.b16 %v3832
  %v5597 = vunpack.c.l.b16 %v3833
  %v5598 = vunpack.c.l.b16 %v3834
  %v5599 = vunpack.c.l.b16 %v3835
  %v5600 = vunpack.c.l.b16 %v3836
  %v5601 = vunpack.c.l.b16 %v3837
  %v5602 = vunpack.c.l.b16 %v3838
  %v5603 = vunpack.c.l.b16 %v3839
  %v5604 = vunpack.c.l.b16 %v3840
  %v5605 = vunpack.c.l.b16 %v3841
  %v5606 = vunpack.c.l.b16 %v3842
  %v5607 = vunpack.c.l.b16 %v3843
  %v5608 = vunpack.c.l.b16 %v3844
  %v5609 = vunpack.c.l.b16 %v3845
  %v5610 = vunpack.c.l.b16 %v3846
  %v5611 = vunpack.c.l.b16 %v3847
  %v5612 = vunpack.c.l.b16 %v3848
  %v5613 = vunpack.c.l.b16 %v3849
  %v5614 = vunpack.c.l.b16 %v3850
  %v5615 = vunpack.c.l.b16 %v3851
  %v5616 = vunpack.c.l.b16 %v3852
  %v5617 = vunpack.c.l.b16 %v3853
  %v5618 = vunpack.c.l.b16 %v3854
  %v5619 = vunpack.c.l.b16 %v3855
  %v5620 = vpack.c.b16 %v5477, %v5476
  %v5621 = vpack.c.b16 %v5479, %v5478
  %v5622 = vpack.c.b16 %v5481, %v5480
  %v5623 = vpack.c.b16 %v5483, %v5482
  %v5624 = vpack.c.b16 %v5485, %v5484
  %v5625 = vpack.c.b16 %v5487, %v5486
  %v5626 = vpack.c.b16 %v5489, %v5488
  %v5627 = vpack.c.b16 %v5491, %v5490
  %v5628 = vpack.c.b16 %v5493, %v5492
  %v5629 = vpack.c.b16 %v5495, %v5494
  %v5630 = vpack.c.b16 %v5497, %v5496
  %v5631 = vpack.c.b16 %v5499, %v5498
  %v5632 = vpack.c.b16 %v5501, %v5500
  %v5633 = vpack.c.b16 %v5503, %v5502
  %v5634 = vpack.c.b16 %v5505, %v5504
  %v5635 = vpack.c.b16 %v5507, %v5506
  %v5636 = vpack.c.b16 %v5509, %v5508
  %v5637 = vpack.c.b16 %v5511, %v5510
  %v5638 = vpack.c.b16 %v5513, %v5512
  %v5639 = vpack.c.b16 %v5515, %v5514
  %v5640 = vpack.c.b16 %v5517, %v5516
  %v5641 = vpack.c.b16 %v5519, %v5518
  %v5642 = vpack.c.b16 %v5521, %v5520
  %v5643 = vpack.c.b16 %v5523, %v5522
  %v5644 = vpack.c.b16 %v5525, %v5524
  %v5645 = vpack.c.b16 %v5527, %v5526
  %v5646 = vpack.c.b16 %v5529, %v5528
  %v5647 = vpack.c.b16 %v5531, %v5530
  %v5648 = vpack.c.b16 %v5533, %v5532
  %v5649 = vpack.c.b16 %v5535, %v5534
  %v5650 = vpack.c.b16 %v5537, %v5536
  %v5651 = vpack.c.b16 %v5539, %v5538
  %v5652 = vpack.c.b16 %v5541, %v5540
  %v5653 = vpack.c.b16 %v5543, %v5542
  %v5654 = vpack.c.b16 %v5545, %v5544
  %v5655 = vpack.c.b16 %v5547, %v5546
  %v5656 = vpack.c.b16 %v5549, %v5548
  %v5657 = vpack.c.b16 %v5551, %v5550
  %v5658 = vpack.c.b16 %v5553, %v5552
  %v5659 = vpack.c.b16 %v5555, %v5554
  %v5660 = vpack.c.b16 %v5557, %v5556
  %v5661 = vpack.c.b16 %v5559, %v5558
  %v5662 = vpack.c.b16 %v5561, %v5560
  %v5663 = vpack.c.b16 %v5563, %v5562
  %v5664 = vpack.c.b16 %v5565, %v5564
  %v5665 = vpack.c.b16 %v5567, %v5566
  %v5666 = vpack.c.b16 %v5569, %v5568
  %v5667 = vpack.c.b16 %v5571, %v5570
  %v5668 = vpack.c.b16 %v5573, %v5572
  %v5669 = vpack.c.b16 %v5575, %v5574
  %v5670 = vpack.c.b16 %v5577, %v5576
  %v5671 = vpack.c.b16 %v5579, %v5578
  %v5672 = vpack.c.b16 %v5581, %v5580
  %v5673 = vpack.c.b16 %v5583, %v5582
  %v5674 = vpack.c.b16 %v5585, %v5584
  %v5675 = vpack.c.b16 %v5587, %v5586
  %v5676 = vpack.c.b16 %v5589, %v5588
  %v5677 = vpack.c.b16 %v5591, %v5590
  %v5678 = vpack.c.b16 %v5593, %v5592
  %v5679 = vpack.c.b16 %v5595, %v5594
  %v5680 = vpack.c.b16 %v5597, %v5596
  %v5681 = vpack.c.b16 %v5599, %v5598
  %v5682 = vpack.c.b16 %v5601, %v5600
  %v5683 = vpack.c.b16 %v5603, %v5602
  %v5684 = vpack.c.b16 %v5605, %v5604
  %v5685 = vpack.c.b16 %v5607, %v5606
  %v5686 = vpack.c.b16 %v5609, %v5608
  %v5687 = vpack.c.b16 %v5611, %v5610
  %v5688 = vpack.c.b16 %v5613, %v5612
  %v5689 = vpack.c.b16 %v5615, %v5614
  %v5690 = vpack.c.b16 %v5617, %v5616
  %v5691 = vpack.c.b16 %v5619, %v5618
  %5764 = vmatpush.bf16.msra.mxu0 %v5627
  %5765 = vmatpush.bf16.msra.mxu0 %v5626
  %5766 = vmatpush.bf16.msra.mxu0 %v5625
  %5767 = vmatpush.bf16.msra.mxu0 %v5624
  %5768 = vmatpush.bf16.msra.mxu0 %v5623
  %5769 = vmatpush.bf16.msra.mxu0 %v5622
  %5770 = vmatpush.bf16.msra.mxu0 %v5621
  %5771 = vmatpush.bf16.msra.mxu0 %v5620
  %5772 = vmatmul.bf16.gmra.mxu0 %v4756
  %v5773 = vpop.f32.mrf.mxu0
  %v5774 = vadd.f32 %v3858, %v5773
  %v5775 = vpop.f32.mrf.mxu0
  %v5776 = vadd.f32 %v3858, %v5775
  %5777 = vmatmul.bf16.gmra.mxu0 %v4765
  %v5778 = vpop.f32.mrf.mxu0
  %v5779 = vadd.f32 %v3858, %v5778
  %v5780 = vpop.f32.mrf.mxu0
  %v5781 = vadd.f32 %v3858, %v5780
  %5782 = vmatmul.bf16.gmra.mxu0 %v4774
  %v5783 = vpop.f32.mrf.mxu0
  %v5784 = vadd.f32 %v3858, %v5783
  %v5785 = vpop.f32.mrf.mxu0
  %v5786 = vadd.f32 %v3858, %v5785
  %5787 = vmatmul.bf16.gmra.mxu0 %v4783
  %v5788 = vpop.f32.mrf.mxu0
  %v5789 = vadd.f32 %v3858, %v5788
  %v5790 = vpop.f32.mrf.mxu0
  %v5791 = vadd.f32 %v3858, %v5790
  %5792 = vmatmul.bf16.gmra.mxu0 %v4792
  %v5793 = vpop.f32.mrf.mxu0
  %v5794 = vadd.f32 %v3858, %v5793
  %v5795 = vpop.f32.mrf.mxu0
  %v5796 = vadd.f32 %v3858, %v5795
  %5797 = vmatmul.bf16.gmra.mxu0 %v4801
  %v5798 = vpop.f32.mrf.mxu0
  %v5799 = vadd.f32 %v3858, %v5798
  %v5800 = vpop.f32.mrf.mxu0
  %v5801 = vadd.f32 %v3858, %v5800
  %5802 = vmatmul.bf16.gmra.mxu0 %v4810
  %v5803 = vpop.f32.mrf.mxu0
  %v5804 = vadd.f32 %v3858, %v5803
  %v5805 = vpop.f32.mrf.mxu0
  %v5806 = vadd.f32 %v3858, %v5805
  %5807 = vmatmul.bf16.gmra.mxu0 %v4819
  %v5808 = vpop.f32.mrf.mxu0
  %v5809 = vadd.f32 %v3858, %v5808
  %v5810 = vpop.f32.mrf.mxu0
  %v5811 = vadd.f32 %v3858, %v5810
  %5812 = vmatmul.bf16.gmra.mxu0 %v4828
  %v5813 = vpop.f32.mrf.mxu0
  %v5814 = vadd.f32 %v3858, %v5813
  %v5815 = vpop.f32.mrf.mxu0
  %v5816 = vadd.f32 %v3858, %v5815
  %5817 = vmatmul.bf16.gmra.mxu0 %v4837
  %v5818 = vpop.f32.mrf.mxu0
  %v5819 = vadd.f32 %v3858, %v5818
  %v5820 = vpop.f32.mrf.mxu0
  %v5821 = vadd.f32 %v3858, %v5820
  %5822 = vmatmul.bf16.gmra.mxu0 %v4846
  %v5823 = vpop.f32.mrf.mxu0
  %v5824 = vadd.f32 %v3858, %v5823
  %v5825 = vpop.f32.mrf.mxu0
  %v5826 = vadd.f32 %v3858, %v5825
  %5827 = vmatmul.bf16.gmra.mxu0 %v4855
  %v5828 = vpop.f32.mrf.mxu0
  %v5829 = vadd.f32 %v3858, %v5828
  %v5830 = vpop.f32.mrf.mxu0
  %v5831 = vadd.f32 %v3858, %v5830
  %5832 = vmatmul.bf16.gmra.mxu0 %v4864
  %v5833 = vpop.f32.mrf.mxu0
  %v5834 = vadd.f32 %v3858, %v5833
  %v5835 = vpop.f32.mrf.mxu0
  %v5836 = vadd.f32 %v3858, %v5835
  %5837 = vmatmul.bf16.gmra.mxu0 %v4873
  %v5838 = vpop.f32.mrf.mxu0
  %v5839 = vadd.f32 %v3858, %v5838
  %v5840 = vpop.f32.mrf.mxu0
  %v5841 = vadd.f32 %v3858, %v5840
  %5842 = vmatmul.bf16.gmra.mxu0 %v4882
  %v5843 = vpop.f32.mrf.mxu0
  %v5844 = vadd.f32 %v3858, %v5843
  %v5845 = vpop.f32.mrf.mxu0
  %v5846 = vadd.f32 %v3858, %v5845
  %5847 = vmatmul.bf16.gmra.mxu0 %v4891
  %v5848 = vpop.f32.mrf.mxu0
  %v5849 = vadd.f32 %v3858, %v5848
  %v5850 = vpop.f32.mrf.mxu0
  %v5851 = vadd.f32 %v3858, %v5850
  %5852 = vmatmul.bf16.gmra.mxu0 %v4900
  %v5853 = vpop.f32.mrf.mxu0
  %v5854 = vadd.f32 %v3858, %v5853
  %v5855 = vpop.f32.mrf.mxu0
  %v5856 = vadd.f32 %v3858, %v5855
  %5857 = vmatmul.bf16.gmra.mxu0 %v4909
  %v5858 = vpop.f32.mrf.mxu0
  %v5859 = vadd.f32 %v3858, %v5858
  %v5860 = vpop.f32.mrf.mxu0
  %v5861 = vadd.f32 %v3858, %v5860
  %5862 = vmatmul.bf16.gmra.mxu0 %v4918
  %v5863 = vpop.f32.mrf.mxu0
  %v5864 = vadd.f32 %v3858, %v5863
  %v5865 = vpop.f32.mrf.mxu0
  %v5866 = vadd.f32 %v3858, %v5865
  %5867 = vmatmul.bf16.gmra.mxu0 %v4927
  %v5868 = vpop.f32.mrf.mxu0
  %v5869 = vadd.f32 %v3858, %v5868
  %v5870 = vpop.f32.mrf.mxu0
  %v5871 = vadd.f32 %v3858, %v5870
  %5872 = vmatmul.bf16.gmra.mxu0 %v4936
  %v5873 = vpop.f32.mrf.mxu0
  %v5874 = vadd.f32 %v3858, %v5873
  %v5875 = vpop.f32.mrf.mxu0
  %v5876 = vadd.f32 %v3858, %v5875
  %5877 = vmatmul.bf16.gmra.mxu0 %v4945
  %v5878 = vpop.f32.mrf.mxu0
  %v5879 = vadd.f32 %v3858, %v5878
  %v5880 = vpop.f32.mrf.mxu0
  %v5881 = vadd.f32 %v3858, %v5880
  %5882 = vmatmul.bf16.gmra.mxu0 %v4954
  %v5883 = vpop.f32.mrf.mxu0
  %v5884 = vadd.f32 %v3858, %v5883
  %v5885 = vpop.f32.mrf.mxu0
  %v5886 = vadd.f32 %v3858, %v5885
  %5887 = vmatmul.bf16.gmra.mxu0 %v4963
  %v5888 = vpop.f32.mrf.mxu0
  %v5889 = vadd.f32 %v3858, %v5888
  %v5890 = vpop.f32.mrf.mxu0
  %v5891 = vadd.f32 %v3858, %v5890
  %5892 = vmatmul.bf16.gmra.mxu0 %v4972
  %v5893 = vpop.f32.mrf.mxu0
  %v5894 = vadd.f32 %v3858, %v5893
  %v5895 = vpop.f32.mrf.mxu0
  %v5896 = vadd.f32 %v3858, %v5895
  %5897 = vmatmul.bf16.gmra.mxu0 %v4981
  %v5898 = vpop.f32.mrf.mxu0
  %v5899 = vadd.f32 %v3858, %v5898
  %v5900 = vpop.f32.mrf.mxu0
  %v5901 = vadd.f32 %v3858, %v5900
  %5902 = vmatmul.bf16.gmra.mxu0 %v4990
  %v5903 = vpop.f32.mrf.mxu0
  %v5904 = vadd.f32 %v3858, %v5903
  %v5905 = vpop.f32.mrf.mxu0
  %v5906 = vadd.f32 %v3858, %v5905
  %5907 = vmatmul.bf16.gmra.mxu0 %v4999
  %v5908 = vpop.f32.mrf.mxu0
  %v5909 = vadd.f32 %v3858, %v5908
  %v5910 = vpop.f32.mrf.mxu0
  %v5911 = vadd.f32 %v3858, %v5910
  %5912 = vmatmul.bf16.gmra.mxu0 %v5008
  %v5913 = vpop.f32.mrf.mxu0
  %v5914 = vadd.f32 %v3858, %v5913
  %v5915 = vpop.f32.mrf.mxu0
  %v5916 = vadd.f32 %v3858, %v5915
  %5917 = vmatmul.bf16.gmra.mxu0 %v5017
  %v5918 = vpop.f32.mrf.mxu0
  %v5919 = vadd.f32 %v3858, %v5918
  %v5920 = vpop.f32.mrf.mxu0
  %v5921 = vadd.f32 %v3858, %v5920
  %5922 = vmatmul.bf16.gmra.mxu0 %v5026
  %v5923 = vpop.f32.mrf.mxu0
  %v5924 = vadd.f32 %v3858, %v5923
  %v5925 = vpop.f32.mrf.mxu0
  %v5926 = vadd.f32 %v3858, %v5925
  %5927 = vmatmul.bf16.gmra.mxu0 %v5035
  %v5928 = vpop.f32.mrf.mxu0
  %v5929 = vadd.f32 %v3858, %v5928
  %v5930 = vpop.f32.mrf.mxu0
  %v5931 = vadd.f32 %v3858, %v5930
  %5932 = vdwg.mxu0
  %5933 = vmatpush.bf16.msra.mxu0 %v5635
  %5934 = vmatpush.bf16.msra.mxu0 %v5634
  %5935 = vmatpush.bf16.msra.mxu0 %v5633
  %5936 = vmatpush.bf16.msra.mxu0 %v5632
  %5937 = vmatpush.bf16.msra.mxu0 %v5631
  %5938 = vmatpush.bf16.msra.mxu0 %v5630
  %5939 = vmatpush.bf16.msra.mxu0 %v5629
  %5940 = vmatpush.bf16.msra.mxu0 %v5628
  %5941 = vmatmul.bf16.gmra.mxu0 %v4757
  %v5942 = vpop.f32.mrf.mxu0
  %v5943 = vadd.f32 %v5774, %v5942
  %v5944 = vpop.f32.mrf.mxu0
  %v5945 = vadd.f32 %v5776, %v5944
  %5946 = vmatmul.bf16.gmra.mxu0 %v4766
  %v5947 = vpop.f32.mrf.mxu0
  %v5948 = vadd.f32 %v5779, %v5947
  %v5949 = vpop.f32.mrf.mxu0
  %v5950 = vadd.f32 %v5781, %v5949
  %5951 = vmatmul.bf16.gmra.mxu0 %v4775
  %v5952 = vpop.f32.mrf.mxu0
  %v5953 = vadd.f32 %v5784, %v5952
  %v5954 = vpop.f32.mrf.mxu0
  %v5955 = vadd.f32 %v5786, %v5954
  %5956 = vmatmul.bf16.gmra.mxu0 %v4784
  %v5957 = vpop.f32.mrf.mxu0
  %v5958 = vadd.f32 %v5789, %v5957
  %v5959 = vpop.f32.mrf.mxu0
  %v5960 = vadd.f32 %v5791, %v5959
  %5961 = vmatmul.bf16.gmra.mxu0 %v4793
  %v5962 = vpop.f32.mrf.mxu0
  %v5963 = vadd.f32 %v5794, %v5962
  %v5964 = vpop.f32.mrf.mxu0
  %v5965 = vadd.f32 %v5796, %v5964
  %5966 = vmatmul.bf16.gmra.mxu0 %v4802
  %v5967 = vpop.f32.mrf.mxu0
  %v5968 = vadd.f32 %v5799, %v5967
  %v5969 = vpop.f32.mrf.mxu0
  %v5970 = vadd.f32 %v5801, %v5969
  %5971 = vmatmul.bf16.gmra.mxu0 %v4811
  %v5972 = vpop.f32.mrf.mxu0
  %v5973 = vadd.f32 %v5804, %v5972
  %v5974 = vpop.f32.mrf.mxu0
  %v5975 = vadd.f32 %v5806, %v5974
  %5976 = vmatmul.bf16.gmra.mxu0 %v4820
  %v5977 = vpop.f32.mrf.mxu0
  %v5978 = vadd.f32 %v5809, %v5977
  %v5979 = vpop.f32.mrf.mxu0
  %v5980 = vadd.f32 %v5811, %v5979
  %5981 = vmatmul.bf16.gmra.mxu0 %v4829
  %v5982 = vpop.f32.mrf.mxu0
  %v5983 = vadd.f32 %v5814, %v5982
  %v5984 = vpop.f32.mrf.mxu0
  %v5985 = vadd.f32 %v5816, %v5984
  %5986 = vmatmul.bf16.gmra.mxu0 %v4838
  %v5987 = vpop.f32.mrf.mxu0
  %v5988 = vadd.f32 %v5819, %v5987
  %v5989 = vpop.f32.mrf.mxu0
  %v5990 = vadd.f32 %v5821, %v5989
  %5991 = vmatmul.bf16.gmra.mxu0 %v4847
  %v5992 = vpop.f32.mrf.mxu0
  %v5993 = vadd.f32 %v5824, %v5992
  %v5994 = vpop.f32.mrf.mxu0
  %v5995 = vadd.f32 %v5826, %v5994
  %5996 = vmatmul.bf16.gmra.mxu0 %v4856
  %v5997 = vpop.f32.mrf.mxu0
  %v5998 = vadd.f32 %v5829, %v5997
  %v5999 = vpop.f32.mrf.mxu0
  %v6000 = vadd.f32 %v5831, %v5999
  %6001 = vmatmul.bf16.gmra.mxu0 %v4865
  %v6002 = vpop.f32.mrf.mxu0
  %v6003 = vadd.f32 %v5834, %v6002
  %v6004 = vpop.f32.mrf.mxu0
  %v6005 = vadd.f32 %v5836, %v6004
  %6006 = vmatmul.bf16.gmra.mxu0 %v4874
  %v6007 = vpop.f32.mrf.mxu0
  %v6008 = vadd.f32 %v5839, %v6007
  %v6009 = vpop.f32.mrf.mxu0
  %v6010 = vadd.f32 %v5841, %v6009
  %6011 = vmatmul.bf16.gmra.mxu0 %v4883
  %v6012 = vpop.f32.mrf.mxu0
  %v6013 = vadd.f32 %v5844, %v6012
  %v6014 = vpop.f32.mrf.mxu0
  %v6015 = vadd.f32 %v5846, %v6014
  %6016 = vmatmul.bf16.gmra.mxu0 %v4892
  %v6017 = vpop.f32.mrf.mxu0
  %v6018 = vadd.f32 %v5849, %v6017
  %v6019 = vpop.f32.mrf.mxu0
  %v6020 = vadd.f32 %v5851, %v6019
  %6021 = vmatmul.bf16.gmra.mxu0 %v4901
  %v6022 = vpop.f32.mrf.mxu0
  %v6023 = vadd.f32 %v5854, %v6022
  %v6024 = vpop.f32.mrf.mxu0
  %v6025 = vadd.f32 %v5856, %v6024
  %6026 = vmatmul.bf16.gmra.mxu0 %v4910
  %v6027 = vpop.f32.mrf.mxu0
  %v6028 = vadd.f32 %v5859, %v6027
  %v6029 = vpop.f32.mrf.mxu0
  %v6030 = vadd.f32 %v5861, %v6029
  %6031 = vmatmul.bf16.gmra.mxu0 %v4919
  %v6032 = vpop.f32.mrf.mxu0
  %v6033 = vadd.f32 %v5864, %v6032
  %v6034 = vpop.f32.mrf.mxu0
  %v6035 = vadd.f32 %v5866, %v6034
  %6036 = vmatmul.bf16.gmra.mxu0 %v4928
  %v6037 = vpop.f32.mrf.mxu0
  %v6038 = vadd.f32 %v5869, %v6037
  %v6039 = vpop.f32.mrf.mxu0
  %v6040 = vadd.f32 %v5871, %v6039
  %6041 = vmatmul.bf16.gmra.mxu0 %v4937
  %v6042 = vpop.f32.mrf.mxu0
  %v6043 = vadd.f32 %v5874, %v6042
  %v6044 = vpop.f32.mrf.mxu0
  %v6045 = vadd.f32 %v5876, %v6044
  %6046 = vmatmul.bf16.gmra.mxu0 %v4946
  %v6047 = vpop.f32.mrf.mxu0
  %v6048 = vadd.f32 %v5879, %v6047
  %v6049 = vpop.f32.mrf.mxu0
  %v6050 = vadd.f32 %v5881, %v6049
  %6051 = vmatmul.bf16.gmra.mxu0 %v4955
  %v6052 = vpop.f32.mrf.mxu0
  %v6053 = vadd.f32 %v5884, %v6052
  %v6054 = vpop.f32.mrf.mxu0
  %v6055 = vadd.f32 %v5886, %v6054
  %6056 = vmatmul.bf16.gmra.mxu0 %v4964
  %v6057 = vpop.f32.mrf.mxu0
  %v6058 = vadd.f32 %v5889, %v6057
  %v6059 = vpop.f32.mrf.mxu0
  %v6060 = vadd.f32 %v5891, %v6059
  %6061 = vmatmul.bf16.gmra.mxu0 %v4973
  %v6062 = vpop.f32.mrf.mxu0
  %v6063 = vadd.f32 %v5894, %v6062
  %v6064 = vpop.f32.mrf.mxu0
  %v6065 = vadd.f32 %v5896, %v6064
  %6066 = vmatmul.bf16.gmra.mxu0 %v4982
  %v6067 = vpop.f32.mrf.mxu0
  %v6068 = vadd.f32 %v5899, %v6067
  %v6069 = vpop.f32.mrf.mxu0
  %v6070 = vadd.f32 %v5901, %v6069
  %6071 = vmatmul.bf16.gmra.mxu0 %v4991
  %v6072 = vpop.f32.mrf.mxu0
  %v6073 = vadd.f32 %v5904, %v6072
  %v6074 = vpop.f32.mrf.mxu0
  %v6075 = vadd.f32 %v5906, %v6074
  %6076 = vmatmul.bf16.gmra.mxu0 %v5000
  %v6077 = vpop.f32.mrf.mxu0
  %v6078 = vadd.f32 %v5909, %v6077
  %v6079 = vpop.f32.mrf.mxu0
  %v6080 = vadd.f32 %v5911, %v6079
  %6081 = vmatmul.bf16.gmra.mxu0 %v5009
  %v6082 = vpop.f32.mrf.mxu0
  %v6083 = vadd.f32 %v5914, %v6082
  %v6084 = vpop.f32.mrf.mxu0
  %v6085 = vadd.f32 %v5916, %v6084
  %6086 = vmatmul.bf16.gmra.mxu0 %v5018
  %v6087 = vpop.f32.mrf.mxu0
  %v6088 = vadd.f32 %v5919, %v6087
  %v6089 = vpop.f32.mrf.mxu0
  %v6090 = vadd.f32 %v5921, %v6089
  %6091 = vmatmul.bf16.gmra.mxu0 %v5027
  %v6092 = vpop.f32.mrf.mxu0
  %v6093 = vadd.f32 %v5924, %v6092
  %v6094 = vpop.f32.mrf.mxu0
  %v6095 = vadd.f32 %v5926, %v6094
  %6096 = vmatmul.bf16.gmra.mxu0 %v5036
  %v6097 = vpop.f32.mrf.mxu0
  %v6098 = vadd.f32 %v5929, %v6097
  %v6099 = vpop.f32.mrf.mxu0
  %v6100 = vadd.f32 %v5931, %v6099
  %6101 = vdwg.mxu0
  %6102 = vmatpush.bf16.msra.mxu0 %v5643
  %6103 = vmatpush.bf16.msra.mxu0 %v5642
  %6104 = vmatpush.bf16.msra.mxu0 %v5641
  %6105 = vmatpush.bf16.msra.mxu0 %v5640
  %6106 = vmatpush.bf16.msra.mxu0 %v5639
  %6107 = vmatpush.bf16.msra.mxu0 %v5638
  %6108 = vmatpush.bf16.msra.mxu0 %v5637
  %6109 = vmatpush.bf16.msra.mxu0 %v5636
  %6110 = vmatmul.bf16.gmra.mxu0 %v4758
  %v6111 = vpop.f32.mrf.mxu0
  %v6112 = vadd.f32 %v5943, %v6111
  %v6113 = vpop.f32.mrf.mxu0
  %v6114 = vadd.f32 %v5945, %v6113
  %6115 = vmatmul.bf16.gmra.mxu0 %v4767
  %v6116 = vpop.f32.mrf.mxu0
  %v6117 = vadd.f32 %v5948, %v6116
  %v6118 = vpop.f32.mrf.mxu0
  %v6119 = vadd.f32 %v5950, %v6118
  %6120 = vmatmul.bf16.gmra.mxu0 %v4776
  %v6121 = vpop.f32.mrf.mxu0
  %v6122 = vadd.f32 %v5953, %v6121
  %v6123 = vpop.f32.mrf.mxu0
  %v6124 = vadd.f32 %v5955, %v6123
  %6125 = vmatmul.bf16.gmra.mxu0 %v4785
  %v6126 = vpop.f32.mrf.mxu0
  %v6127 = vadd.f32 %v5958, %v6126
  %v6128 = vpop.f32.mrf.mxu0
  %v6129 = vadd.f32 %v5960, %v6128
  %6130 = vmatmul.bf16.gmra.mxu0 %v4794
  %v6131 = vpop.f32.mrf.mxu0
  %v6132 = vadd.f32 %v5963, %v6131
  %v6133 = vpop.f32.mrf.mxu0
  %v6134 = vadd.f32 %v5965, %v6133
  %6135 = vmatmul.bf16.gmra.mxu0 %v4803
  %v6136 = vpop.f32.mrf.mxu0
  %v6137 = vadd.f32 %v5968, %v6136
  %v6138 = vpop.f32.mrf.mxu0
  %v6139 = vadd.f32 %v5970, %v6138
  %6140 = vmatmul.bf16.gmra.mxu0 %v4812
  %v6141 = vpop.f32.mrf.mxu0
  %v6142 = vadd.f32 %v5973, %v6141
  %v6143 = vpop.f32.mrf.mxu0
  %v6144 = vadd.f32 %v5975, %v6143
  %6145 = vmatmul.bf16.gmra.mxu0 %v4821
  %v6146 = vpop.f32.mrf.mxu0
  %v6147 = vadd.f32 %v5978, %v6146
  %v6148 = vpop.f32.mrf.mxu0
  %v6149 = vadd.f32 %v5980, %v6148
  %6150 = vmatmul.bf16.gmra.mxu0 %v4830
  %v6151 = vpop.f32.mrf.mxu0
  %v6152 = vadd.f32 %v5983, %v6151
  %v6153 = vpop.f32.mrf.mxu0
  %v6154 = vadd.f32 %v5985, %v6153
  %6155 = vmatmul.bf16.gmra.mxu0 %v4839
  %v6156 = vpop.f32.mrf.mxu0
  %v6157 = vadd.f32 %v5988, %v6156
  %v6158 = vpop.f32.mrf.mxu0
  %v6159 = vadd.f32 %v5990, %v6158
  %6160 = vmatmul.bf16.gmra.mxu0 %v4848
  %v6161 = vpop.f32.mrf.mxu0
  %v6162 = vadd.f32 %v5993, %v6161
  %v6163 = vpop.f32.mrf.mxu0
  %v6164 = vadd.f32 %v5995, %v6163
  %6165 = vmatmul.bf16.gmra.mxu0 %v4857
  %v6166 = vpop.f32.mrf.mxu0
  %v6167 = vadd.f32 %v5998, %v6166
  %v6168 = vpop.f32.mrf.mxu0
  %v6169 = vadd.f32 %v6000, %v6168
  %6170 = vmatmul.bf16.gmra.mxu0 %v4866
  %v6171 = vpop.f32.mrf.mxu0
  %v6172 = vadd.f32 %v6003, %v6171
  %v6173 = vpop.f32.mrf.mxu0
  %v6174 = vadd.f32 %v6005, %v6173
  %6175 = vmatmul.bf16.gmra.mxu0 %v4875
  %v6176 = vpop.f32.mrf.mxu0
  %v6177 = vadd.f32 %v6008, %v6176
  %v6178 = vpop.f32.mrf.mxu0
  %v6179 = vadd.f32 %v6010, %v6178
  %6180 = vmatmul.bf16.gmra.mxu0 %v4884
  %v6181 = vpop.f32.mrf.mxu0
  %v6182 = vadd.f32 %v6013, %v6181
  %v6183 = vpop.f32.mrf.mxu0
  %v6184 = vadd.f32 %v6015, %v6183
  %6185 = vmatmul.bf16.gmra.mxu0 %v4893
  %v6186 = vpop.f32.mrf.mxu0
  %v6187 = vadd.f32 %v6018, %v6186
  %v6188 = vpop.f32.mrf.mxu0
  %v6189 = vadd.f32 %v6020, %v6188
  %6190 = vmatmul.bf16.gmra.mxu0 %v4902
  %v6191 = vpop.f32.mrf.mxu0
  %v6192 = vadd.f32 %v6023, %v6191
  %v6193 = vpop.f32.mrf.mxu0
  %v6194 = vadd.f32 %v6025, %v6193
  %6195 = vmatmul.bf16.gmra.mxu0 %v4911
  %v6196 = vpop.f32.mrf.mxu0
  %v6197 = vadd.f32 %v6028, %v6196
  %v6198 = vpop.f32.mrf.mxu0
  %v6199 = vadd.f32 %v6030, %v6198
  %6200 = vmatmul.bf16.gmra.mxu0 %v4920
  %v6201 = vpop.f32.mrf.mxu0
  %v6202 = vadd.f32 %v6033, %v6201
  %v6203 = vpop.f32.mrf.mxu0
  %v6204 = vadd.f32 %v6035, %v6203
  %6205 = vmatmul.bf16.gmra.mxu0 %v4929
  %v6206 = vpop.f32.mrf.mxu0
  %v6207 = vadd.f32 %v6038, %v6206
  %v6208 = vpop.f32.mrf.mxu0
  %v6209 = vadd.f32 %v6040, %v6208
  %6210 = vmatmul.bf16.gmra.mxu0 %v4938
  %v6211 = vpop.f32.mrf.mxu0
  %v6212 = vadd.f32 %v6043, %v6211
  %v6213 = vpop.f32.mrf.mxu0
  %v6214 = vadd.f32 %v6045, %v6213
  %6215 = vmatmul.bf16.gmra.mxu0 %v4947
  %v6216 = vpop.f32.mrf.mxu0
  %v6217 = vadd.f32 %v6048, %v6216
  %v6218 = vpop.f32.mrf.mxu0
  %v6219 = vadd.f32 %v6050, %v6218
  %6220 = vmatmul.bf16.gmra.mxu0 %v4956
  %v6221 = vpop.f32.mrf.mxu0
  %v6222 = vadd.f32 %v6053, %v6221
  %v6223 = vpop.f32.mrf.mxu0
  %v6224 = vadd.f32 %v6055, %v6223
  %6225 = vmatmul.bf16.gmra.mxu0 %v4965
  %v6226 = vpop.f32.mrf.mxu0
  %v6227 = vadd.f32 %v6058, %v6226
  %v6228 = vpop.f32.mrf.mxu0
  %v6229 = vadd.f32 %v6060, %v6228
  %6230 = vmatmul.bf16.gmra.mxu0 %v4974
  %v6231 = vpop.f32.mrf.mxu0
  %v6232 = vadd.f32 %v6063, %v6231
  %v6233 = vpop.f32.mrf.mxu0
  %v6234 = vadd.f32 %v6065, %v6233
  %6235 = vmatmul.bf16.gmra.mxu0 %v4983
  %v6236 = vpop.f32.mrf.mxu0
  %v6237 = vadd.f32 %v6068, %v6236
  %v6238 = vpop.f32.mrf.mxu0
  %v6239 = vadd.f32 %v6070, %v6238
  %6240 = vmatmul.bf16.gmra.mxu0 %v4992
  %v6241 = vpop.f32.mrf.mxu0
  %v6242 = vadd.f32 %v6073, %v6241
  %v6243 = vpop.f32.mrf.mxu0
  %v6244 = vadd.f32 %v6075, %v6243
  %6245 = vmatmul.bf16.gmra.mxu0 %v5001
  %v6246 = vpop.f32.mrf.mxu0
  %v6247 = vadd.f32 %v6078, %v6246
  %v6248 = vpop.f32.mrf.mxu0
  %v6249 = vadd.f32 %v6080, %v6248
  %6250 = vmatmul.bf16.gmra.mxu0 %v5010
  %v6251 = vpop.f32.mrf.mxu0
  %v6252 = vadd.f32 %v6083, %v6251
  %v6253 = vpop.f32.mrf.mxu0
  %v6254 = vadd.f32 %v6085, %v6253
  %6255 = vmatmul.bf16.gmra.mxu0 %v5019
  %v6256 = vpop.f32.mrf.mxu0
  %v6257 = vadd.f32 %v6088, %v6256
  %v6258 = vpop.f32.mrf.mxu0
  %v6259 = vadd.f32 %v6090, %v6258
  %6260 = vmatmul.bf16.gmra.mxu0 %v5028
  %v6261 = vpop.f32.mrf.mxu0
  %v6262 = vadd.f32 %v6093, %v6261
  %v6263 = vpop.f32.mrf.mxu0
  %v6264 = vadd.f32 %v6095, %v6263
  %6265 = vmatmul.bf16.gmra.mxu0 %v5037
  %v6266 = vpop.f32.mrf.mxu0
  %v6267 = vadd.f32 %v6098, %v6266
  %v6268 = vpop.f32.mrf.mxu0
  %v6269 = vadd.f32 %v6100, %v6268
  %6270 = vdwg.mxu0
  %6271 = vmatpush.bf16.msra.mxu0 %v5651
  %6272 = vmatpush.bf16.msra.mxu0 %v5650
  %6273 = vmatpush.bf16.msra.mxu0 %v5649
  %6274 = vmatpush.bf16.msra.mxu0 %v5648
  %6275 = vmatpush.bf16.msra.mxu0 %v5647
  %6276 = vmatpush.bf16.msra.mxu0 %v5646
  %6277 = vmatpush.bf16.msra.mxu0 %v5645
  %6278 = vmatpush.bf16.msra.mxu0 %v5644
  %6279 = vmatmul.bf16.gmra.mxu0 %v4759
  %v6280 = vpop.f32.mrf.mxu0
  %v6281 = vadd.f32 %v6112, %v6280
  %v6282 = vpop.f32.mrf.mxu0
  %v6283 = vadd.f32 %v6114, %v6282
  %6284 = vmatmul.bf16.gmra.mxu0 %v4768
  %v6285 = vpop.f32.mrf.mxu0
  %v6286 = vadd.f32 %v6117, %v6285
  %v6287 = vpop.f32.mrf.mxu0
  %v6288 = vadd.f32 %v6119, %v6287
  %6289 = vmatmul.bf16.gmra.mxu0 %v4777
  %v6290 = vpop.f32.mrf.mxu0
  %v6291 = vadd.f32 %v6122, %v6290
  %v6292 = vpop.f32.mrf.mxu0
  %v6293 = vadd.f32 %v6124, %v6292
  %6294 = vmatmul.bf16.gmra.mxu0 %v4786
  %v6295 = vpop.f32.mrf.mxu0
  %v6296 = vadd.f32 %v6127, %v6295
  %v6297 = vpop.f32.mrf.mxu0
  %v6298 = vadd.f32 %v6129, %v6297
  %6299 = vmatmul.bf16.gmra.mxu0 %v4795
  %v6300 = vpop.f32.mrf.mxu0
  %v6301 = vadd.f32 %v6132, %v6300
  %v6302 = vpop.f32.mrf.mxu0
  %v6303 = vadd.f32 %v6134, %v6302
  %6304 = vmatmul.bf16.gmra.mxu0 %v4804
  %v6305 = vpop.f32.mrf.mxu0
  %v6306 = vadd.f32 %v6137, %v6305
  %v6307 = vpop.f32.mrf.mxu0
  %v6308 = vadd.f32 %v6139, %v6307
  %6309 = vmatmul.bf16.gmra.mxu0 %v4813
  %v6310 = vpop.f32.mrf.mxu0
  %v6311 = vadd.f32 %v6142, %v6310
  %v6312 = vpop.f32.mrf.mxu0
  %v6313 = vadd.f32 %v6144, %v6312
  %6314 = vmatmul.bf16.gmra.mxu0 %v4822
  %v6315 = vpop.f32.mrf.mxu0
  %v6316 = vadd.f32 %v6147, %v6315
  %v6317 = vpop.f32.mrf.mxu0
  %v6318 = vadd.f32 %v6149, %v6317
  %6319 = vmatmul.bf16.gmra.mxu0 %v4831
  %v6320 = vpop.f32.mrf.mxu0
  %v6321 = vadd.f32 %v6152, %v6320
  %v6322 = vpop.f32.mrf.mxu0
  %v6323 = vadd.f32 %v6154, %v6322
  %6324 = vmatmul.bf16.gmra.mxu0 %v4840
  %v6325 = vpop.f32.mrf.mxu0
  %v6326 = vadd.f32 %v6157, %v6325
  %v6327 = vpop.f32.mrf.mxu0
  %v6328 = vadd.f32 %v6159, %v6327
  %6329 = vmatmul.bf16.gmra.mxu0 %v4849
  %v6330 = vpop.f32.mrf.mxu0
  %v6331 = vadd.f32 %v6162, %v6330
  %v6332 = vpop.f32.mrf.mxu0
  %v6333 = vadd.f32 %v6164, %v6332
  %6334 = vmatmul.bf16.gmra.mxu0 %v4858
  %v6335 = vpop.f32.mrf.mxu0
  %v6336 = vadd.f32 %v6167, %v6335
  %v6337 = vpop.f32.mrf.mxu0
  %v6338 = vadd.f32 %v6169, %v6337
  %6339 = vmatmul.bf16.gmra.mxu0 %v4867
  %v6340 = vpop.f32.mrf.mxu0
  %v6341 = vadd.f32 %v6172, %v6340
  %v6342 = vpop.f32.mrf.mxu0
  %v6343 = vadd.f32 %v6174, %v6342
  %6344 = vmatmul.bf16.gmra.mxu0 %v4876
  %v6345 = vpop.f32.mrf.mxu0
  %v6346 = vadd.f32 %v6177, %v6345
  %v6347 = vpop.f32.mrf.mxu0
  %v6348 = vadd.f32 %v6179, %v6347
  %6349 = vmatmul.bf16.gmra.mxu0 %v4885
  %v6350 = vpop.f32.mrf.mxu0
  %v6351 = vadd.f32 %v6182, %v6350
  %v6352 = vpop.f32.mrf.mxu0
  %v6353 = vadd.f32 %v6184, %v6352
  %6354 = vmatmul.bf16.gmra.mxu0 %v4894
  %v6355 = vpop.f32.mrf.mxu0
  %v6356 = vadd.f32 %v6187, %v6355
  %v6357 = vpop.f32.mrf.mxu0
  %v6358 = vadd.f32 %v6189, %v6357
  %6359 = vmatmul.bf16.gmra.mxu0 %v4903
  %v6360 = vpop.f32.mrf.mxu0
  %v6361 = vadd.f32 %v6192, %v6360
  %v6362 = vpop.f32.mrf.mxu0
  %v6363 = vadd.f32 %v6194, %v6362
  %6364 = vmatmul.bf16.gmra.mxu0 %v4912
  %v6365 = vpop.f32.mrf.mxu0
  %v6366 = vadd.f32 %v6197, %v6365
  %v6367 = vpop.f32.mrf.mxu0
  %v6368 = vadd.f32 %v6199, %v6367
  %6369 = vmatmul.bf16.gmra.mxu0 %v4921
  %v6370 = vpop.f32.mrf.mxu0
  %v6371 = vadd.f32 %v6202, %v6370
  %v6372 = vpop.f32.mrf.mxu0
  %v6373 = vadd.f32 %v6204, %v6372
  %6374 = vmatmul.bf16.gmra.mxu0 %v4930
  %v6375 = vpop.f32.mrf.mxu0
  %v6376 = vadd.f32 %v6207, %v6375
  %v6377 = vpop.f32.mrf.mxu0
  %v6378 = vadd.f32 %v6209, %v6377
  %6379 = vmatmul.bf16.gmra.mxu0 %v4939
  %v6380 = vpop.f32.mrf.mxu0
  %v6381 = vadd.f32 %v6212, %v6380
  %v6382 = vpop.f32.mrf.mxu0
  %v6383 = vadd.f32 %v6214, %v6382
  %6384 = vmatmul.bf16.gmra.mxu0 %v4948
  %v6385 = vpop.f32.mrf.mxu0
  %v6386 = vadd.f32 %v6217, %v6385
  %v6387 = vpop.f32.mrf.mxu0
  %v6388 = vadd.f32 %v6219, %v6387
  %6389 = vmatmul.bf16.gmra.mxu0 %v4957
  %v6390 = vpop.f32.mrf.mxu0
  %v6391 = vadd.f32 %v6222, %v6390
  %v6392 = vpop.f32.mrf.mxu0
  %v6393 = vadd.f32 %v6224, %v6392
  %6394 = vmatmul.bf16.gmra.mxu0 %v4966
  %v6395 = vpop.f32.mrf.mxu0
  %v6396 = vadd.f32 %v6227, %v6395
  %v6397 = vpop.f32.mrf.mxu0
  %v6398 = vadd.f32 %v6229, %v6397
  %6399 = vmatmul.bf16.gmra.mxu0 %v4975
  %v6400 = vpop.f32.mrf.mxu0
  %v6401 = vadd.f32 %v6232, %v6400
  %v6402 = vpop.f32.mrf.mxu0
  %v6403 = vadd.f32 %v6234, %v6402
  %6404 = vmatmul.bf16.gmra.mxu0 %v4984
  %v6405 = vpop.f32.mrf.mxu0
  %v6406 = vadd.f32 %v6237, %v6405
  %v6407 = vpop.f32.mrf.mxu0
  %v6408 = vadd.f32 %v6239, %v6407
  %6409 = vmatmul.bf16.gmra.mxu0 %v4993
  %v6410 = vpop.f32.mrf.mxu0
  %v6411 = vadd.f32 %v6242, %v6410
  %v6412 = vpop.f32.mrf.mxu0
  %v6413 = vadd.f32 %v6244, %v6412
  %6414 = vmatmul.bf16.gmra.mxu0 %v5002
  %v6415 = vpop.f32.mrf.mxu0
  %v6416 = vadd.f32 %v6247, %v6415
  %v6417 = vpop.f32.mrf.mxu0
  %v6418 = vadd.f32 %v6249, %v6417
  %6419 = vmatmul.bf16.gmra.mxu0 %v5011
  %v6420 = vpop.f32.mrf.mxu0
  %v6421 = vadd.f32 %v6252, %v6420
  %v6422 = vpop.f32.mrf.mxu0
  %v6423 = vadd.f32 %v6254, %v6422
  %6424 = vmatmul.bf16.gmra.mxu0 %v5020
  %v6425 = vpop.f32.mrf.mxu0
  %v6426 = vadd.f32 %v6257, %v6425
  %v6427 = vpop.f32.mrf.mxu0
  %v6428 = vadd.f32 %v6259, %v6427
  %6429 = vmatmul.bf16.gmra.mxu0 %v5029
  %v6430 = vpop.f32.mrf.mxu0
  %v6431 = vadd.f32 %v6262, %v6430
  %v6432 = vpop.f32.mrf.mxu0
  %v6433 = vadd.f32 %v6264, %v6432
  %6434 = vmatmul.bf16.gmra.mxu0 %v5038
  %v6435 = vpop.f32.mrf.mxu0
  %v6436 = vadd.f32 %v6267, %v6435
  %v6437 = vpop.f32.mrf.mxu0
  %v6438 = vadd.f32 %v6269, %v6437
  %6439 = vdwg.mxu0
  %6440 = vmatpush.bf16.msra.mxu0 %v5659
  %6441 = vmatpush.bf16.msra.mxu0 %v5658
  %6442 = vmatpush.bf16.msra.mxu0 %v5657
  %6443 = vmatpush.bf16.msra.mxu0 %v5656
  %6444 = vmatpush.bf16.msra.mxu0 %v5655
  %6445 = vmatpush.bf16.msra.mxu0 %v5654
  %6446 = vmatpush.bf16.msra.mxu0 %v5653
  %6447 = vmatpush.bf16.msra.mxu0 %v5652
  %6448 = vmatmul.bf16.gmra.mxu0 %v4760
  %v6449 = vpop.f32.mrf.mxu0
  %v6450 = vadd.f32 %v6281, %v6449
  %v6451 = vpop.f32.mrf.mxu0
  %v6452 = vadd.f32 %v6283, %v6451
  %6453 = vmatmul.bf16.gmra.mxu0 %v4769
  %v6454 = vpop.f32.mrf.mxu0
  %v6455 = vadd.f32 %v6286, %v6454
  %v6456 = vpop.f32.mrf.mxu0
  %v6457 = vadd.f32 %v6288, %v6456
  %6458 = vmatmul.bf16.gmra.mxu0 %v4778
  %v6459 = vpop.f32.mrf.mxu0
  %v6460 = vadd.f32 %v6291, %v6459
  %v6461 = vpop.f32.mrf.mxu0
  %v6462 = vadd.f32 %v6293, %v6461
  %6463 = vmatmul.bf16.gmra.mxu0 %v4787
  %v6464 = vpop.f32.mrf.mxu0
  %v6465 = vadd.f32 %v6296, %v6464
  %v6466 = vpop.f32.mrf.mxu0
  %v6467 = vadd.f32 %v6298, %v6466
  %6468 = vmatmul.bf16.gmra.mxu0 %v4796
  %v6469 = vpop.f32.mrf.mxu0
  %v6470 = vadd.f32 %v6301, %v6469
  %v6471 = vpop.f32.mrf.mxu0
  %v6472 = vadd.f32 %v6303, %v6471
  %6473 = vmatmul.bf16.gmra.mxu0 %v4805
  %v6474 = vpop.f32.mrf.mxu0
  %v6475 = vadd.f32 %v6306, %v6474
  %v6476 = vpop.f32.mrf.mxu0
  %v6477 = vadd.f32 %v6308, %v6476
  %6478 = vmatmul.bf16.gmra.mxu0 %v4814
  %v6479 = vpop.f32.mrf.mxu0
  %v6480 = vadd.f32 %v6311, %v6479
  %v6481 = vpop.f32.mrf.mxu0
  %v6482 = vadd.f32 %v6313, %v6481
  %6483 = vmatmul.bf16.gmra.mxu0 %v4823
  %v6484 = vpop.f32.mrf.mxu0
  %v6485 = vadd.f32 %v6316, %v6484
  %v6486 = vpop.f32.mrf.mxu0
  %v6487 = vadd.f32 %v6318, %v6486
  %6488 = vmatmul.bf16.gmra.mxu0 %v4832
  %v6489 = vpop.f32.mrf.mxu0
  %v6490 = vadd.f32 %v6321, %v6489
  %v6491 = vpop.f32.mrf.mxu0
  %v6492 = vadd.f32 %v6323, %v6491
  %6493 = vmatmul.bf16.gmra.mxu0 %v4841
  %v6494 = vpop.f32.mrf.mxu0
  %v6495 = vadd.f32 %v6326, %v6494
  %v6496 = vpop.f32.mrf.mxu0
  %v6497 = vadd.f32 %v6328, %v6496
  %6498 = vmatmul.bf16.gmra.mxu0 %v4850
  %v6499 = vpop.f32.mrf.mxu0
  %v6500 = vadd.f32 %v6331, %v6499
  %v6501 = vpop.f32.mrf.mxu0
  %v6502 = vadd.f32 %v6333, %v6501
  %6503 = vmatmul.bf16.gmra.mxu0 %v4859
  %v6504 = vpop.f32.mrf.mxu0
  %v6505 = vadd.f32 %v6336, %v6504
  %v6506 = vpop.f32.mrf.mxu0
  %v6507 = vadd.f32 %v6338, %v6506
  %6508 = vmatmul.bf16.gmra.mxu0 %v4868
  %v6509 = vpop.f32.mrf.mxu0
  %v6510 = vadd.f32 %v6341, %v6509
  %v6511 = vpop.f32.mrf.mxu0
  %v6512 = vadd.f32 %v6343, %v6511
  %6513 = vmatmul.bf16.gmra.mxu0 %v4877
  %v6514 = vpop.f32.mrf.mxu0
  %v6515 = vadd.f32 %v6346, %v6514
  %v6516 = vpop.f32.mrf.mxu0
  %v6517 = vadd.f32 %v6348, %v6516
  %6518 = vmatmul.bf16.gmra.mxu0 %v4886
  %v6519 = vpop.f32.mrf.mxu0
  %v6520 = vadd.f32 %v6351, %v6519
  %v6521 = vpop.f32.mrf.mxu0
  %v6522 = vadd.f32 %v6353, %v6521
  %6523 = vmatmul.bf16.gmra.mxu0 %v4895
  %v6524 = vpop.f32.mrf.mxu0
  %v6525 = vadd.f32 %v6356, %v6524
  %v6526 = vpop.f32.mrf.mxu0
  %v6527 = vadd.f32 %v6358, %v6526
  %6528 = vmatmul.bf16.gmra.mxu0 %v4904
  %v6529 = vpop.f32.mrf.mxu0
  %v6530 = vadd.f32 %v6361, %v6529
  %v6531 = vpop.f32.mrf.mxu0
  %v6532 = vadd.f32 %v6363, %v6531
  %6533 = vmatmul.bf16.gmra.mxu0 %v4913
  %v6534 = vpop.f32.mrf.mxu0
  %v6535 = vadd.f32 %v6366, %v6534
  %v6536 = vpop.f32.mrf.mxu0
  %v6537 = vadd.f32 %v6368, %v6536
  %6538 = vmatmul.bf16.gmra.mxu0 %v4922
  %v6539 = vpop.f32.mrf.mxu0
  %v6540 = vadd.f32 %v6371, %v6539
  %v6541 = vpop.f32.mrf.mxu0
  %v6542 = vadd.f32 %v6373, %v6541
  %6543 = vmatmul.bf16.gmra.mxu0 %v4931
  %v6544 = vpop.f32.mrf.mxu0
  %v6545 = vadd.f32 %v6376, %v6544
  %v6546 = vpop.f32.mrf.mxu0
  %v6547 = vadd.f32 %v6378, %v6546
  %6548 = vmatmul.bf16.gmra.mxu0 %v4940
  %v6549 = vpop.f32.mrf.mxu0
  %v6550 = vadd.f32 %v6381, %v6549
  %v6551 = vpop.f32.mrf.mxu0
  %v6552 = vadd.f32 %v6383, %v6551
  %6553 = vmatmul.bf16.gmra.mxu0 %v4949
  %v6554 = vpop.f32.mrf.mxu0
  %v6555 = vadd.f32 %v6386, %v6554
  %v6556 = vpop.f32.mrf.mxu0
  %v6557 = vadd.f32 %v6388, %v6556
  %6558 = vmatmul.bf16.gmra.mxu0 %v4958
  %v6559 = vpop.f32.mrf.mxu0
  %v6560 = vadd.f32 %v6391, %v6559
  %v6561 = vpop.f32.mrf.mxu0
  %v6562 = vadd.f32 %v6393, %v6561
  %6563 = vmatmul.bf16.gmra.mxu0 %v4967
  %v6564 = vpop.f32.mrf.mxu0
  %v6565 = vadd.f32 %v6396, %v6564
  %v6566 = vpop.f32.mrf.mxu0
  %v6567 = vadd.f32 %v6398, %v6566
  %6568 = vmatmul.bf16.gmra.mxu0 %v4976
  %v6569 = vpop.f32.mrf.mxu0
  %v6570 = vadd.f32 %v6401, %v6569
  %v6571 = vpop.f32.mrf.mxu0
  %v6572 = vadd.f32 %v6403, %v6571
  %6573 = vmatmul.bf16.gmra.mxu0 %v4985
  %v6574 = vpop.f32.mrf.mxu0
  %v6575 = vadd.f32 %v6406, %v6574
  %v6576 = vpop.f32.mrf.mxu0
  %v6577 = vadd.f32 %v6408, %v6576
  %6578 = vmatmul.bf16.gmra.mxu0 %v4994
  %v6579 = vpop.f32.mrf.mxu0
  %v6580 = vadd.f32 %v6411, %v6579
  %v6581 = vpop.f32.mrf.mxu0
  %v6582 = vadd.f32 %v6413, %v6581
  %6583 = vmatmul.bf16.gmra.mxu0 %v5003
  %v6584 = vpop.f32.mrf.mxu0
  %v6585 = vadd.f32 %v6416, %v6584
  %v6586 = vpop.f32.mrf.mxu0
  %v6587 = vadd.f32 %v6418, %v6586
  %6588 = vmatmul.bf16.gmra.mxu0 %v5012
  %v6589 = vpop.f32.mrf.mxu0
  %v6590 = vadd.f32 %v6421, %v6589
  %v6591 = vpop.f32.mrf.mxu0
  %v6592 = vadd.f32 %v6423, %v6591
  %6593 = vmatmul.bf16.gmra.mxu0 %v5021
  %v6594 = vpop.f32.mrf.mxu0
  %v6595 = vadd.f32 %v6426, %v6594
  %v6596 = vpop.f32.mrf.mxu0
  %v6597 = vadd.f32 %v6428, %v6596
  %6598 = vmatmul.bf16.gmra.mxu0 %v5030
  %v6599 = vpop.f32.mrf.mxu0
  %v6600 = vadd.f32 %v6431, %v6599
  %v6601 = vpop.f32.mrf.mxu0
  %v6602 = vadd.f32 %v6433, %v6601
  %6603 = vmatmul.bf16.gmra.mxu0 %v5039
  %v6604 = vpop.f32.mrf.mxu0
  %v6605 = vadd.f32 %v6436, %v6604
  %v6606 = vpop.f32.mrf.mxu0
  %v6607 = vadd.f32 %v6438, %v6606
  %6608 = vdwg.mxu0
  %6609 = vmatpush.bf16.msra.mxu0 %v5667
  %6610 = vmatpush.bf16.msra.mxu0 %v5666
  %6611 = vmatpush.bf16.msra.mxu0 %v5665
  %6612 = vmatpush.bf16.msra.mxu0 %v5664
  %6613 = vmatpush.bf16.msra.mxu0 %v5663
  %6614 = vmatpush.bf16.msra.mxu0 %v5662
  %6615 = vmatpush.bf16.msra.mxu0 %v5661
  %6616 = vmatpush.bf16.msra.mxu0 %v5660
  %6617 = vmatmul.bf16.gmra.mxu0 %v4761
  %v6618 = vpop.f32.mrf.mxu0
  %v6619 = vadd.f32 %v6450, %v6618
  %v6620 = vpop.f32.mrf.mxu0
  %v6621 = vadd.f32 %v6452, %v6620
  %6622 = vmatmul.bf16.gmra.mxu0 %v4770
  %v6623 = vpop.f32.mrf.mxu0
  %v6624 = vadd.f32 %v6455, %v6623
  %v6625 = vpop.f32.mrf.mxu0
  %v6626 = vadd.f32 %v6457, %v6625
  %6627 = vmatmul.bf16.gmra.mxu0 %v4779
  %v6628 = vpop.f32.mrf.mxu0
  %v6629 = vadd.f32 %v6460, %v6628
  %v6630 = vpop.f32.mrf.mxu0
  %v6631 = vadd.f32 %v6462, %v6630
  %6632 = vmatmul.bf16.gmra.mxu0 %v4788
  %v6633 = vpop.f32.mrf.mxu0
  %v6634 = vadd.f32 %v6465, %v6633
  %v6635 = vpop.f32.mrf.mxu0
  %v6636 = vadd.f32 %v6467, %v6635
  %6637 = vmatmul.bf16.gmra.mxu0 %v4797
  %v6638 = vpop.f32.mrf.mxu0
  %v6639 = vadd.f32 %v6470, %v6638
  %v6640 = vpop.f32.mrf.mxu0
  %v6641 = vadd.f32 %v6472, %v6640
  %6642 = vmatmul.bf16.gmra.mxu0 %v4806
  %v6643 = vpop.f32.mrf.mxu0
  %v6644 = vadd.f32 %v6475, %v6643
  %v6645 = vpop.f32.mrf.mxu0
  %v6646 = vadd.f32 %v6477, %v6645
  %6647 = vmatmul.bf16.gmra.mxu0 %v4815
  %v6648 = vpop.f32.mrf.mxu0
  %v6649 = vadd.f32 %v6480, %v6648
  %v6650 = vpop.f32.mrf.mxu0
  %v6651 = vadd.f32 %v6482, %v6650
  %6652 = vmatmul.bf16.gmra.mxu0 %v4824
  %v6653 = vpop.f32.mrf.mxu0
  %v6654 = vadd.f32 %v6485, %v6653
  %v6655 = vpop.f32.mrf.mxu0
  %v6656 = vadd.f32 %v6487, %v6655
  %6657 = vmatmul.bf16.gmra.mxu0 %v4833
  %v6658 = vpop.f32.mrf.mxu0
  %v6659 = vadd.f32 %v6490, %v6658
  %v6660 = vpop.f32.mrf.mxu0
  %v6661 = vadd.f32 %v6492, %v6660
  %6662 = vmatmul.bf16.gmra.mxu0 %v4842
  %v6663 = vpop.f32.mrf.mxu0
  %v6664 = vadd.f32 %v6495, %v6663
  %v6665 = vpop.f32.mrf.mxu0
  %v6666 = vadd.f32 %v6497, %v6665
  %6667 = vmatmul.bf16.gmra.mxu0 %v4851
  %v6668 = vpop.f32.mrf.mxu0
  %v6669 = vadd.f32 %v6500, %v6668
  %v6670 = vpop.f32.mrf.mxu0
  %v6671 = vadd.f32 %v6502, %v6670
  %6672 = vmatmul.bf16.gmra.mxu0 %v4860
  %v6673 = vpop.f32.mrf.mxu0
  %v6674 = vadd.f32 %v6505, %v6673
  %v6675 = vpop.f32.mrf.mxu0
  %v6676 = vadd.f32 %v6507, %v6675
  %6677 = vmatmul.bf16.gmra.mxu0 %v4869
  %v6678 = vpop.f32.mrf.mxu0
  %v6679 = vadd.f32 %v6510, %v6678
  %v6680 = vpop.f32.mrf.mxu0
  %v6681 = vadd.f32 %v6512, %v6680
  %6682 = vmatmul.bf16.gmra.mxu0 %v4878
  %v6683 = vpop.f32.mrf.mxu0
  %v6684 = vadd.f32 %v6515, %v6683
  %v6685 = vpop.f32.mrf.mxu0
  %v6686 = vadd.f32 %v6517, %v6685
  %6687 = vmatmul.bf16.gmra.mxu0 %v4887
  %v6688 = vpop.f32.mrf.mxu0
  %v6689 = vadd.f32 %v6520, %v6688
  %v6690 = vpop.f32.mrf.mxu0
  %v6691 = vadd.f32 %v6522, %v6690
  %6692 = vmatmul.bf16.gmra.mxu0 %v4896
  %v6693 = vpop.f32.mrf.mxu0
  %v6694 = vadd.f32 %v6525, %v6693
  %v6695 = vpop.f32.mrf.mxu0
  %v6696 = vadd.f32 %v6527, %v6695
  %6697 = vmatmul.bf16.gmra.mxu0 %v4905
  %v6698 = vpop.f32.mrf.mxu0
  %v6699 = vadd.f32 %v6530, %v6698
  %v6700 = vpop.f32.mrf.mxu0
  %v6701 = vadd.f32 %v6532, %v6700
  %6702 = vmatmul.bf16.gmra.mxu0 %v4914
  %v6703 = vpop.f32.mrf.mxu0
  %v6704 = vadd.f32 %v6535, %v6703
  %v6705 = vpop.f32.mrf.mxu0
  %v6706 = vadd.f32 %v6537, %v6705
  %6707 = vmatmul.bf16.gmra.mxu0 %v4923
  %v6708 = vpop.f32.mrf.mxu0
  %v6709 = vadd.f32 %v6540, %v6708
  %v6710 = vpop.f32.mrf.mxu0
  %v6711 = vadd.f32 %v6542, %v6710
  %6712 = vmatmul.bf16.gmra.mxu0 %v4932
  %v6713 = vpop.f32.mrf.mxu0
  %v6714 = vadd.f32 %v6545, %v6713
  %v6715 = vpop.f32.mrf.mxu0
  %v6716 = vadd.f32 %v6547, %v6715
  %6717 = vmatmul.bf16.gmra.mxu0 %v4941
  %v6718 = vpop.f32.mrf.mxu0
  %v6719 = vadd.f32 %v6550, %v6718
  %v6720 = vpop.f32.mrf.mxu0
  %v6721 = vadd.f32 %v6552, %v6720
  %6722 = vmatmul.bf16.gmra.mxu0 %v4950
  %v6723 = vpop.f32.mrf.mxu0
  %v6724 = vadd.f32 %v6555, %v6723
  %v6725 = vpop.f32.mrf.mxu0
  %v6726 = vadd.f32 %v6557, %v6725
  %6727 = vmatmul.bf16.gmra.mxu0 %v4959
  %v6728 = vpop.f32.mrf.mxu0
  %v6729 = vadd.f32 %v6560, %v6728
  %v6730 = vpop.f32.mrf.mxu0
  %v6731 = vadd.f32 %v6562, %v6730
  %6732 = vmatmul.bf16.gmra.mxu0 %v4968
  %v6733 = vpop.f32.mrf.mxu0
  %v6734 = vadd.f32 %v6565, %v6733
  %v6735 = vpop.f32.mrf.mxu0
  %v6736 = vadd.f32 %v6567, %v6735
  %6737 = vmatmul.bf16.gmra.mxu0 %v4977
  %v6738 = vpop.f32.mrf.mxu0
  %v6739 = vadd.f32 %v6570, %v6738
  %v6740 = vpop.f32.mrf.mxu0
  %v6741 = vadd.f32 %v6572, %v6740
  %6742 = vmatmul.bf16.gmra.mxu0 %v4986
  %v6743 = vpop.f32.mrf.mxu0
  %v6744 = vadd.f32 %v6575, %v6743
  %v6745 = vpop.f32.mrf.mxu0
  %v6746 = vadd.f32 %v6577, %v6745
  %6747 = vmatmul.bf16.gmra.mxu0 %v4995
  %v6748 = vpop.f32.mrf.mxu0
  %v6749 = vadd.f32 %v6580, %v6748
  %v6750 = vpop.f32.mrf.mxu0
  %v6751 = vadd.f32 %v6582, %v6750
  %6752 = vmatmul.bf16.gmra.mxu0 %v5004
  %v6753 = vpop.f32.mrf.mxu0
  %v6754 = vadd.f32 %v6585, %v6753
  %v6755 = vpop.f32.mrf.mxu0
  %v6756 = vadd.f32 %v6587, %v6755
  %6757 = vmatmul.bf16.gmra.mxu0 %v5013
  %v6758 = vpop.f32.mrf.mxu0
  %v6759 = vadd.f32 %v6590, %v6758
  %v6760 = vpop.f32.mrf.mxu0
  %v6761 = vadd.f32 %v6592, %v6760
  %6762 = vmatmul.bf16.gmra.mxu0 %v5022
  %v6763 = vpop.f32.mrf.mxu0
  %v6764 = vadd.f32 %v6595, %v6763
  %v6765 = vpop.f32.mrf.mxu0
  %v6766 = vadd.f32 %v6597, %v6765
  %6767 = vmatmul.bf16.gmra.mxu0 %v5031
  %v6768 = vpop.f32.mrf.mxu0
  %v6769 = vadd.f32 %v6600, %v6768
  %v6770 = vpop.f32.mrf.mxu0
  %v6771 = vadd.f32 %v6602, %v6770
  %6772 = vmatmul.bf16.gmra.mxu0 %v5040
  %v6773 = vpop.f32.mrf.mxu0
  %v6774 = vadd.f32 %v6605, %v6773
  %v6775 = vpop.f32.mrf.mxu0
  %v6776 = vadd.f32 %v6607, %v6775
  %6777 = vdwg.mxu0
  %6778 = vmatpush.bf16.msra.mxu0 %v5675
  %6779 = vmatpush.bf16.msra.mxu0 %v5674
  %6780 = vmatpush.bf16.msra.mxu0 %v5673
  %6781 = vmatpush.bf16.msra.mxu0 %v5672
  %6782 = vmatpush.bf16.msra.mxu0 %v5671
  %6783 = vmatpush.bf16.msra.mxu0 %v5670
  %6784 = vmatpush.bf16.msra.mxu0 %v5669
  %6785 = vmatpush.bf16.msra.mxu0 %v5668
  %6786 = vmatmul.bf16.gmra.mxu0 %v4762
  %v6787 = vpop.f32.mrf.mxu0
  %v6788 = vadd.f32 %v6619, %v6787
  %v6789 = vpop.f32.mrf.mxu0
  %v6790 = vadd.f32 %v6621, %v6789
  %6791 = vmatmul.bf16.gmra.mxu0 %v4771
  %v6792 = vpop.f32.mrf.mxu0
  %v6793 = vadd.f32 %v6624, %v6792
  %v6794 = vpop.f32.mrf.mxu0
  %v6795 = vadd.f32 %v6626, %v6794
  %6796 = vmatmul.bf16.gmra.mxu0 %v4780
  %v6797 = vpop.f32.mrf.mxu0
  %v6798 = vadd.f32 %v6629, %v6797
  %v6799 = vpop.f32.mrf.mxu0
  %v6800 = vadd.f32 %v6631, %v6799
  %6801 = vmatmul.bf16.gmra.mxu0 %v4789
  %v6802 = vpop.f32.mrf.mxu0
  %v6803 = vadd.f32 %v6634, %v6802
  %v6804 = vpop.f32.mrf.mxu0
  %v6805 = vadd.f32 %v6636, %v6804
  %6806 = vmatmul.bf16.gmra.mxu0 %v4798
  %v6807 = vpop.f32.mrf.mxu0
  %v6808 = vadd.f32 %v6639, %v6807
  %v6809 = vpop.f32.mrf.mxu0
  %v6810 = vadd.f32 %v6641, %v6809
  %6811 = vmatmul.bf16.gmra.mxu0 %v4807
  %v6812 = vpop.f32.mrf.mxu0
  %v6813 = vadd.f32 %v6644, %v6812
  %v6814 = vpop.f32.mrf.mxu0
  %v6815 = vadd.f32 %v6646, %v6814
  %6816 = vmatmul.bf16.gmra.mxu0 %v4816
  %v6817 = vpop.f32.mrf.mxu0
  %v6818 = vadd.f32 %v6649, %v6817
  %v6819 = vpop.f32.mrf.mxu0
  %v6820 = vadd.f32 %v6651, %v6819
  %6821 = vmatmul.bf16.gmra.mxu0 %v4825
  %v6822 = vpop.f32.mrf.mxu0
  %v6823 = vadd.f32 %v6654, %v6822
  %v6824 = vpop.f32.mrf.mxu0
  %v6825 = vadd.f32 %v6656, %v6824
  %6826 = vmatmul.bf16.gmra.mxu0 %v4834
  %v6827 = vpop.f32.mrf.mxu0
  %v6828 = vadd.f32 %v6659, %v6827
  %v6829 = vpop.f32.mrf.mxu0
  %v6830 = vadd.f32 %v6661, %v6829
  %6831 = vmatmul.bf16.gmra.mxu0 %v4843
  %v6832 = vpop.f32.mrf.mxu0
  %v6833 = vadd.f32 %v6664, %v6832
  %v6834 = vpop.f32.mrf.mxu0
  %v6835 = vadd.f32 %v6666, %v6834
  %6836 = vmatmul.bf16.gmra.mxu0 %v4852
  %v6837 = vpop.f32.mrf.mxu0
  %v6838 = vadd.f32 %v6669, %v6837
  %v6839 = vpop.f32.mrf.mxu0
  %v6840 = vadd.f32 %v6671, %v6839
  %6841 = vmatmul.bf16.gmra.mxu0 %v4861
  %v6842 = vpop.f32.mrf.mxu0
  %v6843 = vadd.f32 %v6674, %v6842
  %v6844 = vpop.f32.mrf.mxu0
  %v6845 = vadd.f32 %v6676, %v6844
  %6846 = vmatmul.bf16.gmra.mxu0 %v4870
  %v6847 = vpop.f32.mrf.mxu0
  %v6848 = vadd.f32 %v6679, %v6847
  %v6849 = vpop.f32.mrf.mxu0
  %v6850 = vadd.f32 %v6681, %v6849
  %6851 = vmatmul.bf16.gmra.mxu0 %v4879
  %v6852 = vpop.f32.mrf.mxu0
  %v6853 = vadd.f32 %v6684, %v6852
  %v6854 = vpop.f32.mrf.mxu0
  %v6855 = vadd.f32 %v6686, %v6854
  %6856 = vmatmul.bf16.gmra.mxu0 %v4888
  %v6857 = vpop.f32.mrf.mxu0
  %v6858 = vadd.f32 %v6689, %v6857
  %v6859 = vpop.f32.mrf.mxu0
  %v6860 = vadd.f32 %v6691, %v6859
  %6861 = vmatmul.bf16.gmra.mxu0 %v4897
  %v6862 = vpop.f32.mrf.mxu0
  %v6863 = vadd.f32 %v6694, %v6862
  %v6864 = vpop.f32.mrf.mxu0
  %v6865 = vadd.f32 %v6696, %v6864
  %6866 = vmatmul.bf16.gmra.mxu0 %v4906
  %v6867 = vpop.f32.mrf.mxu0
  %v6868 = vadd.f32 %v6699, %v6867
  %v6869 = vpop.f32.mrf.mxu0
  %v6870 = vadd.f32 %v6701, %v6869
  %6871 = vmatmul.bf16.gmra.mxu0 %v4915
  %v6872 = vpop.f32.mrf.mxu0
  %v6873 = vadd.f32 %v6704, %v6872
  %v6874 = vpop.f32.mrf.mxu0
  %v6875 = vadd.f32 %v6706, %v6874
  %6876 = vmatmul.bf16.gmra.mxu0 %v4924
  %v6877 = vpop.f32.mrf.mxu0
  %v6878 = vadd.f32 %v6709, %v6877
  %v6879 = vpop.f32.mrf.mxu0
  %v6880 = vadd.f32 %v6711, %v6879
  %6881 = vmatmul.bf16.gmra.mxu0 %v4933
  %v6882 = vpop.f32.mrf.mxu0
  %v6883 = vadd.f32 %v6714, %v6882
  %v6884 = vpop.f32.mrf.mxu0
  %v6885 = vadd.f32 %v6716, %v6884
  %6886 = vmatmul.bf16.gmra.mxu0 %v4942
  %v6887 = vpop.f32.mrf.mxu0
  %v6888 = vadd.f32 %v6719, %v6887
  %v6889 = vpop.f32.mrf.mxu0
  %v6890 = vadd.f32 %v6721, %v6889
  %6891 = vmatmul.bf16.gmra.mxu0 %v4951
  %v6892 = vpop.f32.mrf.mxu0
  %v6893 = vadd.f32 %v6724, %v6892
  %v6894 = vpop.f32.mrf.mxu0
  %v6895 = vadd.f32 %v6726, %v6894
  %6896 = vmatmul.bf16.gmra.mxu0 %v4960
  %v6897 = vpop.f32.mrf.mxu0
  %v6898 = vadd.f32 %v6729, %v6897
  %v6899 = vpop.f32.mrf.mxu0
  %v6900 = vadd.f32 %v6731, %v6899
  %6901 = vmatmul.bf16.gmra.mxu0 %v4969
  %v6902 = vpop.f32.mrf.mxu0
  %v6903 = vadd.f32 %v6734, %v6902
  %v6904 = vpop.f32.mrf.mxu0
  %v6905 = vadd.f32 %v6736, %v6904
  %6906 = vmatmul.bf16.gmra.mxu0 %v4978
  %v6907 = vpop.f32.mrf.mxu0
  %v6908 = vadd.f32 %v6739, %v6907
  %v6909 = vpop.f32.mrf.mxu0
  %v6910 = vadd.f32 %v6741, %v6909
  %6911 = vmatmul.bf16.gmra.mxu0 %v4987
  %v6912 = vpop.f32.mrf.mxu0
  %v6913 = vadd.f32 %v6744, %v6912
  %v6914 = vpop.f32.mrf.mxu0
  %v6915 = vadd.f32 %v6746, %v6914
  %6916 = vmatmul.bf16.gmra.mxu0 %v4996
  %v6917 = vpop.f32.mrf.mxu0
  %v6918 = vadd.f32 %v6749, %v6917
  %v6919 = vpop.f32.mrf.mxu0
  %v6920 = vadd.f32 %v6751, %v6919
  %6921 = vmatmul.bf16.gmra.mxu0 %v5005
  %v6922 = vpop.f32.mrf.mxu0
  %v6923 = vadd.f32 %v6754, %v6922
  %v6924 = vpop.f32.mrf.mxu0
  %v6925 = vadd.f32 %v6756, %v6924
  %6926 = vmatmul.bf16.gmra.mxu0 %v5014
  %v6927 = vpop.f32.mrf.mxu0
  %v6928 = vadd.f32 %v6759, %v6927
  %v6929 = vpop.f32.mrf.mxu0
  %v6930 = vadd.f32 %v6761, %v6929
  %6931 = vmatmul.bf16.gmra.mxu0 %v5023
  %v6932 = vpop.f32.mrf.mxu0
  %v6933 = vadd.f32 %v6764, %v6932
  %v6934 = vpop.f32.mrf.mxu0
  %v6935 = vadd.f32 %v6766, %v6934
  %6936 = vmatmul.bf16.gmra.mxu0 %v5032
  %v6937 = vpop.f32.mrf.mxu0
  %v6938 = vadd.f32 %v6769, %v6937
  %v6939 = vpop.f32.mrf.mxu0
  %v6940 = vadd.f32 %v6771, %v6939
  %6941 = vmatmul.bf16.gmra.mxu0 %v5041
  %v6942 = vpop.f32.mrf.mxu0
  %v6943 = vadd.f32 %v6774, %v6942
  %v6944 = vpop.f32.mrf.mxu0
  %v6945 = vadd.f32 %v6776, %v6944
  %6946 = vdwg.mxu0
  %6947 = vmatpush.bf16.msra.mxu0 %v5683
  %6948 = vmatpush.bf16.msra.mxu0 %v5682
  %6949 = vmatpush.bf16.msra.mxu0 %v5681
  %6950 = vmatpush.bf16.msra.mxu0 %v5680
  %6951 = vmatpush.bf16.msra.mxu0 %v5679
  %6952 = vmatpush.bf16.msra.mxu0 %v5678
  %6953 = vmatpush.bf16.msra.mxu0 %v5677
  %6954 = vmatpush.bf16.msra.mxu0 %v5676
  %6955 = vmatmul.bf16.gmra.mxu0 %v4763
  %v6956 = vpop.f32.mrf.mxu0
  %v6957 = vadd.f32 %v6788, %v6956
  %v6958 = vpop.f32.mrf.mxu0
  %v6959 = vadd.f32 %v6790, %v6958
  %6960 = vmatmul.bf16.gmra.mxu0 %v4772
  %v6961 = vpop.f32.mrf.mxu0
  %v6962 = vadd.f32 %v6793, %v6961
  %v6963 = vpop.f32.mrf.mxu0
  %v6964 = vadd.f32 %v6795, %v6963
  %6965 = vmatmul.bf16.gmra.mxu0 %v4781
  %v6966 = vpop.f32.mrf.mxu0
  %v6967 = vadd.f32 %v6798, %v6966
  %v6968 = vpop.f32.mrf.mxu0
  %v6969 = vadd.f32 %v6800, %v6968
  %6970 = vmatmul.bf16.gmra.mxu0 %v4790
  %v6971 = vpop.f32.mrf.mxu0
  %v6972 = vadd.f32 %v6803, %v6971
  %v6973 = vpop.f32.mrf.mxu0
  %v6974 = vadd.f32 %v6805, %v6973
  %6975 = vmatmul.bf16.gmra.mxu0 %v4799
  %v6976 = vpop.f32.mrf.mxu0
  %v6977 = vadd.f32 %v6808, %v6976
  %v6978 = vpop.f32.mrf.mxu0
  %v6979 = vadd.f32 %v6810, %v6978
  %6980 = vmatmul.bf16.gmra.mxu0 %v4808
  %v6981 = vpop.f32.mrf.mxu0
  %v6982 = vadd.f32 %v6813, %v6981
  %v6983 = vpop.f32.mrf.mxu0
  %v6984 = vadd.f32 %v6815, %v6983
  %6985 = vmatmul.bf16.gmra.mxu0 %v4817
  %v6986 = vpop.f32.mrf.mxu0
  %v6987 = vadd.f32 %v6818, %v6986
  %v6988 = vpop.f32.mrf.mxu0
  %v6989 = vadd.f32 %v6820, %v6988
  %6990 = vmatmul.bf16.gmra.mxu0 %v4826
  %v6991 = vpop.f32.mrf.mxu0
  %v6992 = vadd.f32 %v6823, %v6991
  %v6993 = vpop.f32.mrf.mxu0
  %v6994 = vadd.f32 %v6825, %v6993
  %6995 = vmatmul.bf16.gmra.mxu0 %v4835
  %v6996 = vpop.f32.mrf.mxu0
  %v6997 = vadd.f32 %v6828, %v6996
  %v6998 = vpop.f32.mrf.mxu0
  %v6999 = vadd.f32 %v6830, %v6998
  %7000 = vmatmul.bf16.gmra.mxu0 %v4844
  %v7001 = vpop.f32.mrf.mxu0
  %v7002 = vadd.f32 %v6833, %v7001
  %v7003 = vpop.f32.mrf.mxu0
  %v7004 = vadd.f32 %v6835, %v7003
  %7005 = vmatmul.bf16.gmra.mxu0 %v4853
  %v7006 = vpop.f32.mrf.mxu0
  %v7007 = vadd.f32 %v6838, %v7006
  %v7008 = vpop.f32.mrf.mxu0
  %v7009 = vadd.f32 %v6840, %v7008
  %7010 = vmatmul.bf16.gmra.mxu0 %v4862
  %v7011 = vpop.f32.mrf.mxu0
  %v7012 = vadd.f32 %v6843, %v7011
  %v7013 = vpop.f32.mrf.mxu0
  %v7014 = vadd.f32 %v6845, %v7013
  %7015 = vmatmul.bf16.gmra.mxu0 %v4871
  %v7016 = vpop.f32.mrf.mxu0
  %v7017 = vadd.f32 %v6848, %v7016
  %v7018 = vpop.f32.mrf.mxu0
  %v7019 = vadd.f32 %v6850, %v7018
  %7020 = vmatmul.bf16.gmra.mxu0 %v4880
  %v7021 = vpop.f32.mrf.mxu0
  %v7022 = vadd.f32 %v6853, %v7021
  %v7023 = vpop.f32.mrf.mxu0
  %v7024 = vadd.f32 %v6855, %v7023
  %7025 = vmatmul.bf16.gmra.mxu0 %v4889
  %v7026 = vpop.f32.mrf.mxu0
  %v7027 = vadd.f32 %v6858, %v7026
  %v7028 = vpop.f32.mrf.mxu0
  %v7029 = vadd.f32 %v6860, %v7028
  %7030 = vmatmul.bf16.gmra.mxu0 %v4898
  %v7031 = vpop.f32.mrf.mxu0
  %v7032 = vadd.f32 %v6863, %v7031
  %v7033 = vpop.f32.mrf.mxu0
  %v7034 = vadd.f32 %v6865, %v7033
  %7035 = vmatmul.bf16.gmra.mxu0 %v4907
  %v7036 = vpop.f32.mrf.mxu0
  %v7037 = vadd.f32 %v6868, %v7036
  %v7038 = vpop.f32.mrf.mxu0
  %v7039 = vadd.f32 %v6870, %v7038
  %7040 = vmatmul.bf16.gmra.mxu0 %v4916
  %v7041 = vpop.f32.mrf.mxu0
  %v7042 = vadd.f32 %v6873, %v7041
  %v7043 = vpop.f32.mrf.mxu0
  %v7044 = vadd.f32 %v6875, %v7043
  %7045 = vmatmul.bf16.gmra.mxu0 %v4925
  %v7046 = vpop.f32.mrf.mxu0
  %v7047 = vadd.f32 %v6878, %v7046
  %v7048 = vpop.f32.mrf.mxu0
  %v7049 = vadd.f32 %v6880, %v7048
  %7050 = vmatmul.bf16.gmra.mxu0 %v4934
  %v7051 = vpop.f32.mrf.mxu0
  %v7052 = vadd.f32 %v6883, %v7051
  %v7053 = vpop.f32.mrf.mxu0
  %v7054 = vadd.f32 %v6885, %v7053
  %7055 = vmatmul.bf16.gmra.mxu0 %v4943
  %v7056 = vpop.f32.mrf.mxu0
  %v7057 = vadd.f32 %v6888, %v7056
  %v7058 = vpop.f32.mrf.mxu0
  %v7059 = vadd.f32 %v6890, %v7058
  %7060 = vmatmul.bf16.gmra.mxu0 %v4952
  %v7061 = vpop.f32.mrf.mxu0
  %v7062 = vadd.f32 %v6893, %v7061
  %v7063 = vpop.f32.mrf.mxu0
  %v7064 = vadd.f32 %v6895, %v7063
  %7065 = vmatmul.bf16.gmra.mxu0 %v4961
  %v7066 = vpop.f32.mrf.mxu0
  %v7067 = vadd.f32 %v6898, %v7066
  %v7068 = vpop.f32.mrf.mxu0
  %v7069 = vadd.f32 %v6900, %v7068
  %7070 = vmatmul.bf16.gmra.mxu0 %v4970
  %v7071 = vpop.f32.mrf.mxu0
  %v7072 = vadd.f32 %v6903, %v7071
  %v7073 = vpop.f32.mrf.mxu0
  %v7074 = vadd.f32 %v6905, %v7073
  %7075 = vmatmul.bf16.gmra.mxu0 %v4979
  %v7076 = vpop.f32.mrf.mxu0
  %v7077 = vadd.f32 %v6908, %v7076
  %v7078 = vpop.f32.mrf.mxu0
  %v7079 = vadd.f32 %v6910, %v7078
  %7080 = vmatmul.bf16.gmra.mxu0 %v4988
  %v7081 = vpop.f32.mrf.mxu0
  %v7082 = vadd.f32 %v6913, %v7081
  %v7083 = vpop.f32.mrf.mxu0
  %v7084 = vadd.f32 %v6915, %v7083
  %7085 = vmatmul.bf16.gmra.mxu0 %v4997
  %v7086 = vpop.f32.mrf.mxu0
  %v7087 = vadd.f32 %v6918, %v7086
  %v7088 = vpop.f32.mrf.mxu0
  %v7089 = vadd.f32 %v6920, %v7088
  %7090 = vmatmul.bf16.gmra.mxu0 %v5006
  %v7091 = vpop.f32.mrf.mxu0
  %v7092 = vadd.f32 %v6923, %v7091
  %v7093 = vpop.f32.mrf.mxu0
  %v7094 = vadd.f32 %v6925, %v7093
  %7095 = vmatmul.bf16.gmra.mxu0 %v5015
  %v7096 = vpop.f32.mrf.mxu0
  %v7097 = vadd.f32 %v6928, %v7096
  %v7098 = vpop.f32.mrf.mxu0
  %v7099 = vadd.f32 %v6930, %v7098
  %7100 = vmatmul.bf16.gmra.mxu0 %v5024
  %v7101 = vpop.f32.mrf.mxu0
  %v7102 = vadd.f32 %v6933, %v7101
  %v7103 = vpop.f32.mrf.mxu0
  %v7104 = vadd.f32 %v6935, %v7103
  %7105 = vmatmul.bf16.gmra.mxu0 %v5033
  %v7106 = vpop.f32.mrf.mxu0
  %v7107 = vadd.f32 %v6938, %v7106
  %v7108 = vpop.f32.mrf.mxu0
  %v7109 = vadd.f32 %v6940, %v7108
  %7110 = vmatmul.bf16.gmra.mxu0 %v5042
  %v7111 = vpop.f32.mrf.mxu0
  %v7112 = vadd.f32 %v6943, %v7111
  %v7113 = vpop.f32.mrf.mxu0
  %v7114 = vadd.f32 %v6945, %v7113
  %7115 = vdwg.mxu0
  %7116 = vmatpush.bf16.msra.mxu0 %v5691
  %7117 = vmatpush.bf16.msra.mxu0 %v5690
  %7118 = vmatpush.bf16.msra.mxu0 %v5689
  %7119 = vmatpush.bf16.msra.mxu0 %v5688
  %7120 = vmatpush.bf16.msra.mxu0 %v5687
  %7121 = vmatpush.bf16.msra.mxu0 %v5686
  %7122 = vmatpush.bf16.msra.mxu0 %v5685
  %7123 = vmatpush.bf16.msra.mxu0 %v5684
  %7124 = vmatmul.bf16.gmra.mxu0 %v4764
  %v7125 = vpop.f32.mrf.mxu0
  %v7126 = vadd.f32 %v6957, %v7125
  %v7127 = vpop.f32.mrf.mxu0
  %v7128 = vadd.f32 %v6959, %v7127
  %7129 = vmatmul.bf16.gmra.mxu0 %v4773
  %v7130 = vpop.f32.mrf.mxu0
  %v7131 = vadd.f32 %v6962, %v7130
  %v7132 = vpop.f32.mrf.mxu0
  %v7133 = vadd.f32 %v6964, %v7132
  %7134 = vmatmul.bf16.gmra.mxu0 %v4782
  %v7135 = vpop.f32.mrf.mxu0
  %v7136 = vadd.f32 %v6967, %v7135
  %v7137 = vpop.f32.mrf.mxu0
  %v7138 = vadd.f32 %v6969, %v7137
  %7139 = vmatmul.bf16.gmra.mxu0 %v4791
  %v7140 = vpop.f32.mrf.mxu0
  %v7141 = vadd.f32 %v6972, %v7140
  %v7142 = vpop.f32.mrf.mxu0
  %v7143 = vadd.f32 %v6974, %v7142
  %7144 = vmatmul.bf16.gmra.mxu0 %v4800
  %v7145 = vpop.f32.mrf.mxu0
  %v7146 = vadd.f32 %v6977, %v7145
  %v7147 = vpop.f32.mrf.mxu0
  %v7148 = vadd.f32 %v6979, %v7147
  %7149 = vmatmul.bf16.gmra.mxu0 %v4809
  %v7150 = vpop.f32.mrf.mxu0
  %v7151 = vadd.f32 %v6982, %v7150
  %v7152 = vpop.f32.mrf.mxu0
  %v7153 = vadd.f32 %v6984, %v7152
  %7154 = vmatmul.bf16.gmra.mxu0 %v4818
  %v7155 = vpop.f32.mrf.mxu0
  %v7156 = vadd.f32 %v6987, %v7155
  %v7157 = vpop.f32.mrf.mxu0
  %v7158 = vadd.f32 %v6989, %v7157
  %7159 = vmatmul.bf16.gmra.mxu0 %v4827
  %v7160 = vpop.f32.mrf.mxu0
  %v7161 = vadd.f32 %v6992, %v7160
  %v7162 = vpop.f32.mrf.mxu0
  %v7163 = vadd.f32 %v6994, %v7162
  %7164 = vmatmul.bf16.gmra.mxu0 %v4836
  %v7165 = vpop.f32.mrf.mxu0
  %v7166 = vadd.f32 %v6997, %v7165
  %v7167 = vpop.f32.mrf.mxu0
  %v7168 = vadd.f32 %v6999, %v7167
  %7169 = vmatmul.bf16.gmra.mxu0 %v4845
  %v7170 = vpop.f32.mrf.mxu0
  %v7171 = vadd.f32 %v7002, %v7170
  %v7172 = vpop.f32.mrf.mxu0
  %v7173 = vadd.f32 %v7004, %v7172
  %7174 = vmatmul.bf16.gmra.mxu0 %v4854
  %v7175 = vpop.f32.mrf.mxu0
  %v7176 = vadd.f32 %v7007, %v7175
  %v7177 = vpop.f32.mrf.mxu0
  %v7178 = vadd.f32 %v7009, %v7177
  %7179 = vmatmul.bf16.gmra.mxu0 %v4863
  %v7180 = vpop.f32.mrf.mxu0
  %v7181 = vadd.f32 %v7012, %v7180
  %v7182 = vpop.f32.mrf.mxu0
  %v7183 = vadd.f32 %v7014, %v7182
  %7184 = vmatmul.bf16.gmra.mxu0 %v4872
  %v7185 = vpop.f32.mrf.mxu0
  %v7186 = vadd.f32 %v7017, %v7185
  %v7187 = vpop.f32.mrf.mxu0
  %v7188 = vadd.f32 %v7019, %v7187
  %7189 = vmatmul.bf16.gmra.mxu0 %v4881
  %v7190 = vpop.f32.mrf.mxu0
  %v7191 = vadd.f32 %v7022, %v7190
  %v7192 = vpop.f32.mrf.mxu0
  %v7193 = vadd.f32 %v7024, %v7192
  %7194 = vmatmul.bf16.gmra.mxu0 %v4890
  %v7195 = vpop.f32.mrf.mxu0
  %v7196 = vadd.f32 %v7027, %v7195
  %v7197 = vpop.f32.mrf.mxu0
  %v7198 = vadd.f32 %v7029, %v7197
  %7199 = vmatmul.bf16.gmra.mxu0 %v4899
  %v7200 = vpop.f32.mrf.mxu0
  %v7201 = vadd.f32 %v7032, %v7200
  %v7202 = vpop.f32.mrf.mxu0
  %v7203 = vadd.f32 %v7034, %v7202
  %7204 = vmatmul.bf16.gmra.mxu0 %v4908
  %v7205 = vpop.f32.mrf.mxu0
  %v7206 = vadd.f32 %v7037, %v7205
  %v7207 = vpop.f32.mrf.mxu0
  %v7208 = vadd.f32 %v7039, %v7207
  %7209 = vmatmul.bf16.gmra.mxu0 %v4917
  %v7210 = vpop.f32.mrf.mxu0
  %v7211 = vadd.f32 %v7042, %v7210
  %v7212 = vpop.f32.mrf.mxu0
  %v7213 = vadd.f32 %v7044, %v7212
  %7214 = vmatmul.bf16.gmra.mxu0 %v4926
  %v7215 = vpop.f32.mrf.mxu0
  %v7216 = vadd.f32 %v7047, %v7215
  %v7217 = vpop.f32.mrf.mxu0
  %v7218 = vadd.f32 %v7049, %v7217
  %7219 = vmatmul.bf16.gmra.mxu0 %v4935
  %v7220 = vpop.f32.mrf.mxu0
  %v7221 = vadd.f32 %v7052, %v7220
  %v7222 = vpop.f32.mrf.mxu0
  %v7223 = vadd.f32 %v7054, %v7222
  %7224 = vmatmul.bf16.gmra.mxu0 %v4944
  %v7225 = vpop.f32.mrf.mxu0
  %v7226 = vadd.f32 %v7057, %v7225
  %v7227 = vpop.f32.mrf.mxu0
  %v7228 = vadd.f32 %v7059, %v7227
  %7229 = vmatmul.bf16.gmra.mxu0 %v4953
  %v7230 = vpop.f32.mrf.mxu0
  %v7231 = vadd.f32 %v7062, %v7230
  %v7232 = vpop.f32.mrf.mxu0
  %v7233 = vadd.f32 %v7064, %v7232
  %7234 = vmatmul.bf16.gmra.mxu0 %v4962
  %v7235 = vpop.f32.mrf.mxu0
  %v7236 = vadd.f32 %v7067, %v7235
  %v7237 = vpop.f32.mrf.mxu0
  %v7238 = vadd.f32 %v7069, %v7237
  %7239 = vmatmul.bf16.gmra.mxu0 %v4971
  %v7240 = vpop.f32.mrf.mxu0
  %v7241 = vadd.f32 %v7072, %v7240
  %v7242 = vpop.f32.mrf.mxu0
  %v7243 = vadd.f32 %v7074, %v7242
  %7244 = vmatmul.bf16.gmra.mxu0 %v4980
  %v7245 = vpop.f32.mrf.mxu0
  %v7246 = vadd.f32 %v7077, %v7245
  %v7247 = vpop.f32.mrf.mxu0
  %v7248 = vadd.f32 %v7079, %v7247
  %7249 = vmatmul.bf16.gmra.mxu0 %v4989
  %v7250 = vpop.f32.mrf.mxu0
  %v7251 = vadd.f32 %v7082, %v7250
  %v7252 = vpop.f32.mrf.mxu0
  %v7253 = vadd.f32 %v7084, %v7252
  %7254 = vmatmul.bf16.gmra.mxu0 %v4998
  %v7255 = vpop.f32.mrf.mxu0
  %v7256 = vadd.f32 %v7087, %v7255
  %v7257 = vpop.f32.mrf.mxu0
  %v7258 = vadd.f32 %v7089, %v7257
  %7259 = vmatmul.bf16.gmra.mxu0 %v5007
  %v7260 = vpop.f32.mrf.mxu0
  %v7261 = vadd.f32 %v7092, %v7260
  %v7262 = vpop.f32.mrf.mxu0
  %v7263 = vadd.f32 %v7094, %v7262
  %7264 = vmatmul.bf16.gmra.mxu0 %v5016
  %v7265 = vpop.f32.mrf.mxu0
  %v7266 = vadd.f32 %v7097, %v7265
  %v7267 = vpop.f32.mrf.mxu0
  %v7268 = vadd.f32 %v7099, %v7267
  %7269 = vmatmul.bf16.gmra.mxu0 %v5025
  %v7270 = vpop.f32.mrf.mxu0
  %v7271 = vadd.f32 %v7102, %v7270
  %v7272 = vpop.f32.mrf.mxu0
  %v7273 = vadd.f32 %v7104, %v7272
  %7274 = vmatmul.bf16.gmra.mxu0 %v5034
  %v7275 = vpop.f32.mrf.mxu0
  %v7276 = vadd.f32 %v7107, %v7275
  %v7277 = vpop.f32.mrf.mxu0
  %v7278 = vadd.f32 %v7109, %v7277
  %7279 = vmatmul.bf16.gmra.mxu0 %v5043
  %v7280 = vpop.f32.mrf.mxu0
  %v7281 = vadd.f32 %v7112, %v7280
  %v7282 = vpop.f32.mrf.mxu0
  %v7283 = vadd.f32 %v7114, %v7282
  %7284 = vdwg.mxu0
  %v7285 = vld [vmem:[%s7] sm:$0x1]
  %v7286 = vld [vmem:[%s8] sm:$0x1]
  %v7287 = vadd.f32 %v7126, %v7128
  %v7288 = vadd.f32 %v7287, %v7131
  %v7289 = vadd.f32 %v7288, %v7133
  %v7290 = vadd.f32 %v7289, %v7136
  %v7291 = vadd.f32 %v7290, %v7138
  %v7292 = vadd.f32 %v7291, %v7141
  %v7293 = vadd.f32 %v7292, %v7143
  %v7294 = vadd.f32 %v7293, %v7146
  %v7295 = vadd.f32 %v7294, %v7148
  %v7296 = vadd.f32 %v7295, %v7151
  %v7297 = vadd.f32 %v7296, %v7153
  %v7298 = vadd.f32 %v7297, %v7156
  %v7299 = vadd.f32 %v7298, %v7158
  %v7300 = vadd.f32 %v7299, %v7161
  %v7301 = vadd.f32 %v7300, %v7163
  %v7302 = vadd.f32 %v7301, %v7166
  %v7303 = vadd.f32 %v7302, %v7168
  %v7304 = vadd.f32 %v7303, %v7171
  %v7305 = vadd.f32 %v7304, %v7173
  %v7306 = vadd.f32 %v7305, %v7176
  %v7307 = vadd.f32 %v7306, %v7178
  %v7308 = vadd.f32 %v7307, %v7181
  %v7309 = vadd.f32 %v7308, %v7183
  %v7310 = vadd.f32 %v7309, %v7186
  %v7311 = vadd.f32 %v7310, %v7188
  %v7312 = vadd.f32 %v7311, %v7191
  %v7313 = vadd.f32 %v7312, %v7193
  %v7314 = vadd.f32 %v7313, %v7196
  %v7315 = vadd.f32 %v7314, %v7198
  %v7316 = vadd.f32 %v7315, %v7201
  %v7317 = vadd.f32 %v7316, %v7203
  %v7318 = vadd.f32 %v7317, %v7206
  %v7319 = vadd.f32 %v7318, %v7208
  %v7320 = vadd.f32 %v7319, %v7211
  %v7321 = vadd.f32 %v7320, %v7213
  %v7322 = vadd.f32 %v7321, %v7216
  %v7323 = vadd.f32 %v7322, %v7218
  %v7324 = vadd.f32 %v7323, %v7221
  %v7325 = vadd.f32 %v7324, %v7223
  %v7326 = vadd.f32 %v7325, %v7226
  %v7327 = vadd.f32 %v7326, %v7228
  %v7328 = vadd.f32 %v7327, %v7231
  %v7329 = vadd.f32 %v7328, %v7233
  %v7330 = vadd.f32 %v7329, %v7236
  %v7331 = vadd.f32 %v7330, %v7238
  %v7332 = vadd.f32 %v7331, %v7241
  %v7333 = vadd.f32 %v7332, %v7243
  %v7334 = vadd.f32 %v7333, %v7246
  %v7335 = vadd.f32 %v7334, %v7248
  %v7336 = vadd.f32 %v7335, %v7251
  %v7337 = vadd.f32 %v7336, %v7253
  %v7338 = vadd.f32 %v7337, %v7256
  %v7339 = vadd.f32 %v7338, %v7258
  %v7340 = vadd.f32 %v7339, %v7261
  %v7341 = vadd.f32 %v7340, %v7263
  %v7342 = vadd.f32 %v7341, %v7266
  %v7343 = vadd.f32 %v7342, %v7268
  %v7344 = vadd.f32 %v7343, %v7271
  %v7345 = vadd.f32 %v7344, %v7273
  %v7346 = vadd.f32 %v7345, %v7276
  %v7347 = vadd.f32 %v7346, %v7278
  %v7348 = vadd.f32 %v7347, %v7281
  %v7349 = vadd.f32 %v7348, %v7283
  %v7350 = vrot.slane %v7349, 4
  %v7351 = vadd.f32 %v7349, %v7350
  %v7352 = vrot.slane %v7351, 2
  %v7353 = vadd.f32 %v7351, %v7352
  %v7354 = vrot.slane %v7353, 1
  %v7355 = vadd.f32 %v7353, %v7354
  %v7356 = vmul.f32 %v7355, %v608
  %v7357 = vmul.f32 %v7126, %v7126
  %v7358 = vmul.f32 %v7128, %v7128
  %v7359 = vmul.f32 %v7131, %v7131
  %v7360 = vmul.f32 %v7133, %v7133
  %v7361 = vmul.f32 %v7136, %v7136
  %v7362 = vmul.f32 %v7138, %v7138
  %v7363 = vmul.f32 %v7141, %v7141
  %v7364 = vmul.f32 %v7143, %v7143
  %v7365 = vmul.f32 %v7146, %v7146
  %v7366 = vmul.f32 %v7148, %v7148
  %v7367 = vmul.f32 %v7151, %v7151
  %v7368 = vmul.f32 %v7153, %v7153
  %v7369 = vmul.f32 %v7156, %v7156
  %v7370 = vmul.f32 %v7158, %v7158
  %v7371 = vmul.f32 %v7161, %v7161
  %v7372 = vmul.f32 %v7163, %v7163
  %v7373 = vmul.f32 %v7166, %v7166
  %v7374 = vmul.f32 %v7168, %v7168
  %v7375 = vmul.f32 %v7171, %v7171
  %v7376 = vmul.f32 %v7173, %v7173
  %v7377 = vmul.f32 %v7176, %v7176
  %v7378 = vmul.f32 %v7178, %v7178
  %v7379 = vmul.f32 %v7181, %v7181
  %v7380 = vmul.f32 %v7183, %v7183
  %v7381 = vmul.f32 %v7186, %v7186
  %v7382 = vmul.f32 %v7188, %v7188
  %v7383 = vmul.f32 %v7191, %v7191
  %v7384 = vmul.f32 %v7193, %v7193
  %v7385 = vmul.f32 %v7196, %v7196
  %v7386 = vmul.f32 %v7198, %v7198
  %v7387 = vmul.f32 %v7201, %v7201
  %v7388 = vmul.f32 %v7203, %v7203
  %v7389 = vmul.f32 %v7206, %v7206
  %v7390 = vmul.f32 %v7208, %v7208
  %v7391 = vmul.f32 %v7211, %v7211
  %v7392 = vmul.f32 %v7213, %v7213
  %v7393 = vmul.f32 %v7216, %v7216
  %v7394 = vmul.f32 %v7218, %v7218
  %v7395 = vmul.f32 %v7221, %v7221
  %v7396 = vmul.f32 %v7223, %v7223
  %v7397 = vmul.f32 %v7226, %v7226
  %v7398 = vmul.f32 %v7228, %v7228
  %v7399 = vmul.f32 %v7231, %v7231
  %v7400 = vmul.f32 %v7233, %v7233
  %v7401 = vmul.f32 %v7236, %v7236
  %v7402 = vmul.f32 %v7238, %v7238
  %v7403 = vmul.f32 %v7241, %v7241
  %v7404 = vmul.f32 %v7243, %v7243
  %v7405 = vmul.f32 %v7246, %v7246
  %v7406 = vmul.f32 %v7248, %v7248
  %v7407 = vmul.f32 %v7251, %v7251
  %v7408 = vmul.f32 %v7253, %v7253
  %v7409 = vmul.f32 %v7256, %v7256
  %v7410 = vmul.f32 %v7258, %v7258
  %v7411 = vmul.f32 %v7261, %v7261
  %v7412 = vmul.f32 %v7263, %v7263
  %v7413 = vmul.f32 %v7266, %v7266
  %v7414 = vmul.f32 %v7268, %v7268
  %v7415 = vmul.f32 %v7271, %v7271
  %v7416 = vmul.f32 %v7273, %v7273
  %v7417 = vmul.f32 %v7276, %v7276
  %v7418 = vmul.f32 %v7278, %v7278
  %v7419 = vmul.f32 %v7281, %v7281
  %v7420 = vmul.f32 %v7283, %v7283
  %v7421 = vadd.f32 %v7357, %v7358
  %v7422 = vadd.f32 %v7421, %v7359
  %v7423 = vadd.f32 %v7422, %v7360
  %v7424 = vadd.f32 %v7423, %v7361
  %v7425 = vadd.f32 %v7424, %v7362
  %v7426 = vadd.f32 %v7425, %v7363
  %v7427 = vadd.f32 %v7426, %v7364
  %v7428 = vadd.f32 %v7427, %v7365
  %v7429 = vadd.f32 %v7428, %v7366
  %v7430 = vadd.f32 %v7429, %v7367
  %v7431 = vadd.f32 %v7430, %v7368
  %v7432 = vadd.f32 %v7431, %v7369
  %v7433 = vadd.f32 %v7432, %v7370
  %v7434 = vadd.f32 %v7433, %v7371
  %v7435 = vadd.f32 %v7434, %v7372
  %v7436 = vadd.f32 %v7435, %v7373
  %v7437 = vadd.f32 %v7436, %v7374
  %v7438 = vadd.f32 %v7437, %v7375
  %v7439 = vadd.f32 %v7438, %v7376
  %v7440 = vadd.f32 %v7439, %v7377
  %v7441 = vadd.f32 %v7440, %v7378
  %v7442 = vadd.f32 %v7441, %v7379
  %v7443 = vadd.f32 %v7442, %v7380
  %v7444 = vadd.f32 %v7443, %v7381
  %v7445 = vadd.f32 %v7444, %v7382
  %v7446 = vadd.f32 %v7445, %v7383
  %v7447 = vadd.f32 %v7446, %v7384
  %v7448 = vadd.f32 %v7447, %v7385
  %v7449 = vadd.f32 %v7448, %v7386
  %v7450 = vadd.f32 %v7449, %v7387
  %v7451 = vadd.f32 %v7450, %v7388
  %v7452 = vadd.f32 %v7451, %v7389
  %v7453 = vadd.f32 %v7452, %v7390
  %v7454 = vadd.f32 %v7453, %v7391
  %v7455 = vadd.f32 %v7454, %v7392
  %v7456 = vadd.f32 %v7455, %v7393
  %v7457 = vadd.f32 %v7456, %v7394
  %v7458 = vadd.f32 %v7457, %v7395
  %v7459 = vadd.f32 %v7458, %v7396
  %v7460 = vadd.f32 %v7459, %v7397
  %v7461 = vadd.f32 %v7460, %v7398
  %v7462 = vadd.f32 %v7461, %v7399
  %v7463 = vadd.f32 %v7462, %v7400
  %v7464 = vadd.f32 %v7463, %v7401
  %v7465 = vadd.f32 %v7464, %v7402
  %v7466 = vadd.f32 %v7465, %v7403
  %v7467 = vadd.f32 %v7466, %v7404
  %v7468 = vadd.f32 %v7467, %v7405
  %v7469 = vadd.f32 %v7468, %v7406
  %v7470 = vadd.f32 %v7469, %v7407
  %v7471 = vadd.f32 %v7470, %v7408
  %v7472 = vadd.f32 %v7471, %v7409
  %v7473 = vadd.f32 %v7472, %v7410
  %v7474 = vadd.f32 %v7473, %v7411
  %v7475 = vadd.f32 %v7474, %v7412
  %v7476 = vadd.f32 %v7475, %v7413
  %v7477 = vadd.f32 %v7476, %v7414
  %v7478 = vadd.f32 %v7477, %v7415
  %v7479 = vadd.f32 %v7478, %v7416
  %v7480 = vadd.f32 %v7479, %v7417
  %v7481 = vadd.f32 %v7480, %v7418
  %v7482 = vadd.f32 %v7481, %v7419
  %v7483 = vadd.f32 %v7482, %v7420
  %v7484 = vrot.slane %v7483, 4
  %v7485 = vadd.f32 %v7483, %v7484
  %v7486 = vrot.slane %v7485, 2
  %v7487 = vadd.f32 %v7485, %v7486
  %v7488 = vrot.slane %v7487, 1
  %v7489 = vadd.f32 %v7487, %v7488
  %v7490 = vmul.f32 %v7489, %v608
  %v7491 = vmul.f32 %v7356, %v7356
  %v7492 = vsub.f32 %v7490, %v7491
  %v7493 = vmax.f32 %v7492, 0.0
  %v7494 = vsub.f32 %v7126, %v7356
  %v7495 = vsub.f32 %v7128, %v7356
  %v7496 = vsub.f32 %v7131, %v7356
  %v7497 = vsub.f32 %v7133, %v7356
  %v7498 = vsub.f32 %v7136, %v7356
  %v7499 = vsub.f32 %v7138, %v7356
  %v7500 = vsub.f32 %v7141, %v7356
  %v7501 = vsub.f32 %v7143, %v7356
  %v7502 = vsub.f32 %v7146, %v7356
  %v7503 = vsub.f32 %v7148, %v7356
  %v7504 = vsub.f32 %v7151, %v7356
  %v7505 = vsub.f32 %v7153, %v7356
  %v7506 = vsub.f32 %v7156, %v7356
  %v7507 = vsub.f32 %v7158, %v7356
  %v7508 = vsub.f32 %v7161, %v7356
  %v7509 = vsub.f32 %v7163, %v7356
  %v7510 = vsub.f32 %v7166, %v7356
  %v7511 = vsub.f32 %v7168, %v7356
  %v7512 = vsub.f32 %v7171, %v7356
  %v7513 = vsub.f32 %v7173, %v7356
  %v7514 = vsub.f32 %v7176, %v7356
  %v7515 = vsub.f32 %v7178, %v7356
  %v7516 = vsub.f32 %v7181, %v7356
  %v7517 = vsub.f32 %v7183, %v7356
  %v7518 = vsub.f32 %v7186, %v7356
  %v7519 = vsub.f32 %v7188, %v7356
  %v7520 = vsub.f32 %v7191, %v7356
  %v7521 = vsub.f32 %v7193, %v7356
  %v7522 = vsub.f32 %v7196, %v7356
  %v7523 = vsub.f32 %v7198, %v7356
  %v7524 = vsub.f32 %v7201, %v7356
  %v7525 = vsub.f32 %v7203, %v7356
  %v7526 = vsub.f32 %v7206, %v7356
  %v7527 = vsub.f32 %v7208, %v7356
  %v7528 = vsub.f32 %v7211, %v7356
  %v7529 = vsub.f32 %v7213, %v7356
  %v7530 = vsub.f32 %v7216, %v7356
  %v7531 = vsub.f32 %v7218, %v7356
  %v7532 = vsub.f32 %v7221, %v7356
  %v7533 = vsub.f32 %v7223, %v7356
  %v7534 = vsub.f32 %v7226, %v7356
  %v7535 = vsub.f32 %v7228, %v7356
  %v7536 = vsub.f32 %v7231, %v7356
  %v7537 = vsub.f32 %v7233, %v7356
  %v7538 = vsub.f32 %v7236, %v7356
  %v7539 = vsub.f32 %v7238, %v7356
  %v7540 = vsub.f32 %v7241, %v7356
  %v7541 = vsub.f32 %v7243, %v7356
  %v7542 = vsub.f32 %v7246, %v7356
  %v7543 = vsub.f32 %v7248, %v7356
  %v7544 = vsub.f32 %v7251, %v7356
  %v7545 = vsub.f32 %v7253, %v7356
  %v7546 = vsub.f32 %v7256, %v7356
  %v7547 = vsub.f32 %v7258, %v7356
  %v7548 = vsub.f32 %v7261, %v7356
  %v7549 = vsub.f32 %v7263, %v7356
  %v7550 = vsub.f32 %v7266, %v7356
  %v7551 = vsub.f32 %v7268, %v7356
  %v7552 = vsub.f32 %v7271, %v7356
  %v7553 = vsub.f32 %v7273, %v7356
  %v7554 = vsub.f32 %v7276, %v7356
  %v7555 = vsub.f32 %v7278, %v7356
  %v7556 = vsub.f32 %v7281, %v7356
  %v7557 = vsub.f32 %v7283, %v7356
  %v7558 = vadd.f32 %v7493, 1e-05
  %v7559 = vrsqrt.pop %v7558
  %v7560 = vmul.f32 %v7559, %v7558
  %v7561 = vmul.f32 %v7560, %v7559
  %v7562 = vmul.f32 0.5, %v7561
  %v7563 = vsub.f32 1.5, %v7562
  %v7564 = vmul.f32 %v7559, %v7563
  %vm7565 = vweird.f32 %v7558
  %vm7566 = vweird.f32 %v7559
  %vm7567 = vmor %vm7565, %vm7566
  %v7568 = vsel %vm7567, %v7559, %v7564
  %v7569 = vmul.f32 %v7494, %v7568
  %v7570 = vmul.f32 %v7495, %v7568
  %v7571 = vmul.f32 %v7496, %v7568
  %v7572 = vmul.f32 %v7497, %v7568
  %v7573 = vmul.f32 %v7498, %v7568
  %v7574 = vmul.f32 %v7499, %v7568
  %v7575 = vmul.f32 %v7500, %v7568
  %v7576 = vmul.f32 %v7501, %v7568
  %v7577 = vmul.f32 %v7502, %v7568
  %v7578 = vmul.f32 %v7503, %v7568
  %v7579 = vmul.f32 %v7504, %v7568
  %v7580 = vmul.f32 %v7505, %v7568
  %v7581 = vmul.f32 %v7506, %v7568
  %v7582 = vmul.f32 %v7507, %v7568
  %v7583 = vmul.f32 %v7508, %v7568
  %v7584 = vmul.f32 %v7509, %v7568
  %v7585 = vmul.f32 %v7510, %v7568
  %v7586 = vmul.f32 %v7511, %v7568
  %v7587 = vmul.f32 %v7512, %v7568
  %v7588 = vmul.f32 %v7513, %v7568
  %v7589 = vmul.f32 %v7514, %v7568
  %v7590 = vmul.f32 %v7515, %v7568
  %v7591 = vmul.f32 %v7516, %v7568
  %v7592 = vmul.f32 %v7517, %v7568
  %v7593 = vmul.f32 %v7518, %v7568
  %v7594 = vmul.f32 %v7519, %v7568
  %v7595 = vmul.f32 %v7520, %v7568
  %v7596 = vmul.f32 %v7521, %v7568
  %v7597 = vmul.f32 %v7522, %v7568
  %v7598 = vmul.f32 %v7523, %v7568
  %v7599 = vmul.f32 %v7524, %v7568
  %v7600 = vmul.f32 %v7525, %v7568
  %v7601 = vmul.f32 %v7526, %v7568
  %v7602 = vmul.f32 %v7527, %v7568
  %v7603 = vmul.f32 %v7528, %v7568
  %v7604 = vmul.f32 %v7529, %v7568
  %v7605 = vmul.f32 %v7530, %v7568
  %v7606 = vmul.f32 %v7531, %v7568
  %v7607 = vmul.f32 %v7532, %v7568
  %v7608 = vmul.f32 %v7533, %v7568
  %v7609 = vmul.f32 %v7534, %v7568
  %v7610 = vmul.f32 %v7535, %v7568
  %v7611 = vmul.f32 %v7536, %v7568
  %v7612 = vmul.f32 %v7537, %v7568
  %v7613 = vmul.f32 %v7538, %v7568
  %v7614 = vmul.f32 %v7539, %v7568
  %v7615 = vmul.f32 %v7540, %v7568
  %v7616 = vmul.f32 %v7541, %v7568
  %v7617 = vmul.f32 %v7542, %v7568
  %v7618 = vmul.f32 %v7543, %v7568
  %v7619 = vmul.f32 %v7544, %v7568
  %v7620 = vmul.f32 %v7545, %v7568
  %v7621 = vmul.f32 %v7546, %v7568
  %v7622 = vmul.f32 %v7547, %v7568
  %v7623 = vmul.f32 %v7548, %v7568
  %v7624 = vmul.f32 %v7549, %v7568
  %v7625 = vmul.f32 %v7550, %v7568
  %v7626 = vmul.f32 %v7551, %v7568
  %v7627 = vmul.f32 %v7552, %v7568
  %v7628 = vmul.f32 %v7553, %v7568
  %v7629 = vmul.f32 %v7554, %v7568
  %v7630 = vmul.f32 %v7555, %v7568
  %v7631 = vmul.f32 %v7556, %v7568
  %v7632 = vmul.f32 %v7557, %v7568
  %v7634 = vperm.slane %v7285, 0
  %v7636 = vmul.f32 %v7569, %v7634
  %v7637 = vmul.f32 %v7570, %v7634
  %v7638 = vmul.f32 %v7571, %v7634
  %v7639 = vmul.f32 %v7572, %v7634
  %v7640 = vmul.f32 %v7573, %v7634
  %v7641 = vmul.f32 %v7574, %v7634
  %v7642 = vmul.f32 %v7575, %v7634
  %v7643 = vmul.f32 %v7576, %v7634
  %v7644 = vmul.f32 %v7577, %v7634
  %v7645 = vmul.f32 %v7578, %v7634
  %v7646 = vmul.f32 %v7579, %v7634
  %v7647 = vmul.f32 %v7580, %v7634
  %v7648 = vmul.f32 %v7581, %v7634
  %v7649 = vmul.f32 %v7582, %v7634
  %v7650 = vmul.f32 %v7583, %v7634
  %v7651 = vmul.f32 %v7584, %v7634
  %v7652 = vmul.f32 %v7585, %v7634
  %v7653 = vmul.f32 %v7586, %v7634
  %v7654 = vmul.f32 %v7587, %v7634
  %v7655 = vmul.f32 %v7588, %v7634
  %v7656 = vmul.f32 %v7589, %v7634
  %v7657 = vmul.f32 %v7590, %v7634
  %v7658 = vmul.f32 %v7591, %v7634
  %v7659 = vmul.f32 %v7592, %v7634
  %v7660 = vmul.f32 %v7593, %v7634
  %v7661 = vmul.f32 %v7594, %v7634
  %v7662 = vmul.f32 %v7595, %v7634
  %v7663 = vmul.f32 %v7596, %v7634
  %v7664 = vmul.f32 %v7597, %v7634
  %v7665 = vmul.f32 %v7598, %v7634
  %v7666 = vmul.f32 %v7599, %v7634
  %v7667 = vmul.f32 %v7600, %v7634
  %v7668 = vmul.f32 %v7601, %v7634
  %v7669 = vmul.f32 %v7602, %v7634
  %v7670 = vmul.f32 %v7603, %v7634
  %v7671 = vmul.f32 %v7604, %v7634
  %v7672 = vmul.f32 %v7605, %v7634
  %v7673 = vmul.f32 %v7606, %v7634
  %v7674 = vmul.f32 %v7607, %v7634
  %v7675 = vmul.f32 %v7608, %v7634
  %v7676 = vmul.f32 %v7609, %v7634
  %v7677 = vmul.f32 %v7610, %v7634
  %v7678 = vmul.f32 %v7611, %v7634
  %v7679 = vmul.f32 %v7612, %v7634
  %v7680 = vmul.f32 %v7613, %v7634
  %v7681 = vmul.f32 %v7614, %v7634
  %v7682 = vmul.f32 %v7615, %v7634
  %v7683 = vmul.f32 %v7616, %v7634
  %v7684 = vmul.f32 %v7617, %v7634
  %v7685 = vmul.f32 %v7618, %v7634
  %v7686 = vmul.f32 %v7619, %v7634
  %v7687 = vmul.f32 %v7620, %v7634
  %v7688 = vmul.f32 %v7621, %v7634
  %v7689 = vmul.f32 %v7622, %v7634
  %v7690 = vmul.f32 %v7623, %v7634
  %v7691 = vmul.f32 %v7624, %v7634
  %v7692 = vmul.f32 %v7625, %v7634
  %v7693 = vmul.f32 %v7626, %v7634
  %v7694 = vmul.f32 %v7627, %v7634
  %v7695 = vmul.f32 %v7628, %v7634
  %v7696 = vmul.f32 %v7629, %v7634
  %v7697 = vmul.f32 %v7630, %v7634
  %v7698 = vmul.f32 %v7631, %v7634
  %v7699 = vmul.f32 %v7632, %v7634
  %v7701 = vperm.slane %v7286, 0
  %v7703 = vadd.f32 %v7636, %v7701
  %v7704 = vadd.f32 %v7637, %v7701
  %v7705 = vadd.f32 %v7638, %v7701
  %v7706 = vadd.f32 %v7639, %v7701
  %v7707 = vadd.f32 %v7640, %v7701
  %v7708 = vadd.f32 %v7641, %v7701
  %v7709 = vadd.f32 %v7642, %v7701
  %v7710 = vadd.f32 %v7643, %v7701
  %v7711 = vadd.f32 %v7644, %v7701
  %v7712 = vadd.f32 %v7645, %v7701
  %v7713 = vadd.f32 %v7646, %v7701
  %v7714 = vadd.f32 %v7647, %v7701
  %v7715 = vadd.f32 %v7648, %v7701
  %v7716 = vadd.f32 %v7649, %v7701
  %v7717 = vadd.f32 %v7650, %v7701
  %v7718 = vadd.f32 %v7651, %v7701
  %v7719 = vadd.f32 %v7652, %v7701
  %v7720 = vadd.f32 %v7653, %v7701
  %v7721 = vadd.f32 %v7654, %v7701
  %v7722 = vadd.f32 %v7655, %v7701
  %v7723 = vadd.f32 %v7656, %v7701
  %v7724 = vadd.f32 %v7657, %v7701
  %v7725 = vadd.f32 %v7658, %v7701
  %v7726 = vadd.f32 %v7659, %v7701
  %v7727 = vadd.f32 %v7660, %v7701
  %v7728 = vadd.f32 %v7661, %v7701
  %v7729 = vadd.f32 %v7662, %v7701
  %v7730 = vadd.f32 %v7663, %v7701
  %v7731 = vadd.f32 %v7664, %v7701
  %v7732 = vadd.f32 %v7665, %v7701
  %v7733 = vadd.f32 %v7666, %v7701
  %v7734 = vadd.f32 %v7667, %v7701
  %v7735 = vadd.f32 %v7668, %v7701
  %v7736 = vadd.f32 %v7669, %v7701
  %v7737 = vadd.f32 %v7670, %v7701
  %v7738 = vadd.f32 %v7671, %v7701
  %v7739 = vadd.f32 %v7672, %v7701
  %v7740 = vadd.f32 %v7673, %v7701
  %v7741 = vadd.f32 %v7674, %v7701
  %v7742 = vadd.f32 %v7675, %v7701
  %v7743 = vadd.f32 %v7676, %v7701
  %v7744 = vadd.f32 %v7677, %v7701
  %v7745 = vadd.f32 %v7678, %v7701
  %v7746 = vadd.f32 %v7679, %v7701
  %v7747 = vadd.f32 %v7680, %v7701
  %v7748 = vadd.f32 %v7681, %v7701
  %v7749 = vadd.f32 %v7682, %v7701
  %v7750 = vadd.f32 %v7683, %v7701
  %v7751 = vadd.f32 %v7684, %v7701
  %v7752 = vadd.f32 %v7685, %v7701
  %v7753 = vadd.f32 %v7686, %v7701
  %v7754 = vadd.f32 %v7687, %v7701
  %v7755 = vadd.f32 %v7688, %v7701
  %v7756 = vadd.f32 %v7689, %v7701
  %v7757 = vadd.f32 %v7690, %v7701
  %v7758 = vadd.f32 %v7691, %v7701
  %v7759 = vadd.f32 %v7692, %v7701
  %v7760 = vadd.f32 %v7693, %v7701
  %v7761 = vadd.f32 %v7694, %v7701
  %v7762 = vadd.f32 %v7695, %v7701
  %v7763 = vadd.f32 %v7696, %v7701
  %v7764 = vadd.f32 %v7697, %v7701
  %v7765 = vadd.f32 %v7698, %v7701
  %v7766 = vadd.f32 %v7699, %v7701
  %v7767 = vld [vmem:[%s9] sm:$0xf]
  %v7768 = vld [vmem:[%s9 + $0x4] sm:$0xf]
  %v7769 = vld [vmem:[%s9 + $0x8] sm:$0xf]
  %v7770 = vld [vmem:[%s9 + $0xc] sm:$0xf]
  %v7771 = vld [vmem:[%s9 + $0x10] sm:$0xf]
  %v7772 = vld [vmem:[%s9 + $0x14] sm:$0xf]
  %v7773 = vld [vmem:[%s9 + $0x18] sm:$0xf]
  %v7774 = vld [vmem:[%s9 + $0x1c] sm:$0xf]
  %v7775 = vld [vmem:[%s9 + $0x20] sm:$0xf]
  %v7776 = vld [vmem:[%s9 + $0x24] sm:$0xf]
  %v7777 = vld [vmem:[%s9 + $0x28] sm:$0xf]
  %v7778 = vld [vmem:[%s9 + $0x2c] sm:$0xf]
  %v7779 = vld [vmem:[%s9 + $0x30] sm:$0xf]
  %v7780 = vld [vmem:[%s9 + $0x34] sm:$0xf]
  %v7781 = vld [vmem:[%s9 + $0x38] sm:$0xf]
  %v7782 = vld [vmem:[%s9 + $0x3c] sm:$0xf]
  %v7783 = vld [vmem:[%s10] sm:$0x1]
  %v7785 = vperm.slane %v7783, 0
  %v7803 = vunpack.c.l.b16 %v7767
  %v7804 = vunpack.c.l.b16 %v7768
  %v7805 = vunpack.c.l.b16 %v7769
  %v7806 = vunpack.c.l.b16 %v7770
  %v7807 = vunpack.c.l.b16 %v7771
  %v7808 = vunpack.c.l.b16 %v7772
  %v7809 = vunpack.c.l.b16 %v7773
  %v7810 = vunpack.c.l.b16 %v7774
  %v7811 = vunpack.c.l.b16 %v7775
  %v7812 = vunpack.c.l.b16 %v7776
  %v7813 = vunpack.c.l.b16 %v7777
  %v7814 = vunpack.c.l.b16 %v7778
  %v7815 = vunpack.c.l.b16 %v7779
  %v7816 = vunpack.c.l.b16 %v7780
  %v7817 = vunpack.c.l.b16 %v7781
  %v7818 = vunpack.c.l.b16 %v7782
  %v7819 = vpack.c.b16 %v7804, %v7803
  %v7820 = vpack.c.b16 %v7806, %v7805
  %v7821 = vpack.c.b16 %v7808, %v7807
  %v7822 = vpack.c.b16 %v7810, %v7809
  %v7823 = vpack.c.b16 %v7812, %v7811
  %v7824 = vpack.c.b16 %v7814, %v7813
  %v7825 = vpack.c.b16 %v7816, %v7815
  %v7826 = vpack.c.b16 %v7818, %v7817
  %7835 = vmatpush.bf16.msra.mxu0 %v7826
  %7836 = vmatpush.bf16.msra.mxu0 %v7825
  %7837 = vmatpush.bf16.msra.mxu0 %v7824
  %7838 = vmatpush.bf16.msra.mxu0 %v7823
  %7839 = vmatpush.bf16.msra.mxu0 %v7822
  %7840 = vmatpush.bf16.msra.mxu0 %v7821
  %7841 = vmatpush.bf16.msra.mxu0 %v7820
  %7842 = vmatpush.bf16.msra.mxu0 %v7819
  %7843 = vmatmul.bf16.gmra.mxu0 %v250
  %v7844 = vpop.f32.mrf.mxu0
  %v7845 = vadd.f32 %v7785, %v7844
  %v7846 = vpop.f32.mrf.mxu0
  %v7847 = vadd.f32 %v7785, %v7846
  %7848 = vmatmul.bf16.gmra.mxu0 %v251
  %v7849 = vpop.f32.mrf.mxu0
  %v7850 = vadd.f32 %v7785, %v7849
  %v7851 = vpop.f32.mrf.mxu0
  %v7852 = vadd.f32 %v7785, %v7851
  %7853 = vmatmul.bf16.gmra.mxu0 %v252
  %v7854 = vpop.f32.mrf.mxu0
  %v7855 = vadd.f32 %v7785, %v7854
  %v7856 = vpop.f32.mrf.mxu0
  %v7857 = vadd.f32 %v7785, %v7856
  %7858 = vmatmul.bf16.gmra.mxu0 %v253
  %v7859 = vpop.f32.mrf.mxu0
  %v7860 = vadd.f32 %v7785, %v7859
  %v7861 = vpop.f32.mrf.mxu0
  %v7862 = vadd.f32 %v7785, %v7861
  %7863 = vmatmul.bf16.gmra.mxu0 %v254
  %v7864 = vpop.f32.mrf.mxu0
  %v7865 = vadd.f32 %v7785, %v7864
  %v7866 = vpop.f32.mrf.mxu0
  %v7867 = vadd.f32 %v7785, %v7866
  %7868 = vmatmul.bf16.gmra.mxu0 %v255
  %v7869 = vpop.f32.mrf.mxu0
  %v7870 = vadd.f32 %v7785, %v7869
  %v7871 = vpop.f32.mrf.mxu0
  %v7872 = vadd.f32 %v7785, %v7871
  %7873 = vmatmul.bf16.gmra.mxu0 %v256
  %v7874 = vpop.f32.mrf.mxu0
  %v7875 = vadd.f32 %v7785, %v7874
  %v7876 = vpop.f32.mrf.mxu0
  %v7877 = vadd.f32 %v7785, %v7876
  %7878 = vmatmul.bf16.gmra.mxu0 %v257
  %v7879 = vpop.f32.mrf.mxu0
  %v7880 = vadd.f32 %v7785, %v7879
  %v7881 = vpop.f32.mrf.mxu0
  %v7882 = vadd.f32 %v7785, %v7881
  %7883 = vmatmul.bf16.gmra.mxu0 %v258
  %v7884 = vpop.f32.mrf.mxu0
  %v7885 = vadd.f32 %v7785, %v7884
  %v7886 = vpop.f32.mrf.mxu0
  %v7887 = vadd.f32 %v7785, %v7886
  %7888 = vmatmul.bf16.gmra.mxu0 %v259
  %v7889 = vpop.f32.mrf.mxu0
  %v7890 = vadd.f32 %v7785, %v7889
  %v7891 = vpop.f32.mrf.mxu0
  %v7892 = vadd.f32 %v7785, %v7891
  %7893 = vmatmul.bf16.gmra.mxu0 %v260
  %v7894 = vpop.f32.mrf.mxu0
  %v7895 = vadd.f32 %v7785, %v7894
  %v7896 = vpop.f32.mrf.mxu0
  %v7897 = vadd.f32 %v7785, %v7896
  %7898 = vmatmul.bf16.gmra.mxu0 %v261
  %v7899 = vpop.f32.mrf.mxu0
  %v7900 = vadd.f32 %v7785, %v7899
  %v7901 = vpop.f32.mrf.mxu0
  %v7902 = vadd.f32 %v7785, %v7901
  %7903 = vmatmul.bf16.gmra.mxu0 %v262
  %v7904 = vpop.f32.mrf.mxu0
  %v7905 = vadd.f32 %v7785, %v7904
  %v7906 = vpop.f32.mrf.mxu0
  %v7907 = vadd.f32 %v7785, %v7906
  %7908 = vmatmul.bf16.gmra.mxu0 %v263
  %v7909 = vpop.f32.mrf.mxu0
  %v7910 = vadd.f32 %v7785, %v7909
  %v7911 = vpop.f32.mrf.mxu0
  %v7912 = vadd.f32 %v7785, %v7911
  %7913 = vmatmul.bf16.gmra.mxu0 %v264
  %v7914 = vpop.f32.mrf.mxu0
  %v7915 = vadd.f32 %v7785, %v7914
  %v7916 = vpop.f32.mrf.mxu0
  %v7917 = vadd.f32 %v7785, %v7916
  %7918 = vmatmul.bf16.gmra.mxu0 %v265
  %v7919 = vpop.f32.mrf.mxu0
  %v7920 = vadd.f32 %v7785, %v7919
  %v7921 = vpop.f32.mrf.mxu0
  %v7922 = vadd.f32 %v7785, %v7921
  %7923 = vmatmul.bf16.gmra.mxu0 %v266
  %v7924 = vpop.f32.mrf.mxu0
  %v7925 = vadd.f32 %v7785, %v7924
  %v7926 = vpop.f32.mrf.mxu0
  %v7927 = vadd.f32 %v7785, %v7926
  %7928 = vmatmul.bf16.gmra.mxu0 %v267
  %v7929 = vpop.f32.mrf.mxu0
  %v7930 = vadd.f32 %v7785, %v7929
  %v7931 = vpop.f32.mrf.mxu0
  %v7932 = vadd.f32 %v7785, %v7931
  %7933 = vmatmul.bf16.gmra.mxu0 %v268
  %v7934 = vpop.f32.mrf.mxu0
  %v7935 = vadd.f32 %v7785, %v7934
  %v7936 = vpop.f32.mrf.mxu0
  %v7937 = vadd.f32 %v7785, %v7936
  %7938 = vmatmul.bf16.gmra.mxu0 %v269
  %v7939 = vpop.f32.mrf.mxu0
  %v7940 = vadd.f32 %v7785, %v7939
  %v7941 = vpop.f32.mrf.mxu0
  %v7942 = vadd.f32 %v7785, %v7941
  %7943 = vmatmul.bf16.gmra.mxu0 %v270
  %v7944 = vpop.f32.mrf.mxu0
  %v7945 = vadd.f32 %v7785, %v7944
  %v7946 = vpop.f32.mrf.mxu0
  %v7947 = vadd.f32 %v7785, %v7946
  %7948 = vmatmul.bf16.gmra.mxu0 %v271
  %v7949 = vpop.f32.mrf.mxu0
  %v7950 = vadd.f32 %v7785, %v7949
  %v7951 = vpop.f32.mrf.mxu0
  %v7952 = vadd.f32 %v7785, %v7951
  %7953 = vmatmul.bf16.gmra.mxu0 %v272
  %v7954 = vpop.f32.mrf.mxu0
  %v7955 = vadd.f32 %v7785, %v7954
  %v7956 = vpop.f32.mrf.mxu0
  %v7957 = vadd.f32 %v7785, %v7956
  %7958 = vmatmul.bf16.gmra.mxu0 %v273
  %v7959 = vpop.f32.mrf.mxu0
  %v7960 = vadd.f32 %v7785, %v7959
  %v7961 = vpop.f32.mrf.mxu0
  %v7962 = vadd.f32 %v7785, %v7961
  %7963 = vmatmul.bf16.gmra.mxu0 %v274
  %v7964 = vpop.f32.mrf.mxu0
  %v7965 = vadd.f32 %v7785, %v7964
  %v7966 = vpop.f32.mrf.mxu0
  %v7967 = vadd.f32 %v7785, %v7966
  %7968 = vmatmul.bf16.gmra.mxu0 %v275
  %v7969 = vpop.f32.mrf.mxu0
  %v7970 = vadd.f32 %v7785, %v7969
  %v7971 = vpop.f32.mrf.mxu0
  %v7972 = vadd.f32 %v7785, %v7971
  %7973 = vmatmul.bf16.gmra.mxu0 %v276
  %v7974 = vpop.f32.mrf.mxu0
  %v7975 = vadd.f32 %v7785, %v7974
  %v7976 = vpop.f32.mrf.mxu0
  %v7977 = vadd.f32 %v7785, %v7976
  %7978 = vmatmul.bf16.gmra.mxu0 %v277
  %v7979 = vpop.f32.mrf.mxu0
  %v7980 = vadd.f32 %v7785, %v7979
  %v7981 = vpop.f32.mrf.mxu0
  %v7982 = vadd.f32 %v7785, %v7981
  %7983 = vmatmul.bf16.gmra.mxu0 %v278
  %v7984 = vpop.f32.mrf.mxu0
  %v7985 = vadd.f32 %v7785, %v7984
  %v7986 = vpop.f32.mrf.mxu0
  %v7987 = vadd.f32 %v7785, %v7986
  %7988 = vmatmul.bf16.gmra.mxu0 %v279
  %v7989 = vpop.f32.mrf.mxu0
  %v7990 = vadd.f32 %v7785, %v7989
  %v7991 = vpop.f32.mrf.mxu0
  %v7992 = vadd.f32 %v7785, %v7991
  %7993 = vmatmul.bf16.gmra.mxu0 %v280
  %v7994 = vpop.f32.mrf.mxu0
  %v7995 = vadd.f32 %v7785, %v7994
  %v7996 = vpop.f32.mrf.mxu0
  %v7997 = vadd.f32 %v7785, %v7996
  %7998 = vmatmul.bf16.gmra.mxu0 %v281
  %v7999 = vpop.f32.mrf.mxu0
  %v8000 = vadd.f32 %v7785, %v7999
  %v8001 = vpop.f32.mrf.mxu0
  %v8002 = vadd.f32 %v7785, %v8001
  %8003 = vdwg.mxu0
  %v8004 = vadd.f32 %v7703, %v7845
  %v8005 = vadd.f32 %v7704, %v7847
  %v8006 = vadd.f32 %v7705, %v7850
  %v8007 = vadd.f32 %v7706, %v7852
  %v8008 = vadd.f32 %v7707, %v7855
  %v8009 = vadd.f32 %v7708, %v7857
  %v8010 = vadd.f32 %v7709, %v7860
  %v8011 = vadd.f32 %v7710, %v7862
  %v8012 = vadd.f32 %v7711, %v7865
  %v8013 = vadd.f32 %v7712, %v7867
  %v8014 = vadd.f32 %v7713, %v7870
  %v8015 = vadd.f32 %v7714, %v7872
  %v8016 = vadd.f32 %v7715, %v7875
  %v8017 = vadd.f32 %v7716, %v7877
  %v8018 = vadd.f32 %v7717, %v7880
  %v8019 = vadd.f32 %v7718, %v7882
  %v8020 = vadd.f32 %v7719, %v7885
  %v8021 = vadd.f32 %v7720, %v7887
  %v8022 = vadd.f32 %v7721, %v7890
  %v8023 = vadd.f32 %v7722, %v7892
  %v8024 = vadd.f32 %v7723, %v7895
  %v8025 = vadd.f32 %v7724, %v7897
  %v8026 = vadd.f32 %v7725, %v7900
  %v8027 = vadd.f32 %v7726, %v7902
  %v8028 = vadd.f32 %v7727, %v7905
  %v8029 = vadd.f32 %v7728, %v7907
  %v8030 = vadd.f32 %v7729, %v7910
  %v8031 = vadd.f32 %v7730, %v7912
  %v8032 = vadd.f32 %v7731, %v7915
  %v8033 = vadd.f32 %v7732, %v7917
  %v8034 = vadd.f32 %v7733, %v7920
  %v8035 = vadd.f32 %v7734, %v7922
  %v8036 = vadd.f32 %v7735, %v7925
  %v8037 = vadd.f32 %v7736, %v7927
  %v8038 = vadd.f32 %v7737, %v7930
  %v8039 = vadd.f32 %v7738, %v7932
  %v8040 = vadd.f32 %v7739, %v7935
  %v8041 = vadd.f32 %v7740, %v7937
  %v8042 = vadd.f32 %v7741, %v7940
  %v8043 = vadd.f32 %v7742, %v7942
  %v8044 = vadd.f32 %v7743, %v7945
  %v8045 = vadd.f32 %v7744, %v7947
  %v8046 = vadd.f32 %v7745, %v7950
  %v8047 = vadd.f32 %v7746, %v7952
  %v8048 = vadd.f32 %v7747, %v7955
  %v8049 = vadd.f32 %v7748, %v7957
  %v8050 = vadd.f32 %v7749, %v7960
  %v8051 = vadd.f32 %v7750, %v7962
  %v8052 = vadd.f32 %v7751, %v7965
  %v8053 = vadd.f32 %v7752, %v7967
  %v8054 = vadd.f32 %v7753, %v7970
  %v8055 = vadd.f32 %v7754, %v7972
  %v8056 = vadd.f32 %v7755, %v7975
  %v8057 = vadd.f32 %v7756, %v7977
  %v8058 = vadd.f32 %v7757, %v7980
  %v8059 = vadd.f32 %v7758, %v7982
  %v8060 = vadd.f32 %v7759, %v7985
  %v8061 = vadd.f32 %v7760, %v7987
  %v8062 = vadd.f32 %v7761, %v7990
  %v8063 = vadd.f32 %v7762, %v7992
  %v8064 = vadd.f32 %v7763, %v7995
  %v8065 = vadd.f32 %v7764, %v7997
  %v8066 = vadd.f32 %v7765, %v8000
  %v8067 = vadd.f32 %v7766, %v8002
  %v8068 = vmax.f32 %v8004, 0.0
  %v8069 = vmax.f32 %v8005, 0.0
  %v8070 = vmax.f32 %v8006, 0.0
  %v8071 = vmax.f32 %v8007, 0.0
  %v8072 = vmax.f32 %v8008, 0.0
  %v8073 = vmax.f32 %v8009, 0.0
  %v8074 = vmax.f32 %v8010, 0.0
  %v8075 = vmax.f32 %v8011, 0.0
  %v8076 = vmax.f32 %v8012, 0.0
  %v8077 = vmax.f32 %v8013, 0.0
  %v8078 = vmax.f32 %v8014, 0.0
  %v8079 = vmax.f32 %v8015, 0.0
  %v8080 = vmax.f32 %v8016, 0.0
  %v8081 = vmax.f32 %v8017, 0.0
  %v8082 = vmax.f32 %v8018, 0.0
  %v8083 = vmax.f32 %v8019, 0.0
  %v8084 = vmax.f32 %v8020, 0.0
  %v8085 = vmax.f32 %v8021, 0.0
  %v8086 = vmax.f32 %v8022, 0.0
  %v8087 = vmax.f32 %v8023, 0.0
  %v8088 = vmax.f32 %v8024, 0.0
  %v8089 = vmax.f32 %v8025, 0.0
  %v8090 = vmax.f32 %v8026, 0.0
  %v8091 = vmax.f32 %v8027, 0.0
  %v8092 = vmax.f32 %v8028, 0.0
  %v8093 = vmax.f32 %v8029, 0.0
  %v8094 = vmax.f32 %v8030, 0.0
  %v8095 = vmax.f32 %v8031, 0.0
  %v8096 = vmax.f32 %v8032, 0.0
  %v8097 = vmax.f32 %v8033, 0.0
  %v8098 = vmax.f32 %v8034, 0.0
  %v8099 = vmax.f32 %v8035, 0.0
  %v8100 = vmax.f32 %v8036, 0.0
  %v8101 = vmax.f32 %v8037, 0.0
  %v8102 = vmax.f32 %v8038, 0.0
  %v8103 = vmax.f32 %v8039, 0.0
  %v8104 = vmax.f32 %v8040, 0.0
  %v8105 = vmax.f32 %v8041, 0.0
  %v8106 = vmax.f32 %v8042, 0.0
  %v8107 = vmax.f32 %v8043, 0.0
  %v8108 = vmax.f32 %v8044, 0.0
  %v8109 = vmax.f32 %v8045, 0.0
  %v8110 = vmax.f32 %v8046, 0.0
  %v8111 = vmax.f32 %v8047, 0.0
  %v8112 = vmax.f32 %v8048, 0.0
  %v8113 = vmax.f32 %v8049, 0.0
  %v8114 = vmax.f32 %v8050, 0.0
  %v8115 = vmax.f32 %v8051, 0.0
  %v8116 = vmax.f32 %v8052, 0.0
  %v8117 = vmax.f32 %v8053, 0.0
  %v8118 = vmax.f32 %v8054, 0.0
  %v8119 = vmax.f32 %v8055, 0.0
  %v8120 = vmax.f32 %v8056, 0.0
  %v8121 = vmax.f32 %v8057, 0.0
  %v8122 = vmax.f32 %v8058, 0.0
  %v8123 = vmax.f32 %v8059, 0.0
  %v8124 = vmax.f32 %v8060, 0.0
  %v8125 = vmax.f32 %v8061, 0.0
  %v8126 = vmax.f32 %v8062, 0.0
  %v8127 = vmax.f32 %v8063, 0.0
  %v8128 = vmax.f32 %v8064, 0.0
  %v8129 = vmax.f32 %v8065, 0.0
  %v8130 = vmax.f32 %v8066, 0.0
  %v8131 = vmax.f32 %v8067, 0.0
  %8132 = vst [vmem:[%s11] sm:$0xff] %v8068
  %8133 = vst [vmem:[%s11 + $0x8] sm:$0xff] %v8069
  %8134 = vst [vmem:[%s11 + $0x10] sm:$0xff] %v8070
  %8135 = vst [vmem:[%s11 + $0x18] sm:$0xff] %v8071
  %8136 = vst [vmem:[%s11 + $0x20] sm:$0xff] %v8072
  %8137 = vst [vmem:[%s11 + $0x28] sm:$0xff] %v8073
  %8138 = vst [vmem:[%s11 + $0x30] sm:$0xff] %v8074
  %8139 = vst [vmem:[%s11 + $0x38] sm:$0xff] %v8075
  %8140 = vst [vmem:[%s11 + $0x40] sm:$0xff] %v8076
  %8141 = vst [vmem:[%s11 + $0x48] sm:$0xff] %v8077
  %8142 = vst [vmem:[%s11 + $0x50] sm:$0xff] %v8078
  %8143 = vst [vmem:[%s11 + $0x58] sm:$0xff] %v8079
  %8144 = vst [vmem:[%s11 + $0x60] sm:$0xff] %v8080
  %8145 = vst [vmem:[%s11 + $0x68] sm:$0xff] %v8081
  %8146 = vst [vmem:[%s11 + $0x70] sm:$0xff] %v8082
  %8147 = vst [vmem:[%s11 + $0x78] sm:$0xff] %v8083
  %8148 = vst [vmem:[%s11 + $0x80] sm:$0xff] %v8084
  %8149 = vst [vmem:[%s11 + $0x88] sm:$0xff] %v8085
  %8150 = vst [vmem:[%s11 + $0x90] sm:$0xff] %v8086
  %8151 = vst [vmem:[%s11 + $0x98] sm:$0xff] %v8087
  %8152 = vst [vmem:[%s11 + $0xa0] sm:$0xff] %v8088
  %8153 = vst [vmem:[%s11 + $0xa8] sm:$0xff] %v8089
  %8154 = vst [vmem:[%s11 + $0xb0] sm:$0xff] %v8090
  %8155 = vst [vmem:[%s11 + $0xb8] sm:$0xff] %v8091
  %8156 = vst [vmem:[%s11 + $0xc0] sm:$0xff] %v8092
  %8157 = vst [vmem:[%s11 + $0xc8] sm:$0xff] %v8093
  %8158 = vst [vmem:[%s11 + $0xd0] sm:$0xff] %v8094
  %8159 = vst [vmem:[%s11 + $0xd8] sm:$0xff] %v8095
  %8160 = vst [vmem:[%s11 + $0xe0] sm:$0xff] %v8096
  %8161 = vst [vmem:[%s11 + $0xe8] sm:$0xff] %v8097
  %8162 = vst [vmem:[%s11 + $0xf0] sm:$0xff] %v8098
  %8163 = vst [vmem:[%s11 + $0xf8] sm:$0xff] %v8099
  %8164 = vst [vmem:[%s11 + $0x100] sm:$0xff] %v8100
  %8165 = vst [vmem:[%s11 + $0x108] sm:$0xff] %v8101
  %8166 = vst [vmem:[%s11 + $0x110] sm:$0xff] %v8102
  %8167 = vst [vmem:[%s11 + $0x118] sm:$0xff] %v8103
  %8168 = vst [vmem:[%s11 + $0x120] sm:$0xff] %v8104
  %8169 = vst [vmem:[%s11 + $0x128] sm:$0xff] %v8105
  %8170 = vst [vmem:[%s11 + $0x130] sm:$0xff] %v8106
  %8171 = vst [vmem:[%s11 + $0x138] sm:$0xff] %v8107
  %8172 = vst [vmem:[%s11 + $0x140] sm:$0xff] %v8108
  %8173 = vst [vmem:[%s11 + $0x148] sm:$0xff] %v8109
  %8174 = vst [vmem:[%s11 + $0x150] sm:$0xff] %v8110
  %8175 = vst [vmem:[%s11 + $0x158] sm:$0xff] %v8111
  %8176 = vst [vmem:[%s11 + $0x160] sm:$0xff] %v8112
  %8177 = vst [vmem:[%s11 + $0x168] sm:$0xff] %v8113
  %8178 = vst [vmem:[%s11 + $0x170] sm:$0xff] %v8114
  %8179 = vst [vmem:[%s11 + $0x178] sm:$0xff] %v8115
  %8180 = vst [vmem:[%s11 + $0x180] sm:$0xff] %v8116
  %8181 = vst [vmem:[%s11 + $0x188] sm:$0xff] %v8117
  %8182 = vst [vmem:[%s11 + $0x190] sm:$0xff] %v8118
  %8183 = vst [vmem:[%s11 + $0x198] sm:$0xff] %v8119
  %8184 = vst [vmem:[%s11 + $0x1a0] sm:$0xff] %v8120
  %8185 = vst [vmem:[%s11 + $0x1a8] sm:$0xff] %v8121
  %8186 = vst [vmem:[%s11 + $0x1b0] sm:$0xff] %v8122
  %8187 = vst [vmem:[%s11 + $0x1b8] sm:$0xff] %v8123
  %8188 = vst [vmem:[%s11 + $0x1c0] sm:$0xff] %v8124
  %8189 = vst [vmem:[%s11 + $0x1c8] sm:$0xff] %v8125
  %8190 = vst [vmem:[%s11 + $0x1d0] sm:$0xff] %v8126
  %8191 = vst [vmem:[%s11 + $0x1d8] sm:$0xff] %v8127
  %8192 = vst [vmem:[%s11 + $0x1e0] sm:$0xff] %v8128
  %8193 = vst [vmem:[%s11 + $0x1e8] sm:$0xff] %v8129
  %8194 = vst [vmem:[%s11 + $0x1f0] sm:$0xff] %v8130
  %8195 = vst [vmem:[%s11 + $0x1f8] sm:$0xff] %v8131
  // Predicated region
  $region46: #{bottleneck_forward.1} parent=0 // pred_check
    _
  $region47: #{bottleneck_forward.1} parent=0 // pred_check_branch
    %8197 = sbr.rel (0) target = $region49
  $region48: #{bottleneck_forward.1} parent=0 // pred_region
    _
  $region49: #{bottleneck_forward.1} parent=0 // pred_fallthru
    _
  // Predicated region
  $region50: #{bottleneck_forward.1} parent=0 // pred_check
    _
  $region51: #{bottleneck_forward.1} parent=0 // pred_check_branch
    %8199 = sbr.rel (0) target = $region53
  $region52: #{bottleneck_forward.1} parent=0 // pred_region
    _
  $region53: #{bottleneck_forward.1} parent=0 // pred_fallthru
    _

</llo_original>
